<compile_context>
chip_gen: v6e
topology: v6e:2x2x1
jax: 0.10.0
libtpu: 0.0.40
codegen_flags: <defaults>
</compile_context>

<pallas_src>
import jax
import jax.numpy as jnp
from jax.experimental import pallas as pl
from jax.experimental.pallas import tpu as pltpu

GRID_SIZE = 5
SPLINE_ORDER = 3
N_BASIS = GRID_SIZE + SPLINE_ORDER               # 8 basis functions per edge
N_GRID_PTS = GRID_SIZE + 2 * SPLINE_ORDER + 1    # 12 extended grid points
GRID_H = 2.0 / GRID_SIZE                         # uniform knot spacing (grid_range=[-1,1])
KNOTS = tuple((j - SPLINE_ORDER) * GRID_H - 1.0 for j in range(N_GRID_PTS))  # 12 floats

LANE = 128                                       # vreg lane width
SUB = 8                                          # vreg sublane height


def _round_up(x, m):
    return ((x + m - 1) // m) * m


# ----------------------------------------------------------------------------
# In-kernel helpers
# ----------------------------------------------------------------------------
def _kan_feature_blocks(h):
    """h: (8, 128) f32 chunk -> [SiLU(h), B_0(h), ..., B_7(h)] (9 chunks, same shape).

    Knots are compile-time Python constants (uniform grid constant-folded, reciprocal
    multiplies instead of per-interval divides); degree-0 bases reuse the 12 comparisons.
    """
    silu = h * jax.nn.sigmoid(h)                                   # exp -> EUP slot
    ge = [h >= kn for kn in KNOTS]
    bases = [(ge[j] & (~ge[j + 1])).astype(jnp.float32) for j in range(N_GRID_PTS - 1)]
    ts = [h - kn for kn in KNOTS]
    for k in range(1, SPLINE_ORDER + 1):
        inv = 1.0 / (k * GRID_H)
        bases = [(ts[j] * bases[j] - ts[j + k + 1] * bases[j + 1]) * inv
                 for j in range(len(bases) - 1)]
    return [silu] + bases                                          # len == 9


def _build_features(h, feat_ref):
    """h: (F, TB) f32 value.  Writes [SiLU(h); B_0..B_7] into feat_ref rows [0, 9F).

    Processed one (8, 128) vreg block at a time so the Cox-de Boor live set never
    exceeds ~35 vregs (no spills), with direct aligned stores into the VMEM scratch
    (no concatenate / no extra copy of the feature matrix).
    """
    F, tb = h.shape
    for c0 in range(0, F, SUB):
        for l0 in range(0, tb, LANE):
            blocks = _kan_feature_blocks(h[c0:c0 + SUB, l0:l0 + LANE])
            for j, blk in enumerate(blocks):
                feat_ref[j * F + c0: j * F + c0 + SUB, l0:l0 + LANE] = blk


# ----------------------------------------------------------------------------
# Fused Pallas kernel: entire actor-critic forward pass (transposed layout:
# features on sublanes, batch on lanes).
#   x_ref : (in_pad, TB)    transposed, zero-padded observations
#   w1    : (16,  9*in_pad) fc1 layer 0
#   w2    : (32,  9*16)     fc1 layer 1
#   w3    : (32,  9*32)     merged first layers of pi/v heads (rows 0:16 pi, 16:32 v)
#   w4    : (8,   9*32)     block-diagonal merged second layers (rows 0:n_actions pi,
#                           row n_actions = v, remaining rows zero)
#   o_ref : (8, TB)         rows 0:n_actions = pi^T, row n_actions = v^T
#   feat  : (9*max(in_pad,32), TB) VMEM scratch for the per-layer feature matrix
# ----------------------------------------------------------------------------
def _fused_kernel(x_ref, w1_ref, w2_ref, w3_ref, w4_ref, o_ref, feat_ref):
    # Stage 1: in_pad -> 16
    _build_features(x_ref[...], feat_ref)
    h = jnp.dot(w1_ref[...], feat_ref[0:w1_ref.shape[1], :],
                preferred_element_type=jnp.float32)                # (16, TB)
    # Stage 2: 16 -> 32
    _build_features(h, feat_ref)
    h = jnp.dot(w2_ref[...], feat_ref[0:w2_ref.shape[1], :],
                preferred_element_type=jnp.float32)                # (32, TB)
    # Stage 3: 32 -> 32 (= [pi_hidden ; v_hidden], heads merged)
    _build_features(h, feat_ref)
    h = jnp.dot(w3_ref[...], feat_ref[0:w3_ref.shape[1], :],
                preferred_element_type=jnp.float32)                # (32, TB)
    # Stage 4: 32 -> 8 (block-diagonal: pi rows + v row + zero pad rows)
    _build_features(h, feat_ref)
    o = jnp.dot(w4_ref[...], feat_ref[0:w4_ref.shape[1], :],
                preferred_element_type=jnp.float32)                # (8, TB)
    o_ref[...] = o.astype(o_ref.dtype)


@jax.jit
def _kan_actor_critic_forward(x, w1, w2, w3, w4):
    """x: (B, input_dims) -> (out_pad, B) packed [pi ; v ; zeros] (transposed)."""
    b, d_in = x.shape
    in_pad = w1.shape[1] // (N_BASIS + 1)
    out_pad = w4.shape[0]

    # Batch tile: big enough to amortize per-step pipeline overhead, small enough to
    # give >= 2 grid steps on mid-size batches (v7x megacore sharding), capped at 512.
    bp128 = _round_up(b, LANE)
    if bp128 <= LANE:
        tb = LANE
    else:
        tb = max(LANE, min(4 * LANE, _round_up(bp128 // 2, LANE)))
    bp = _round_up(b, tb)
    feat_rows = (N_BASIS + 1) * max(in_pad, 32)

    # Transposed, zero-padded layout (tiny (B, d_in) array; cheap host-side op).
    xt = jnp.zeros((in_pad, bp), jnp.float32).at[:d_in, :b].set(x.T)

    n_weight_bytes = 4 * (w1.size + w2.size + w3.size + w4.size)
    cost = pl.CostEstimate(
        flops=2 * (16 * w1.shape[1] + 32 * w2.shape[1]
                   + 32 * w3.shape[1] + out_pad * w4.shape[1]) * bp,
        transcendentals=(in_pad + 16 + 32 + 32) * bp,
        bytes_accessed=4 * (in_pad + out_pad) * bp + n_weight_bytes,
    )

    out_t = pl.pallas_call(
        _fused_kernel,
        out_shape=jax.ShapeDtypeStruct((out_pad, bp), jnp.float32),
        grid=(bp // tb,),
        in_specs=[
            pl.BlockSpec((in_pad, tb), lambda i: (0, i)),
            pl.BlockSpec(w1.shape, lambda i: (0, 0)),
            pl.BlockSpec(w2.shape, lambda i: (0, 0)),
            pl.BlockSpec(w3.shape, lambda i: (0, 0)),
            pl.BlockSpec(w4.shape, lambda i: (0, 0)),
        ],
        out_specs=pl.BlockSpec((out_pad, tb), lambda i: (0, i)),
        scratch_shapes=[pltpu.VMEM((feat_rows, tb), jnp.float32)],
        compiler_params=pltpu.CompilerParams(
            dimension_semantics=("parallel",)),
        cost_estimate=cost,
    )(xt, w1, w2, w3, w4)

    return out_t[:, :b]                                             # (out_pad, B)


# ----------------------------------------------------------------------------
# Host-side parameter construction / packing
# ----------------------------------------------------------------------------
def init_kan_linear_raw(key, in_f, out_f):
    """Raw efficient-kan style parameters (synthetic deterministic init)."""
    k1, k2, k3 = jax.random.split(key, 3)
    bound = (1.0 / in_f) ** 0.5
    base_w = jax.random.uniform(k1, (out_f, in_f), jnp.float32, -bound, bound)
    spline_w = 0.1 * jax.random.normal(k2, (out_f, in_f, N_BASIS), jnp.float32)
    spline_scaler = jax.random.uniform(k3, (out_f, in_f), jnp.float32, -bound, bound)
    return base_w, spline_w, spline_scaler


def pack_kan_weights(raw, in_pad=None):
    """(out, 9*in_pad) = [W_base | scaled_spline_0 | ... | scaled_spline_7]."""
    base_w, spline_w, spline_scaler = raw
    out_f, in_f = base_w.shape
    if in_pad is None:
        in_pad = in_f
    scaled = spline_w * spline_scaler[..., None]                # (out, in, 8)
    blocks = [base_w] + [scaled[:, :, j] for j in range(N_BASIS)]
    if in_pad != in_f:
        blocks = [jnp.pad(b, ((0, 0), (0, in_pad - in_f))) for b in blocks]
    return jnp.concatenate(blocks, axis=1).astype(jnp.float32)


def pack_head_weights(raw_pi, raw_v, out_rows=8):
    """Block-diagonal merge of the two head output layers (16->n_actions and 16->1)."""
    wp = pack_kan_weights(raw_pi)                               # (n_pi, 9*16)
    wv = pack_kan_weights(raw_v)                                # (n_v,  9*16)
    n_pi, n_v = wp.shape[0], wv.shape[0]
    in_h = raw_pi[0].shape[1]                                   # 16
    blocks = []
    for j in range(N_BASIS + 1):
        pj = wp[:, j * in_h:(j + 1) * in_h]
        vj = wv[:, j * in_h:(j + 1) * in_h]
        top = jnp.concatenate([pj, jnp.zeros((n_pi, in_h), jnp.float32)], axis=1)
        bot = jnp.concatenate([jnp.zeros((n_v, in_h), jnp.float32), vj], axis=1)
        blocks.append(jnp.concatenate([top, bot], axis=0))      # (n_pi+n_v, 32)
    w = jnp.concatenate(blocks, axis=1)                         # (n_pi+n_v, 9*32)
    pad = out_rows - (n_pi + n_v)
    if pad > 0:
        w = jnp.concatenate([w, jnp.zeros((pad, w.shape[1]), jnp.float32)], axis=0)
    return w


class KANActorCriticPallas:
    def __init__(self, key, input_dims=4, fc1_dims=16, fc2_dims=32, n_actions=2):
        # Mirrors the PyTorch module: fc1 = KANLayer([input_dims, 16, 32]),
        # pi = KANLayer([32, 16, n_actions]), v = KANLayer([32, 16, 1]).
        del fc1_dims, fc2_dims  # the original module hard-codes 16/32 in the KANLayers
        ks = jax.random.split(key, 6)
        self.input_dims = input_dims
        self.n_actions = n_actions

        self.raw_fc1_0 = init_kan_linear_raw(ks[0], input_dims, 16)
        self.raw_fc1_1 = init_kan_linear_raw(ks[1], 16, 32)
        self.raw_pi_0 = init_kan_linear_raw(ks[2], 32, 16)
        self.raw_pi_1 = init_kan_linear_raw(ks[3], 16, n_actions)
        self.raw_v_0 = init_kan_linear_raw(ks[4], 32, 16)
        self.raw_v_1 = init_kan_linear_raw(ks[5], 16, 1)

        self.in_pad = _round_up(input_dims, 8)
        self.out_pad = _round_up(n_actions + 1, 8)

        self.w1 = pack_kan_weights(self.raw_fc1_0, in_pad=self.in_pad)      # (16, 9*in_pad)
        self.w2 = pack_kan_weights(self.raw_fc1_1)                          # (32, 144)
        self.w3 = jnp.concatenate([pack_kan_weights(self.raw_pi_0),
                                   pack_kan_weights(self.raw_v_0)], axis=0)  # (32, 288)
        self.w4 = pack_head_weights(self.raw_pi_1, self.raw_v_1,
                                    out_rows=self.out_pad)                   # (8, 288)

    def __call__(self, observation):
        x = jnp.asarray(observation, jnp.float32)
        out_t = _kan_actor_critic_forward(x, self.w1, self.w2, self.w3, self.w4)
        pi = out_t[: self.n_actions, :].T                       # (B, n_actions)
        v = out_t[self.n_actions: self.n_actions + 1, :].T      # (B, 1)
        return pi, v


# ----------------------------------------------------------------------------
# Pure-JAX reference (mirrors efficient-kan KANLinear.forward) for validation
# ----------------------------------------------------------------------------
def _kan_linear_ref(x, raw):
    base_w, spline_w, spline_scaler = raw
    in_f = base_w.shape[1]
    grid = jnp.tile(jnp.asarray(KNOTS, jnp.float32)[None, :], (in_f, 1))     # (in, 12)
    base = (x * jax.nn.sigmoid(x)) @ base_w.T
    xk = x[:, :, None]
    bases = ((xk >= grid[None, :, :-1]) & (xk < grid[None, :, 1:])).astype(x.dtype)
    for k in range(1, SPLINE_ORDER + 1):
        bases = ((xk - grid[None, :, :-(k + 1)])
                 / (grid[None, :, k:-1] - grid[None, :, :-(k + 1)]) * bases[:, :, :-1]
                 + (grid[None, :, k + 1:] - xk)
                 / (grid[None, :, k + 1:] - grid[None, :, 1:-k]) * bases[:, :, 1:])
    scaled = spline_w * spline_scaler[..., None]                             # (out, in, 8)
    spline = jnp.einsum('big,oig->bo', bases, scaled)
    return base + spline


def _forward_ref(net, observation):
    x = jnp.asarray(observation, jnp.float32)
    h = _kan_linear_ref(x, net.raw_fc1_0)
    h = _kan_linear_ref(h, net.raw_fc1_1)
    pi = _kan_linear_ref(_kan_linear_ref(h, net.raw_pi_0), net.raw_pi_1)
    v = _kan_linear_ref(_kan_linear_ref(h, net.raw_v_0), net.raw_v_1)
    return pi, v


if __name__ == "__main__":
    key = jax.random.PRNGKey(0)
    k_param, k_obs = jax.random.split(key)

    batch, input_dims, n_actions = 8, 4, 2
    observation = jax.random.uniform(k_obs, (batch, input_dims), jnp.float32,
                                     minval=-1.0, maxval=1.0)

    net = KANActorCriticPallas(k_param, input_dims=input_dims, n_actions=n_actions)

    pi, v = net(observation)
    jax.block_until_ready((pi, v))

    pi_ref, v_ref = _forward_ref(net, observation)
    assert pi.shape == (batch, n_actions) and v.shape == (batch, 1)
    assert jnp.allclose(pi, pi_ref, atol=1e-3, rtol=1e-3)
    assert jnp.allclose(v, v_ref, atol=1e-3, rtol=1e-3)

    print("KERNEL_OK")
</pallas_src>

<mosaic_0001>
module attributes {stable_mosaic.version = 11 : i64} {
  func.func @_fused_kernel(%arg0: i32, %arg1: memref<8x128xf32, #tpu.memory_space<vmem>>, %arg2: memref<16x72xf32, #tpu.memory_space<vmem>>, %arg3: memref<32x144xf32, #tpu.memory_space<vmem>>, %arg4: memref<32x288xf32, #tpu.memory_space<vmem>>, %arg5: memref<8x288xf32, #tpu.memory_space<vmem>>, %arg6: memref<8x128xf32, #tpu.memory_space<vmem>>, %arg7: memref<288x128xf32, #tpu.memory_space<vmem>>) attributes {dimension_semantics = [#tpu.dimension_semantics<parallel>], iteration_bounds = array<i64: 1>, scalar_prefetch = 0 : i64, scratch_operands = 1 : i64, tpu.core_type = #tpu.core_type<tc>, window_params = [{transform_indices = @transform_0, window_bounds = array<i64: 8, 128>}, {pipeline_mode = #tpu.pipeline_mode<synchronous>, transform_indices = @transform_1, window_bounds = array<i64: 16, 72>}, {pipeline_mode = #tpu.pipeline_mode<synchronous>, transform_indices = @transform_2, window_bounds = array<i64: 32, 144>}, {pipeline_mode = #tpu.pipeline_mode<synchronous>, transform_indices = @transform_3, window_bounds = array<i64: 32, 288>}, {pipeline_mode = #tpu.pipeline_mode<synchronous>, transform_indices = @transform_4, window_bounds = array<i64: 8, 288>}, {transform_indices = @transform_5, window_bounds = array<i64: 8, 128>}]} {
    %c0 = arith.constant 0 : index
    %c0_0 = arith.constant 0 : index
    %0 = vector.load %arg1[%c0, %c0_0] : memref<8x128xf32, #tpu.memory_space<vmem>>, vector<8x128xf32>
    %1 = arith.negf %0 : vector<8x128xf32>
    %2 = math.exp %1 : vector<8x128xf32>
    %cst = arith.constant 1.000000e+00 : f32
    %3 = vector.broadcast %cst : f32 to vector<8x128xf32>
    %4 = arith.addf %3, %2 : vector<8x128xf32>
    %5 = arith.divf %3, %4 : vector<8x128xf32>
    %6 = arith.mulf %0, %5 : vector<8x128xf32>
    %cst_1 = arith.constant -2.200000e+00 : f32
    %7 = vector.broadcast %cst_1 : f32 to vector<8x128xf32>
    %8 = arith.cmpf oge, %0, %7 : vector<8x128xf32>
    %cst_2 = arith.constant -1.800000e+00 : f32
    %9 = vector.broadcast %cst_2 : f32 to vector<8x128xf32>
    %10 = arith.cmpf oge, %0, %9 : vector<8x128xf32>
    %cst_3 = arith.constant -1.400000e+00 : f32
    %11 = vector.broadcast %cst_3 : f32 to vector<8x128xf32>
    %12 = arith.cmpf oge, %0, %11 : vector<8x128xf32>
    %cst_4 = arith.constant -1.000000e+00 : f32
    %13 = vector.broadcast %cst_4 : f32 to vector<8x128xf32>
    %14 = arith.cmpf oge, %0, %13 : vector<8x128xf32>
    %cst_5 = arith.constant -6.000000e-01 : f32
    %15 = vector.broadcast %cst_5 : f32 to vector<8x128xf32>
    %16 = arith.cmpf oge, %0, %15 : vector<8x128xf32>
    %cst_6 = arith.constant -2.000000e-01 : f32
    %17 = vector.broadcast %cst_6 : f32 to vector<8x128xf32>
    %18 = arith.cmpf oge, %0, %17 : vector<8x128xf32>
    %cst_7 = arith.constant 2.000000e-01 : f32
    %19 = vector.broadcast %cst_7 : f32 to vector<8x128xf32>
    %20 = arith.cmpf oge, %0, %19 : vector<8x128xf32>
    %cst_8 = arith.constant 6.000000e-01 : f32
    %21 = vector.broadcast %cst_8 : f32 to vector<8x128xf32>
    %22 = arith.cmpf oge, %0, %21 : vector<8x128xf32>
    %cst_9 = arith.constant 1.000000e+00 : f32
    %23 = vector.broadcast %cst_9 : f32 to vector<8x128xf32>
    %24 = arith.cmpf oge, %0, %23 : vector<8x128xf32>
    %cst_10 = arith.constant 1.400000e+00 : f32
    %25 = vector.broadcast %cst_10 : f32 to vector<8x128xf32>
    %26 = arith.cmpf oge, %0, %25 : vector<8x128xf32>
    %cst_11 = arith.constant 1.800000e+00 : f32
    %27 = vector.broadcast %cst_11 : f32 to vector<8x128xf32>
    %28 = arith.cmpf oge, %0, %27 : vector<8x128xf32>
    %cst_12 = arith.constant 2.200000e+00 : f32
    %29 = vector.broadcast %cst_12 : f32 to vector<8x128xf32>
    %30 = arith.cmpf oge, %0, %29 : vector<8x128xf32>
    %cst_13 = arith.constant dense<true> : vector<8x128xi1>
    %31 = arith.xori %10, %cst_13 : vector<8x128xi1>
    %32 = arith.andi %8, %31 : vector<8x128xi1>
    %33 = arith.extui %32 : vector<8x128xi1> to vector<8x128xi32>
    %34 = arith.sitofp %33 : vector<8x128xi32> to vector<8x128xf32>
    %cst_14 = arith.constant dense<true> : vector<8x128xi1>
    %35 = arith.xori %12, %cst_14 : vector<8x128xi1>
    %36 = arith.andi %10, %35 : vector<8x128xi1>
    %37 = arith.extui %36 : vector<8x128xi1> to vector<8x128xi32>
    %38 = arith.sitofp %37 : vector<8x128xi32> to vector<8x128xf32>
    %cst_15 = arith.constant dense<true> : vector<8x128xi1>
    %39 = arith.xori %14, %cst_15 : vector<8x128xi1>
    %40 = arith.andi %12, %39 : vector<8x128xi1>
    %41 = arith.extui %40 : vector<8x128xi1> to vector<8x128xi32>
    %42 = arith.sitofp %41 : vector<8x128xi32> to vector<8x128xf32>
    %cst_16 = arith.constant dense<true> : vector<8x128xi1>
    %43 = arith.xori %16, %cst_16 : vector<8x128xi1>
    %44 = arith.andi %14, %43 : vector<8x128xi1>
    %45 = arith.extui %44 : vector<8x128xi1> to vector<8x128xi32>
    %46 = arith.sitofp %45 : vector<8x128xi32> to vector<8x128xf32>
    %cst_17 = arith.constant dense<true> : vector<8x128xi1>
    %47 = arith.xori %18, %cst_17 : vector<8x128xi1>
    %48 = arith.andi %16, %47 : vector<8x128xi1>
    %49 = arith.extui %48 : vector<8x128xi1> to vector<8x128xi32>
    %50 = arith.sitofp %49 : vector<8x128xi32> to vector<8x128xf32>
    %cst_18 = arith.constant dense<true> : vector<8x128xi1>
    %51 = arith.xori %20, %cst_18 : vector<8x128xi1>
    %52 = arith.andi %18, %51 : vector<8x128xi1>
    %53 = arith.extui %52 : vector<8x128xi1> to vector<8x128xi32>
    %54 = arith.sitofp %53 : vector<8x128xi32> to vector<8x128xf32>
    %cst_19 = arith.constant dense<true> : vector<8x128xi1>
    %55 = arith.xori %22, %cst_19 : vector<8x128xi1>
    %56 = arith.andi %20, %55 : vector<8x128xi1>
    %57 = arith.extui %56 : vector<8x128xi1> to vector<8x128xi32>
    %58 = arith.sitofp %57 : vector<8x128xi32> to vector<8x128xf32>
    %cst_20 = arith.constant dense<true> : vector<8x128xi1>
    %59 = arith.xori %24, %cst_20 : vector<8x128xi1>
    %60 = arith.andi %22, %59 : vector<8x128xi1>
    %61 = arith.extui %60 : vector<8x128xi1> to vector<8x128xi32>
    %62 = arith.sitofp %61 : vector<8x128xi32> to vector<8x128xf32>
    %cst_21 = arith.constant dense<true> : vector<8x128xi1>
    %63 = arith.xori %26, %cst_21 : vector<8x128xi1>
    %64 = arith.andi %24, %63 : vector<8x128xi1>
    %65 = arith.extui %64 : vector<8x128xi1> to vector<8x128xi32>
    %66 = arith.sitofp %65 : vector<8x128xi32> to vector<8x128xf32>
    %cst_22 = arith.constant dense<true> : vector<8x128xi1>
    %67 = arith.xori %28, %cst_22 : vector<8x128xi1>
    %68 = arith.andi %26, %67 : vector<8x128xi1>
    %69 = arith.extui %68 : vector<8x128xi1> to vector<8x128xi32>
    %70 = arith.sitofp %69 : vector<8x128xi32> to vector<8x128xf32>
    %cst_23 = arith.constant dense<true> : vector<8x128xi1>
    %71 = arith.xori %30, %cst_23 : vector<8x128xi1>
    %72 = arith.andi %28, %71 : vector<8x128xi1>
    %73 = arith.extui %72 : vector<8x128xi1> to vector<8x128xi32>
    %74 = arith.sitofp %73 : vector<8x128xi32> to vector<8x128xf32>
    %cst_24 = arith.constant -2.200000e+00 : f32
    %75 = vector.broadcast %cst_24 : f32 to vector<8x128xf32>
    %76 = arith.subf %0, %75 : vector<8x128xf32>
    %cst_25 = arith.constant -1.800000e+00 : f32
    %77 = vector.broadcast %cst_25 : f32 to vector<8x128xf32>
    %78 = arith.subf %0, %77 : vector<8x128xf32>
    %cst_26 = arith.constant -1.400000e+00 : f32
    %79 = vector.broadcast %cst_26 : f32 to vector<8x128xf32>
    %80 = arith.subf %0, %79 : vector<8x128xf32>
    %cst_27 = arith.constant -1.000000e+00 : f32
    %81 = vector.broadcast %cst_27 : f32 to vector<8x128xf32>
    %82 = arith.subf %0, %81 : vector<8x128xf32>
    %cst_28 = arith.constant -6.000000e-01 : f32
    %83 = vector.broadcast %cst_28 : f32 to vector<8x128xf32>
    %84 = arith.subf %0, %83 : vector<8x128xf32>
    %cst_29 = arith.constant -2.000000e-01 : f32
    %85 = vector.broadcast %cst_29 : f32 to vector<8x128xf32>
    %86 = arith.subf %0, %85 : vector<8x128xf32>
    %cst_30 = arith.constant 2.000000e-01 : f32
    %87 = vector.broadcast %cst_30 : f32 to vector<8x128xf32>
    %88 = arith.subf %0, %87 : vector<8x128xf32>
    %cst_31 = arith.constant 6.000000e-01 : f32
    %89 = vector.broadcast %cst_31 : f32 to vector<8x128xf32>
    %90 = arith.subf %0, %89 : vector<8x128xf32>
    %cst_32 = arith.constant 1.000000e+00 : f32
    %91 = vector.broadcast %cst_32 : f32 to vector<8x128xf32>
    %92 = arith.subf %0, %91 : vector<8x128xf32>
    %cst_33 = arith.constant 1.400000e+00 : f32
    %93 = vector.broadcast %cst_33 : f32 to vector<8x128xf32>
    %94 = arith.subf %0, %93 : vector<8x128xf32>
    %cst_34 = arith.constant 1.800000e+00 : f32
    %95 = vector.broadcast %cst_34 : f32 to vector<8x128xf32>
    %96 = arith.subf %0, %95 : vector<8x128xf32>
    %cst_35 = arith.constant 2.200000e+00 : f32
    %97 = vector.broadcast %cst_35 : f32 to vector<8x128xf32>
    %98 = arith.subf %0, %97 : vector<8x128xf32>
    %99 = arith.mulf %76, %34 : vector<8x128xf32>
    %100 = arith.mulf %80, %38 : vector<8x128xf32>
    %101 = arith.subf %99, %100 : vector<8x128xf32>
    %cst_36 = arith.constant 2.500000e+00 : f32
    %102 = vector.broadcast %cst_36 : f32 to vector<8x128xf32>
    %103 = arith.mulf %101, %102 : vector<8x128xf32>
    %104 = arith.mulf %78, %38 : vector<8x128xf32>
    %105 = arith.mulf %82, %42 : vector<8x128xf32>
    %106 = arith.subf %104, %105 : vector<8x128xf32>
    %cst_37 = arith.constant 2.500000e+00 : f32
    %107 = vector.broadcast %cst_37 : f32 to vector<8x128xf32>
    %108 = arith.mulf %106, %107 : vector<8x128xf32>
    %109 = arith.mulf %80, %42 : vector<8x128xf32>
    %110 = arith.mulf %84, %46 : vector<8x128xf32>
    %111 = arith.subf %109, %110 : vector<8x128xf32>
    %cst_38 = arith.constant 2.500000e+00 : f32
    %112 = vector.broadcast %cst_38 : f32 to vector<8x128xf32>
    %113 = arith.mulf %111, %112 : vector<8x128xf32>
    %114 = arith.mulf %82, %46 : vector<8x128xf32>
    %115 = arith.mulf %86, %50 : vector<8x128xf32>
    %116 = arith.subf %114, %115 : vector<8x128xf32>
    %cst_39 = arith.constant 2.500000e+00 : f32
    %117 = vector.broadcast %cst_39 : f32 to vector<8x128xf32>
    %118 = arith.mulf %116, %117 : vector<8x128xf32>
    %119 = arith.mulf %84, %50 : vector<8x128xf32>
    %120 = arith.mulf %88, %54 : vector<8x128xf32>
    %121 = arith.subf %119, %120 : vector<8x128xf32>
    %cst_40 = arith.constant 2.500000e+00 : f32
    %122 = vector.broadcast %cst_40 : f32 to vector<8x128xf32>
    %123 = arith.mulf %121, %122 : vector<8x128xf32>
    %124 = arith.mulf %86, %54 : vector<8x128xf32>
    %125 = arith.mulf %90, %58 : vector<8x128xf32>
    %126 = arith.subf %124, %125 : vector<8x128xf32>
    %cst_41 = arith.constant 2.500000e+00 : f32
    %127 = vector.broadcast %cst_41 : f32 to vector<8x128xf32>
    %128 = arith.mulf %126, %127 : vector<8x128xf32>
    %129 = arith.mulf %88, %58 : vector<8x128xf32>
    %130 = arith.mulf %92, %62 : vector<8x128xf32>
    %131 = arith.subf %129, %130 : vector<8x128xf32>
    %cst_42 = arith.constant 2.500000e+00 : f32
    %132 = vector.broadcast %cst_42 : f32 to vector<8x128xf32>
    %133 = arith.mulf %131, %132 : vector<8x128xf32>
    %134 = arith.mulf %90, %62 : vector<8x128xf32>
    %135 = arith.mulf %94, %66 : vector<8x128xf32>
    %136 = arith.subf %134, %135 : vector<8x128xf32>
    %cst_43 = arith.constant 2.500000e+00 : f32
    %137 = vector.broadcast %cst_43 : f32 to vector<8x128xf32>
    %138 = arith.mulf %136, %137 : vector<8x128xf32>
    %139 = arith.mulf %92, %66 : vector<8x128xf32>
    %140 = arith.mulf %96, %70 : vector<8x128xf32>
    %141 = arith.subf %139, %140 : vector<8x128xf32>
    %cst_44 = arith.constant 2.500000e+00 : f32
    %142 = vector.broadcast %cst_44 : f32 to vector<8x128xf32>
    %143 = arith.mulf %141, %142 : vector<8x128xf32>
    %144 = arith.mulf %94, %70 : vector<8x128xf32>
    %145 = arith.mulf %98, %74 : vector<8x128xf32>
    %146 = arith.subf %144, %145 : vector<8x128xf32>
    %cst_45 = arith.constant 2.500000e+00 : f32
    %147 = vector.broadcast %cst_45 : f32 to vector<8x128xf32>
    %148 = arith.mulf %146, %147 : vector<8x128xf32>
    %149 = arith.mulf %76, %103 : vector<8x128xf32>
    %150 = arith.mulf %82, %108 : vector<8x128xf32>
    %151 = arith.subf %149, %150 : vector<8x128xf32>
    %cst_46 = arith.constant 1.250000e+00 : f32
    %152 = vector.broadcast %cst_46 : f32 to vector<8x128xf32>
    %153 = arith.mulf %151, %152 : vector<8x128xf32>
    %154 = arith.mulf %78, %108 : vector<8x128xf32>
    %155 = arith.mulf %84, %113 : vector<8x128xf32>
    %156 = arith.subf %154, %155 : vector<8x128xf32>
    %cst_47 = arith.constant 1.250000e+00 : f32
    %157 = vector.broadcast %cst_47 : f32 to vector<8x128xf32>
    %158 = arith.mulf %156, %157 : vector<8x128xf32>
    %159 = arith.mulf %80, %113 : vector<8x128xf32>
    %160 = arith.mulf %86, %118 : vector<8x128xf32>
    %161 = arith.subf %159, %160 : vector<8x128xf32>
    %cst_48 = arith.constant 1.250000e+00 : f32
    %162 = vector.broadcast %cst_48 : f32 to vector<8x128xf32>
    %163 = arith.mulf %161, %162 : vector<8x128xf32>
    %164 = arith.mulf %82, %118 : vector<8x128xf32>
    %165 = arith.mulf %88, %123 : vector<8x128xf32>
    %166 = arith.subf %164, %165 : vector<8x128xf32>
    %cst_49 = arith.constant 1.250000e+00 : f32
    %167 = vector.broadcast %cst_49 : f32 to vector<8x128xf32>
    %168 = arith.mulf %166, %167 : vector<8x128xf32>
    %169 = arith.mulf %84, %123 : vector<8x128xf32>
    %170 = arith.mulf %90, %128 : vector<8x128xf32>
    %171 = arith.subf %169, %170 : vector<8x128xf32>
    %cst_50 = arith.constant 1.250000e+00 : f32
    %172 = vector.broadcast %cst_50 : f32 to vector<8x128xf32>
    %173 = arith.mulf %171, %172 : vector<8x128xf32>
    %174 = arith.mulf %86, %128 : vector<8x128xf32>
    %175 = arith.mulf %92, %133 : vector<8x128xf32>
    %176 = arith.subf %174, %175 : vector<8x128xf32>
    %cst_51 = arith.constant 1.250000e+00 : f32
    %177 = vector.broadcast %cst_51 : f32 to vector<8x128xf32>
    %178 = arith.mulf %176, %177 : vector<8x128xf32>
    %179 = arith.mulf %88, %133 : vector<8x128xf32>
    %180 = arith.mulf %94, %138 : vector<8x128xf32>
    %181 = arith.subf %179, %180 : vector<8x128xf32>
    %cst_52 = arith.constant 1.250000e+00 : f32
    %182 = vector.broadcast %cst_52 : f32 to vector<8x128xf32>
    %183 = arith.mulf %181, %182 : vector<8x128xf32>
    %184 = arith.mulf %90, %138 : vector<8x128xf32>
    %185 = arith.mulf %96, %143 : vector<8x128xf32>
    %186 = arith.subf %184, %185 : vector<8x128xf32>
    %cst_53 = arith.constant 1.250000e+00 : f32
    %187 = vector.broadcast %cst_53 : f32 to vector<8x128xf32>
    %188 = arith.mulf %186, %187 : vector<8x128xf32>
    %189 = arith.mulf %92, %143 : vector<8x128xf32>
    %190 = arith.mulf %98, %148 : vector<8x128xf32>
    %191 = arith.subf %189, %190 : vector<8x128xf32>
    %cst_54 = arith.constant 1.250000e+00 : f32
    %192 = vector.broadcast %cst_54 : f32 to vector<8x128xf32>
    %193 = arith.mulf %191, %192 : vector<8x128xf32>
    %194 = arith.mulf %76, %153 : vector<8x128xf32>
    %195 = arith.mulf %84, %158 : vector<8x128xf32>
    %196 = arith.subf %194, %195 : vector<8x128xf32>
    %cst_55 = arith.constant 0.833333313 : f32
    %197 = vector.broadcast %cst_55 : f32 to vector<8x128xf32>
    %198 = arith.mulf %196, %197 : vector<8x128xf32>
    %199 = arith.mulf %78, %158 : vector<8x128xf32>
    %200 = arith.mulf %86, %163 : vector<8x128xf32>
    %201 = arith.subf %199, %200 : vector<8x128xf32>
    %cst_56 = arith.constant 0.833333313 : f32
    %202 = vector.broadcast %cst_56 : f32 to vector<8x128xf32>
    %203 = arith.mulf %201, %202 : vector<8x128xf32>
    %204 = arith.mulf %80, %163 : vector<8x128xf32>
    %205 = arith.mulf %88, %168 : vector<8x128xf32>
    %206 = arith.subf %204, %205 : vector<8x128xf32>
    %cst_57 = arith.constant 0.833333313 : f32
    %207 = vector.broadcast %cst_57 : f32 to vector<8x128xf32>
    %208 = arith.mulf %206, %207 : vector<8x128xf32>
    %209 = arith.mulf %82, %168 : vector<8x128xf32>
    %210 = arith.mulf %90, %173 : vector<8x128xf32>
    %211 = arith.subf %209, %210 : vector<8x128xf32>
    %cst_58 = arith.constant 0.833333313 : f32
    %212 = vector.broadcast %cst_58 : f32 to vector<8x128xf32>
    %213 = arith.mulf %211, %212 : vector<8x128xf32>
    %214 = arith.mulf %84, %173 : vector<8x128xf32>
    %215 = arith.mulf %92, %178 : vector<8x128xf32>
    %216 = arith.subf %214, %215 : vector<8x128xf32>
    %cst_59 = arith.constant 0.833333313 : f32
    %217 = vector.broadcast %cst_59 : f32 to vector<8x128xf32>
    %218 = arith.mulf %216, %217 : vector<8x128xf32>
    %219 = arith.mulf %86, %178 : vector<8x128xf32>
    %220 = arith.mulf %94, %183 : vector<8x128xf32>
    %221 = arith.subf %219, %220 : vector<8x128xf32>
    %cst_60 = arith.constant 0.833333313 : f32
    %222 = vector.broadcast %cst_60 : f32 to vector<8x128xf32>
    %223 = arith.mulf %221, %222 : vector<8x128xf32>
    %224 = arith.mulf %88, %183 : vector<8x128xf32>
    %225 = arith.mulf %96, %188 : vector<8x128xf32>
    %226 = arith.subf %224, %225 : vector<8x128xf32>
    %cst_61 = arith.constant 0.833333313 : f32
    %227 = vector.broadcast %cst_61 : f32 to vector<8x128xf32>
    %228 = arith.mulf %226, %227 : vector<8x128xf32>
    %229 = arith.mulf %90, %188 : vector<8x128xf32>
    %230 = arith.mulf %98, %193 : vector<8x128xf32>
    %231 = arith.subf %229, %230 : vector<8x128xf32>
    %cst_62 = arith.constant 0.833333313 : f32
    %232 = vector.broadcast %cst_62 : f32 to vector<8x128xf32>
    %233 = arith.mulf %231, %232 : vector<8x128xf32>
    %c0_63 = arith.constant 0 : index
    %c0_64 = arith.constant 0 : index
    %234 = vector.load %arg7[%c0_63, %c0_64] : memref<288x128xf32, #tpu.memory_space<vmem>>, vector<8x128xf32>
    tpu.vector_store %arg7[%c0_63, %c0_64], %6 {strides = array<i32>} : memref<288x128xf32, #tpu.memory_space<vmem>>, vector<8x128xf32>,
    %c8 = arith.constant 8 : index
    %c0_65 = arith.constant 0 : index
    %235 = vector.load %arg7[%c8, %c0_65] : memref<288x128xf32, #tpu.memory_space<vmem>>, vector<8x128xf32>
    tpu.vector_store %arg7[%c8, %c0_65], %198 {strides = array<i32>} : memref<288x128xf32, #tpu.memory_space<vmem>>, vector<8x128xf32>,
    %c16 = arith.constant 16 : index
    %c0_66 = arith.constant 0 : index
    %236 = vector.load %arg7[%c16, %c0_66] : memref<288x128xf32, #tpu.memory_space<vmem>>, vector<8x128xf32>
    tpu.vector_store %arg7[%c16, %c0_66], %203 {strides = array<i32>} : memref<288x128xf32, #tpu.memory_space<vmem>>, vector<8x128xf32>,
    %c24 = arith.constant 24 : index
    %c0_67 = arith.constant 0 : index
    %237 = vector.load %arg7[%c24, %c0_67] : memref<288x128xf32, #tpu.memory_space<vmem>>, vector<8x128xf32>
    tpu.vector_store %arg7[%c24, %c0_67], %208 {strides = array<i32>} : memref<288x128xf32, #tpu.memory_space<vmem>>, vector<8x128xf32>,
    %c32 = arith.constant 32 : index
    %c0_68 = arith.constant 0 : index
    %238 = vector.load %arg7[%c32, %c0_68] : memref<288x128xf32, #tpu.memory_space<vmem>>, vector<8x128xf32>
    tpu.vector_store %arg7[%c32, %c0_68], %213 {strides = array<i32>} : memref<288x128xf32, #tpu.memory_space<vmem>>, vector<8x128xf32>,
    %c40 = arith.constant 40 : index
    %c0_69 = arith.constant 0 : index
    %239 = vector.load %arg7[%c40, %c0_69] : memref<288x128xf32, #tpu.memory_space<vmem>>, vector<8x128xf32>
    tpu.vector_store %arg7[%c40, %c0_69], %218 {strides = array<i32>} : memref<288x128xf32, #tpu.memory_space<vmem>>, vector<8x128xf32>,
    %c48 = arith.constant 48 : index
    %c0_70 = arith.constant 0 : index
    %240 = vector.load %arg7[%c48, %c0_70] : memref<288x128xf32, #tpu.memory_space<vmem>>, vector<8x128xf32>
    tpu.vector_store %arg7[%c48, %c0_70], %223 {strides = array<i32>} : memref<288x128xf32, #tpu.memory_space<vmem>>, vector<8x128xf32>,
    %c56 = arith.constant 56 : index
    %c0_71 = arith.constant 0 : index
    %241 = vector.load %arg7[%c56, %c0_71] : memref<288x128xf32, #tpu.memory_space<vmem>>, vector<8x128xf32>
    tpu.vector_store %arg7[%c56, %c0_71], %228 {strides = array<i32>} : memref<288x128xf32, #tpu.memory_space<vmem>>, vector<8x128xf32>,
    %c64 = arith.constant 64 : index
    %c0_72 = arith.constant 0 : index
    %242 = vector.load %arg7[%c64, %c0_72] : memref<288x128xf32, #tpu.memory_space<vmem>>, vector<8x128xf32>
    tpu.vector_store %arg7[%c64, %c0_72], %233 {strides = array<i32>} : memref<288x128xf32, #tpu.memory_space<vmem>>, vector<8x128xf32>,
    %c0_73 = arith.constant 0 : index
    %c0_74 = arith.constant 0 : index
    %243 = vector.load %arg2[%c0_73, %c0_74] : memref<16x72xf32, #tpu.memory_space<vmem>>, vector<16x72xf32>
    %c0_75 = arith.constant 0 : index
    %c0_76 = arith.constant 0 : index
    %244 = vector.load %arg7[%c0_75, %c0_76] : memref<288x128xf32, #tpu.memory_space<vmem>>, vector<72x128xf32>
    %cst_77 = arith.constant dense<0.000000e+00> : vector<16x128xf32>
    %245 = tpu.matmul %243, %244, %cst_77 {dimension_numbers = #tpu.dot_dimension_numbers<[1], [0], [0], [1], [0, 0, 1, 1], [], []>} : vector<16x72xf32>, vector<72x128xf32>, vector<16x128xf32> -> vector<16x128xf32>
    %246 = vector.extract_strided_slice %245 {offsets = [0, 0], sizes = [8, 128], strides = [1, 1]} : vector<16x128xf32> to vector<8x128xf32>
    %247 = arith.negf %246 : vector<8x128xf32>
    %248 = math.exp %247 : vector<8x128xf32>
    %cst_78 = arith.constant 1.000000e+00 : f32
    %249 = vector.broadcast %cst_78 : f32 to vector<8x128xf32>
    %250 = arith.addf %249, %248 : vector<8x128xf32>
    %251 = arith.divf %249, %250 : vector<8x128xf32>
    %252 = arith.mulf %246, %251 : vector<8x128xf32>
    %cst_79 = arith.constant -2.200000e+00 : f32
    %253 = vector.broadcast %cst_79 : f32 to vector<8x128xf32>
    %254 = arith.cmpf oge, %246, %253 : vector<8x128xf32>
    %cst_80 = arith.constant -1.800000e+00 : f32
    %255 = vector.broadcast %cst_80 : f32 to vector<8x128xf32>
    %256 = arith.cmpf oge, %246, %255 : vector<8x128xf32>
    %cst_81 = arith.constant -1.400000e+00 : f32
    %257 = vector.broadcast %cst_81 : f32 to vector<8x128xf32>
    %258 = arith.cmpf oge, %246, %257 : vector<8x128xf32>
    %cst_82 = arith.constant -1.000000e+00 : f32
    %259 = vector.broadcast %cst_82 : f32 to vector<8x128xf32>
    %260 = arith.cmpf oge, %246, %259 : vector<8x128xf32>
    %cst_83 = arith.constant -6.000000e-01 : f32
    %261 = vector.broadcast %cst_83 : f32 to vector<8x128xf32>
    %262 = arith.cmpf oge, %246, %261 : vector<8x128xf32>
    %cst_84 = arith.constant -2.000000e-01 : f32
    %263 = vector.broadcast %cst_84 : f32 to vector<8x128xf32>
    %264 = arith.cmpf oge, %246, %263 : vector<8x128xf32>
    %cst_85 = arith.constant 2.000000e-01 : f32
    %265 = vector.broadcast %cst_85 : f32 to vector<8x128xf32>
    %266 = arith.cmpf oge, %246, %265 : vector<8x128xf32>
    %cst_86 = arith.constant 6.000000e-01 : f32
    %267 = vector.broadcast %cst_86 : f32 to vector<8x128xf32>
    %268 = arith.cmpf oge, %246, %267 : vector<8x128xf32>
    %cst_87 = arith.constant 1.000000e+00 : f32
    %269 = vector.broadcast %cst_87 : f32 to vector<8x128xf32>
    %270 = arith.cmpf oge, %246, %269 : vector<8x128xf32>
    %cst_88 = arith.constant 1.400000e+00 : f32
    %271 = vector.broadcast %cst_88 : f32 to vector<8x128xf32>
    %272 = arith.cmpf oge, %246, %271 : vector<8x128xf32>
    %cst_89 = arith.constant 1.800000e+00 : f32
    %273 = vector.broadcast %cst_89 : f32 to vector<8x128xf32>
    %274 = arith.cmpf oge, %246, %273 : vector<8x128xf32>
    %cst_90 = arith.constant 2.200000e+00 : f32
    %275 = vector.broadcast %cst_90 : f32 to vector<8x128xf32>
    %276 = arith.cmpf oge, %246, %275 : vector<8x128xf32>
    %cst_91 = arith.constant dense<true> : vector<8x128xi1>
    %277 = arith.xori %256, %cst_91 : vector<8x128xi1>
    %278 = arith.andi %254, %277 : vector<8x128xi1>
    %279 = arith.extui %278 : vector<8x128xi1> to vector<8x128xi32>
    %280 = arith.sitofp %279 : vector<8x128xi32> to vector<8x128xf32>
    %cst_92 = arith.constant dense<true> : vector<8x128xi1>
    %281 = arith.xori %258, %cst_92 : vector<8x128xi1>
    %282 = arith.andi %256, %281 : vector<8x128xi1>
    %283 = arith.extui %282 : vector<8x128xi1> to vector<8x128xi32>
    %284 = arith.sitofp %283 : vector<8x128xi32> to vector<8x128xf32>
    %cst_93 = arith.constant dense<true> : vector<8x128xi1>
    %285 = arith.xori %260, %cst_93 : vector<8x128xi1>
    %286 = arith.andi %258, %285 : vector<8x128xi1>
    %287 = arith.extui %286 : vector<8x128xi1> to vector<8x128xi32>
    %288 = arith.sitofp %287 : vector<8x128xi32> to vector<8x128xf32>
    %cst_94 = arith.constant dense<true> : vector<8x128xi1>
    %289 = arith.xori %262, %cst_94 : vector<8x128xi1>
    %290 = arith.andi %260, %289 : vector<8x128xi1>
    %291 = arith.extui %290 : vector<8x128xi1> to vector<8x128xi32>
    %292 = arith.sitofp %291 : vector<8x128xi32> to vector<8x128xf32>
    %cst_95 = arith.constant dense<true> : vector<8x128xi1>
    %293 = arith.xori %264, %cst_95 : vector<8x128xi1>
    %294 = arith.andi %262, %293 : vector<8x128xi1>
    %295 = arith.extui %294 : vector<8x128xi1> to vector<8x128xi32>
    %296 = arith.sitofp %295 : vector<8x128xi32> to vector<8x128xf32>
    %cst_96 = arith.constant dense<true> : vector<8x128xi1>
    %297 = arith.xori %266, %cst_96 : vector<8x128xi1>
    %298 = arith.andi %264, %297 : vector<8x128xi1>
    %299 = arith.extui %298 : vector<8x128xi1> to vector<8x128xi32>
    %300 = arith.sitofp %299 : vector<8x128xi32> to vector<8x128xf32>
    %cst_97 = arith.constant dense<true> : vector<8x128xi1>
    %301 = arith.xori %268, %cst_97 : vector<8x128xi1>
    %302 = arith.andi %266, %301 : vector<8x128xi1>
    %303 = arith.extui %302 : vector<8x128xi1> to vector<8x128xi32>
    %304 = arith.sitofp %303 : vector<8x128xi32> to vector<8x128xf32>
    %cst_98 = arith.constant dense<true> : vector<8x128xi1>
    %305 = arith.xori %270, %cst_98 : vector<8x128xi1>
    %306 = arith.andi %268, %305 : vector<8x128xi1>
    %307 = arith.extui %306 : vector<8x128xi1> to vector<8x128xi32>
    %308 = arith.sitofp %307 : vector<8x128xi32> to vector<8x128xf32>
    %cst_99 = arith.constant dense<true> : vector<8x128xi1>
    %309 = arith.xori %272, %cst_99 : vector<8x128xi1>
    %310 = arith.andi %270, %309 : vector<8x128xi1>
    %311 = arith.extui %310 : vector<8x128xi1> to vector<8x128xi32>
    %312 = arith.sitofp %311 : vector<8x128xi32> to vector<8x128xf32>
    %cst_100 = arith.constant dense<true> : vector<8x128xi1>
    %313 = arith.xori %274, %cst_100 : vector<8x128xi1>
    %314 = arith.andi %272, %313 : vector<8x128xi1>
    %315 = arith.extui %314 : vector<8x128xi1> to vector<8x128xi32>
    %316 = arith.sitofp %315 : vector<8x128xi32> to vector<8x128xf32>
    %cst_101 = arith.constant dense<true> : vector<8x128xi1>
    %317 = arith.xori %276, %cst_101 : vector<8x128xi1>
    %318 = arith.andi %274, %317 : vector<8x128xi1>
    %319 = arith.extui %318 : vector<8x128xi1> to vector<8x128xi32>
    %320 = arith.sitofp %319 : vector<8x128xi32> to vector<8x128xf32>
    %cst_102 = arith.constant -2.200000e+00 : f32
    %321 = vector.broadcast %cst_102 : f32 to vector<8x128xf32>
    %322 = arith.subf %246, %321 : vector<8x128xf32>
    %cst_103 = arith.constant -1.800000e+00 : f32
    %323 = vector.broadcast %cst_103 : f32 to vector<8x128xf32>
    %324 = arith.subf %246, %323 : vector<8x128xf32>
    %cst_104 = arith.constant -1.400000e+00 : f32
    %325 = vector.broadcast %cst_104 : f32 to vector<8x128xf32>
    %326 = arith.subf %246, %325 : vector<8x128xf32>
    %cst_105 = arith.constant -1.000000e+00 : f32
    %327 = vector.broadcast %cst_105 : f32 to vector<8x128xf32>
    %328 = arith.subf %246, %327 : vector<8x128xf32>
    %cst_106 = arith.constant -6.000000e-01 : f32
    %329 = vector.broadcast %cst_106 : f32 to vector<8x128xf32>
    %330 = arith.subf %246, %329 : vector<8x128xf32>
    %cst_107 = arith.constant -2.000000e-01 : f32
    %331 = vector.broadcast %cst_107 : f32 to vector<8x128xf32>
    %332 = arith.subf %246, %331 : vector<8x128xf32>
    %cst_108 = arith.constant 2.000000e-01 : f32
    %333 = vector.broadcast %cst_108 : f32 to vector<8x128xf32>
    %334 = arith.subf %246, %333 : vector<8x128xf32>
    %cst_109 = arith.constant 6.000000e-01 : f32
    %335 = vector.broadcast %cst_109 : f32 to vector<8x128xf32>
    %336 = arith.subf %246, %335 : vector<8x128xf32>
    %cst_110 = arith.constant 1.000000e+00 : f32
    %337 = vector.broadcast %cst_110 : f32 to vector<8x128xf32>
    %338 = arith.subf %246, %337 : vector<8x128xf32>
    %cst_111 = arith.constant 1.400000e+00 : f32
    %339 = vector.broadcast %cst_111 : f32 to vector<8x128xf32>
    %340 = arith.subf %246, %339 : vector<8x128xf32>
    %cst_112 = arith.constant 1.800000e+00 : f32
    %341 = vector.broadcast %cst_112 : f32 to vector<8x128xf32>
    %342 = arith.subf %246, %341 : vector<8x128xf32>
    %cst_113 = arith.constant 2.200000e+00 : f32
    %343 = vector.broadcast %cst_113 : f32 to vector<8x128xf32>
    %344 = arith.subf %246, %343 : vector<8x128xf32>
    %345 = arith.mulf %322, %280 : vector<8x128xf32>
    %346 = arith.mulf %326, %284 : vector<8x128xf32>
    %347 = arith.subf %345, %346 : vector<8x128xf32>
    %cst_114 = arith.constant 2.500000e+00 : f32
    %348 = vector.broadcast %cst_114 : f32 to vector<8x128xf32>
    %349 = arith.mulf %347, %348 : vector<8x128xf32>
    %350 = arith.mulf %324, %284 : vector<8x128xf32>
    %351 = arith.mulf %328, %288 : vector<8x128xf32>
    %352 = arith.subf %350, %351 : vector<8x128xf32>
    %cst_115 = arith.constant 2.500000e+00 : f32
    %353 = vector.broadcast %cst_115 : f32 to vector<8x128xf32>
    %354 = arith.mulf %352, %353 : vector<8x128xf32>
    %355 = arith.mulf %326, %288 : vector<8x128xf32>
    %356 = arith.mulf %330, %292 : vector<8x128xf32>
    %357 = arith.subf %355, %356 : vector<8x128xf32>
    %cst_116 = arith.constant 2.500000e+00 : f32
    %358 = vector.broadcast %cst_116 : f32 to vector<8x128xf32>
    %359 = arith.mulf %357, %358 : vector<8x128xf32>
    %360 = arith.mulf %328, %292 : vector<8x128xf32>
    %361 = arith.mulf %332, %296 : vector<8x128xf32>
    %362 = arith.subf %360, %361 : vector<8x128xf32>
    %cst_117 = arith.constant 2.500000e+00 : f32
    %363 = vector.broadcast %cst_117 : f32 to vector<8x128xf32>
    %364 = arith.mulf %362, %363 : vector<8x128xf32>
    %365 = arith.mulf %330, %296 : vector<8x128xf32>
    %366 = arith.mulf %334, %300 : vector<8x128xf32>
    %367 = arith.subf %365, %366 : vector<8x128xf32>
    %cst_118 = arith.constant 2.500000e+00 : f32
    %368 = vector.broadcast %cst_118 : f32 to vector<8x128xf32>
    %369 = arith.mulf %367, %368 : vector<8x128xf32>
    %370 = arith.mulf %332, %300 : vector<8x128xf32>
    %371 = arith.mulf %336, %304 : vector<8x128xf32>
    %372 = arith.subf %370, %371 : vector<8x128xf32>
    %cst_119 = arith.constant 2.500000e+00 : f32
    %373 = vector.broadcast %cst_119 : f32 to vector<8x128xf32>
    %374 = arith.mulf %372, %373 : vector<8x128xf32>
    %375 = arith.mulf %334, %304 : vector<8x128xf32>
    %376 = arith.mulf %338, %308 : vector<8x128xf32>
    %377 = arith.subf %375, %376 : vector<8x128xf32>
    %cst_120 = arith.constant 2.500000e+00 : f32
    %378 = vector.broadcast %cst_120 : f32 to vector<8x128xf32>
    %379 = arith.mulf %377, %378 : vector<8x128xf32>
    %380 = arith.mulf %336, %308 : vector<8x128xf32>
    %381 = arith.mulf %340, %312 : vector<8x128xf32>
    %382 = arith.subf %380, %381 : vector<8x128xf32>
    %cst_121 = arith.constant 2.500000e+00 : f32
    %383 = vector.broadcast %cst_121 : f32 to vector<8x128xf32>
    %384 = arith.mulf %382, %383 : vector<8x128xf32>
    %385 = arith.mulf %338, %312 : vector<8x128xf32>
    %386 = arith.mulf %342, %316 : vector<8x128xf32>
    %387 = arith.subf %385, %386 : vector<8x128xf32>
    %cst_122 = arith.constant 2.500000e+00 : f32
    %388 = vector.broadcast %cst_122 : f32 to vector<8x128xf32>
    %389 = arith.mulf %387, %388 : vector<8x128xf32>
    %390 = arith.mulf %340, %316 : vector<8x128xf32>
    %391 = arith.mulf %344, %320 : vector<8x128xf32>
    %392 = arith.subf %390, %391 : vector<8x128xf32>
    %cst_123 = arith.constant 2.500000e+00 : f32
    %393 = vector.broadcast %cst_123 : f32 to vector<8x128xf32>
    %394 = arith.mulf %392, %393 : vector<8x128xf32>
    %395 = arith.mulf %322, %349 : vector<8x128xf32>
    %396 = arith.mulf %328, %354 : vector<8x128xf32>
    %397 = arith.subf %395, %396 : vector<8x128xf32>
    %cst_124 = arith.constant 1.250000e+00 : f32
    %398 = vector.broadcast %cst_124 : f32 to vector<8x128xf32>
    %399 = arith.mulf %397, %398 : vector<8x128xf32>
    %400 = arith.mulf %324, %354 : vector<8x128xf32>
    %401 = arith.mulf %330, %359 : vector<8x128xf32>
    %402 = arith.subf %400, %401 : vector<8x128xf32>
    %cst_125 = arith.constant 1.250000e+00 : f32
    %403 = vector.broadcast %cst_125 : f32 to vector<8x128xf32>
    %404 = arith.mulf %402, %403 : vector<8x128xf32>
    %405 = arith.mulf %326, %359 : vector<8x128xf32>
    %406 = arith.mulf %332, %364 : vector<8x128xf32>
    %407 = arith.subf %405, %406 : vector<8x128xf32>
    %cst_126 = arith.constant 1.250000e+00 : f32
    %408 = vector.broadcast %cst_126 : f32 to vector<8x128xf32>
    %409 = arith.mulf %407, %408 : vector<8x128xf32>
    %410 = arith.mulf %328, %364 : vector<8x128xf32>
    %411 = arith.mulf %334, %369 : vector<8x128xf32>
    %412 = arith.subf %410, %411 : vector<8x128xf32>
    %cst_127 = arith.constant 1.250000e+00 : f32
    %413 = vector.broadcast %cst_127 : f32 to vector<8x128xf32>
    %414 = arith.mulf %412, %413 : vector<8x128xf32>
    %415 = arith.mulf %330, %369 : vector<8x128xf32>
    %416 = arith.mulf %336, %374 : vector<8x128xf32>
    %417 = arith.subf %415, %416 : vector<8x128xf32>
    %cst_128 = arith.constant 1.250000e+00 : f32
    %418 = vector.broadcast %cst_128 : f32 to vector<8x128xf32>
    %419 = arith.mulf %417, %418 : vector<8x128xf32>
    %420 = arith.mulf %332, %374 : vector<8x128xf32>
    %421 = arith.mulf %338, %379 : vector<8x128xf32>
    %422 = arith.subf %420, %421 : vector<8x128xf32>
    %cst_129 = arith.constant 1.250000e+00 : f32
    %423 = vector.broadcast %cst_129 : f32 to vector<8x128xf32>
    %424 = arith.mulf %422, %423 : vector<8x128xf32>
    %425 = arith.mulf %334, %379 : vector<8x128xf32>
    %426 = arith.mulf %340, %384 : vector<8x128xf32>
    %427 = arith.subf %425, %426 : vector<8x128xf32>
    %cst_130 = arith.constant 1.250000e+00 : f32
    %428 = vector.broadcast %cst_130 : f32 to vector<8x128xf32>
    %429 = arith.mulf %427, %428 : vector<8x128xf32>
    %430 = arith.mulf %336, %384 : vector<8x128xf32>
    %431 = arith.mulf %342, %389 : vector<8x128xf32>
    %432 = arith.subf %430, %431 : vector<8x128xf32>
    %cst_131 = arith.constant 1.250000e+00 : f32
    %433 = vector.broadcast %cst_131 : f32 to vector<8x128xf32>
    %434 = arith.mulf %432, %433 : vector<8x128xf32>
    %435 = arith.mulf %338, %389 : vector<8x128xf32>
    %436 = arith.mulf %344, %394 : vector<8x128xf32>
    %437 = arith.subf %435, %436 : vector<8x128xf32>
    %cst_132 = arith.constant 1.250000e+00 : f32
    %438 = vector.broadcast %cst_132 : f32 to vector<8x128xf32>
    %439 = arith.mulf %437, %438 : vector<8x128xf32>
    %440 = arith.mulf %322, %399 : vector<8x128xf32>
    %441 = arith.mulf %330, %404 : vector<8x128xf32>
    %442 = arith.subf %440, %441 : vector<8x128xf32>
    %cst_133 = arith.constant 0.833333313 : f32
    %443 = vector.broadcast %cst_133 : f32 to vector<8x128xf32>
    %444 = arith.mulf %442, %443 : vector<8x128xf32>
    %445 = arith.mulf %324, %404 : vector<8x128xf32>
    %446 = arith.mulf %332, %409 : vector<8x128xf32>
    %447 = arith.subf %445, %446 : vector<8x128xf32>
    %cst_134 = arith.constant 0.833333313 : f32
    %448 = vector.broadcast %cst_134 : f32 to vector<8x128xf32>
    %449 = arith.mulf %447, %448 : vector<8x128xf32>
    %450 = arith.mulf %326, %409 : vector<8x128xf32>
    %451 = arith.mulf %334, %414 : vector<8x128xf32>
    %452 = arith.subf %450, %451 : vector<8x128xf32>
    %cst_135 = arith.constant 0.833333313 : f32
    %453 = vector.broadcast %cst_135 : f32 to vector<8x128xf32>
    %454 = arith.mulf %452, %453 : vector<8x128xf32>
    %455 = arith.mulf %328, %414 : vector<8x128xf32>
    %456 = arith.mulf %336, %419 : vector<8x128xf32>
    %457 = arith.subf %455, %456 : vector<8x128xf32>
    %cst_136 = arith.constant 0.833333313 : f32
    %458 = vector.broadcast %cst_136 : f32 to vector<8x128xf32>
    %459 = arith.mulf %457, %458 : vector<8x128xf32>
    %460 = arith.mulf %330, %419 : vector<8x128xf32>
    %461 = arith.mulf %338, %424 : vector<8x128xf32>
    %462 = arith.subf %460, %461 : vector<8x128xf32>
    %cst_137 = arith.constant 0.833333313 : f32
    %463 = vector.broadcast %cst_137 : f32 to vector<8x128xf32>
    %464 = arith.mulf %462, %463 : vector<8x128xf32>
    %465 = arith.mulf %332, %424 : vector<8x128xf32>
    %466 = arith.mulf %340, %429 : vector<8x128xf32>
    %467 = arith.subf %465, %466 : vector<8x128xf32>
    %cst_138 = arith.constant 0.833333313 : f32
    %468 = vector.broadcast %cst_138 : f32 to vector<8x128xf32>
    %469 = arith.mulf %467, %468 : vector<8x128xf32>
    %470 = arith.mulf %334, %429 : vector<8x128xf32>
    %471 = arith.mulf %342, %434 : vector<8x128xf32>
    %472 = arith.subf %470, %471 : vector<8x128xf32>
    %cst_139 = arith.constant 0.833333313 : f32
    %473 = vector.broadcast %cst_139 : f32 to vector<8x128xf32>
    %474 = arith.mulf %472, %473 : vector<8x128xf32>
    %475 = arith.mulf %336, %434 : vector<8x128xf32>
    %476 = arith.mulf %344, %439 : vector<8x128xf32>
    %477 = arith.subf %475, %476 : vector<8x128xf32>
    %cst_140 = arith.constant 0.833333313 : f32
    %478 = vector.broadcast %cst_140 : f32 to vector<8x128xf32>
    %479 = arith.mulf %477, %478 : vector<8x128xf32>
    %c0_141 = arith.constant 0 : index
    %c0_142 = arith.constant 0 : index
    %480 = vector.load %arg7[%c0_141, %c0_142] : memref<288x128xf32, #tpu.memory_space<vmem>>, vector<8x128xf32>
    tpu.vector_store %arg7[%c0_141, %c0_142], %252 {strides = array<i32>} : memref<288x128xf32, #tpu.memory_space<vmem>>, vector<8x128xf32>,
    %c16_143 = arith.constant 16 : index
    %c0_144 = arith.constant 0 : index
    %481 = vector.load %arg7[%c16_143, %c0_144] : memref<288x128xf32, #tpu.memory_space<vmem>>, vector<8x128xf32>
    tpu.vector_store %arg7[%c16_143, %c0_144], %444 {strides = array<i32>} : memref<288x128xf32, #tpu.memory_space<vmem>>, vector<8x128xf32>,
    %c32_145 = arith.constant 32 : index
    %c0_146 = arith.constant 0 : index
    %482 = vector.load %arg7[%c32_145, %c0_146] : memref<288x128xf32, #tpu.memory_space<vmem>>, vector<8x128xf32>
    tpu.vector_store %arg7[%c32_145, %c0_146], %449 {strides = array<i32>} : memref<288x128xf32, #tpu.memory_space<vmem>>, vector<8x128xf32>,
    %c48_147 = arith.constant 48 : index
    %c0_148 = arith.constant 0 : index
    %483 = vector.load %arg7[%c48_147, %c0_148] : memref<288x128xf32, #tpu.memory_space<vmem>>, vector<8x128xf32>
    tpu.vector_store %arg7[%c48_147, %c0_148], %454 {strides = array<i32>} : memref<288x128xf32, #tpu.memory_space<vmem>>, vector<8x128xf32>,
    %c64_149 = arith.constant 64 : index
    %c0_150 = arith.constant 0 : index
    %484 = vector.load %arg7[%c64_149, %c0_150] : memref<288x128xf32, #tpu.memory_space<vmem>>, vector<8x128xf32>
    tpu.vector_store %arg7[%c64_149, %c0_150], %459 {strides = array<i32>} : memref<288x128xf32, #tpu.memory_space<vmem>>, vector<8x128xf32>,
    %c80 = arith.constant 80 : index
    %c0_151 = arith.constant 0 : index
    %485 = vector.load %arg7[%c80, %c0_151] : memref<288x128xf32, #tpu.memory_space<vmem>>, vector<8x128xf32>
    tpu.vector_store %arg7[%c80, %c0_151], %464 {strides = array<i32>} : memref<288x128xf32, #tpu.memory_space<vmem>>, vector<8x128xf32>,
    %c96 = arith.constant 96 : index
    %c0_152 = arith.constant 0 : index
    %486 = vector.load %arg7[%c96, %c0_152] : memref<288x128xf32, #tpu.memory_space<vmem>>, vector<8x128xf32>
    tpu.vector_store %arg7[%c96, %c0_152], %469 {strides = array<i32>} : memref<288x128xf32, #tpu.memory_space<vmem>>, vector<8x128xf32>,
    %c112 = arith.constant 112 : index
    %c0_153 = arith.constant 0 : index
    %487 = vector.load %arg7[%c112, %c0_153] : memref<288x128xf32, #tpu.memory_space<vmem>>, vector<8x128xf32>
    tpu.vector_store %arg7[%c112, %c0_153], %474 {strides = array<i32>} : memref<288x128xf32, #tpu.memory_space<vmem>>, vector<8x128xf32>,
    %c128 = arith.constant 128 : index
    %c0_154 = arith.constant 0 : index
    %488 = vector.load %arg7[%c128, %c0_154] : memref<288x128xf32, #tpu.memory_space<vmem>>, vector<8x128xf32>
    tpu.vector_store %arg7[%c128, %c0_154], %479 {strides = array<i32>} : memref<288x128xf32, #tpu.memory_space<vmem>>, vector<8x128xf32>,
    %489 = vector.extract_strided_slice %245 {offsets = [8, 0], sizes = [8, 128], strides = [1, 1]} : vector<16x128xf32> to vector<8x128xf32>
    %490 = arith.negf %489 : vector<8x128xf32>
    %491 = math.exp %490 : vector<8x128xf32>
    %cst_155 = arith.constant 1.000000e+00 : f32
    %492 = vector.broadcast %cst_155 : f32 to vector<8x128xf32>
    %493 = arith.addf %492, %491 : vector<8x128xf32>
    %494 = arith.divf %492, %493 : vector<8x128xf32>
    %495 = arith.mulf %489, %494 : vector<8x128xf32>
    %cst_156 = arith.constant -2.200000e+00 : f32
    %496 = vector.broadcast %cst_156 : f32 to vector<8x128xf32>
    %497 = arith.cmpf oge, %489, %496 : vector<8x128xf32>
    %cst_157 = arith.constant -1.800000e+00 : f32
    %498 = vector.broadcast %cst_157 : f32 to vector<8x128xf32>
    %499 = arith.cmpf oge, %489, %498 : vector<8x128xf32>
    %cst_158 = arith.constant -1.400000e+00 : f32
    %500 = vector.broadcast %cst_158 : f32 to vector<8x128xf32>
    %501 = arith.cmpf oge, %489, %500 : vector<8x128xf32>
    %cst_159 = arith.constant -1.000000e+00 : f32
    %502 = vector.broadcast %cst_159 : f32 to vector<8x128xf32>
    %503 = arith.cmpf oge, %489, %502 : vector<8x128xf32>
    %cst_160 = arith.constant -6.000000e-01 : f32
    %504 = vector.broadcast %cst_160 : f32 to vector<8x128xf32>
    %505 = arith.cmpf oge, %489, %504 : vector<8x128xf32>
    %cst_161 = arith.constant -2.000000e-01 : f32
    %506 = vector.broadcast %cst_161 : f32 to vector<8x128xf32>
    %507 = arith.cmpf oge, %489, %506 : vector<8x128xf32>
    %cst_162 = arith.constant 2.000000e-01 : f32
    %508 = vector.broadcast %cst_162 : f32 to vector<8x128xf32>
    %509 = arith.cmpf oge, %489, %508 : vector<8x128xf32>
    %cst_163 = arith.constant 6.000000e-01 : f32
    %510 = vector.broadcast %cst_163 : f32 to vector<8x128xf32>
    %511 = arith.cmpf oge, %489, %510 : vector<8x128xf32>
    %cst_164 = arith.constant 1.000000e+00 : f32
    %512 = vector.broadcast %cst_164 : f32 to vector<8x128xf32>
    %513 = arith.cmpf oge, %489, %512 : vector<8x128xf32>
    %cst_165 = arith.constant 1.400000e+00 : f32
    %514 = vector.broadcast %cst_165 : f32 to vector<8x128xf32>
    %515 = arith.cmpf oge, %489, %514 : vector<8x128xf32>
    %cst_166 = arith.constant 1.800000e+00 : f32
    %516 = vector.broadcast %cst_166 : f32 to vector<8x128xf32>
    %517 = arith.cmpf oge, %489, %516 : vector<8x128xf32>
    %cst_167 = arith.constant 2.200000e+00 : f32
    %518 = vector.broadcast %cst_167 : f32 to vector<8x128xf32>
    %519 = arith.cmpf oge, %489, %518 : vector<8x128xf32>
    %cst_168 = arith.constant dense<true> : vector<8x128xi1>
    %520 = arith.xori %499, %cst_168 : vector<8x128xi1>
    %521 = arith.andi %497, %520 : vector<8x128xi1>
    %522 = arith.extui %521 : vector<8x128xi1> to vector<8x128xi32>
    %523 = arith.sitofp %522 : vector<8x128xi32> to vector<8x128xf32>
    %cst_169 = arith.constant dense<true> : vector<8x128xi1>
    %524 = arith.xori %501, %cst_169 : vector<8x128xi1>
    %525 = arith.andi %499, %524 : vector<8x128xi1>
    %526 = arith.extui %525 : vector<8x128xi1> to vector<8x128xi32>
    %527 = arith.sitofp %526 : vector<8x128xi32> to vector<8x128xf32>
    %cst_170 = arith.constant dense<true> : vector<8x128xi1>
    %528 = arith.xori %503, %cst_170 : vector<8x128xi1>
    %529 = arith.andi %501, %528 : vector<8x128xi1>
    %530 = arith.extui %529 : vector<8x128xi1> to vector<8x128xi32>
    %531 = arith.sitofp %530 : vector<8x128xi32> to vector<8x128xf32>
    %cst_171 = arith.constant dense<true> : vector<8x128xi1>
    %532 = arith.xori %505, %cst_171 : vector<8x128xi1>
    %533 = arith.andi %503, %532 : vector<8x128xi1>
    %534 = arith.extui %533 : vector<8x128xi1> to vector<8x128xi32>
    %535 = arith.sitofp %534 : vector<8x128xi32> to vector<8x128xf32>
    %cst_172 = arith.constant dense<true> : vector<8x128xi1>
    %536 = arith.xori %507, %cst_172 : vector<8x128xi1>
    %537 = arith.andi %505, %536 : vector<8x128xi1>
    %538 = arith.extui %537 : vector<8x128xi1> to vector<8x128xi32>
    %539 = arith.sitofp %538 : vector<8x128xi32> to vector<8x128xf32>
    %cst_173 = arith.constant dense<true> : vector<8x128xi1>
    %540 = arith.xori %509, %cst_173 : vector<8x128xi1>
    %541 = arith.andi %507, %540 : vector<8x128xi1>
    %542 = arith.extui %541 : vector<8x128xi1> to vector<8x128xi32>
    %543 = arith.sitofp %542 : vector<8x128xi32> to vector<8x128xf32>
    %cst_174 = arith.constant dense<true> : vector<8x128xi1>
    %544 = arith.xori %511, %cst_174 : vector<8x128xi1>
    %545 = arith.andi %509, %544 : vector<8x128xi1>
    %546 = arith.extui %545 : vector<8x128xi1> to vector<8x128xi32>
    %547 = arith.sitofp %546 : vector<8x128xi32> to vector<8x128xf32>
    %cst_175 = arith.constant dense<true> : vector<8x128xi1>
    %548 = arith.xori %513, %cst_175 : vector<8x128xi1>
    %549 = arith.andi %511, %548 : vector<8x128xi1>
    %550 = arith.extui %549 : vector<8x128xi1> to vector<8x128xi32>
    %551 = arith.sitofp %550 : vector<8x128xi32> to vector<8x128xf32>
    %cst_176 = arith.constant dense<true> : vector<8x128xi1>
    %552 = arith.xori %515, %cst_176 : vector<8x128xi1>
    %553 = arith.andi %513, %552 : vector<8x128xi1>
    %554 = arith.extui %553 : vector<8x128xi1> to vector<8x128xi32>
    %555 = arith.sitofp %554 : vector<8x128xi32> to vector<8x128xf32>
    %cst_177 = arith.constant dense<true> : vector<8x128xi1>
    %556 = arith.xori %517, %cst_177 : vector<8x128xi1>
    %557 = arith.andi %515, %556 : vector<8x128xi1>
    %558 = arith.extui %557 : vector<8x128xi1> to vector<8x128xi32>
    %559 = arith.sitofp %558 : vector<8x128xi32> to vector<8x128xf32>
    %cst_178 = arith.constant dense<true> : vector<8x128xi1>
    %560 = arith.xori %519, %cst_178 : vector<8x128xi1>
    %561 = arith.andi %517, %560 : vector<8x128xi1>
    %562 = arith.extui %561 : vector<8x128xi1> to vector<8x128xi32>
    %563 = arith.sitofp %562 : vector<8x128xi32> to vector<8x128xf32>
    %cst_179 = arith.constant -2.200000e+00 : f32
    %564 = vector.broadcast %cst_179 : f32 to vector<8x128xf32>
    %565 = arith.subf %489, %564 : vector<8x128xf32>
    %cst_180 = arith.constant -1.800000e+00 : f32
    %566 = vector.broadcast %cst_180 : f32 to vector<8x128xf32>
    %567 = arith.subf %489, %566 : vector<8x128xf32>
    %cst_181 = arith.constant -1.400000e+00 : f32
    %568 = vector.broadcast %cst_181 : f32 to vector<8x128xf32>
    %569 = arith.subf %489, %568 : vector<8x128xf32>
    %cst_182 = arith.constant -1.000000e+00 : f32
    %570 = vector.broadcast %cst_182 : f32 to vector<8x128xf32>
    %571 = arith.subf %489, %570 : vector<8x128xf32>
    %cst_183 = arith.constant -6.000000e-01 : f32
    %572 = vector.broadcast %cst_183 : f32 to vector<8x128xf32>
    %573 = arith.subf %489, %572 : vector<8x128xf32>
    %cst_184 = arith.constant -2.000000e-01 : f32
    %574 = vector.broadcast %cst_184 : f32 to vector<8x128xf32>
    %575 = arith.subf %489, %574 : vector<8x128xf32>
    %cst_185 = arith.constant 2.000000e-01 : f32
    %576 = vector.broadcast %cst_185 : f32 to vector<8x128xf32>
    %577 = arith.subf %489, %576 : vector<8x128xf32>
    %cst_186 = arith.constant 6.000000e-01 : f32
    %578 = vector.broadcast %cst_186 : f32 to vector<8x128xf32>
    %579 = arith.subf %489, %578 : vector<8x128xf32>
    %cst_187 = arith.constant 1.000000e+00 : f32
    %580 = vector.broadcast %cst_187 : f32 to vector<8x128xf32>
    %581 = arith.subf %489, %580 : vector<8x128xf32>
    %cst_188 = arith.constant 1.400000e+00 : f32
    %582 = vector.broadcast %cst_188 : f32 to vector<8x128xf32>
    %583 = arith.subf %489, %582 : vector<8x128xf32>
    %cst_189 = arith.constant 1.800000e+00 : f32
    %584 = vector.broadcast %cst_189 : f32 to vector<8x128xf32>
    %585 = arith.subf %489, %584 : vector<8x128xf32>
    %cst_190 = arith.constant 2.200000e+00 : f32
    %586 = vector.broadcast %cst_190 : f32 to vector<8x128xf32>
    %587 = arith.subf %489, %586 : vector<8x128xf32>
    %588 = arith.mulf %565, %523 : vector<8x128xf32>
    %589 = arith.mulf %569, %527 : vector<8x128xf32>
    %590 = arith.subf %588, %589 : vector<8x128xf32>
    %cst_191 = arith.constant 2.500000e+00 : f32
    %591 = vector.broadcast %cst_191 : f32 to vector<8x128xf32>
    %592 = arith.mulf %590, %591 : vector<8x128xf32>
    %593 = arith.mulf %567, %527 : vector<8x128xf32>
    %594 = arith.mulf %571, %531 : vector<8x128xf32>
    %595 = arith.subf %593, %594 : vector<8x128xf32>
    %cst_192 = arith.constant 2.500000e+00 : f32
    %596 = vector.broadcast %cst_192 : f32 to vector<8x128xf32>
    %597 = arith.mulf %595, %596 : vector<8x128xf32>
    %598 = arith.mulf %569, %531 : vector<8x128xf32>
    %599 = arith.mulf %573, %535 : vector<8x128xf32>
    %600 = arith.subf %598, %599 : vector<8x128xf32>
    %cst_193 = arith.constant 2.500000e+00 : f32
    %601 = vector.broadcast %cst_193 : f32 to vector<8x128xf32>
    %602 = arith.mulf %600, %601 : vector<8x128xf32>
    %603 = arith.mulf %571, %535 : vector<8x128xf32>
    %604 = arith.mulf %575, %539 : vector<8x128xf32>
    %605 = arith.subf %603, %604 : vector<8x128xf32>
    %cst_194 = arith.constant 2.500000e+00 : f32
    %606 = vector.broadcast %cst_194 : f32 to vector<8x128xf32>
    %607 = arith.mulf %605, %606 : vector<8x128xf32>
    %608 = arith.mulf %573, %539 : vector<8x128xf32>
    %609 = arith.mulf %577, %543 : vector<8x128xf32>
    %610 = arith.subf %608, %609 : vector<8x128xf32>
    %cst_195 = arith.constant 2.500000e+00 : f32
    %611 = vector.broadcast %cst_195 : f32 to vector<8x128xf32>
    %612 = arith.mulf %610, %611 : vector<8x128xf32>
    %613 = arith.mulf %575, %543 : vector<8x128xf32>
    %614 = arith.mulf %579, %547 : vector<8x128xf32>
    %615 = arith.subf %613, %614 : vector<8x128xf32>
    %cst_196 = arith.constant 2.500000e+00 : f32
    %616 = vector.broadcast %cst_196 : f32 to vector<8x128xf32>
    %617 = arith.mulf %615, %616 : vector<8x128xf32>
    %618 = arith.mulf %577, %547 : vector<8x128xf32>
    %619 = arith.mulf %581, %551 : vector<8x128xf32>
    %620 = arith.subf %618, %619 : vector<8x128xf32>
    %cst_197 = arith.constant 2.500000e+00 : f32
    %621 = vector.broadcast %cst_197 : f32 to vector<8x128xf32>
    %622 = arith.mulf %620, %621 : vector<8x128xf32>
    %623 = arith.mulf %579, %551 : vector<8x128xf32>
    %624 = arith.mulf %583, %555 : vector<8x128xf32>
    %625 = arith.subf %623, %624 : vector<8x128xf32>
    %cst_198 = arith.constant 2.500000e+00 : f32
    %626 = vector.broadcast %cst_198 : f32 to vector<8x128xf32>
    %627 = arith.mulf %625, %626 : vector<8x128xf32>
    %628 = arith.mulf %581, %555 : vector<8x128xf32>
    %629 = arith.mulf %585, %559 : vector<8x128xf32>
    %630 = arith.subf %628, %629 : vector<8x128xf32>
    %cst_199 = arith.constant 2.500000e+00 : f32
    %631 = vector.broadcast %cst_199 : f32 to vector<8x128xf32>
    %632 = arith.mulf %630, %631 : vector<8x128xf32>
    %633 = arith.mulf %583, %559 : vector<8x128xf32>
    %634 = arith.mulf %587, %563 : vector<8x128xf32>
    %635 = arith.subf %633, %634 : vector<8x128xf32>
    %cst_200 = arith.constant 2.500000e+00 : f32
    %636 = vector.broadcast %cst_200 : f32 to vector<8x128xf32>
    %637 = arith.mulf %635, %636 : vector<8x128xf32>
    %638 = arith.mulf %565, %592 : vector<8x128xf32>
    %639 = arith.mulf %571, %597 : vector<8x128xf32>
    %640 = arith.subf %638, %639 : vector<8x128xf32>
    %cst_201 = arith.constant 1.250000e+00 : f32
    %641 = vector.broadcast %cst_201 : f32 to vector<8x128xf32>
    %642 = arith.mulf %640, %641 : vector<8x128xf32>
    %643 = arith.mulf %567, %597 : vector<8x128xf32>
    %644 = arith.mulf %573, %602 : vector<8x128xf32>
    %645 = arith.subf %643, %644 : vector<8x128xf32>
    %cst_202 = arith.constant 1.250000e+00 : f32
    %646 = vector.broadcast %cst_202 : f32 to vector<8x128xf32>
    %647 = arith.mulf %645, %646 : vector<8x128xf32>
    %648 = arith.mulf %569, %602 : vector<8x128xf32>
    %649 = arith.mulf %575, %607 : vector<8x128xf32>
    %650 = arith.subf %648, %649 : vector<8x128xf32>
    %cst_203 = arith.constant 1.250000e+00 : f32
    %651 = vector.broadcast %cst_203 : f32 to vector<8x128xf32>
    %652 = arith.mulf %650, %651 : vector<8x128xf32>
    %653 = arith.mulf %571, %607 : vector<8x128xf32>
    %654 = arith.mulf %577, %612 : vector<8x128xf32>
    %655 = arith.subf %653, %654 : vector<8x128xf32>
    %cst_204 = arith.constant 1.250000e+00 : f32
    %656 = vector.broadcast %cst_204 : f32 to vector<8x128xf32>
    %657 = arith.mulf %655, %656 : vector<8x128xf32>
    %658 = arith.mulf %573, %612 : vector<8x128xf32>
    %659 = arith.mulf %579, %617 : vector<8x128xf32>
    %660 = arith.subf %658, %659 : vector<8x128xf32>
    %cst_205 = arith.constant 1.250000e+00 : f32
    %661 = vector.broadcast %cst_205 : f32 to vector<8x128xf32>
    %662 = arith.mulf %660, %661 : vector<8x128xf32>
    %663 = arith.mulf %575, %617 : vector<8x128xf32>
    %664 = arith.mulf %581, %622 : vector<8x128xf32>
    %665 = arith.subf %663, %664 : vector<8x128xf32>
    %cst_206 = arith.constant 1.250000e+00 : f32
    %666 = vector.broadcast %cst_206 : f32 to vector<8x128xf32>
    %667 = arith.mulf %665, %666 : vector<8x128xf32>
    %668 = arith.mulf %577, %622 : vector<8x128xf32>
    %669 = arith.mulf %583, %627 : vector<8x128xf32>
    %670 = arith.subf %668, %669 : vector<8x128xf32>
    %cst_207 = arith.constant 1.250000e+00 : f32
    %671 = vector.broadcast %cst_207 : f32 to vector<8x128xf32>
    %672 = arith.mulf %670, %671 : vector<8x128xf32>
    %673 = arith.mulf %579, %627 : vector<8x128xf32>
    %674 = arith.mulf %585, %632 : vector<8x128xf32>
    %675 = arith.subf %673, %674 : vector<8x128xf32>
    %cst_208 = arith.constant 1.250000e+00 : f32
    %676 = vector.broadcast %cst_208 : f32 to vector<8x128xf32>
    %677 = arith.mulf %675, %676 : vector<8x128xf32>
    %678 = arith.mulf %581, %632 : vector<8x128xf32>
    %679 = arith.mulf %587, %637 : vector<8x128xf32>
    %680 = arith.subf %678, %679 : vector<8x128xf32>
    %cst_209 = arith.constant 1.250000e+00 : f32
    %681 = vector.broadcast %cst_209 : f32 to vector<8x128xf32>
    %682 = arith.mulf %680, %681 : vector<8x128xf32>
    %683 = arith.mulf %565, %642 : vector<8x128xf32>
    %684 = arith.mulf %573, %647 : vector<8x128xf32>
    %685 = arith.subf %683, %684 : vector<8x128xf32>
    %cst_210 = arith.constant 0.833333313 : f32
    %686 = vector.broadcast %cst_210 : f32 to vector<8x128xf32>
    %687 = arith.mulf %685, %686 : vector<8x128xf32>
    %688 = arith.mulf %567, %647 : vector<8x128xf32>
    %689 = arith.mulf %575, %652 : vector<8x128xf32>
    %690 = arith.subf %688, %689 : vector<8x128xf32>
    %cst_211 = arith.constant 0.833333313 : f32
    %691 = vector.broadcast %cst_211 : f32 to vector<8x128xf32>
    %692 = arith.mulf %690, %691 : vector<8x128xf32>
    %693 = arith.mulf %569, %652 : vector<8x128xf32>
    %694 = arith.mulf %577, %657 : vector<8x128xf32>
    %695 = arith.subf %693, %694 : vector<8x128xf32>
    %cst_212 = arith.constant 0.833333313 : f32
    %696 = vector.broadcast %cst_212 : f32 to vector<8x128xf32>
    %697 = arith.mulf %695, %696 : vector<8x128xf32>
    %698 = arith.mulf %571, %657 : vector<8x128xf32>
    %699 = arith.mulf %579, %662 : vector<8x128xf32>
    %700 = arith.subf %698, %699 : vector<8x128xf32>
    %cst_213 = arith.constant 0.833333313 : f32
    %701 = vector.broadcast %cst_213 : f32 to vector<8x128xf32>
    %702 = arith.mulf %700, %701 : vector<8x128xf32>
    %703 = arith.mulf %573, %662 : vector<8x128xf32>
    %704 = arith.mulf %581, %667 : vector<8x128xf32>
    %705 = arith.subf %703, %704 : vector<8x128xf32>
    %cst_214 = arith.constant 0.833333313 : f32
    %706 = vector.broadcast %cst_214 : f32 to vector<8x128xf32>
    %707 = arith.mulf %705, %706 : vector<8x128xf32>
    %708 = arith.mulf %575, %667 : vector<8x128xf32>
    %709 = arith.mulf %583, %672 : vector<8x128xf32>
    %710 = arith.subf %708, %709 : vector<8x128xf32>
    %cst_215 = arith.constant 0.833333313 : f32
    %711 = vector.broadcast %cst_215 : f32 to vector<8x128xf32>
    %712 = arith.mulf %710, %711 : vector<8x128xf32>
    %713 = arith.mulf %577, %672 : vector<8x128xf32>
    %714 = arith.mulf %585, %677 : vector<8x128xf32>
    %715 = arith.subf %713, %714 : vector<8x128xf32>
    %cst_216 = arith.constant 0.833333313 : f32
    %716 = vector.broadcast %cst_216 : f32 to vector<8x128xf32>
    %717 = arith.mulf %715, %716 : vector<8x128xf32>
    %718 = arith.mulf %579, %677 : vector<8x128xf32>
    %719 = arith.mulf %587, %682 : vector<8x128xf32>
    %720 = arith.subf %718, %719 : vector<8x128xf32>
    %cst_217 = arith.constant 0.833333313 : f32
    %721 = vector.broadcast %cst_217 : f32 to vector<8x128xf32>
    %722 = arith.mulf %720, %721 : vector<8x128xf32>
    %c8_218 = arith.constant 8 : index
    %c0_219 = arith.constant 0 : index
    %723 = vector.load %arg7[%c8_218, %c0_219] : memref<288x128xf32, #tpu.memory_space<vmem>>, vector<8x128xf32>
    tpu.vector_store %arg7[%c8_218, %c0_219], %495 {strides = array<i32>} : memref<288x128xf32, #tpu.memory_space<vmem>>, vector<8x128xf32>,
    %c24_220 = arith.constant 24 : index
    %c0_221 = arith.constant 0 : index
    %724 = vector.load %arg7[%c24_220, %c0_221] : memref<288x128xf32, #tpu.memory_space<vmem>>, vector<8x128xf32>
    tpu.vector_store %arg7[%c24_220, %c0_221], %687 {strides = array<i32>} : memref<288x128xf32, #tpu.memory_space<vmem>>, vector<8x128xf32>,
    %c40_222 = arith.constant 40 : index
    %c0_223 = arith.constant 0 : index
    %725 = vector.load %arg7[%c40_222, %c0_223] : memref<288x128xf32, #tpu.memory_space<vmem>>, vector<8x128xf32>
    tpu.vector_store %arg7[%c40_222, %c0_223], %692 {strides = array<i32>} : memref<288x128xf32, #tpu.memory_space<vmem>>, vector<8x128xf32>,
    %c56_224 = arith.constant 56 : index
    %c0_225 = arith.constant 0 : index
    %726 = vector.load %arg7[%c56_224, %c0_225] : memref<288x128xf32, #tpu.memory_space<vmem>>, vector<8x128xf32>
    tpu.vector_store %arg7[%c56_224, %c0_225], %697 {strides = array<i32>} : memref<288x128xf32, #tpu.memory_space<vmem>>, vector<8x128xf32>,
    %c72 = arith.constant 72 : index
    %c0_226 = arith.constant 0 : index
    %727 = vector.load %arg7[%c72, %c0_226] : memref<288x128xf32, #tpu.memory_space<vmem>>, vector<8x128xf32>
    tpu.vector_store %arg7[%c72, %c0_226], %702 {strides = array<i32>} : memref<288x128xf32, #tpu.memory_space<vmem>>, vector<8x128xf32>,
    %c88 = arith.constant 88 : index
    %c0_227 = arith.constant 0 : index
    %728 = vector.load %arg7[%c88, %c0_227] : memref<288x128xf32, #tpu.memory_space<vmem>>, vector<8x128xf32>
    tpu.vector_store %arg7[%c88, %c0_227], %707 {strides = array<i32>} : memref<288x128xf32, #tpu.memory_space<vmem>>, vector<8x128xf32>,
    %c104 = arith.constant 104 : index
    %c0_228 = arith.constant 0 : index
    %729 = vector.load %arg7[%c104, %c0_228] : memref<288x128xf32, #tpu.memory_space<vmem>>, vector<8x128xf32>
    tpu.vector_store %arg7[%c104, %c0_228], %712 {strides = array<i32>} : memref<288x128xf32, #tpu.memory_space<vmem>>, vector<8x128xf32>,
    %c120 = arith.constant 120 : index
    %c0_229 = arith.constant 0 : index
    %730 = vector.load %arg7[%c120, %c0_229] : memref<288x128xf32, #tpu.memory_space<vmem>>, vector<8x128xf32>
    tpu.vector_store %arg7[%c120, %c0_229], %717 {strides = array<i32>} : memref<288x128xf32, #tpu.memory_space<vmem>>, vector<8x128xf32>,
    %c136 = arith.constant 136 : index
    %c0_230 = arith.constant 0 : index
    %731 = vector.load %arg7[%c136, %c0_230] : memref<288x128xf32, #tpu.memory_space<vmem>>, vector<8x128xf32>
    tpu.vector_store %arg7[%c136, %c0_230], %722 {strides = array<i32>} : memref<288x128xf32, #tpu.memory_space<vmem>>, vector<8x128xf32>,
    %c0_231 = arith.constant 0 : index
    %c0_232 = arith.constant 0 : index
    %732 = vector.load %arg3[%c0_231, %c0_232] : memref<32x144xf32, #tpu.memory_space<vmem>>, vector<32x144xf32>
    %c0_233 = arith.constant 0 : index
    %c0_234 = arith.constant 0 : index
    %733 = vector.load %arg7[%c0_233, %c0_234] : memref<288x128xf32, #tpu.memory_space<vmem>>, vector<144x128xf32>
    %cst_235 = arith.constant dense<0.000000e+00> : vector<32x128xf32>
    %734 = tpu.matmul %732, %733, %cst_235 {dimension_numbers = #tpu.dot_dimension_numbers<[1], [0], [0], [1], [0, 0, 1, 1], [], []>} : vector<32x144xf32>, vector<144x128xf32>, vector<32x128xf32> -> vector<32x128xf32>
    %735 = vector.extract_strided_slice %734 {offsets = [0, 0], sizes = [8, 128], strides = [1, 1]} : vector<32x128xf32> to vector<8x128xf32>
    %736 = arith.negf %735 : vector<8x128xf32>
    %737 = math.exp %736 : vector<8x128xf32>
    %cst_236 = arith.constant 1.000000e+00 : f32
    %738 = vector.broadcast %cst_236 : f32 to vector<8x128xf32>
    %739 = arith.addf %738, %737 : vector<8x128xf32>
    %740 = arith.divf %738, %739 : vector<8x128xf32>
    %741 = arith.mulf %735, %740 : vector<8x128xf32>
    %cst_237 = arith.constant -2.200000e+00 : f32
    %742 = vector.broadcast %cst_237 : f32 to vector<8x128xf32>
    %743 = arith.cmpf oge, %735, %742 : vector<8x128xf32>
    %cst_238 = arith.constant -1.800000e+00 : f32
    %744 = vector.broadcast %cst_238 : f32 to vector<8x128xf32>
    %745 = arith.cmpf oge, %735, %744 : vector<8x128xf32>
    %cst_239 = arith.constant -1.400000e+00 : f32
    %746 = vector.broadcast %cst_239 : f32 to vector<8x128xf32>
    %747 = arith.cmpf oge, %735, %746 : vector<8x128xf32>
    %cst_240 = arith.constant -1.000000e+00 : f32
    %748 = vector.broadcast %cst_240 : f32 to vector<8x128xf32>
    %749 = arith.cmpf oge, %735, %748 : vector<8x128xf32>
    %cst_241 = arith.constant -6.000000e-01 : f32
    %750 = vector.broadcast %cst_241 : f32 to vector<8x128xf32>
    %751 = arith.cmpf oge, %735, %750 : vector<8x128xf32>
    %cst_242 = arith.constant -2.000000e-01 : f32
    %752 = vector.broadcast %cst_242 : f32 to vector<8x128xf32>
    %753 = arith.cmpf oge, %735, %752 : vector<8x128xf32>
    %cst_243 = arith.constant 2.000000e-01 : f32
    %754 = vector.broadcast %cst_243 : f32 to vector<8x128xf32>
    %755 = arith.cmpf oge, %735, %754 : vector<8x128xf32>
    %cst_244 = arith.constant 6.000000e-01 : f32
    %756 = vector.broadcast %cst_244 : f32 to vector<8x128xf32>
    %757 = arith.cmpf oge, %735, %756 : vector<8x128xf32>
    %cst_245 = arith.constant 1.000000e+00 : f32
    %758 = vector.broadcast %cst_245 : f32 to vector<8x128xf32>
    %759 = arith.cmpf oge, %735, %758 : vector<8x128xf32>
    %cst_246 = arith.constant 1.400000e+00 : f32
    %760 = vector.broadcast %cst_246 : f32 to vector<8x128xf32>
    %761 = arith.cmpf oge, %735, %760 : vector<8x128xf32>
    %cst_247 = arith.constant 1.800000e+00 : f32
    %762 = vector.broadcast %cst_247 : f32 to vector<8x128xf32>
    %763 = arith.cmpf oge, %735, %762 : vector<8x128xf32>
    %cst_248 = arith.constant 2.200000e+00 : f32
    %764 = vector.broadcast %cst_248 : f32 to vector<8x128xf32>
    %765 = arith.cmpf oge, %735, %764 : vector<8x128xf32>
    %cst_249 = arith.constant dense<true> : vector<8x128xi1>
    %766 = arith.xori %745, %cst_249 : vector<8x128xi1>
    %767 = arith.andi %743, %766 : vector<8x128xi1>
    %768 = arith.extui %767 : vector<8x128xi1> to vector<8x128xi32>
    %769 = arith.sitofp %768 : vector<8x128xi32> to vector<8x128xf32>
    %cst_250 = arith.constant dense<true> : vector<8x128xi1>
    %770 = arith.xori %747, %cst_250 : vector<8x128xi1>
    %771 = arith.andi %745, %770 : vector<8x128xi1>
    %772 = arith.extui %771 : vector<8x128xi1> to vector<8x128xi32>
    %773 = arith.sitofp %772 : vector<8x128xi32> to vector<8x128xf32>
    %cst_251 = arith.constant dense<true> : vector<8x128xi1>
    %774 = arith.xori %749, %cst_251 : vector<8x128xi1>
    %775 = arith.andi %747, %774 : vector<8x128xi1>
    %776 = arith.extui %775 : vector<8x128xi1> to vector<8x128xi32>
    %777 = arith.sitofp %776 : vector<8x128xi32> to vector<8x128xf32>
    %cst_252 = arith.constant dense<true> : vector<8x128xi1>
    %778 = arith.xori %751, %cst_252 : vector<8x128xi1>
    %779 = arith.andi %749, %778 : vector<8x128xi1>
    %780 = arith.extui %779 : vector<8x128xi1> to vector<8x128xi32>
    %781 = arith.sitofp %780 : vector<8x128xi32> to vector<8x128xf32>
    %cst_253 = arith.constant dense<true> : vector<8x128xi1>
    %782 = arith.xori %753, %cst_253 : vector<8x128xi1>
    %783 = arith.andi %751, %782 : vector<8x128xi1>
    %784 = arith.extui %783 : vector<8x128xi1> to vector<8x128xi32>
    %785 = arith.sitofp %784 : vector<8x128xi32> to vector<8x128xf32>
    %cst_254 = arith.constant dense<true> : vector<8x128xi1>
    %786 = arith.xori %755, %cst_254 : vector<8x128xi1>
    %787 = arith.andi %753, %786 : vector<8x128xi1>
    %788 = arith.extui %787 : vector<8x128xi1> to vector<8x128xi32>
    %789 = arith.sitofp %788 : vector<8x128xi32> to vector<8x128xf32>
    %cst_255 = arith.constant dense<true> : vector<8x128xi1>
    %790 = arith.xori %757, %cst_255 : vector<8x128xi1>
    %791 = arith.andi %755, %790 : vector<8x128xi1>
    %792 = arith.extui %791 : vector<8x128xi1> to vector<8x128xi32>
    %793 = arith.sitofp %792 : vector<8x128xi32> to vector<8x128xf32>
    %cst_256 = arith.constant dense<true> : vector<8x128xi1>
    %794 = arith.xori %759, %cst_256 : vector<8x128xi1>
    %795 = arith.andi %757, %794 : vector<8x128xi1>
    %796 = arith.extui %795 : vector<8x128xi1> to vector<8x128xi32>
    %797 = arith.sitofp %796 : vector<8x128xi32> to vector<8x128xf32>
    %cst_257 = arith.constant dense<true> : vector<8x128xi1>
    %798 = arith.xori %761, %cst_257 : vector<8x128xi1>
    %799 = arith.andi %759, %798 : vector<8x128xi1>
    %800 = arith.extui %799 : vector<8x128xi1> to vector<8x128xi32>
    %801 = arith.sitofp %800 : vector<8x128xi32> to vector<8x128xf32>
    %cst_258 = arith.constant dense<true> : vector<8x128xi1>
    %802 = arith.xori %763, %cst_258 : vector<8x128xi1>
    %803 = arith.andi %761, %802 : vector<8x128xi1>
    %804 = arith.extui %803 : vector<8x128xi1> to vector<8x128xi32>
    %805 = arith.sitofp %804 : vector<8x128xi32> to vector<8x128xf32>
    %cst_259 = arith.constant dense<true> : vector<8x128xi1>
    %806 = arith.xori %765, %cst_259 : vector<8x128xi1>
    %807 = arith.andi %763, %806 : vector<8x128xi1>
    %808 = arith.extui %807 : vector<8x128xi1> to vector<8x128xi32>
    %809 = arith.sitofp %808 : vector<8x128xi32> to vector<8x128xf32>
    %cst_260 = arith.constant -2.200000e+00 : f32
    %810 = vector.broadcast %cst_260 : f32 to vector<8x128xf32>
    %811 = arith.subf %735, %810 : vector<8x128xf32>
    %cst_261 = arith.constant -1.800000e+00 : f32
    %812 = vector.broadcast %cst_261 : f32 to vector<8x128xf32>
    %813 = arith.subf %735, %812 : vector<8x128xf32>
    %cst_262 = arith.constant -1.400000e+00 : f32
    %814 = vector.broadcast %cst_262 : f32 to vector<8x128xf32>
    %815 = arith.subf %735, %814 : vector<8x128xf32>
    %cst_263 = arith.constant -1.000000e+00 : f32
    %816 = vector.broadcast %cst_263 : f32 to vector<8x128xf32>
    %817 = arith.subf %735, %816 : vector<8x128xf32>
    %cst_264 = arith.constant -6.000000e-01 : f32
    %818 = vector.broadcast %cst_264 : f32 to vector<8x128xf32>
    %819 = arith.subf %735, %818 : vector<8x128xf32>
    %cst_265 = arith.constant -2.000000e-01 : f32
    %820 = vector.broadcast %cst_265 : f32 to vector<8x128xf32>
    %821 = arith.subf %735, %820 : vector<8x128xf32>
    %cst_266 = arith.constant 2.000000e-01 : f32
    %822 = vector.broadcast %cst_266 : f32 to vector<8x128xf32>
    %823 = arith.subf %735, %822 : vector<8x128xf32>
    %cst_267 = arith.constant 6.000000e-01 : f32
    %824 = vector.broadcast %cst_267 : f32 to vector<8x128xf32>
    %825 = arith.subf %735, %824 : vector<8x128xf32>
    %cst_268 = arith.constant 1.000000e+00 : f32
    %826 = vector.broadcast %cst_268 : f32 to vector<8x128xf32>
    %827 = arith.subf %735, %826 : vector<8x128xf32>
    %cst_269 = arith.constant 1.400000e+00 : f32
    %828 = vector.broadcast %cst_269 : f32 to vector<8x128xf32>
    %829 = arith.subf %735, %828 : vector<8x128xf32>
    %cst_270 = arith.constant 1.800000e+00 : f32
    %830 = vector.broadcast %cst_270 : f32 to vector<8x128xf32>
    %831 = arith.subf %735, %830 : vector<8x128xf32>
    %cst_271 = arith.constant 2.200000e+00 : f32
    %832 = vector.broadcast %cst_271 : f32 to vector<8x128xf32>
    %833 = arith.subf %735, %832 : vector<8x128xf32>
    %834 = arith.mulf %811, %769 : vector<8x128xf32>
    %835 = arith.mulf %815, %773 : vector<8x128xf32>
    %836 = arith.subf %834, %835 : vector<8x128xf32>
    %cst_272 = arith.constant 2.500000e+00 : f32
    %837 = vector.broadcast %cst_272 : f32 to vector<8x128xf32>
    %838 = arith.mulf %836, %837 : vector<8x128xf32>
    %839 = arith.mulf %813, %773 : vector<8x128xf32>
    %840 = arith.mulf %817, %777 : vector<8x128xf32>
    %841 = arith.subf %839, %840 : vector<8x128xf32>
    %cst_273 = arith.constant 2.500000e+00 : f32
    %842 = vector.broadcast %cst_273 : f32 to vector<8x128xf32>
    %843 = arith.mulf %841, %842 : vector<8x128xf32>
    %844 = arith.mulf %815, %777 : vector<8x128xf32>
    %845 = arith.mulf %819, %781 : vector<8x128xf32>
    %846 = arith.subf %844, %845 : vector<8x128xf32>
    %cst_274 = arith.constant 2.500000e+00 : f32
    %847 = vector.broadcast %cst_274 : f32 to vector<8x128xf32>
    %848 = arith.mulf %846, %847 : vector<8x128xf32>
    %849 = arith.mulf %817, %781 : vector<8x128xf32>
    %850 = arith.mulf %821, %785 : vector<8x128xf32>
    %851 = arith.subf %849, %850 : vector<8x128xf32>
    %cst_275 = arith.constant 2.500000e+00 : f32
    %852 = vector.broadcast %cst_275 : f32 to vector<8x128xf32>
    %853 = arith.mulf %851, %852 : vector<8x128xf32>
    %854 = arith.mulf %819, %785 : vector<8x128xf32>
    %855 = arith.mulf %823, %789 : vector<8x128xf32>
    %856 = arith.subf %854, %855 : vector<8x128xf32>
    %cst_276 = arith.constant 2.500000e+00 : f32
    %857 = vector.broadcast %cst_276 : f32 to vector<8x128xf32>
    %858 = arith.mulf %856, %857 : vector<8x128xf32>
    %859 = arith.mulf %821, %789 : vector<8x128xf32>
    %860 = arith.mulf %825, %793 : vector<8x128xf32>
    %861 = arith.subf %859, %860 : vector<8x128xf32>
    %cst_277 = arith.constant 2.500000e+00 : f32
    %862 = vector.broadcast %cst_277 : f32 to vector<8x128xf32>
    %863 = arith.mulf %861, %862 : vector<8x128xf32>
    %864 = arith.mulf %823, %793 : vector<8x128xf32>
    %865 = arith.mulf %827, %797 : vector<8x128xf32>
    %866 = arith.subf %864, %865 : vector<8x128xf32>
    %cst_278 = arith.constant 2.500000e+00 : f32
    %867 = vector.broadcast %cst_278 : f32 to vector<8x128xf32>
    %868 = arith.mulf %866, %867 : vector<8x128xf32>
    %869 = arith.mulf %825, %797 : vector<8x128xf32>
    %870 = arith.mulf %829, %801 : vector<8x128xf32>
    %871 = arith.subf %869, %870 : vector<8x128xf32>
    %cst_279 = arith.constant 2.500000e+00 : f32
    %872 = vector.broadcast %cst_279 : f32 to vector<8x128xf32>
    %873 = arith.mulf %871, %872 : vector<8x128xf32>
    %874 = arith.mulf %827, %801 : vector<8x128xf32>
    %875 = arith.mulf %831, %805 : vector<8x128xf32>
    %876 = arith.subf %874, %875 : vector<8x128xf32>
    %cst_280 = arith.constant 2.500000e+00 : f32
    %877 = vector.broadcast %cst_280 : f32 to vector<8x128xf32>
    %878 = arith.mulf %876, %877 : vector<8x128xf32>
    %879 = arith.mulf %829, %805 : vector<8x128xf32>
    %880 = arith.mulf %833, %809 : vector<8x128xf32>
    %881 = arith.subf %879, %880 : vector<8x128xf32>
    %cst_281 = arith.constant 2.500000e+00 : f32
    %882 = vector.broadcast %cst_281 : f32 to vector<8x128xf32>
    %883 = arith.mulf %881, %882 : vector<8x128xf32>
    %884 = arith.mulf %811, %838 : vector<8x128xf32>
    %885 = arith.mulf %817, %843 : vector<8x128xf32>
    %886 = arith.subf %884, %885 : vector<8x128xf32>
    %cst_282 = arith.constant 1.250000e+00 : f32
    %887 = vector.broadcast %cst_282 : f32 to vector<8x128xf32>
    %888 = arith.mulf %886, %887 : vector<8x128xf32>
    %889 = arith.mulf %813, %843 : vector<8x128xf32>
    %890 = arith.mulf %819, %848 : vector<8x128xf32>
    %891 = arith.subf %889, %890 : vector<8x128xf32>
    %cst_283 = arith.constant 1.250000e+00 : f32
    %892 = vector.broadcast %cst_283 : f32 to vector<8x128xf32>
    %893 = arith.mulf %891, %892 : vector<8x128xf32>
    %894 = arith.mulf %815, %848 : vector<8x128xf32>
    %895 = arith.mulf %821, %853 : vector<8x128xf32>
    %896 = arith.subf %894, %895 : vector<8x128xf32>
    %cst_284 = arith.constant 1.250000e+00 : f32
    %897 = vector.broadcast %cst_284 : f32 to vector<8x128xf32>
    %898 = arith.mulf %896, %897 : vector<8x128xf32>
    %899 = arith.mulf %817, %853 : vector<8x128xf32>
    %900 = arith.mulf %823, %858 : vector<8x128xf32>
    %901 = arith.subf %899, %900 : vector<8x128xf32>
    %cst_285 = arith.constant 1.250000e+00 : f32
    %902 = vector.broadcast %cst_285 : f32 to vector<8x128xf32>
    %903 = arith.mulf %901, %902 : vector<8x128xf32>
    %904 = arith.mulf %819, %858 : vector<8x128xf32>
    %905 = arith.mulf %825, %863 : vector<8x128xf32>
    %906 = arith.subf %904, %905 : vector<8x128xf32>
    %cst_286 = arith.constant 1.250000e+00 : f32
    %907 = vector.broadcast %cst_286 : f32 to vector<8x128xf32>
    %908 = arith.mulf %906, %907 : vector<8x128xf32>
    %909 = arith.mulf %821, %863 : vector<8x128xf32>
    %910 = arith.mulf %827, %868 : vector<8x128xf32>
    %911 = arith.subf %909, %910 : vector<8x128xf32>
    %cst_287 = arith.constant 1.250000e+00 : f32
    %912 = vector.broadcast %cst_287 : f32 to vector<8x128xf32>
    %913 = arith.mulf %911, %912 : vector<8x128xf32>
    %914 = arith.mulf %823, %868 : vector<8x128xf32>
    %915 = arith.mulf %829, %873 : vector<8x128xf32>
    %916 = arith.subf %914, %915 : vector<8x128xf32>
    %cst_288 = arith.constant 1.250000e+00 : f32
    %917 = vector.broadcast %cst_288 : f32 to vector<8x128xf32>
    %918 = arith.mulf %916, %917 : vector<8x128xf32>
    %919 = arith.mulf %825, %873 : vector<8x128xf32>
    %920 = arith.mulf %831, %878 : vector<8x128xf32>
    %921 = arith.subf %919, %920 : vector<8x128xf32>
    %cst_289 = arith.constant 1.250000e+00 : f32
    %922 = vector.broadcast %cst_289 : f32 to vector<8x128xf32>
    %923 = arith.mulf %921, %922 : vector<8x128xf32>
    %924 = arith.mulf %827, %878 : vector<8x128xf32>
    %925 = arith.mulf %833, %883 : vector<8x128xf32>
    %926 = arith.subf %924, %925 : vector<8x128xf32>
    %cst_290 = arith.constant 1.250000e+00 : f32
    %927 = vector.broadcast %cst_290 : f32 to vector<8x128xf32>
    %928 = arith.mulf %926, %927 : vector<8x128xf32>
    %929 = arith.mulf %811, %888 : vector<8x128xf32>
    %930 = arith.mulf %819, %893 : vector<8x128xf32>
    %931 = arith.subf %929, %930 : vector<8x128xf32>
    %cst_291 = arith.constant 0.833333313 : f32
    %932 = vector.broadcast %cst_291 : f32 to vector<8x128xf32>
    %933 = arith.mulf %931, %932 : vector<8x128xf32>
    %934 = arith.mulf %813, %893 : vector<8x128xf32>
    %935 = arith.mulf %821, %898 : vector<8x128xf32>
    %936 = arith.subf %934, %935 : vector<8x128xf32>
    %cst_292 = arith.constant 0.833333313 : f32
    %937 = vector.broadcast %cst_292 : f32 to vector<8x128xf32>
    %938 = arith.mulf %936, %937 : vector<8x128xf32>
    %939 = arith.mulf %815, %898 : vector<8x128xf32>
    %940 = arith.mulf %823, %903 : vector<8x128xf32>
    %941 = arith.subf %939, %940 : vector<8x128xf32>
    %cst_293 = arith.constant 0.833333313 : f32
    %942 = vector.broadcast %cst_293 : f32 to vector<8x128xf32>
    %943 = arith.mulf %941, %942 : vector<8x128xf32>
    %944 = arith.mulf %817, %903 : vector<8x128xf32>
    %945 = arith.mulf %825, %908 : vector<8x128xf32>
    %946 = arith.subf %944, %945 : vector<8x128xf32>
    %cst_294 = arith.constant 0.833333313 : f32
    %947 = vector.broadcast %cst_294 : f32 to vector<8x128xf32>
    %948 = arith.mulf %946, %947 : vector<8x128xf32>
    %949 = arith.mulf %819, %908 : vector<8x128xf32>
    %950 = arith.mulf %827, %913 : vector<8x128xf32>
    %951 = arith.subf %949, %950 : vector<8x128xf32>
    %cst_295 = arith.constant 0.833333313 : f32
    %952 = vector.broadcast %cst_295 : f32 to vector<8x128xf32>
    %953 = arith.mulf %951, %952 : vector<8x128xf32>
    %954 = arith.mulf %821, %913 : vector<8x128xf32>
    %955 = arith.mulf %829, %918 : vector<8x128xf32>
    %956 = arith.subf %954, %955 : vector<8x128xf32>
    %cst_296 = arith.constant 0.833333313 : f32
    %957 = vector.broadcast %cst_296 : f32 to vector<8x128xf32>
    %958 = arith.mulf %956, %957 : vector<8x128xf32>
    %959 = arith.mulf %823, %918 : vector<8x128xf32>
    %960 = arith.mulf %831, %923 : vector<8x128xf32>
    %961 = arith.subf %959, %960 : vector<8x128xf32>
    %cst_297 = arith.constant 0.833333313 : f32
    %962 = vector.broadcast %cst_297 : f32 to vector<8x128xf32>
    %963 = arith.mulf %961, %962 : vector<8x128xf32>
    %964 = arith.mulf %825, %923 : vector<8x128xf32>
    %965 = arith.mulf %833, %928 : vector<8x128xf32>
    %966 = arith.subf %964, %965 : vector<8x128xf32>
    %cst_298 = arith.constant 0.833333313 : f32
    %967 = vector.broadcast %cst_298 : f32 to vector<8x128xf32>
    %968 = arith.mulf %966, %967 : vector<8x128xf32>
    %c0_299 = arith.constant 0 : index
    %c0_300 = arith.constant 0 : index
    %969 = vector.load %arg7[%c0_299, %c0_300] : memref<288x128xf32, #tpu.memory_space<vmem>>, vector<8x128xf32>
    tpu.vector_store %arg7[%c0_299, %c0_300], %741 {strides = array<i32>} : memref<288x128xf32, #tpu.memory_space<vmem>>, vector<8x128xf32>,
    %c32_301 = arith.constant 32 : index
    %c0_302 = arith.constant 0 : index
    %970 = vector.load %arg7[%c32_301, %c0_302] : memref<288x128xf32, #tpu.memory_space<vmem>>, vector<8x128xf32>
    tpu.vector_store %arg7[%c32_301, %c0_302], %933 {strides = array<i32>} : memref<288x128xf32, #tpu.memory_space<vmem>>, vector<8x128xf32>,
    %c64_303 = arith.constant 64 : index
    %c0_304 = arith.constant 0 : index
    %971 = vector.load %arg7[%c64_303, %c0_304] : memref<288x128xf32, #tpu.memory_space<vmem>>, vector<8x128xf32>
    tpu.vector_store %arg7[%c64_303, %c0_304], %938 {strides = array<i32>} : memref<288x128xf32, #tpu.memory_space<vmem>>, vector<8x128xf32>,
    %c96_305 = arith.constant 96 : index
    %c0_306 = arith.constant 0 : index
    %972 = vector.load %arg7[%c96_305, %c0_306] : memref<288x128xf32, #tpu.memory_space<vmem>>, vector<8x128xf32>
    tpu.vector_store %arg7[%c96_305, %c0_306], %943 {strides = array<i32>} : memref<288x128xf32, #tpu.memory_space<vmem>>, vector<8x128xf32>,
    %c128_307 = arith.constant 128 : index
    %c0_308 = arith.constant 0 : index
    %973 = vector.load %arg7[%c128_307, %c0_308] : memref<288x128xf32, #tpu.memory_space<vmem>>, vector<8x128xf32>
    tpu.vector_store %arg7[%c128_307, %c0_308], %948 {strides = array<i32>} : memref<288x128xf32, #tpu.memory_space<vmem>>, vector<8x128xf32>,
    %c160 = arith.constant 160 : index
    %c0_309 = arith.constant 0 : index
    %974 = vector.load %arg7[%c160, %c0_309] : memref<288x128xf32, #tpu.memory_space<vmem>>, vector<8x128xf32>
    tpu.vector_store %arg7[%c160, %c0_309], %953 {strides = array<i32>} : memref<288x128xf32, #tpu.memory_space<vmem>>, vector<8x128xf32>,
    %c192 = arith.constant 192 : index
    %c0_310 = arith.constant 0 : index
    %975 = vector.load %arg7[%c192, %c0_310] : memref<288x128xf32, #tpu.memory_space<vmem>>, vector<8x128xf32>
    tpu.vector_store %arg7[%c192, %c0_310], %958 {strides = array<i32>} : memref<288x128xf32, #tpu.memory_space<vmem>>, vector<8x128xf32>,
    %c224 = arith.constant 224 : index
    %c0_311 = arith.constant 0 : index
    %976 = vector.load %arg7[%c224, %c0_311] : memref<288x128xf32, #tpu.memory_space<vmem>>, vector<8x128xf32>
    tpu.vector_store %arg7[%c224, %c0_311], %963 {strides = array<i32>} : memref<288x128xf32, #tpu.memory_space<vmem>>, vector<8x128xf32>,
    %c256 = arith.constant 256 : index
    %c0_312 = arith.constant 0 : index
    %977 = vector.load %arg7[%c256, %c0_312] : memref<288x128xf32, #tpu.memory_space<vmem>>, vector<8x128xf32>
    tpu.vector_store %arg7[%c256, %c0_312], %968 {strides = array<i32>} : memref<288x128xf32, #tpu.memory_space<vmem>>, vector<8x128xf32>,
    %978 = vector.extract_strided_slice %734 {offsets = [8, 0], sizes = [8, 128], strides = [1, 1]} : vector<32x128xf32> to vector<8x128xf32>
    %979 = arith.negf %978 : vector<8x128xf32>
    %980 = math.exp %979 : vector<8x128xf32>
    %cst_313 = arith.constant 1.000000e+00 : f32
    %981 = vector.broadcast %cst_313 : f32 to vector<8x128xf32>
    %982 = arith.addf %981, %980 : vector<8x128xf32>
    %983 = arith.divf %981, %982 : vector<8x128xf32>
    %984 = arith.mulf %978, %983 : vector<8x128xf32>
    %cst_314 = arith.constant -2.200000e+00 : f32
    %985 = vector.broadcast %cst_314 : f32 to vector<8x128xf32>
    %986 = arith.cmpf oge, %978, %985 : vector<8x128xf32>
    %cst_315 = arith.constant -1.800000e+00 : f32
    %987 = vector.broadcast %cst_315 : f32 to vector<8x128xf32>
    %988 = arith.cmpf oge, %978, %987 : vector<8x128xf32>
    %cst_316 = arith.constant -1.400000e+00 : f32
    %989 = vector.broadcast %cst_316 : f32 to vector<8x128xf32>
    %990 = arith.cmpf oge, %978, %989 : vector<8x128xf32>
    %cst_317 = arith.constant -1.000000e+00 : f32
    %991 = vector.broadcast %cst_317 : f32 to vector<8x128xf32>
    %992 = arith.cmpf oge, %978, %991 : vector<8x128xf32>
    %cst_318 = arith.constant -6.000000e-01 : f32
    %993 = vector.broadcast %cst_318 : f32 to vector<8x128xf32>
    %994 = arith.cmpf oge, %978, %993 : vector<8x128xf32>
    %cst_319 = arith.constant -2.000000e-01 : f32
    %995 = vector.broadcast %cst_319 : f32 to vector<8x128xf32>
    %996 = arith.cmpf oge, %978, %995 : vector<8x128xf32>
    %cst_320 = arith.constant 2.000000e-01 : f32
    %997 = vector.broadcast %cst_320 : f32 to vector<8x128xf32>
    %998 = arith.cmpf oge, %978, %997 : vector<8x128xf32>
    %cst_321 = arith.constant 6.000000e-01 : f32
    %999 = vector.broadcast %cst_321 : f32 to vector<8x128xf32>
    %1000 = arith.cmpf oge, %978, %999 : vector<8x128xf32>
    %cst_322 = arith.constant 1.000000e+00 : f32
    %1001 = vector.broadcast %cst_322 : f32 to vector<8x128xf32>
    %1002 = arith.cmpf oge, %978, %1001 : vector<8x128xf32>
    %cst_323 = arith.constant 1.400000e+00 : f32
    %1003 = vector.broadcast %cst_323 : f32 to vector<8x128xf32>
    %1004 = arith.cmpf oge, %978, %1003 : vector<8x128xf32>
    %cst_324 = arith.constant 1.800000e+00 : f32
    %1005 = vector.broadcast %cst_324 : f32 to vector<8x128xf32>
    %1006 = arith.cmpf oge, %978, %1005 : vector<8x128xf32>
    %cst_325 = arith.constant 2.200000e+00 : f32
    %1007 = vector.broadcast %cst_325 : f32 to vector<8x128xf32>
    %1008 = arith.cmpf oge, %978, %1007 : vector<8x128xf32>
    %cst_326 = arith.constant dense<true> : vector<8x128xi1>
    %1009 = arith.xori %988, %cst_326 : vector<8x128xi1>
    %1010 = arith.andi %986, %1009 : vector<8x128xi1>
    %1011 = arith.extui %1010 : vector<8x128xi1> to vector<8x128xi32>
    %1012 = arith.sitofp %1011 : vector<8x128xi32> to vector<8x128xf32>
    %cst_327 = arith.constant dense<true> : vector<8x128xi1>
    %1013 = arith.xori %990, %cst_327 : vector<8x128xi1>
    %1014 = arith.andi %988, %1013 : vector<8x128xi1>
    %1015 = arith.extui %1014 : vector<8x128xi1> to vector<8x128xi32>
    %1016 = arith.sitofp %1015 : vector<8x128xi32> to vector<8x128xf32>
    %cst_328 = arith.constant dense<true> : vector<8x128xi1>
    %1017 = arith.xori %992, %cst_328 : vector<8x128xi1>
    %1018 = arith.andi %990, %1017 : vector<8x128xi1>
    %1019 = arith.extui %1018 : vector<8x128xi1> to vector<8x128xi32>
    %1020 = arith.sitofp %1019 : vector<8x128xi32> to vector<8x128xf32>
    %cst_329 = arith.constant dense<true> : vector<8x128xi1>
    %1021 = arith.xori %994, %cst_329 : vector<8x128xi1>
    %1022 = arith.andi %992, %1021 : vector<8x128xi1>
    %1023 = arith.extui %1022 : vector<8x128xi1> to vector<8x128xi32>
    %1024 = arith.sitofp %1023 : vector<8x128xi32> to vector<8x128xf32>
    %cst_330 = arith.constant dense<true> : vector<8x128xi1>
    %1025 = arith.xori %996, %cst_330 : vector<8x128xi1>
    %1026 = arith.andi %994, %1025 : vector<8x128xi1>
    %1027 = arith.extui %1026 : vector<8x128xi1> to vector<8x128xi32>
    %1028 = arith.sitofp %1027 : vector<8x128xi32> to vector<8x128xf32>
    %cst_331 = arith.constant dense<true> : vector<8x128xi1>
    %1029 = arith.xori %998, %cst_331 : vector<8x128xi1>
    %1030 = arith.andi %996, %1029 : vector<8x128xi1>
    %1031 = arith.extui %1030 : vector<8x128xi1> to vector<8x128xi32>
    %1032 = arith.sitofp %1031 : vector<8x128xi32> to vector<8x128xf32>
    %cst_332 = arith.constant dense<true> : vector<8x128xi1>
    %1033 = arith.xori %1000, %cst_332 : vector<8x128xi1>
    %1034 = arith.andi %998, %1033 : vector<8x128xi1>
    %1035 = arith.extui %1034 : vector<8x128xi1> to vector<8x128xi32>
    %1036 = arith.sitofp %1035 : vector<8x128xi32> to vector<8x128xf32>
    %cst_333 = arith.constant dense<true> : vector<8x128xi1>
    %1037 = arith.xori %1002, %cst_333 : vector<8x128xi1>
    %1038 = arith.andi %1000, %1037 : vector<8x128xi1>
    %1039 = arith.extui %1038 : vector<8x128xi1> to vector<8x128xi32>
    %1040 = arith.sitofp %1039 : vector<8x128xi32> to vector<8x128xf32>
    %cst_334 = arith.constant dense<true> : vector<8x128xi1>
    %1041 = arith.xori %1004, %cst_334 : vector<8x128xi1>
    %1042 = arith.andi %1002, %1041 : vector<8x128xi1>
    %1043 = arith.extui %1042 : vector<8x128xi1> to vector<8x128xi32>
    %1044 = arith.sitofp %1043 : vector<8x128xi32> to vector<8x128xf32>
    %cst_335 = arith.constant dense<true> : vector<8x128xi1>
    %1045 = arith.xori %1006, %cst_335 : vector<8x128xi1>
    %1046 = arith.andi %1004, %1045 : vector<8x128xi1>
    %1047 = arith.extui %1046 : vector<8x128xi1> to vector<8x128xi32>
    %1048 = arith.sitofp %1047 : vector<8x128xi32> to vector<8x128xf32>
    %cst_336 = arith.constant dense<true> : vector<8x128xi1>
    %1049 = arith.xori %1008, %cst_336 : vector<8x128xi1>
    %1050 = arith.andi %1006, %1049 : vector<8x128xi1>
    %1051 = arith.extui %1050 : vector<8x128xi1> to vector<8x128xi32>
    %1052 = arith.sitofp %1051 : vector<8x128xi32> to vector<8x128xf32>
    %cst_337 = arith.constant -2.200000e+00 : f32
    %1053 = vector.broadcast %cst_337 : f32 to vector<8x128xf32>
    %1054 = arith.subf %978, %1053 : vector<8x128xf32>
    %cst_338 = arith.constant -1.800000e+00 : f32
    %1055 = vector.broadcast %cst_338 : f32 to vector<8x128xf32>
    %1056 = arith.subf %978, %1055 : vector<8x128xf32>
    %cst_339 = arith.constant -1.400000e+00 : f32
    %1057 = vector.broadcast %cst_339 : f32 to vector<8x128xf32>
    %1058 = arith.subf %978, %1057 : vector<8x128xf32>
    %cst_340 = arith.constant -1.000000e+00 : f32
    %1059 = vector.broadcast %cst_340 : f32 to vector<8x128xf32>
    %1060 = arith.subf %978, %1059 : vector<8x128xf32>
    %cst_341 = arith.constant -6.000000e-01 : f32
    %1061 = vector.broadcast %cst_341 : f32 to vector<8x128xf32>
    %1062 = arith.subf %978, %1061 : vector<8x128xf32>
    %cst_342 = arith.constant -2.000000e-01 : f32
    %1063 = vector.broadcast %cst_342 : f32 to vector<8x128xf32>
    %1064 = arith.subf %978, %1063 : vector<8x128xf32>
    %cst_343 = arith.constant 2.000000e-01 : f32
    %1065 = vector.broadcast %cst_343 : f32 to vector<8x128xf32>
    %1066 = arith.subf %978, %1065 : vector<8x128xf32>
    %cst_344 = arith.constant 6.000000e-01 : f32
    %1067 = vector.broadcast %cst_344 : f32 to vector<8x128xf32>
    %1068 = arith.subf %978, %1067 : vector<8x128xf32>
    %cst_345 = arith.constant 1.000000e+00 : f32
    %1069 = vector.broadcast %cst_345 : f32 to vector<8x128xf32>
    %1070 = arith.subf %978, %1069 : vector<8x128xf32>
    %cst_346 = arith.constant 1.400000e+00 : f32
    %1071 = vector.broadcast %cst_346 : f32 to vector<8x128xf32>
    %1072 = arith.subf %978, %1071 : vector<8x128xf32>
    %cst_347 = arith.constant 1.800000e+00 : f32
    %1073 = vector.broadcast %cst_347 : f32 to vector<8x128xf32>
    %1074 = arith.subf %978, %1073 : vector<8x128xf32>
    %cst_348 = arith.constant 2.200000e+00 : f32
    %1075 = vector.broadcast %cst_348 : f32 to vector<8x128xf32>
    %1076 = arith.subf %978, %1075 : vector<8x128xf32>
    %1077 = arith.mulf %1054, %1012 : vector<8x128xf32>
    %1078 = arith.mulf %1058, %1016 : vector<8x128xf32>
    %1079 = arith.subf %1077, %1078 : vector<8x128xf32>
    %cst_349 = arith.constant 2.500000e+00 : f32
    %1080 = vector.broadcast %cst_349 : f32 to vector<8x128xf32>
    %1081 = arith.mulf %1079, %1080 : vector<8x128xf32>
    %1082 = arith.mulf %1056, %1016 : vector<8x128xf32>
    %1083 = arith.mulf %1060, %1020 : vector<8x128xf32>
    %1084 = arith.subf %1082, %1083 : vector<8x128xf32>
    %cst_350 = arith.constant 2.500000e+00 : f32
    %1085 = vector.broadcast %cst_350 : f32 to vector<8x128xf32>
    %1086 = arith.mulf %1084, %1085 : vector<8x128xf32>
    %1087 = arith.mulf %1058, %1020 : vector<8x128xf32>
    %1088 = arith.mulf %1062, %1024 : vector<8x128xf32>
    %1089 = arith.subf %1087, %1088 : vector<8x128xf32>
    %cst_351 = arith.constant 2.500000e+00 : f32
    %1090 = vector.broadcast %cst_351 : f32 to vector<8x128xf32>
    %1091 = arith.mulf %1089, %1090 : vector<8x128xf32>
    %1092 = arith.mulf %1060, %1024 : vector<8x128xf32>
    %1093 = arith.mulf %1064, %1028 : vector<8x128xf32>
    %1094 = arith.subf %1092, %1093 : vector<8x128xf32>
    %cst_352 = arith.constant 2.500000e+00 : f32
    %1095 = vector.broadcast %cst_352 : f32 to vector<8x128xf32>
    %1096 = arith.mulf %1094, %1095 : vector<8x128xf32>
    %1097 = arith.mulf %1062, %1028 : vector<8x128xf32>
    %1098 = arith.mulf %1066, %1032 : vector<8x128xf32>
    %1099 = arith.subf %1097, %1098 : vector<8x128xf32>
    %cst_353 = arith.constant 2.500000e+00 : f32
    %1100 = vector.broadcast %cst_353 : f32 to vector<8x128xf32>
    %1101 = arith.mulf %1099, %1100 : vector<8x128xf32>
    %1102 = arith.mulf %1064, %1032 : vector<8x128xf32>
    %1103 = arith.mulf %1068, %1036 : vector<8x128xf32>
    %1104 = arith.subf %1102, %1103 : vector<8x128xf32>
    %cst_354 = arith.constant 2.500000e+00 : f32
    %1105 = vector.broadcast %cst_354 : f32 to vector<8x128xf32>
    %1106 = arith.mulf %1104, %1105 : vector<8x128xf32>
    %1107 = arith.mulf %1066, %1036 : vector<8x128xf32>
    %1108 = arith.mulf %1070, %1040 : vector<8x128xf32>
    %1109 = arith.subf %1107, %1108 : vector<8x128xf32>
    %cst_355 = arith.constant 2.500000e+00 : f32
    %1110 = vector.broadcast %cst_355 : f32 to vector<8x128xf32>
    %1111 = arith.mulf %1109, %1110 : vector<8x128xf32>
    %1112 = arith.mulf %1068, %1040 : vector<8x128xf32>
    %1113 = arith.mulf %1072, %1044 : vector<8x128xf32>
    %1114 = arith.subf %1112, %1113 : vector<8x128xf32>
    %cst_356 = arith.constant 2.500000e+00 : f32
    %1115 = vector.broadcast %cst_356 : f32 to vector<8x128xf32>
    %1116 = arith.mulf %1114, %1115 : vector<8x128xf32>
    %1117 = arith.mulf %1070, %1044 : vector<8x128xf32>
    %1118 = arith.mulf %1074, %1048 : vector<8x128xf32>
    %1119 = arith.subf %1117, %1118 : vector<8x128xf32>
    %cst_357 = arith.constant 2.500000e+00 : f32
    %1120 = vector.broadcast %cst_357 : f32 to vector<8x128xf32>
    %1121 = arith.mulf %1119, %1120 : vector<8x128xf32>
    %1122 = arith.mulf %1072, %1048 : vector<8x128xf32>
    %1123 = arith.mulf %1076, %1052 : vector<8x128xf32>
    %1124 = arith.subf %1122, %1123 : vector<8x128xf32>
    %cst_358 = arith.constant 2.500000e+00 : f32
    %1125 = vector.broadcast %cst_358 : f32 to vector<8x128xf32>
    %1126 = arith.mulf %1124, %1125 : vector<8x128xf32>
    %1127 = arith.mulf %1054, %1081 : vector<8x128xf32>
    %1128 = arith.mulf %1060, %1086 : vector<8x128xf32>
    %1129 = arith.subf %1127, %1128 : vector<8x128xf32>
    %cst_359 = arith.constant 1.250000e+00 : f32
    %1130 = vector.broadcast %cst_359 : f32 to vector<8x128xf32>
    %1131 = arith.mulf %1129, %1130 : vector<8x128xf32>
    %1132 = arith.mulf %1056, %1086 : vector<8x128xf32>
    %1133 = arith.mulf %1062, %1091 : vector<8x128xf32>
    %1134 = arith.subf %1132, %1133 : vector<8x128xf32>
    %cst_360 = arith.constant 1.250000e+00 : f32
    %1135 = vector.broadcast %cst_360 : f32 to vector<8x128xf32>
    %1136 = arith.mulf %1134, %1135 : vector<8x128xf32>
    %1137 = arith.mulf %1058, %1091 : vector<8x128xf32>
    %1138 = arith.mulf %1064, %1096 : vector<8x128xf32>
    %1139 = arith.subf %1137, %1138 : vector<8x128xf32>
    %cst_361 = arith.constant 1.250000e+00 : f32
    %1140 = vector.broadcast %cst_361 : f32 to vector<8x128xf32>
    %1141 = arith.mulf %1139, %1140 : vector<8x128xf32>
    %1142 = arith.mulf %1060, %1096 : vector<8x128xf32>
    %1143 = arith.mulf %1066, %1101 : vector<8x128xf32>
    %1144 = arith.subf %1142, %1143 : vector<8x128xf32>
    %cst_362 = arith.constant 1.250000e+00 : f32
    %1145 = vector.broadcast %cst_362 : f32 to vector<8x128xf32>
    %1146 = arith.mulf %1144, %1145 : vector<8x128xf32>
    %1147 = arith.mulf %1062, %1101 : vector<8x128xf32>
    %1148 = arith.mulf %1068, %1106 : vector<8x128xf32>
    %1149 = arith.subf %1147, %1148 : vector<8x128xf32>
    %cst_363 = arith.constant 1.250000e+00 : f32
    %1150 = vector.broadcast %cst_363 : f32 to vector<8x128xf32>
    %1151 = arith.mulf %1149, %1150 : vector<8x128xf32>
    %1152 = arith.mulf %1064, %1106 : vector<8x128xf32>
    %1153 = arith.mulf %1070, %1111 : vector<8x128xf32>
    %1154 = arith.subf %1152, %1153 : vector<8x128xf32>
    %cst_364 = arith.constant 1.250000e+00 : f32
    %1155 = vector.broadcast %cst_364 : f32 to vector<8x128xf32>
    %1156 = arith.mulf %1154, %1155 : vector<8x128xf32>
    %1157 = arith.mulf %1066, %1111 : vector<8x128xf32>
    %1158 = arith.mulf %1072, %1116 : vector<8x128xf32>
    %1159 = arith.subf %1157, %1158 : vector<8x128xf32>
    %cst_365 = arith.constant 1.250000e+00 : f32
    %1160 = vector.broadcast %cst_365 : f32 to vector<8x128xf32>
    %1161 = arith.mulf %1159, %1160 : vector<8x128xf32>
    %1162 = arith.mulf %1068, %1116 : vector<8x128xf32>
    %1163 = arith.mulf %1074, %1121 : vector<8x128xf32>
    %1164 = arith.subf %1162, %1163 : vector<8x128xf32>
    %cst_366 = arith.constant 1.250000e+00 : f32
    %1165 = vector.broadcast %cst_366 : f32 to vector<8x128xf32>
    %1166 = arith.mulf %1164, %1165 : vector<8x128xf32>
    %1167 = arith.mulf %1070, %1121 : vector<8x128xf32>
    %1168 = arith.mulf %1076, %1126 : vector<8x128xf32>
    %1169 = arith.subf %1167, %1168 : vector<8x128xf32>
    %cst_367 = arith.constant 1.250000e+00 : f32
    %1170 = vector.broadcast %cst_367 : f32 to vector<8x128xf32>
    %1171 = arith.mulf %1169, %1170 : vector<8x128xf32>
    %1172 = arith.mulf %1054, %1131 : vector<8x128xf32>
    %1173 = arith.mulf %1062, %1136 : vector<8x128xf32>
    %1174 = arith.subf %1172, %1173 : vector<8x128xf32>
    %cst_368 = arith.constant 0.833333313 : f32
    %1175 = vector.broadcast %cst_368 : f32 to vector<8x128xf32>
    %1176 = arith.mulf %1174, %1175 : vector<8x128xf32>
    %1177 = arith.mulf %1056, %1136 : vector<8x128xf32>
    %1178 = arith.mulf %1064, %1141 : vector<8x128xf32>
    %1179 = arith.subf %1177, %1178 : vector<8x128xf32>
    %cst_369 = arith.constant 0.833333313 : f32
    %1180 = vector.broadcast %cst_369 : f32 to vector<8x128xf32>
    %1181 = arith.mulf %1179, %1180 : vector<8x128xf32>
    %1182 = arith.mulf %1058, %1141 : vector<8x128xf32>
    %1183 = arith.mulf %1066, %1146 : vector<8x128xf32>
    %1184 = arith.subf %1182, %1183 : vector<8x128xf32>
    %cst_370 = arith.constant 0.833333313 : f32
    %1185 = vector.broadcast %cst_370 : f32 to vector<8x128xf32>
    %1186 = arith.mulf %1184, %1185 : vector<8x128xf32>
    %1187 = arith.mulf %1060, %1146 : vector<8x128xf32>
    %1188 = arith.mulf %1068, %1151 : vector<8x128xf32>
    %1189 = arith.subf %1187, %1188 : vector<8x128xf32>
    %cst_371 = arith.constant 0.833333313 : f32
    %1190 = vector.broadcast %cst_371 : f32 to vector<8x128xf32>
    %1191 = arith.mulf %1189, %1190 : vector<8x128xf32>
    %1192 = arith.mulf %1062, %1151 : vector<8x128xf32>
    %1193 = arith.mulf %1070, %1156 : vector<8x128xf32>
    %1194 = arith.subf %1192, %1193 : vector<8x128xf32>
    %cst_372 = arith.constant 0.833333313 : f32
    %1195 = vector.broadcast %cst_372 : f32 to vector<8x128xf32>
    %1196 = arith.mulf %1194, %1195 : vector<8x128xf32>
    %1197 = arith.mulf %1064, %1156 : vector<8x128xf32>
    %1198 = arith.mulf %1072, %1161 : vector<8x128xf32>
    %1199 = arith.subf %1197, %1198 : vector<8x128xf32>
    %cst_373 = arith.constant 0.833333313 : f32
    %1200 = vector.broadcast %cst_373 : f32 to vector<8x128xf32>
    %1201 = arith.mulf %1199, %1200 : vector<8x128xf32>
    %1202 = arith.mulf %1066, %1161 : vector<8x128xf32>
    %1203 = arith.mulf %1074, %1166 : vector<8x128xf32>
    %1204 = arith.subf %1202, %1203 : vector<8x128xf32>
    %cst_374 = arith.constant 0.833333313 : f32
    %1205 = vector.broadcast %cst_374 : f32 to vector<8x128xf32>
    %1206 = arith.mulf %1204, %1205 : vector<8x128xf32>
    %1207 = arith.mulf %1068, %1166 : vector<8x128xf32>
    %1208 = arith.mulf %1076, %1171 : vector<8x128xf32>
    %1209 = arith.subf %1207, %1208 : vector<8x128xf32>
    %cst_375 = arith.constant 0.833333313 : f32
    %1210 = vector.broadcast %cst_375 : f32 to vector<8x128xf32>
    %1211 = arith.mulf %1209, %1210 : vector<8x128xf32>
    %c8_376 = arith.constant 8 : index
    %c0_377 = arith.constant 0 : index
    %1212 = vector.load %arg7[%c8_376, %c0_377] : memref<288x128xf32, #tpu.memory_space<vmem>>, vector<8x128xf32>
    tpu.vector_store %arg7[%c8_376, %c0_377], %984 {strides = array<i32>} : memref<288x128xf32, #tpu.memory_space<vmem>>, vector<8x128xf32>,
    %c40_378 = arith.constant 40 : index
    %c0_379 = arith.constant 0 : index
    %1213 = vector.load %arg7[%c40_378, %c0_379] : memref<288x128xf32, #tpu.memory_space<vmem>>, vector<8x128xf32>
    tpu.vector_store %arg7[%c40_378, %c0_379], %1176 {strides = array<i32>} : memref<288x128xf32, #tpu.memory_space<vmem>>, vector<8x128xf32>,
    %c72_380 = arith.constant 72 : index
    %c0_381 = arith.constant 0 : index
    %1214 = vector.load %arg7[%c72_380, %c0_381] : memref<288x128xf32, #tpu.memory_space<vmem>>, vector<8x128xf32>
    tpu.vector_store %arg7[%c72_380, %c0_381], %1181 {strides = array<i32>} : memref<288x128xf32, #tpu.memory_space<vmem>>, vector<8x128xf32>,
    %c104_382 = arith.constant 104 : index
    %c0_383 = arith.constant 0 : index
    %1215 = vector.load %arg7[%c104_382, %c0_383] : memref<288x128xf32, #tpu.memory_space<vmem>>, vector<8x128xf32>
    tpu.vector_store %arg7[%c104_382, %c0_383], %1186 {strides = array<i32>} : memref<288x128xf32, #tpu.memory_space<vmem>>, vector<8x128xf32>,
    %c136_384 = arith.constant 136 : index
    %c0_385 = arith.constant 0 : index
    %1216 = vector.load %arg7[%c136_384, %c0_385] : memref<288x128xf32, #tpu.memory_space<vmem>>, vector<8x128xf32>
    tpu.vector_store %arg7[%c136_384, %c0_385], %1191 {strides = array<i32>} : memref<288x128xf32, #tpu.memory_space<vmem>>, vector<8x128xf32>,
    %c168 = arith.constant 168 : index
    %c0_386 = arith.constant 0 : index
    %1217 = vector.load %arg7[%c168, %c0_386] : memref<288x128xf32, #tpu.memory_space<vmem>>, vector<8x128xf32>
    tpu.vector_store %arg7[%c168, %c0_386], %1196 {strides = array<i32>} : memref<288x128xf32, #tpu.memory_space<vmem>>, vector<8x128xf32>,
    %c200 = arith.constant 200 : index
    %c0_387 = arith.constant 0 : index
    %1218 = vector.load %arg7[%c200, %c0_387] : memref<288x128xf32, #tpu.memory_space<vmem>>, vector<8x128xf32>
    tpu.vector_store %arg7[%c200, %c0_387], %1201 {strides = array<i32>} : memref<288x128xf32, #tpu.memory_space<vmem>>, vector<8x128xf32>,
    %c232 = arith.constant 232 : index
    %c0_388 = arith.constant 0 : index
    %1219 = vector.load %arg7[%c232, %c0_388] : memref<288x128xf32, #tpu.memory_space<vmem>>, vector<8x128xf32>
    tpu.vector_store %arg7[%c232, %c0_388], %1206 {strides = array<i32>} : memref<288x128xf32, #tpu.memory_space<vmem>>, vector<8x128xf32>,
    %c264 = arith.constant 264 : index
    %c0_389 = arith.constant 0 : index
    %1220 = vector.load %arg7[%c264, %c0_389] : memref<288x128xf32, #tpu.memory_space<vmem>>, vector<8x128xf32>
    tpu.vector_store %arg7[%c264, %c0_389], %1211 {strides = array<i32>} : memref<288x128xf32, #tpu.memory_space<vmem>>, vector<8x128xf32>,
    %1221 = vector.extract_strided_slice %734 {offsets = [16, 0], sizes = [8, 128], strides = [1, 1]} : vector<32x128xf32> to vector<8x128xf32>
    %1222 = arith.negf %1221 : vector<8x128xf32>
    %1223 = math.exp %1222 : vector<8x128xf32>
    %cst_390 = arith.constant 1.000000e+00 : f32
    %1224 = vector.broadcast %cst_390 : f32 to vector<8x128xf32>
    %1225 = arith.addf %1224, %1223 : vector<8x128xf32>
    %1226 = arith.divf %1224, %1225 : vector<8x128xf32>
    %1227 = arith.mulf %1221, %1226 : vector<8x128xf32>
    %cst_391 = arith.constant -2.200000e+00 : f32
    %1228 = vector.broadcast %cst_391 : f32 to vector<8x128xf32>
    %1229 = arith.cmpf oge, %1221, %1228 : vector<8x128xf32>
    %cst_392 = arith.constant -1.800000e+00 : f32
    %1230 = vector.broadcast %cst_392 : f32 to vector<8x128xf32>
    %1231 = arith.cmpf oge, %1221, %1230 : vector<8x128xf32>
    %cst_393 = arith.constant -1.400000e+00 : f32
    %1232 = vector.broadcast %cst_393 : f32 to vector<8x128xf32>
    %1233 = arith.cmpf oge, %1221, %1232 : vector<8x128xf32>
    %cst_394 = arith.constant -1.000000e+00 : f32
    %1234 = vector.broadcast %cst_394 : f32 to vector<8x128xf32>
    %1235 = arith.cmpf oge, %1221, %1234 : vector<8x128xf32>
    %cst_395 = arith.constant -6.000000e-01 : f32
    %1236 = vector.broadcast %cst_395 : f32 to vector<8x128xf32>
    %1237 = arith.cmpf oge, %1221, %1236 : vector<8x128xf32>
    %cst_396 = arith.constant -2.000000e-01 : f32
    %1238 = vector.broadcast %cst_396 : f32 to vector<8x128xf32>
    %1239 = arith.cmpf oge, %1221, %1238 : vector<8x128xf32>
    %cst_397 = arith.constant 2.000000e-01 : f32
    %1240 = vector.broadcast %cst_397 : f32 to vector<8x128xf32>
    %1241 = arith.cmpf oge, %1221, %1240 : vector<8x128xf32>
    %cst_398 = arith.constant 6.000000e-01 : f32
    %1242 = vector.broadcast %cst_398 : f32 to vector<8x128xf32>
    %1243 = arith.cmpf oge, %1221, %1242 : vector<8x128xf32>
    %cst_399 = arith.constant 1.000000e+00 : f32
    %1244 = vector.broadcast %cst_399 : f32 to vector<8x128xf32>
    %1245 = arith.cmpf oge, %1221, %1244 : vector<8x128xf32>
    %cst_400 = arith.constant 1.400000e+00 : f32
    %1246 = vector.broadcast %cst_400 : f32 to vector<8x128xf32>
    %1247 = arith.cmpf oge, %1221, %1246 : vector<8x128xf32>
    %cst_401 = arith.constant 1.800000e+00 : f32
    %1248 = vector.broadcast %cst_401 : f32 to vector<8x128xf32>
    %1249 = arith.cmpf oge, %1221, %1248 : vector<8x128xf32>
    %cst_402 = arith.constant 2.200000e+00 : f32
    %1250 = vector.broadcast %cst_402 : f32 to vector<8x128xf32>
    %1251 = arith.cmpf oge, %1221, %1250 : vector<8x128xf32>
    %cst_403 = arith.constant dense<true> : vector<8x128xi1>
    %1252 = arith.xori %1231, %cst_403 : vector<8x128xi1>
    %1253 = arith.andi %1229, %1252 : vector<8x128xi1>
    %1254 = arith.extui %1253 : vector<8x128xi1> to vector<8x128xi32>
    %1255 = arith.sitofp %1254 : vector<8x128xi32> to vector<8x128xf32>
    %cst_404 = arith.constant dense<true> : vector<8x128xi1>
    %1256 = arith.xori %1233, %cst_404 : vector<8x128xi1>
    %1257 = arith.andi %1231, %1256 : vector<8x128xi1>
    %1258 = arith.extui %1257 : vector<8x128xi1> to vector<8x128xi32>
    %1259 = arith.sitofp %1258 : vector<8x128xi32> to vector<8x128xf32>
    %cst_405 = arith.constant dense<true> : vector<8x128xi1>
    %1260 = arith.xori %1235, %cst_405 : vector<8x128xi1>
    %1261 = arith.andi %1233, %1260 : vector<8x128xi1>
    %1262 = arith.extui %1261 : vector<8x128xi1> to vector<8x128xi32>
    %1263 = arith.sitofp %1262 : vector<8x128xi32> to vector<8x128xf32>
    %cst_406 = arith.constant dense<true> : vector<8x128xi1>
    %1264 = arith.xori %1237, %cst_406 : vector<8x128xi1>
    %1265 = arith.andi %1235, %1264 : vector<8x128xi1>
    %1266 = arith.extui %1265 : vector<8x128xi1> to vector<8x128xi32>
    %1267 = arith.sitofp %1266 : vector<8x128xi32> to vector<8x128xf32>
    %cst_407 = arith.constant dense<true> : vector<8x128xi1>
    %1268 = arith.xori %1239, %cst_407 : vector<8x128xi1>
    %1269 = arith.andi %1237, %1268 : vector<8x128xi1>
    %1270 = arith.extui %1269 : vector<8x128xi1> to vector<8x128xi32>
    %1271 = arith.sitofp %1270 : vector<8x128xi32> to vector<8x128xf32>
    %cst_408 = arith.constant dense<true> : vector<8x128xi1>
    %1272 = arith.xori %1241, %cst_408 : vector<8x128xi1>
    %1273 = arith.andi %1239, %1272 : vector<8x128xi1>
    %1274 = arith.extui %1273 : vector<8x128xi1> to vector<8x128xi32>
    %1275 = arith.sitofp %1274 : vector<8x128xi32> to vector<8x128xf32>
    %cst_409 = arith.constant dense<true> : vector<8x128xi1>
    %1276 = arith.xori %1243, %cst_409 : vector<8x128xi1>
    %1277 = arith.andi %1241, %1276 : vector<8x128xi1>
    %1278 = arith.extui %1277 : vector<8x128xi1> to vector<8x128xi32>
    %1279 = arith.sitofp %1278 : vector<8x128xi32> to vector<8x128xf32>
    %cst_410 = arith.constant dense<true> : vector<8x128xi1>
    %1280 = arith.xori %1245, %cst_410 : vector<8x128xi1>
    %1281 = arith.andi %1243, %1280 : vector<8x128xi1>
    %1282 = arith.extui %1281 : vector<8x128xi1> to vector<8x128xi32>
    %1283 = arith.sitofp %1282 : vector<8x128xi32> to vector<8x128xf32>
    %cst_411 = arith.constant dense<true> : vector<8x128xi1>
    %1284 = arith.xori %1247, %cst_411 : vector<8x128xi1>
    %1285 = arith.andi %1245, %1284 : vector<8x128xi1>
    %1286 = arith.extui %1285 : vector<8x128xi1> to vector<8x128xi32>
    %1287 = arith.sitofp %1286 : vector<8x128xi32> to vector<8x128xf32>
    %cst_412 = arith.constant dense<true> : vector<8x128xi1>
    %1288 = arith.xori %1249, %cst_412 : vector<8x128xi1>
    %1289 = arith.andi %1247, %1288 : vector<8x128xi1>
    %1290 = arith.extui %1289 : vector<8x128xi1> to vector<8x128xi32>
    %1291 = arith.sitofp %1290 : vector<8x128xi32> to vector<8x128xf32>
    %cst_413 = arith.constant dense<true> : vector<8x128xi1>
    %1292 = arith.xori %1251, %cst_413 : vector<8x128xi1>
    %1293 = arith.andi %1249, %1292 : vector<8x128xi1>
    %1294 = arith.extui %1293 : vector<8x128xi1> to vector<8x128xi32>
    %1295 = arith.sitofp %1294 : vector<8x128xi32> to vector<8x128xf32>
    %cst_414 = arith.constant -2.200000e+00 : f32
    %1296 = vector.broadcast %cst_414 : f32 to vector<8x128xf32>
    %1297 = arith.subf %1221, %1296 : vector<8x128xf32>
    %cst_415 = arith.constant -1.800000e+00 : f32
    %1298 = vector.broadcast %cst_415 : f32 to vector<8x128xf32>
    %1299 = arith.subf %1221, %1298 : vector<8x128xf32>
    %cst_416 = arith.constant -1.400000e+00 : f32
    %1300 = vector.broadcast %cst_416 : f32 to vector<8x128xf32>
    %1301 = arith.subf %1221, %1300 : vector<8x128xf32>
    %cst_417 = arith.constant -1.000000e+00 : f32
    %1302 = vector.broadcast %cst_417 : f32 to vector<8x128xf32>
    %1303 = arith.subf %1221, %1302 : vector<8x128xf32>
    %cst_418 = arith.constant -6.000000e-01 : f32
    %1304 = vector.broadcast %cst_418 : f32 to vector<8x128xf32>
    %1305 = arith.subf %1221, %1304 : vector<8x128xf32>
    %cst_419 = arith.constant -2.000000e-01 : f32
    %1306 = vector.broadcast %cst_419 : f32 to vector<8x128xf32>
    %1307 = arith.subf %1221, %1306 : vector<8x128xf32>
    %cst_420 = arith.constant 2.000000e-01 : f32
    %1308 = vector.broadcast %cst_420 : f32 to vector<8x128xf32>
    %1309 = arith.subf %1221, %1308 : vector<8x128xf32>
    %cst_421 = arith.constant 6.000000e-01 : f32
    %1310 = vector.broadcast %cst_421 : f32 to vector<8x128xf32>
    %1311 = arith.subf %1221, %1310 : vector<8x128xf32>
    %cst_422 = arith.constant 1.000000e+00 : f32
    %1312 = vector.broadcast %cst_422 : f32 to vector<8x128xf32>
    %1313 = arith.subf %1221, %1312 : vector<8x128xf32>
    %cst_423 = arith.constant 1.400000e+00 : f32
    %1314 = vector.broadcast %cst_423 : f32 to vector<8x128xf32>
    %1315 = arith.subf %1221, %1314 : vector<8x128xf32>
    %cst_424 = arith.constant 1.800000e+00 : f32
    %1316 = vector.broadcast %cst_424 : f32 to vector<8x128xf32>
    %1317 = arith.subf %1221, %1316 : vector<8x128xf32>
    %cst_425 = arith.constant 2.200000e+00 : f32
    %1318 = vector.broadcast %cst_425 : f32 to vector<8x128xf32>
    %1319 = arith.subf %1221, %1318 : vector<8x128xf32>
    %1320 = arith.mulf %1297, %1255 : vector<8x128xf32>
    %1321 = arith.mulf %1301, %1259 : vector<8x128xf32>
    %1322 = arith.subf %1320, %1321 : vector<8x128xf32>
    %cst_426 = arith.constant 2.500000e+00 : f32
    %1323 = vector.broadcast %cst_426 : f32 to vector<8x128xf32>
    %1324 = arith.mulf %1322, %1323 : vector<8x128xf32>
    %1325 = arith.mulf %1299, %1259 : vector<8x128xf32>
    %1326 = arith.mulf %1303, %1263 : vector<8x128xf32>
    %1327 = arith.subf %1325, %1326 : vector<8x128xf32>
    %cst_427 = arith.constant 2.500000e+00 : f32
    %1328 = vector.broadcast %cst_427 : f32 to vector<8x128xf32>
    %1329 = arith.mulf %1327, %1328 : vector<8x128xf32>
    %1330 = arith.mulf %1301, %1263 : vector<8x128xf32>
    %1331 = arith.mulf %1305, %1267 : vector<8x128xf32>
    %1332 = arith.subf %1330, %1331 : vector<8x128xf32>
    %cst_428 = arith.constant 2.500000e+00 : f32
    %1333 = vector.broadcast %cst_428 : f32 to vector<8x128xf32>
    %1334 = arith.mulf %1332, %1333 : vector<8x128xf32>
    %1335 = arith.mulf %1303, %1267 : vector<8x128xf32>
    %1336 = arith.mulf %1307, %1271 : vector<8x128xf32>
    %1337 = arith.subf %1335, %1336 : vector<8x128xf32>
    %cst_429 = arith.constant 2.500000e+00 : f32
    %1338 = vector.broadcast %cst_429 : f32 to vector<8x128xf32>
    %1339 = arith.mulf %1337, %1338 : vector<8x128xf32>
    %1340 = arith.mulf %1305, %1271 : vector<8x128xf32>
    %1341 = arith.mulf %1309, %1275 : vector<8x128xf32>
    %1342 = arith.subf %1340, %1341 : vector<8x128xf32>
    %cst_430 = arith.constant 2.500000e+00 : f32
    %1343 = vector.broadcast %cst_430 : f32 to vector<8x128xf32>
    %1344 = arith.mulf %1342, %1343 : vector<8x128xf32>
    %1345 = arith.mulf %1307, %1275 : vector<8x128xf32>
    %1346 = arith.mulf %1311, %1279 : vector<8x128xf32>
    %1347 = arith.subf %1345, %1346 : vector<8x128xf32>
    %cst_431 = arith.constant 2.500000e+00 : f32
    %1348 = vector.broadcast %cst_431 : f32 to vector<8x128xf32>
    %1349 = arith.mulf %1347, %1348 : vector<8x128xf32>
    %1350 = arith.mulf %1309, %1279 : vector<8x128xf32>
    %1351 = arith.mulf %1313, %1283 : vector<8x128xf32>
    %1352 = arith.subf %1350, %1351 : vector<8x128xf32>
    %cst_432 = arith.constant 2.500000e+00 : f32
    %1353 = vector.broadcast %cst_432 : f32 to vector<8x128xf32>
    %1354 = arith.mulf %1352, %1353 : vector<8x128xf32>
    %1355 = arith.mulf %1311, %1283 : vector<8x128xf32>
    %1356 = arith.mulf %1315, %1287 : vector<8x128xf32>
    %1357 = arith.subf %1355, %1356 : vector<8x128xf32>
    %cst_433 = arith.constant 2.500000e+00 : f32
    %1358 = vector.broadcast %cst_433 : f32 to vector<8x128xf32>
    %1359 = arith.mulf %1357, %1358 : vector<8x128xf32>
    %1360 = arith.mulf %1313, %1287 : vector<8x128xf32>
    %1361 = arith.mulf %1317, %1291 : vector<8x128xf32>
    %1362 = arith.subf %1360, %1361 : vector<8x128xf32>
    %cst_434 = arith.constant 2.500000e+00 : f32
    %1363 = vector.broadcast %cst_434 : f32 to vector<8x128xf32>
    %1364 = arith.mulf %1362, %1363 : vector<8x128xf32>
    %1365 = arith.mulf %1315, %1291 : vector<8x128xf32>
    %1366 = arith.mulf %1319, %1295 : vector<8x128xf32>
    %1367 = arith.subf %1365, %1366 : vector<8x128xf32>
    %cst_435 = arith.constant 2.500000e+00 : f32
    %1368 = vector.broadcast %cst_435 : f32 to vector<8x128xf32>
    %1369 = arith.mulf %1367, %1368 : vector<8x128xf32>
    %1370 = arith.mulf %1297, %1324 : vector<8x128xf32>
    %1371 = arith.mulf %1303, %1329 : vector<8x128xf32>
    %1372 = arith.subf %1370, %1371 : vector<8x128xf32>
    %cst_436 = arith.constant 1.250000e+00 : f32
    %1373 = vector.broadcast %cst_436 : f32 to vector<8x128xf32>
    %1374 = arith.mulf %1372, %1373 : vector<8x128xf32>
    %1375 = arith.mulf %1299, %1329 : vector<8x128xf32>
    %1376 = arith.mulf %1305, %1334 : vector<8x128xf32>
    %1377 = arith.subf %1375, %1376 : vector<8x128xf32>
    %cst_437 = arith.constant 1.250000e+00 : f32
    %1378 = vector.broadcast %cst_437 : f32 to vector<8x128xf32>
    %1379 = arith.mulf %1377, %1378 : vector<8x128xf32>
    %1380 = arith.mulf %1301, %1334 : vector<8x128xf32>
    %1381 = arith.mulf %1307, %1339 : vector<8x128xf32>
    %1382 = arith.subf %1380, %1381 : vector<8x128xf32>
    %cst_438 = arith.constant 1.250000e+00 : f32
    %1383 = vector.broadcast %cst_438 : f32 to vector<8x128xf32>
    %1384 = arith.mulf %1382, %1383 : vector<8x128xf32>
    %1385 = arith.mulf %1303, %1339 : vector<8x128xf32>
    %1386 = arith.mulf %1309, %1344 : vector<8x128xf32>
    %1387 = arith.subf %1385, %1386 : vector<8x128xf32>
    %cst_439 = arith.constant 1.250000e+00 : f32
    %1388 = vector.broadcast %cst_439 : f32 to vector<8x128xf32>
    %1389 = arith.mulf %1387, %1388 : vector<8x128xf32>
    %1390 = arith.mulf %1305, %1344 : vector<8x128xf32>
    %1391 = arith.mulf %1311, %1349 : vector<8x128xf32>
    %1392 = arith.subf %1390, %1391 : vector<8x128xf32>
    %cst_440 = arith.constant 1.250000e+00 : f32
    %1393 = vector.broadcast %cst_440 : f32 to vector<8x128xf32>
    %1394 = arith.mulf %1392, %1393 : vector<8x128xf32>
    %1395 = arith.mulf %1307, %1349 : vector<8x128xf32>
    %1396 = arith.mulf %1313, %1354 : vector<8x128xf32>
    %1397 = arith.subf %1395, %1396 : vector<8x128xf32>
    %cst_441 = arith.constant 1.250000e+00 : f32
    %1398 = vector.broadcast %cst_441 : f32 to vector<8x128xf32>
    %1399 = arith.mulf %1397, %1398 : vector<8x128xf32>
    %1400 = arith.mulf %1309, %1354 : vector<8x128xf32>
    %1401 = arith.mulf %1315, %1359 : vector<8x128xf32>
    %1402 = arith.subf %1400, %1401 : vector<8x128xf32>
    %cst_442 = arith.constant 1.250000e+00 : f32
    %1403 = vector.broadcast %cst_442 : f32 to vector<8x128xf32>
    %1404 = arith.mulf %1402, %1403 : vector<8x128xf32>
    %1405 = arith.mulf %1311, %1359 : vector<8x128xf32>
    %1406 = arith.mulf %1317, %1364 : vector<8x128xf32>
    %1407 = arith.subf %1405, %1406 : vector<8x128xf32>
    %cst_443 = arith.constant 1.250000e+00 : f32
    %1408 = vector.broadcast %cst_443 : f32 to vector<8x128xf32>
    %1409 = arith.mulf %1407, %1408 : vector<8x128xf32>
    %1410 = arith.mulf %1313, %1364 : vector<8x128xf32>
    %1411 = arith.mulf %1319, %1369 : vector<8x128xf32>
    %1412 = arith.subf %1410, %1411 : vector<8x128xf32>
    %cst_444 = arith.constant 1.250000e+00 : f32
    %1413 = vector.broadcast %cst_444 : f32 to vector<8x128xf32>
    %1414 = arith.mulf %1412, %1413 : vector<8x128xf32>
    %1415 = arith.mulf %1297, %1374 : vector<8x128xf32>
    %1416 = arith.mulf %1305, %1379 : vector<8x128xf32>
    %1417 = arith.subf %1415, %1416 : vector<8x128xf32>
    %cst_445 = arith.constant 0.833333313 : f32
    %1418 = vector.broadcast %cst_445 : f32 to vector<8x128xf32>
    %1419 = arith.mulf %1417, %1418 : vector<8x128xf32>
    %1420 = arith.mulf %1299, %1379 : vector<8x128xf32>
    %1421 = arith.mulf %1307, %1384 : vector<8x128xf32>
    %1422 = arith.subf %1420, %1421 : vector<8x128xf32>
    %cst_446 = arith.constant 0.833333313 : f32
    %1423 = vector.broadcast %cst_446 : f32 to vector<8x128xf32>
    %1424 = arith.mulf %1422, %1423 : vector<8x128xf32>
    %1425 = arith.mulf %1301, %1384 : vector<8x128xf32>
    %1426 = arith.mulf %1309, %1389 : vector<8x128xf32>
    %1427 = arith.subf %1425, %1426 : vector<8x128xf32>
    %cst_447 = arith.constant 0.833333313 : f32
    %1428 = vector.broadcast %cst_447 : f32 to vector<8x128xf32>
    %1429 = arith.mulf %1427, %1428 : vector<8x128xf32>
    %1430 = arith.mulf %1303, %1389 : vector<8x128xf32>
    %1431 = arith.mulf %1311, %1394 : vector<8x128xf32>
    %1432 = arith.subf %1430, %1431 : vector<8x128xf32>
    %cst_448 = arith.constant 0.833333313 : f32
    %1433 = vector.broadcast %cst_448 : f32 to vector<8x128xf32>
    %1434 = arith.mulf %1432, %1433 : vector<8x128xf32>
    %1435 = arith.mulf %1305, %1394 : vector<8x128xf32>
    %1436 = arith.mulf %1313, %1399 : vector<8x128xf32>
    %1437 = arith.subf %1435, %1436 : vector<8x128xf32>
    %cst_449 = arith.constant 0.833333313 : f32
    %1438 = vector.broadcast %cst_449 : f32 to vector<8x128xf32>
    %1439 = arith.mulf %1437, %1438 : vector<8x128xf32>
    %1440 = arith.mulf %1307, %1399 : vector<8x128xf32>
    %1441 = arith.mulf %1315, %1404 : vector<8x128xf32>
    %1442 = arith.subf %1440, %1441 : vector<8x128xf32>
    %cst_450 = arith.constant 0.833333313 : f32
    %1443 = vector.broadcast %cst_450 : f32 to vector<8x128xf32>
    %1444 = arith.mulf %1442, %1443 : vector<8x128xf32>
    %1445 = arith.mulf %1309, %1404 : vector<8x128xf32>
    %1446 = arith.mulf %1317, %1409 : vector<8x128xf32>
    %1447 = arith.subf %1445, %1446 : vector<8x128xf32>
    %cst_451 = arith.constant 0.833333313 : f32
    %1448 = vector.broadcast %cst_451 : f32 to vector<8x128xf32>
    %1449 = arith.mulf %1447, %1448 : vector<8x128xf32>
    %1450 = arith.mulf %1311, %1409 : vector<8x128xf32>
    %1451 = arith.mulf %1319, %1414 : vector<8x128xf32>
    %1452 = arith.subf %1450, %1451 : vector<8x128xf32>
    %cst_452 = arith.constant 0.833333313 : f32
    %1453 = vector.broadcast %cst_452 : f32 to vector<8x128xf32>
    %1454 = arith.mulf %1452, %1453 : vector<8x128xf32>
    %c16_453 = arith.constant 16 : index
    %c0_454 = arith.constant 0 : index
    %1455 = vector.load %arg7[%c16_453, %c0_454] : memref<288x128xf32, #tpu.memory_space<vmem>>, vector<8x128xf32>
    tpu.vector_store %arg7[%c16_453, %c0_454], %1227 {strides = array<i32>} : memref<288x128xf32, #tpu.memory_space<vmem>>, vector<8x128xf32>,
    %c48_455 = arith.constant 48 : index
    %c0_456 = arith.constant 0 : index
    %1456 = vector.load %arg7[%c48_455, %c0_456] : memref<288x128xf32, #tpu.memory_space<vmem>>, vector<8x128xf32>
    tpu.vector_store %arg7[%c48_455, %c0_456], %1419 {strides = array<i32>} : memref<288x128xf32, #tpu.memory_space<vmem>>, vector<8x128xf32>,
    %c80_457 = arith.constant 80 : index
    %c0_458 = arith.constant 0 : index
    %1457 = vector.load %arg7[%c80_457, %c0_458] : memref<288x128xf32, #tpu.memory_space<vmem>>, vector<8x128xf32>
    tpu.vector_store %arg7[%c80_457, %c0_458], %1424 {strides = array<i32>} : memref<288x128xf32, #tpu.memory_space<vmem>>, vector<8x128xf32>,
    %c112_459 = arith.constant 112 : index
    %c0_460 = arith.constant 0 : index
    %1458 = vector.load %arg7[%c112_459, %c0_460] : memref<288x128xf32, #tpu.memory_space<vmem>>, vector<8x128xf32>
    tpu.vector_store %arg7[%c112_459, %c0_460], %1429 {strides = array<i32>} : memref<288x128xf32, #tpu.memory_space<vmem>>, vector<8x128xf32>,
    %c144 = arith.constant 144 : index
    %c0_461 = arith.constant 0 : index
    %1459 = vector.load %arg7[%c144, %c0_461] : memref<288x128xf32, #tpu.memory_space<vmem>>, vector<8x128xf32>
    tpu.vector_store %arg7[%c144, %c0_461], %1434 {strides = array<i32>} : memref<288x128xf32, #tpu.memory_space<vmem>>, vector<8x128xf32>,
    %c176 = arith.constant 176 : index
    %c0_462 = arith.constant 0 : index
    %1460 = vector.load %arg7[%c176, %c0_462] : memref<288x128xf32, #tpu.memory_space<vmem>>, vector<8x128xf32>
    tpu.vector_store %arg7[%c176, %c0_462], %1439 {strides = array<i32>} : memref<288x128xf32, #tpu.memory_space<vmem>>, vector<8x128xf32>,
    %c208 = arith.constant 208 : index
    %c0_463 = arith.constant 0 : index
    %1461 = vector.load %arg7[%c208, %c0_463] : memref<288x128xf32, #tpu.memory_space<vmem>>, vector<8x128xf32>
    tpu.vector_store %arg7[%c208, %c0_463], %1444 {strides = array<i32>} : memref<288x128xf32, #tpu.memory_space<vmem>>, vector<8x128xf32>,
    %c240 = arith.constant 240 : index
    %c0_464 = arith.constant 0 : index
    %1462 = vector.load %arg7[%c240, %c0_464] : memref<288x128xf32, #tpu.memory_space<vmem>>, vector<8x128xf32>
    tpu.vector_store %arg7[%c240, %c0_464], %1449 {strides = array<i32>} : memref<288x128xf32, #tpu.memory_space<vmem>>, vector<8x128xf32>,
    %c272 = arith.constant 272 : index
    %c0_465 = arith.constant 0 : index
    %1463 = vector.load %arg7[%c272, %c0_465] : memref<288x128xf32, #tpu.memory_space<vmem>>, vector<8x128xf32>
    tpu.vector_store %arg7[%c272, %c0_465], %1454 {strides = array<i32>} : memref<288x128xf32, #tpu.memory_space<vmem>>, vector<8x128xf32>,
    %1464 = vector.extract_strided_slice %734 {offsets = [24, 0], sizes = [8, 128], strides = [1, 1]} : vector<32x128xf32> to vector<8x128xf32>
    %1465 = arith.negf %1464 : vector<8x128xf32>
    %1466 = math.exp %1465 : vector<8x128xf32>
    %cst_466 = arith.constant 1.000000e+00 : f32
    %1467 = vector.broadcast %cst_466 : f32 to vector<8x128xf32>
    %1468 = arith.addf %1467, %1466 : vector<8x128xf32>
    %1469 = arith.divf %1467, %1468 : vector<8x128xf32>
    %1470 = arith.mulf %1464, %1469 : vector<8x128xf32>
    %cst_467 = arith.constant -2.200000e+00 : f32
    %1471 = vector.broadcast %cst_467 : f32 to vector<8x128xf32>
    %1472 = arith.cmpf oge, %1464, %1471 : vector<8x128xf32>
    %cst_468 = arith.constant -1.800000e+00 : f32
    %1473 = vector.broadcast %cst_468 : f32 to vector<8x128xf32>
    %1474 = arith.cmpf oge, %1464, %1473 : vector<8x128xf32>
    %cst_469 = arith.constant -1.400000e+00 : f32
    %1475 = vector.broadcast %cst_469 : f32 to vector<8x128xf32>
    %1476 = arith.cmpf oge, %1464, %1475 : vector<8x128xf32>
    %cst_470 = arith.constant -1.000000e+00 : f32
    %1477 = vector.broadcast %cst_470 : f32 to vector<8x128xf32>
    %1478 = arith.cmpf oge, %1464, %1477 : vector<8x128xf32>
    %cst_471 = arith.constant -6.000000e-01 : f32
    %1479 = vector.broadcast %cst_471 : f32 to vector<8x128xf32>
    %1480 = arith.cmpf oge, %1464, %1479 : vector<8x128xf32>
    %cst_472 = arith.constant -2.000000e-01 : f32
    %1481 = vector.broadcast %cst_472 : f32 to vector<8x128xf32>
    %1482 = arith.cmpf oge, %1464, %1481 : vector<8x128xf32>
    %cst_473 = arith.constant 2.000000e-01 : f32
    %1483 = vector.broadcast %cst_473 : f32 to vector<8x128xf32>
    %1484 = arith.cmpf oge, %1464, %1483 : vector<8x128xf32>
    %cst_474 = arith.constant 6.000000e-01 : f32
    %1485 = vector.broadcast %cst_474 : f32 to vector<8x128xf32>
    %1486 = arith.cmpf oge, %1464, %1485 : vector<8x128xf32>
    %cst_475 = arith.constant 1.000000e+00 : f32
    %1487 = vector.broadcast %cst_475 : f32 to vector<8x128xf32>
    %1488 = arith.cmpf oge, %1464, %1487 : vector<8x128xf32>
    %cst_476 = arith.constant 1.400000e+00 : f32
    %1489 = vector.broadcast %cst_476 : f32 to vector<8x128xf32>
    %1490 = arith.cmpf oge, %1464, %1489 : vector<8x128xf32>
    %cst_477 = arith.constant 1.800000e+00 : f32
    %1491 = vector.broadcast %cst_477 : f32 to vector<8x128xf32>
    %1492 = arith.cmpf oge, %1464, %1491 : vector<8x128xf32>
    %cst_478 = arith.constant 2.200000e+00 : f32
    %1493 = vector.broadcast %cst_478 : f32 to vector<8x128xf32>
    %1494 = arith.cmpf oge, %1464, %1493 : vector<8x128xf32>
    %cst_479 = arith.constant dense<true> : vector<8x128xi1>
    %1495 = arith.xori %1474, %cst_479 : vector<8x128xi1>
    %1496 = arith.andi %1472, %1495 : vector<8x128xi1>
    %1497 = arith.extui %1496 : vector<8x128xi1> to vector<8x128xi32>
    %1498 = arith.sitofp %1497 : vector<8x128xi32> to vector<8x128xf32>
    %cst_480 = arith.constant dense<true> : vector<8x128xi1>
    %1499 = arith.xori %1476, %cst_480 : vector<8x128xi1>
    %1500 = arith.andi %1474, %1499 : vector<8x128xi1>
    %1501 = arith.extui %1500 : vector<8x128xi1> to vector<8x128xi32>
    %1502 = arith.sitofp %1501 : vector<8x128xi32> to vector<8x128xf32>
    %cst_481 = arith.constant dense<true> : vector<8x128xi1>
    %1503 = arith.xori %1478, %cst_481 : vector<8x128xi1>
    %1504 = arith.andi %1476, %1503 : vector<8x128xi1>
    %1505 = arith.extui %1504 : vector<8x128xi1> to vector<8x128xi32>
    %1506 = arith.sitofp %1505 : vector<8x128xi32> to vector<8x128xf32>
    %cst_482 = arith.constant dense<true> : vector<8x128xi1>
    %1507 = arith.xori %1480, %cst_482 : vector<8x128xi1>
    %1508 = arith.andi %1478, %1507 : vector<8x128xi1>
    %1509 = arith.extui %1508 : vector<8x128xi1> to vector<8x128xi32>
    %1510 = arith.sitofp %1509 : vector<8x128xi32> to vector<8x128xf32>
    %cst_483 = arith.constant dense<true> : vector<8x128xi1>
    %1511 = arith.xori %1482, %cst_483 : vector<8x128xi1>
    %1512 = arith.andi %1480, %1511 : vector<8x128xi1>
    %1513 = arith.extui %1512 : vector<8x128xi1> to vector<8x128xi32>
    %1514 = arith.sitofp %1513 : vector<8x128xi32> to vector<8x128xf32>
    %cst_484 = arith.constant dense<true> : vector<8x128xi1>
    %1515 = arith.xori %1484, %cst_484 : vector<8x128xi1>
    %1516 = arith.andi %1482, %1515 : vector<8x128xi1>
    %1517 = arith.extui %1516 : vector<8x128xi1> to vector<8x128xi32>
    %1518 = arith.sitofp %1517 : vector<8x128xi32> to vector<8x128xf32>
    %cst_485 = arith.constant dense<true> : vector<8x128xi1>
    %1519 = arith.xori %1486, %cst_485 : vector<8x128xi1>
    %1520 = arith.andi %1484, %1519 : vector<8x128xi1>
    %1521 = arith.extui %1520 : vector<8x128xi1> to vector<8x128xi32>
    %1522 = arith.sitofp %1521 : vector<8x128xi32> to vector<8x128xf32>
    %cst_486 = arith.constant dense<true> : vector<8x128xi1>
    %1523 = arith.xori %1488, %cst_486 : vector<8x128xi1>
    %1524 = arith.andi %1486, %1523 : vector<8x128xi1>
    %1525 = arith.extui %1524 : vector<8x128xi1> to vector<8x128xi32>
    %1526 = arith.sitofp %1525 : vector<8x128xi32> to vector<8x128xf32>
    %cst_487 = arith.constant dense<true> : vector<8x128xi1>
    %1527 = arith.xori %1490, %cst_487 : vector<8x128xi1>
    %1528 = arith.andi %1488, %1527 : vector<8x128xi1>
    %1529 = arith.extui %1528 : vector<8x128xi1> to vector<8x128xi32>
    %1530 = arith.sitofp %1529 : vector<8x128xi32> to vector<8x128xf32>
    %cst_488 = arith.constant dense<true> : vector<8x128xi1>
    %1531 = arith.xori %1492, %cst_488 : vector<8x128xi1>
    %1532 = arith.andi %1490, %1531 : vector<8x128xi1>
    %1533 = arith.extui %1532 : vector<8x128xi1> to vector<8x128xi32>
    %1534 = arith.sitofp %1533 : vector<8x128xi32> to vector<8x128xf32>
    %cst_489 = arith.constant dense<true> : vector<8x128xi1>
    %1535 = arith.xori %1494, %cst_489 : vector<8x128xi1>
    %1536 = arith.andi %1492, %1535 : vector<8x128xi1>
    %1537 = arith.extui %1536 : vector<8x128xi1> to vector<8x128xi32>
    %1538 = arith.sitofp %1537 : vector<8x128xi32> to vector<8x128xf32>
    %cst_490 = arith.constant -2.200000e+00 : f32
    %1539 = vector.broadcast %cst_490 : f32 to vector<8x128xf32>
    %1540 = arith.subf %1464, %1539 : vector<8x128xf32>
    %cst_491 = arith.constant -1.800000e+00 : f32
    %1541 = vector.broadcast %cst_491 : f32 to vector<8x128xf32>
    %1542 = arith.subf %1464, %1541 : vector<8x128xf32>
    %cst_492 = arith.constant -1.400000e+00 : f32
    %1543 = vector.broadcast %cst_492 : f32 to vector<8x128xf32>
    %1544 = arith.subf %1464, %1543 : vector<8x128xf32>
    %cst_493 = arith.constant -1.000000e+00 : f32
    %1545 = vector.broadcast %cst_493 : f32 to vector<8x128xf32>
    %1546 = arith.subf %1464, %1545 : vector<8x128xf32>
    %cst_494 = arith.constant -6.000000e-01 : f32
    %1547 = vector.broadcast %cst_494 : f32 to vector<8x128xf32>
    %1548 = arith.subf %1464, %1547 : vector<8x128xf32>
    %cst_495 = arith.constant -2.000000e-01 : f32
    %1549 = vector.broadcast %cst_495 : f32 to vector<8x128xf32>
    %1550 = arith.subf %1464, %1549 : vector<8x128xf32>
    %cst_496 = arith.constant 2.000000e-01 : f32
    %1551 = vector.broadcast %cst_496 : f32 to vector<8x128xf32>
    %1552 = arith.subf %1464, %1551 : vector<8x128xf32>
    %cst_497 = arith.constant 6.000000e-01 : f32
    %1553 = vector.broadcast %cst_497 : f32 to vector<8x128xf32>
    %1554 = arith.subf %1464, %1553 : vector<8x128xf32>
    %cst_498 = arith.constant 1.000000e+00 : f32
    %1555 = vector.broadcast %cst_498 : f32 to vector<8x128xf32>
    %1556 = arith.subf %1464, %1555 : vector<8x128xf32>
    %cst_499 = arith.constant 1.400000e+00 : f32
    %1557 = vector.broadcast %cst_499 : f32 to vector<8x128xf32>
    %1558 = arith.subf %1464, %1557 : vector<8x128xf32>
    %cst_500 = arith.constant 1.800000e+00 : f32
    %1559 = vector.broadcast %cst_500 : f32 to vector<8x128xf32>
    %1560 = arith.subf %1464, %1559 : vector<8x128xf32>
    %cst_501 = arith.constant 2.200000e+00 : f32
    %1561 = vector.broadcast %cst_501 : f32 to vector<8x128xf32>
    %1562 = arith.subf %1464, %1561 : vector<8x128xf32>
    %1563 = arith.mulf %1540, %1498 : vector<8x128xf32>
    %1564 = arith.mulf %1544, %1502 : vector<8x128xf32>
    %1565 = arith.subf %1563, %1564 : vector<8x128xf32>
    %cst_502 = arith.constant 2.500000e+00 : f32
    %1566 = vector.broadcast %cst_502 : f32 to vector<8x128xf32>
    %1567 = arith.mulf %1565, %1566 : vector<8x128xf32>
    %1568 = arith.mulf %1542, %1502 : vector<8x128xf32>
    %1569 = arith.mulf %1546, %1506 : vector<8x128xf32>
    %1570 = arith.subf %1568, %1569 : vector<8x128xf32>
    %cst_503 = arith.constant 2.500000e+00 : f32
    %1571 = vector.broadcast %cst_503 : f32 to vector<8x128xf32>
    %1572 = arith.mulf %1570, %1571 : vector<8x128xf32>
    %1573 = arith.mulf %1544, %1506 : vector<8x128xf32>
    %1574 = arith.mulf %1548, %1510 : vector<8x128xf32>
    %1575 = arith.subf %1573, %1574 : vector<8x128xf32>
    %cst_504 = arith.constant 2.500000e+00 : f32
    %1576 = vector.broadcast %cst_504 : f32 to vector<8x128xf32>
    %1577 = arith.mulf %1575, %1576 : vector<8x128xf32>
    %1578 = arith.mulf %1546, %1510 : vector<8x128xf32>
    %1579 = arith.mulf %1550, %1514 : vector<8x128xf32>
    %1580 = arith.subf %1578, %1579 : vector<8x128xf32>
    %cst_505 = arith.constant 2.500000e+00 : f32
    %1581 = vector.broadcast %cst_505 : f32 to vector<8x128xf32>
    %1582 = arith.mulf %1580, %1581 : vector<8x128xf32>
    %1583 = arith.mulf %1548, %1514 : vector<8x128xf32>
    %1584 = arith.mulf %1552, %1518 : vector<8x128xf32>
    %1585 = arith.subf %1583, %1584 : vector<8x128xf32>
    %cst_506 = arith.constant 2.500000e+00 : f32
    %1586 = vector.broadcast %cst_506 : f32 to vector<8x128xf32>
    %1587 = arith.mulf %1585, %1586 : vector<8x128xf32>
    %1588 = arith.mulf %1550, %1518 : vector<8x128xf32>
    %1589 = arith.mulf %1554, %1522 : vector<8x128xf32>
    %1590 = arith.subf %1588, %1589 : vector<8x128xf32>
    %cst_507 = arith.constant 2.500000e+00 : f32
    %1591 = vector.broadcast %cst_507 : f32 to vector<8x128xf32>
    %1592 = arith.mulf %1590, %1591 : vector<8x128xf32>
    %1593 = arith.mulf %1552, %1522 : vector<8x128xf32>
    %1594 = arith.mulf %1556, %1526 : vector<8x128xf32>
    %1595 = arith.subf %1593, %1594 : vector<8x128xf32>
    %cst_508 = arith.constant 2.500000e+00 : f32
    %1596 = vector.broadcast %cst_508 : f32 to vector<8x128xf32>
    %1597 = arith.mulf %1595, %1596 : vector<8x128xf32>
    %1598 = arith.mulf %1554, %1526 : vector<8x128xf32>
    %1599 = arith.mulf %1558, %1530 : vector<8x128xf32>
    %1600 = arith.subf %1598, %1599 : vector<8x128xf32>
    %cst_509 = arith.constant 2.500000e+00 : f32
    %1601 = vector.broadcast %cst_509 : f32 to vector<8x128xf32>
    %1602 = arith.mulf %1600, %1601 : vector<8x128xf32>
    %1603 = arith.mulf %1556, %1530 : vector<8x128xf32>
    %1604 = arith.mulf %1560, %1534 : vector<8x128xf32>
    %1605 = arith.subf %1603, %1604 : vector<8x128xf32>
    %cst_510 = arith.constant 2.500000e+00 : f32
    %1606 = vector.broadcast %cst_510 : f32 to vector<8x128xf32>
    %1607 = arith.mulf %1605, %1606 : vector<8x128xf32>
    %1608 = arith.mulf %1558, %1534 : vector<8x128xf32>
    %1609 = arith.mulf %1562, %1538 : vector<8x128xf32>
    %1610 = arith.subf %1608, %1609 : vector<8x128xf32>
    %cst_511 = arith.constant 2.500000e+00 : f32
    %1611 = vector.broadcast %cst_511 : f32 to vector<8x128xf32>
    %1612 = arith.mulf %1610, %1611 : vector<8x128xf32>
    %1613 = arith.mulf %1540, %1567 : vector<8x128xf32>
    %1614 = arith.mulf %1546, %1572 : vector<8x128xf32>
    %1615 = arith.subf %1613, %1614 : vector<8x128xf32>
    %cst_512 = arith.constant 1.250000e+00 : f32
    %1616 = vector.broadcast %cst_512 : f32 to vector<8x128xf32>
    %1617 = arith.mulf %1615, %1616 : vector<8x128xf32>
    %1618 = arith.mulf %1542, %1572 : vector<8x128xf32>
    %1619 = arith.mulf %1548, %1577 : vector<8x128xf32>
    %1620 = arith.subf %1618, %1619 : vector<8x128xf32>
    %cst_513 = arith.constant 1.250000e+00 : f32
    %1621 = vector.broadcast %cst_513 : f32 to vector<8x128xf32>
    %1622 = arith.mulf %1620, %1621 : vector<8x128xf32>
    %1623 = arith.mulf %1544, %1577 : vector<8x128xf32>
    %1624 = arith.mulf %1550, %1582 : vector<8x128xf32>
    %1625 = arith.subf %1623, %1624 : vector<8x128xf32>
    %cst_514 = arith.constant 1.250000e+00 : f32
    %1626 = vector.broadcast %cst_514 : f32 to vector<8x128xf32>
    %1627 = arith.mulf %1625, %1626 : vector<8x128xf32>
    %1628 = arith.mulf %1546, %1582 : vector<8x128xf32>
    %1629 = arith.mulf %1552, %1587 : vector<8x128xf32>
    %1630 = arith.subf %1628, %1629 : vector<8x128xf32>
    %cst_515 = arith.constant 1.250000e+00 : f32
    %1631 = vector.broadcast %cst_515 : f32 to vector<8x128xf32>
    %1632 = arith.mulf %1630, %1631 : vector<8x128xf32>
    %1633 = arith.mulf %1548, %1587 : vector<8x128xf32>
    %1634 = arith.mulf %1554, %1592 : vector<8x128xf32>
    %1635 = arith.subf %1633, %1634 : vector<8x128xf32>
    %cst_516 = arith.constant 1.250000e+00 : f32
    %1636 = vector.broadcast %cst_516 : f32 to vector<8x128xf32>
    %1637 = arith.mulf %1635, %1636 : vector<8x128xf32>
    %1638 = arith.mulf %1550, %1592 : vector<8x128xf32>
    %1639 = arith.mulf %1556, %1597 : vector<8x128xf32>
    %1640 = arith.subf %1638, %1639 : vector<8x128xf32>
    %cst_517 = arith.constant 1.250000e+00 : f32
    %1641 = vector.broadcast %cst_517 : f32 to vector<8x128xf32>
    %1642 = arith.mulf %1640, %1641 : vector<8x128xf32>
    %1643 = arith.mulf %1552, %1597 : vector<8x128xf32>
    %1644 = arith.mulf %1558, %1602 : vector<8x128xf32>
    %1645 = arith.subf %1643, %1644 : vector<8x128xf32>
    %cst_518 = arith.constant 1.250000e+00 : f32
    %1646 = vector.broadcast %cst_518 : f32 to vector<8x128xf32>
    %1647 = arith.mulf %1645, %1646 : vector<8x128xf32>
    %1648 = arith.mulf %1554, %1602 : vector<8x128xf32>
    %1649 = arith.mulf %1560, %1607 : vector<8x128xf32>
    %1650 = arith.subf %1648, %1649 : vector<8x128xf32>
    %cst_519 = arith.constant 1.250000e+00 : f32
    %1651 = vector.broadcast %cst_519 : f32 to vector<8x128xf32>
    %1652 = arith.mulf %1650, %1651 : vector<8x128xf32>
    %1653 = arith.mulf %1556, %1607 : vector<8x128xf32>
    %1654 = arith.mulf %1562, %1612 : vector<8x128xf32>
    %1655 = arith.subf %1653, %1654 : vector<8x128xf32>
    %cst_520 = arith.constant 1.250000e+00 : f32
    %1656 = vector.broadcast %cst_520 : f32 to vector<8x128xf32>
    %1657 = arith.mulf %1655, %1656 : vector<8x128xf32>
    %1658 = arith.mulf %1540, %1617 : vector<8x128xf32>
    %1659 = arith.mulf %1548, %1622 : vector<8x128xf32>
    %1660 = arith.subf %1658, %1659 : vector<8x128xf32>
    %cst_521 = arith.constant 0.833333313 : f32
    %1661 = vector.broadcast %cst_521 : f32 to vector<8x128xf32>
    %1662 = arith.mulf %1660, %1661 : vector<8x128xf32>
    %1663 = arith.mulf %1542, %1622 : vector<8x128xf32>
    %1664 = arith.mulf %1550, %1627 : vector<8x128xf32>
    %1665 = arith.subf %1663, %1664 : vector<8x128xf32>
    %cst_522 = arith.constant 0.833333313 : f32
    %1666 = vector.broadcast %cst_522 : f32 to vector<8x128xf32>
    %1667 = arith.mulf %1665, %1666 : vector<8x128xf32>
    %1668 = arith.mulf %1544, %1627 : vector<8x128xf32>
    %1669 = arith.mulf %1552, %1632 : vector<8x128xf32>
    %1670 = arith.subf %1668, %1669 : vector<8x128xf32>
    %cst_523 = arith.constant 0.833333313 : f32
    %1671 = vector.broadcast %cst_523 : f32 to vector<8x128xf32>
    %1672 = arith.mulf %1670, %1671 : vector<8x128xf32>
    %1673 = arith.mulf %1546, %1632 : vector<8x128xf32>
    %1674 = arith.mulf %1554, %1637 : vector<8x128xf32>
    %1675 = arith.subf %1673, %1674 : vector<8x128xf32>
    %cst_524 = arith.constant 0.833333313 : f32
    %1676 = vector.broadcast %cst_524 : f32 to vector<8x128xf32>
    %1677 = arith.mulf %1675, %1676 : vector<8x128xf32>
    %1678 = arith.mulf %1548, %1637 : vector<8x128xf32>
    %1679 = arith.mulf %1556, %1642 : vector<8x128xf32>
    %1680 = arith.subf %1678, %1679 : vector<8x128xf32>
    %cst_525 = arith.constant 0.833333313 : f32
    %1681 = vector.broadcast %cst_525 : f32 to vector<8x128xf32>
    %1682 = arith.mulf %1680, %1681 : vector<8x128xf32>
    %1683 = arith.mulf %1550, %1642 : vector<8x128xf32>
    %1684 = arith.mulf %1558, %1647 : vector<8x128xf32>
    %1685 = arith.subf %1683, %1684 : vector<8x128xf32>
    %cst_526 = arith.constant 0.833333313 : f32
    %1686 = vector.broadcast %cst_526 : f32 to vector<8x128xf32>
    %1687 = arith.mulf %1685, %1686 : vector<8x128xf32>
    %1688 = arith.mulf %1552, %1647 : vector<8x128xf32>
    %1689 = arith.mulf %1560, %1652 : vector<8x128xf32>
    %1690 = arith.subf %1688, %1689 : vector<8x128xf32>
    %cst_527 = arith.constant 0.833333313 : f32
    %1691 = vector.broadcast %cst_527 : f32 to vector<8x128xf32>
    %1692 = arith.mulf %1690, %1691 : vector<8x128xf32>
    %1693 = arith.mulf %1554, %1652 : vector<8x128xf32>
    %1694 = arith.mulf %1562, %1657 : vector<8x128xf32>
    %1695 = arith.subf %1693, %1694 : vector<8x128xf32>
    %cst_528 = arith.constant 0.833333313 : f32
    %1696 = vector.broadcast %cst_528 : f32 to vector<8x128xf32>
    %1697 = arith.mulf %1695, %1696 : vector<8x128xf32>
    %c24_529 = arith.constant 24 : index
    %c0_530 = arith.constant 0 : index
    %1698 = vector.load %arg7[%c24_529, %c0_530] : memref<288x128xf32, #tpu.memory_space<vmem>>, vector<8x128xf32>
    tpu.vector_store %arg7[%c24_529, %c0_530], %1470 {strides = array<i32>} : memref<288x128xf32, #tpu.memory_space<vmem>>, vector<8x128xf32>,
    %c56_531 = arith.constant 56 : index
    %c0_532 = arith.constant 0 : index
    %1699 = vector.load %arg7[%c56_531, %c0_532] : memref<288x128xf32, #tpu.memory_space<vmem>>, vector<8x128xf32>
    tpu.vector_store %arg7[%c56_531, %c0_532], %1662 {strides = array<i32>} : memref<288x128xf32, #tpu.memory_space<vmem>>, vector<8x128xf32>,
    %c88_533 = arith.constant 88 : index
    %c0_534 = arith.constant 0 : index
    %1700 = vector.load %arg7[%c88_533, %c0_534] : memref<288x128xf32, #tpu.memory_space<vmem>>, vector<8x128xf32>
    tpu.vector_store %arg7[%c88_533, %c0_534], %1667 {strides = array<i32>} : memref<288x128xf32, #tpu.memory_space<vmem>>, vector<8x128xf32>,
    %c120_535 = arith.constant 120 : index
    %c0_536 = arith.constant 0 : index
    %1701 = vector.load %arg7[%c120_535, %c0_536] : memref<288x128xf32, #tpu.memory_space<vmem>>, vector<8x128xf32>
    tpu.vector_store %arg7[%c120_535, %c0_536], %1672 {strides = array<i32>} : memref<288x128xf32, #tpu.memory_space<vmem>>, vector<8x128xf32>,
    %c152 = arith.constant 152 : index
    %c0_537 = arith.constant 0 : index
    %1702 = vector.load %arg7[%c152, %c0_537] : memref<288x128xf32, #tpu.memory_space<vmem>>, vector<8x128xf32>
    tpu.vector_store %arg7[%c152, %c0_537], %1677 {strides = array<i32>} : memref<288x128xf32, #tpu.memory_space<vmem>>, vector<8x128xf32>,
    %c184 = arith.constant 184 : index
    %c0_538 = arith.constant 0 : index
    %1703 = vector.load %arg7[%c184, %c0_538] : memref<288x128xf32, #tpu.memory_space<vmem>>, vector<8x128xf32>
    tpu.vector_store %arg7[%c184, %c0_538], %1682 {strides = array<i32>} : memref<288x128xf32, #tpu.memory_space<vmem>>, vector<8x128xf32>,
    %c216 = arith.constant 216 : index
    %c0_539 = arith.constant 0 : index
    %1704 = vector.load %arg7[%c216, %c0_539] : memref<288x128xf32, #tpu.memory_space<vmem>>, vector<8x128xf32>
    tpu.vector_store %arg7[%c216, %c0_539], %1687 {strides = array<i32>} : memref<288x128xf32, #tpu.memory_space<vmem>>, vector<8x128xf32>,
    %c248 = arith.constant 248 : index
    %c0_540 = arith.constant 0 : index
    %1705 = vector.load %arg7[%c248, %c0_540] : memref<288x128xf32, #tpu.memory_space<vmem>>, vector<8x128xf32>
    tpu.vector_store %arg7[%c248, %c0_540], %1692 {strides = array<i32>} : memref<288x128xf32, #tpu.memory_space<vmem>>, vector<8x128xf32>,
    %c280 = arith.constant 280 : index
    %c0_541 = arith.constant 0 : index
    %1706 = vector.load %arg7[%c280, %c0_541] : memref<288x128xf32, #tpu.memory_space<vmem>>, vector<8x128xf32>
    tpu.vector_store %arg7[%c280, %c0_541], %1697 {strides = array<i32>} : memref<288x128xf32, #tpu.memory_space<vmem>>, vector<8x128xf32>,
    %c0_542 = arith.constant 0 : index
    %c0_543 = arith.constant 0 : index
    %1707 = vector.load %arg4[%c0_542, %c0_543] : memref<32x288xf32, #tpu.memory_space<vmem>>, vector<32x288xf32>
    %c0_544 = arith.constant 0 : index
    %c0_545 = arith.constant 0 : index
    %1708 = vector.load %arg7[%c0_544, %c0_545] : memref<288x128xf32, #tpu.memory_space<vmem>>, vector<288x128xf32>
    %cst_546 = arith.constant dense<0.000000e+00> : vector<32x128xf32>
    %1709 = tpu.matmul %1707, %1708, %cst_546 {dimension_numbers = #tpu.dot_dimension_numbers<[1], [0], [0], [1], [0, 0, 1, 1], [], []>} : vector<32x288xf32>, vector<288x128xf32>, vector<32x128xf32> -> vector<32x128xf32>
    %1710 = vector.extract_strided_slice %1709 {offsets = [0, 0], sizes = [8, 128], strides = [1, 1]} : vector<32x128xf32> to vector<8x128xf32>
    %1711 = arith.negf %1710 : vector<8x128xf32>
    %1712 = math.exp %1711 : vector<8x128xf32>
    %cst_547 = arith.constant 1.000000e+00 : f32
    %1713 = vector.broadcast %cst_547 : f32 to vector<8x128xf32>
    %1714 = arith.addf %1713, %1712 : vector<8x128xf32>
    %1715 = arith.divf %1713, %1714 : vector<8x128xf32>
    %1716 = arith.mulf %1710, %1715 : vector<8x128xf32>
    %cst_548 = arith.constant -2.200000e+00 : f32
    %1717 = vector.broadcast %cst_548 : f32 to vector<8x128xf32>
    %1718 = arith.cmpf oge, %1710, %1717 : vector<8x128xf32>
    %cst_549 = arith.constant -1.800000e+00 : f32
    %1719 = vector.broadcast %cst_549 : f32 to vector<8x128xf32>
    %1720 = arith.cmpf oge, %1710, %1719 : vector<8x128xf32>
    %cst_550 = arith.constant -1.400000e+00 : f32
    %1721 = vector.broadcast %cst_550 : f32 to vector<8x128xf32>
    %1722 = arith.cmpf oge, %1710, %1721 : vector<8x128xf32>
    %cst_551 = arith.constant -1.000000e+00 : f32
    %1723 = vector.broadcast %cst_551 : f32 to vector<8x128xf32>
    %1724 = arith.cmpf oge, %1710, %1723 : vector<8x128xf32>
    %cst_552 = arith.constant -6.000000e-01 : f32
    %1725 = vector.broadcast %cst_552 : f32 to vector<8x128xf32>
    %1726 = arith.cmpf oge, %1710, %1725 : vector<8x128xf32>
    %cst_553 = arith.constant -2.000000e-01 : f32
    %1727 = vector.broadcast %cst_553 : f32 to vector<8x128xf32>
    %1728 = arith.cmpf oge, %1710, %1727 : vector<8x128xf32>
    %cst_554 = arith.constant 2.000000e-01 : f32
    %1729 = vector.broadcast %cst_554 : f32 to vector<8x128xf32>
    %1730 = arith.cmpf oge, %1710, %1729 : vector<8x128xf32>
    %cst_555 = arith.constant 6.000000e-01 : f32
    %1731 = vector.broadcast %cst_555 : f32 to vector<8x128xf32>
    %1732 = arith.cmpf oge, %1710, %1731 : vector<8x128xf32>
    %cst_556 = arith.constant 1.000000e+00 : f32
    %1733 = vector.broadcast %cst_556 : f32 to vector<8x128xf32>
    %1734 = arith.cmpf oge, %1710, %1733 : vector<8x128xf32>
    %cst_557 = arith.constant 1.400000e+00 : f32
    %1735 = vector.broadcast %cst_557 : f32 to vector<8x128xf32>
    %1736 = arith.cmpf oge, %1710, %1735 : vector<8x128xf32>
    %cst_558 = arith.constant 1.800000e+00 : f32
    %1737 = vector.broadcast %cst_558 : f32 to vector<8x128xf32>
    %1738 = arith.cmpf oge, %1710, %1737 : vector<8x128xf32>
    %cst_559 = arith.constant 2.200000e+00 : f32
    %1739 = vector.broadcast %cst_559 : f32 to vector<8x128xf32>
    %1740 = arith.cmpf oge, %1710, %1739 : vector<8x128xf32>
    %cst_560 = arith.constant dense<true> : vector<8x128xi1>
    %1741 = arith.xori %1720, %cst_560 : vector<8x128xi1>
    %1742 = arith.andi %1718, %1741 : vector<8x128xi1>
    %1743 = arith.extui %1742 : vector<8x128xi1> to vector<8x128xi32>
    %1744 = arith.sitofp %1743 : vector<8x128xi32> to vector<8x128xf32>
    %cst_561 = arith.constant dense<true> : vector<8x128xi1>
    %1745 = arith.xori %1722, %cst_561 : vector<8x128xi1>
    %1746 = arith.andi %1720, %1745 : vector<8x128xi1>
    %1747 = arith.extui %1746 : vector<8x128xi1> to vector<8x128xi32>
    %1748 = arith.sitofp %1747 : vector<8x128xi32> to vector<8x128xf32>
    %cst_562 = arith.constant dense<true> : vector<8x128xi1>
    %1749 = arith.xori %1724, %cst_562 : vector<8x128xi1>
    %1750 = arith.andi %1722, %1749 : vector<8x128xi1>
    %1751 = arith.extui %1750 : vector<8x128xi1> to vector<8x128xi32>
    %1752 = arith.sitofp %1751 : vector<8x128xi32> to vector<8x128xf32>
    %cst_563 = arith.constant dense<true> : vector<8x128xi1>
    %1753 = arith.xori %1726, %cst_563 : vector<8x128xi1>
    %1754 = arith.andi %1724, %1753 : vector<8x128xi1>
    %1755 = arith.extui %1754 : vector<8x128xi1> to vector<8x128xi32>
    %1756 = arith.sitofp %1755 : vector<8x128xi32> to vector<8x128xf32>
    %cst_564 = arith.constant dense<true> : vector<8x128xi1>
    %1757 = arith.xori %1728, %cst_564 : vector<8x128xi1>
    %1758 = arith.andi %1726, %1757 : vector<8x128xi1>
    %1759 = arith.extui %1758 : vector<8x128xi1> to vector<8x128xi32>
    %1760 = arith.sitofp %1759 : vector<8x128xi32> to vector<8x128xf32>
    %cst_565 = arith.constant dense<true> : vector<8x128xi1>
    %1761 = arith.xori %1730, %cst_565 : vector<8x128xi1>
    %1762 = arith.andi %1728, %1761 : vector<8x128xi1>
    %1763 = arith.extui %1762 : vector<8x128xi1> to vector<8x128xi32>
    %1764 = arith.sitofp %1763 : vector<8x128xi32> to vector<8x128xf32>
    %cst_566 = arith.constant dense<true> : vector<8x128xi1>
    %1765 = arith.xori %1732, %cst_566 : vector<8x128xi1>
    %1766 = arith.andi %1730, %1765 : vector<8x128xi1>
    %1767 = arith.extui %1766 : vector<8x128xi1> to vector<8x128xi32>
    %1768 = arith.sitofp %1767 : vector<8x128xi32> to vector<8x128xf32>
    %cst_567 = arith.constant dense<true> : vector<8x128xi1>
    %1769 = arith.xori %1734, %cst_567 : vector<8x128xi1>
    %1770 = arith.andi %1732, %1769 : vector<8x128xi1>
    %1771 = arith.extui %1770 : vector<8x128xi1> to vector<8x128xi32>
    %1772 = arith.sitofp %1771 : vector<8x128xi32> to vector<8x128xf32>
    %cst_568 = arith.constant dense<true> : vector<8x128xi1>
    %1773 = arith.xori %1736, %cst_568 : vector<8x128xi1>
    %1774 = arith.andi %1734, %1773 : vector<8x128xi1>
    %1775 = arith.extui %1774 : vector<8x128xi1> to vector<8x128xi32>
    %1776 = arith.sitofp %1775 : vector<8x128xi32> to vector<8x128xf32>
    %cst_569 = arith.constant dense<true> : vector<8x128xi1>
    %1777 = arith.xori %1738, %cst_569 : vector<8x128xi1>
    %1778 = arith.andi %1736, %1777 : vector<8x128xi1>
    %1779 = arith.extui %1778 : vector<8x128xi1> to vector<8x128xi32>
    %1780 = arith.sitofp %1779 : vector<8x128xi32> to vector<8x128xf32>
    %cst_570 = arith.constant dense<true> : vector<8x128xi1>
    %1781 = arith.xori %1740, %cst_570 : vector<8x128xi1>
    %1782 = arith.andi %1738, %1781 : vector<8x128xi1>
    %1783 = arith.extui %1782 : vector<8x128xi1> to vector<8x128xi32>
    %1784 = arith.sitofp %1783 : vector<8x128xi32> to vector<8x128xf32>
    %cst_571 = arith.constant -2.200000e+00 : f32
    %1785 = vector.broadcast %cst_571 : f32 to vector<8x128xf32>
    %1786 = arith.subf %1710, %1785 : vector<8x128xf32>
    %cst_572 = arith.constant -1.800000e+00 : f32
    %1787 = vector.broadcast %cst_572 : f32 to vector<8x128xf32>
    %1788 = arith.subf %1710, %1787 : vector<8x128xf32>
    %cst_573 = arith.constant -1.400000e+00 : f32
    %1789 = vector.broadcast %cst_573 : f32 to vector<8x128xf32>
    %1790 = arith.subf %1710, %1789 : vector<8x128xf32>
    %cst_574 = arith.constant -1.000000e+00 : f32
    %1791 = vector.broadcast %cst_574 : f32 to vector<8x128xf32>
    %1792 = arith.subf %1710, %1791 : vector<8x128xf32>
    %cst_575 = arith.constant -6.000000e-01 : f32
    %1793 = vector.broadcast %cst_575 : f32 to vector<8x128xf32>
    %1794 = arith.subf %1710, %1793 : vector<8x128xf32>
    %cst_576 = arith.constant -2.000000e-01 : f32
    %1795 = vector.broadcast %cst_576 : f32 to vector<8x128xf32>
    %1796 = arith.subf %1710, %1795 : vector<8x128xf32>
    %cst_577 = arith.constant 2.000000e-01 : f32
    %1797 = vector.broadcast %cst_577 : f32 to vector<8x128xf32>
    %1798 = arith.subf %1710, %1797 : vector<8x128xf32>
    %cst_578 = arith.constant 6.000000e-01 : f32
    %1799 = vector.broadcast %cst_578 : f32 to vector<8x128xf32>
    %1800 = arith.subf %1710, %1799 : vector<8x128xf32>
    %cst_579 = arith.constant 1.000000e+00 : f32
    %1801 = vector.broadcast %cst_579 : f32 to vector<8x128xf32>
    %1802 = arith.subf %1710, %1801 : vector<8x128xf32>
    %cst_580 = arith.constant 1.400000e+00 : f32
    %1803 = vector.broadcast %cst_580 : f32 to vector<8x128xf32>
    %1804 = arith.subf %1710, %1803 : vector<8x128xf32>
    %cst_581 = arith.constant 1.800000e+00 : f32
    %1805 = vector.broadcast %cst_581 : f32 to vector<8x128xf32>
    %1806 = arith.subf %1710, %1805 : vector<8x128xf32>
    %cst_582 = arith.constant 2.200000e+00 : f32
    %1807 = vector.broadcast %cst_582 : f32 to vector<8x128xf32>
    %1808 = arith.subf %1710, %1807 : vector<8x128xf32>
    %1809 = arith.mulf %1786, %1744 : vector<8x128xf32>
    %1810 = arith.mulf %1790, %1748 : vector<8x128xf32>
    %1811 = arith.subf %1809, %1810 : vector<8x128xf32>
    %cst_583 = arith.constant 2.500000e+00 : f32
    %1812 = vector.broadcast %cst_583 : f32 to vector<8x128xf32>
    %1813 = arith.mulf %1811, %1812 : vector<8x128xf32>
    %1814 = arith.mulf %1788, %1748 : vector<8x128xf32>
    %1815 = arith.mulf %1792, %1752 : vector<8x128xf32>
    %1816 = arith.subf %1814, %1815 : vector<8x128xf32>
    %cst_584 = arith.constant 2.500000e+00 : f32
    %1817 = vector.broadcast %cst_584 : f32 to vector<8x128xf32>
    %1818 = arith.mulf %1816, %1817 : vector<8x128xf32>
    %1819 = arith.mulf %1790, %1752 : vector<8x128xf32>
    %1820 = arith.mulf %1794, %1756 : vector<8x128xf32>
    %1821 = arith.subf %1819, %1820 : vector<8x128xf32>
    %cst_585 = arith.constant 2.500000e+00 : f32
    %1822 = vector.broadcast %cst_585 : f32 to vector<8x128xf32>
    %1823 = arith.mulf %1821, %1822 : vector<8x128xf32>
    %1824 = arith.mulf %1792, %1756 : vector<8x128xf32>
    %1825 = arith.mulf %1796, %1760 : vector<8x128xf32>
    %1826 = arith.subf %1824, %1825 : vector<8x128xf32>
    %cst_586 = arith.constant 2.500000e+00 : f32
    %1827 = vector.broadcast %cst_586 : f32 to vector<8x128xf32>
    %1828 = arith.mulf %1826, %1827 : vector<8x128xf32>
    %1829 = arith.mulf %1794, %1760 : vector<8x128xf32>
    %1830 = arith.mulf %1798, %1764 : vector<8x128xf32>
    %1831 = arith.subf %1829, %1830 : vector<8x128xf32>
    %cst_587 = arith.constant 2.500000e+00 : f32
    %1832 = vector.broadcast %cst_587 : f32 to vector<8x128xf32>
    %1833 = arith.mulf %1831, %1832 : vector<8x128xf32>
    %1834 = arith.mulf %1796, %1764 : vector<8x128xf32>
    %1835 = arith.mulf %1800, %1768 : vector<8x128xf32>
    %1836 = arith.subf %1834, %1835 : vector<8x128xf32>
    %cst_588 = arith.constant 2.500000e+00 : f32
    %1837 = vector.broadcast %cst_588 : f32 to vector<8x128xf32>
    %1838 = arith.mulf %1836, %1837 : vector<8x128xf32>
    %1839 = arith.mulf %1798, %1768 : vector<8x128xf32>
    %1840 = arith.mulf %1802, %1772 : vector<8x128xf32>
    %1841 = arith.subf %1839, %1840 : vector<8x128xf32>
    %cst_589 = arith.constant 2.500000e+00 : f32
    %1842 = vector.broadcast %cst_589 : f32 to vector<8x128xf32>
    %1843 = arith.mulf %1841, %1842 : vector<8x128xf32>
    %1844 = arith.mulf %1800, %1772 : vector<8x128xf32>
    %1845 = arith.mulf %1804, %1776 : vector<8x128xf32>
    %1846 = arith.subf %1844, %1845 : vector<8x128xf32>
    %cst_590 = arith.constant 2.500000e+00 : f32
    %1847 = vector.broadcast %cst_590 : f32 to vector<8x128xf32>
    %1848 = arith.mulf %1846, %1847 : vector<8x128xf32>
    %1849 = arith.mulf %1802, %1776 : vector<8x128xf32>
    %1850 = arith.mulf %1806, %1780 : vector<8x128xf32>
    %1851 = arith.subf %1849, %1850 : vector<8x128xf32>
    %cst_591 = arith.constant 2.500000e+00 : f32
    %1852 = vector.broadcast %cst_591 : f32 to vector<8x128xf32>
    %1853 = arith.mulf %1851, %1852 : vector<8x128xf32>
    %1854 = arith.mulf %1804, %1780 : vector<8x128xf32>
    %1855 = arith.mulf %1808, %1784 : vector<8x128xf32>
    %1856 = arith.subf %1854, %1855 : vector<8x128xf32>
    %cst_592 = arith.constant 2.500000e+00 : f32
    %1857 = vector.broadcast %cst_592 : f32 to vector<8x128xf32>
    %1858 = arith.mulf %1856, %1857 : vector<8x128xf32>
    %1859 = arith.mulf %1786, %1813 : vector<8x128xf32>
    %1860 = arith.mulf %1792, %1818 : vector<8x128xf32>
    %1861 = arith.subf %1859, %1860 : vector<8x128xf32>
    %cst_593 = arith.constant 1.250000e+00 : f32
    %1862 = vector.broadcast %cst_593 : f32 to vector<8x128xf32>
    %1863 = arith.mulf %1861, %1862 : vector<8x128xf32>
    %1864 = arith.mulf %1788, %1818 : vector<8x128xf32>
    %1865 = arith.mulf %1794, %1823 : vector<8x128xf32>
    %1866 = arith.subf %1864, %1865 : vector<8x128xf32>
    %cst_594 = arith.constant 1.250000e+00 : f32
    %1867 = vector.broadcast %cst_594 : f32 to vector<8x128xf32>
    %1868 = arith.mulf %1866, %1867 : vector<8x128xf32>
    %1869 = arith.mulf %1790, %1823 : vector<8x128xf32>
    %1870 = arith.mulf %1796, %1828 : vector<8x128xf32>
    %1871 = arith.subf %1869, %1870 : vector<8x128xf32>
    %cst_595 = arith.constant 1.250000e+00 : f32
    %1872 = vector.broadcast %cst_595 : f32 to vector<8x128xf32>
    %1873 = arith.mulf %1871, %1872 : vector<8x128xf32>
    %1874 = arith.mulf %1792, %1828 : vector<8x128xf32>
    %1875 = arith.mulf %1798, %1833 : vector<8x128xf32>
    %1876 = arith.subf %1874, %1875 : vector<8x128xf32>
    %cst_596 = arith.constant 1.250000e+00 : f32
    %1877 = vector.broadcast %cst_596 : f32 to vector<8x128xf32>
    %1878 = arith.mulf %1876, %1877 : vector<8x128xf32>
    %1879 = arith.mulf %1794, %1833 : vector<8x128xf32>
    %1880 = arith.mulf %1800, %1838 : vector<8x128xf32>
    %1881 = arith.subf %1879, %1880 : vector<8x128xf32>
    %cst_597 = arith.constant 1.250000e+00 : f32
    %1882 = vector.broadcast %cst_597 : f32 to vector<8x128xf32>
    %1883 = arith.mulf %1881, %1882 : vector<8x128xf32>
    %1884 = arith.mulf %1796, %1838 : vector<8x128xf32>
    %1885 = arith.mulf %1802, %1843 : vector<8x128xf32>
    %1886 = arith.subf %1884, %1885 : vector<8x128xf32>
    %cst_598 = arith.constant 1.250000e+00 : f32
    %1887 = vector.broadcast %cst_598 : f32 to vector<8x128xf32>
    %1888 = arith.mulf %1886, %1887 : vector<8x128xf32>
    %1889 = arith.mulf %1798, %1843 : vector<8x128xf32>
    %1890 = arith.mulf %1804, %1848 : vector<8x128xf32>
    %1891 = arith.subf %1889, %1890 : vector<8x128xf32>
    %cst_599 = arith.constant 1.250000e+00 : f32
    %1892 = vector.broadcast %cst_599 : f32 to vector<8x128xf32>
    %1893 = arith.mulf %1891, %1892 : vector<8x128xf32>
    %1894 = arith.mulf %1800, %1848 : vector<8x128xf32>
    %1895 = arith.mulf %1806, %1853 : vector<8x128xf32>
    %1896 = arith.subf %1894, %1895 : vector<8x128xf32>
    %cst_600 = arith.constant 1.250000e+00 : f32
    %1897 = vector.broadcast %cst_600 : f32 to vector<8x128xf32>
    %1898 = arith.mulf %1896, %1897 : vector<8x128xf32>
    %1899 = arith.mulf %1802, %1853 : vector<8x128xf32>
    %1900 = arith.mulf %1808, %1858 : vector<8x128xf32>
    %1901 = arith.subf %1899, %1900 : vector<8x128xf32>
    %cst_601 = arith.constant 1.250000e+00 : f32
    %1902 = vector.broadcast %cst_601 : f32 to vector<8x128xf32>
    %1903 = arith.mulf %1901, %1902 : vector<8x128xf32>
    %1904 = arith.mulf %1786, %1863 : vector<8x128xf32>
    %1905 = arith.mulf %1794, %1868 : vector<8x128xf32>
    %1906 = arith.subf %1904, %1905 : vector<8x128xf32>
    %cst_602 = arith.constant 0.833333313 : f32
    %1907 = vector.broadcast %cst_602 : f32 to vector<8x128xf32>
    %1908 = arith.mulf %1906, %1907 : vector<8x128xf32>
    %1909 = arith.mulf %1788, %1868 : vector<8x128xf32>
    %1910 = arith.mulf %1796, %1873 : vector<8x128xf32>
    %1911 = arith.subf %1909, %1910 : vector<8x128xf32>
    %cst_603 = arith.constant 0.833333313 : f32
    %1912 = vector.broadcast %cst_603 : f32 to vector<8x128xf32>
    %1913 = arith.mulf %1911, %1912 : vector<8x128xf32>
    %1914 = arith.mulf %1790, %1873 : vector<8x128xf32>
    %1915 = arith.mulf %1798, %1878 : vector<8x128xf32>
    %1916 = arith.subf %1914, %1915 : vector<8x128xf32>
    %cst_604 = arith.constant 0.833333313 : f32
    %1917 = vector.broadcast %cst_604 : f32 to vector<8x128xf32>
    %1918 = arith.mulf %1916, %1917 : vector<8x128xf32>
    %1919 = arith.mulf %1792, %1878 : vector<8x128xf32>
    %1920 = arith.mulf %1800, %1883 : vector<8x128xf32>
    %1921 = arith.subf %1919, %1920 : vector<8x128xf32>
    %cst_605 = arith.constant 0.833333313 : f32
    %1922 = vector.broadcast %cst_605 : f32 to vector<8x128xf32>
    %1923 = arith.mulf %1921, %1922 : vector<8x128xf32>
    %1924 = arith.mulf %1794, %1883 : vector<8x128xf32>
    %1925 = arith.mulf %1802, %1888 : vector<8x128xf32>
    %1926 = arith.subf %1924, %1925 : vector<8x128xf32>
    %cst_606 = arith.constant 0.833333313 : f32
    %1927 = vector.broadcast %cst_606 : f32 to vector<8x128xf32>
    %1928 = arith.mulf %1926, %1927 : vector<8x128xf32>
    %1929 = arith.mulf %1796, %1888 : vector<8x128xf32>
    %1930 = arith.mulf %1804, %1893 : vector<8x128xf32>
    %1931 = arith.subf %1929, %1930 : vector<8x128xf32>
    %cst_607 = arith.constant 0.833333313 : f32
    %1932 = vector.broadcast %cst_607 : f32 to vector<8x128xf32>
    %1933 = arith.mulf %1931, %1932 : vector<8x128xf32>
    %1934 = arith.mulf %1798, %1893 : vector<8x128xf32>
    %1935 = arith.mulf %1806, %1898 : vector<8x128xf32>
    %1936 = arith.subf %1934, %1935 : vector<8x128xf32>
    %cst_608 = arith.constant 0.833333313 : f32
    %1937 = vector.broadcast %cst_608 : f32 to vector<8x128xf32>
    %1938 = arith.mulf %1936, %1937 : vector<8x128xf32>
    %1939 = arith.mulf %1800, %1898 : vector<8x128xf32>
    %1940 = arith.mulf %1808, %1903 : vector<8x128xf32>
    %1941 = arith.subf %1939, %1940 : vector<8x128xf32>
    %cst_609 = arith.constant 0.833333313 : f32
    %1942 = vector.broadcast %cst_609 : f32 to vector<8x128xf32>
    %1943 = arith.mulf %1941, %1942 : vector<8x128xf32>
    %c0_610 = arith.constant 0 : index
    %c0_611 = arith.constant 0 : index
    %1944 = vector.load %arg7[%c0_610, %c0_611] : memref<288x128xf32, #tpu.memory_space<vmem>>, vector<8x128xf32>
    tpu.vector_store %arg7[%c0_610, %c0_611], %1716 {strides = array<i32>} : memref<288x128xf32, #tpu.memory_space<vmem>>, vector<8x128xf32>,
    %c32_612 = arith.constant 32 : index
    %c0_613 = arith.constant 0 : index
    %1945 = vector.load %arg7[%c32_612, %c0_613] : memref<288x128xf32, #tpu.memory_space<vmem>>, vector<8x128xf32>
    tpu.vector_store %arg7[%c32_612, %c0_613], %1908 {strides = array<i32>} : memref<288x128xf32, #tpu.memory_space<vmem>>, vector<8x128xf32>,
    %c64_614 = arith.constant 64 : index
    %c0_615 = arith.constant 0 : index
    %1946 = vector.load %arg7[%c64_614, %c0_615] : memref<288x128xf32, #tpu.memory_space<vmem>>, vector<8x128xf32>
    tpu.vector_store %arg7[%c64_614, %c0_615], %1913 {strides = array<i32>} : memref<288x128xf32, #tpu.memory_space<vmem>>, vector<8x128xf32>,
    %c96_616 = arith.constant 96 : index
    %c0_617 = arith.constant 0 : index
    %1947 = vector.load %arg7[%c96_616, %c0_617] : memref<288x128xf32, #tpu.memory_space<vmem>>, vector<8x128xf32>
    tpu.vector_store %arg7[%c96_616, %c0_617], %1918 {strides = array<i32>} : memref<288x128xf32, #tpu.memory_space<vmem>>, vector<8x128xf32>,
    %c128_618 = arith.constant 128 : index
    %c0_619 = arith.constant 0 : index
    %1948 = vector.load %arg7[%c128_618, %c0_619] : memref<288x128xf32, #tpu.memory_space<vmem>>, vector<8x128xf32>
    tpu.vector_store %arg7[%c128_618, %c0_619], %1923 {strides = array<i32>} : memref<288x128xf32, #tpu.memory_space<vmem>>, vector<8x128xf32>,
    %c160_620 = arith.constant 160 : index
    %c0_621 = arith.constant 0 : index
    %1949 = vector.load %arg7[%c160_620, %c0_621] : memref<288x128xf32, #tpu.memory_space<vmem>>, vector<8x128xf32>
    tpu.vector_store %arg7[%c160_620, %c0_621], %1928 {strides = array<i32>} : memref<288x128xf32, #tpu.memory_space<vmem>>, vector<8x128xf32>,
    %c192_622 = arith.constant 192 : index
    %c0_623 = arith.constant 0 : index
    %1950 = vector.load %arg7[%c192_622, %c0_623] : memref<288x128xf32, #tpu.memory_space<vmem>>, vector<8x128xf32>
    tpu.vector_store %arg7[%c192_622, %c0_623], %1933 {strides = array<i32>} : memref<288x128xf32, #tpu.memory_space<vmem>>, vector<8x128xf32>,
    %c224_624 = arith.constant 224 : index
    %c0_625 = arith.constant 0 : index
    %1951 = vector.load %arg7[%c224_624, %c0_625] : memref<288x128xf32, #tpu.memory_space<vmem>>, vector<8x128xf32>
    tpu.vector_store %arg7[%c224_624, %c0_625], %1938 {strides = array<i32>} : memref<288x128xf32, #tpu.memory_space<vmem>>, vector<8x128xf32>,
    %c256_626 = arith.constant 256 : index
    %c0_627 = arith.constant 0 : index
    %1952 = vector.load %arg7[%c256_626, %c0_627] : memref<288x128xf32, #tpu.memory_space<vmem>>, vector<8x128xf32>
    tpu.vector_store %arg7[%c256_626, %c0_627], %1943 {strides = array<i32>} : memref<288x128xf32, #tpu.memory_space<vmem>>, vector<8x128xf32>,
    %1953 = vector.extract_strided_slice %1709 {offsets = [8, 0], sizes = [8, 128], strides = [1, 1]} : vector<32x128xf32> to vector<8x128xf32>
    %1954 = arith.negf %1953 : vector<8x128xf32>
    %1955 = math.exp %1954 : vector<8x128xf32>
    %cst_628 = arith.constant 1.000000e+00 : f32
    %1956 = vector.broadcast %cst_628 : f32 to vector<8x128xf32>
    %1957 = arith.addf %1956, %1955 : vector<8x128xf32>
    %1958 = arith.divf %1956, %1957 : vector<8x128xf32>
    %1959 = arith.mulf %1953, %1958 : vector<8x128xf32>
    %cst_629 = arith.constant -2.200000e+00 : f32
    %1960 = vector.broadcast %cst_629 : f32 to vector<8x128xf32>
    %1961 = arith.cmpf oge, %1953, %1960 : vector<8x128xf32>
    %cst_630 = arith.constant -1.800000e+00 : f32
    %1962 = vector.broadcast %cst_630 : f32 to vector<8x128xf32>
    %1963 = arith.cmpf oge, %1953, %1962 : vector<8x128xf32>
    %cst_631 = arith.constant -1.400000e+00 : f32
    %1964 = vector.broadcast %cst_631 : f32 to vector<8x128xf32>
    %1965 = arith.cmpf oge, %1953, %1964 : vector<8x128xf32>
    %cst_632 = arith.constant -1.000000e+00 : f32
    %1966 = vector.broadcast %cst_632 : f32 to vector<8x128xf32>
    %1967 = arith.cmpf oge, %1953, %1966 : vector<8x128xf32>
    %cst_633 = arith.constant -6.000000e-01 : f32
    %1968 = vector.broadcast %cst_633 : f32 to vector<8x128xf32>
    %1969 = arith.cmpf oge, %1953, %1968 : vector<8x128xf32>
    %cst_634 = arith.constant -2.000000e-01 : f32
    %1970 = vector.broadcast %cst_634 : f32 to vector<8x128xf32>
    %1971 = arith.cmpf oge, %1953, %1970 : vector<8x128xf32>
    %cst_635 = arith.constant 2.000000e-01 : f32
    %1972 = vector.broadcast %cst_635 : f32 to vector<8x128xf32>
    %1973 = arith.cmpf oge, %1953, %1972 : vector<8x128xf32>
    %cst_636 = arith.constant 6.000000e-01 : f32
    %1974 = vector.broadcast %cst_636 : f32 to vector<8x128xf32>
    %1975 = arith.cmpf oge, %1953, %1974 : vector<8x128xf32>
    %cst_637 = arith.constant 1.000000e+00 : f32
    %1976 = vector.broadcast %cst_637 : f32 to vector<8x128xf32>
    %1977 = arith.cmpf oge, %1953, %1976 : vector<8x128xf32>
    %cst_638 = arith.constant 1.400000e+00 : f32
    %1978 = vector.broadcast %cst_638 : f32 to vector<8x128xf32>
    %1979 = arith.cmpf oge, %1953, %1978 : vector<8x128xf32>
    %cst_639 = arith.constant 1.800000e+00 : f32
    %1980 = vector.broadcast %cst_639 : f32 to vector<8x128xf32>
    %1981 = arith.cmpf oge, %1953, %1980 : vector<8x128xf32>
    %cst_640 = arith.constant 2.200000e+00 : f32
    %1982 = vector.broadcast %cst_640 : f32 to vector<8x128xf32>
    %1983 = arith.cmpf oge, %1953, %1982 : vector<8x128xf32>
    %cst_641 = arith.constant dense<true> : vector<8x128xi1>
    %1984 = arith.xori %1963, %cst_641 : vector<8x128xi1>
    %1985 = arith.andi %1961, %1984 : vector<8x128xi1>
    %1986 = arith.extui %1985 : vector<8x128xi1> to vector<8x128xi32>
    %1987 = arith.sitofp %1986 : vector<8x128xi32> to vector<8x128xf32>
    %cst_642 = arith.constant dense<true> : vector<8x128xi1>
    %1988 = arith.xori %1965, %cst_642 : vector<8x128xi1>
    %1989 = arith.andi %1963, %1988 : vector<8x128xi1>
    %1990 = arith.extui %1989 : vector<8x128xi1> to vector<8x128xi32>
    %1991 = arith.sitofp %1990 : vector<8x128xi32> to vector<8x128xf32>
    %cst_643 = arith.constant dense<true> : vector<8x128xi1>
    %1992 = arith.xori %1967, %cst_643 : vector<8x128xi1>
    %1993 = arith.andi %1965, %1992 : vector<8x128xi1>
    %1994 = arith.extui %1993 : vector<8x128xi1> to vector<8x128xi32>
    %1995 = arith.sitofp %1994 : vector<8x128xi32> to vector<8x128xf32>
    %cst_644 = arith.constant dense<true> : vector<8x128xi1>
    %1996 = arith.xori %1969, %cst_644 : vector<8x128xi1>
    %1997 = arith.andi %1967, %1996 : vector<8x128xi1>
    %1998 = arith.extui %1997 : vector<8x128xi1> to vector<8x128xi32>
    %1999 = arith.sitofp %1998 : vector<8x128xi32> to vector<8x128xf32>
    %cst_645 = arith.constant dense<true> : vector<8x128xi1>
    %2000 = arith.xori %1971, %cst_645 : vector<8x128xi1>
    %2001 = arith.andi %1969, %2000 : vector<8x128xi1>
    %2002 = arith.extui %2001 : vector<8x128xi1> to vector<8x128xi32>
    %2003 = arith.sitofp %2002 : vector<8x128xi32> to vector<8x128xf32>
    %cst_646 = arith.constant dense<true> : vector<8x128xi1>
    %2004 = arith.xori %1973, %cst_646 : vector<8x128xi1>
    %2005 = arith.andi %1971, %2004 : vector<8x128xi1>
    %2006 = arith.extui %2005 : vector<8x128xi1> to vector<8x128xi32>
    %2007 = arith.sitofp %2006 : vector<8x128xi32> to vector<8x128xf32>
    %cst_647 = arith.constant dense<true> : vector<8x128xi1>
    %2008 = arith.xori %1975, %cst_647 : vector<8x128xi1>
    %2009 = arith.andi %1973, %2008 : vector<8x128xi1>
    %2010 = arith.extui %2009 : vector<8x128xi1> to vector<8x128xi32>
    %2011 = arith.sitofp %2010 : vector<8x128xi32> to vector<8x128xf32>
    %cst_648 = arith.constant dense<true> : vector<8x128xi1>
    %2012 = arith.xori %1977, %cst_648 : vector<8x128xi1>
    %2013 = arith.andi %1975, %2012 : vector<8x128xi1>
    %2014 = arith.extui %2013 : vector<8x128xi1> to vector<8x128xi32>
    %2015 = arith.sitofp %2014 : vector<8x128xi32> to vector<8x128xf32>
    %cst_649 = arith.constant dense<true> : vector<8x128xi1>
    %2016 = arith.xori %1979, %cst_649 : vector<8x128xi1>
    %2017 = arith.andi %1977, %2016 : vector<8x128xi1>
    %2018 = arith.extui %2017 : vector<8x128xi1> to vector<8x128xi32>
    %2019 = arith.sitofp %2018 : vector<8x128xi32> to vector<8x128xf32>
    %cst_650 = arith.constant dense<true> : vector<8x128xi1>
    %2020 = arith.xori %1981, %cst_650 : vector<8x128xi1>
    %2021 = arith.andi %1979, %2020 : vector<8x128xi1>
    %2022 = arith.extui %2021 : vector<8x128xi1> to vector<8x128xi32>
    %2023 = arith.sitofp %2022 : vector<8x128xi32> to vector<8x128xf32>
    %cst_651 = arith.constant dense<true> : vector<8x128xi1>
    %2024 = arith.xori %1983, %cst_651 : vector<8x128xi1>
    %2025 = arith.andi %1981, %2024 : vector<8x128xi1>
    %2026 = arith.extui %2025 : vector<8x128xi1> to vector<8x128xi32>
    %2027 = arith.sitofp %2026 : vector<8x128xi32> to vector<8x128xf32>
    %cst_652 = arith.constant -2.200000e+00 : f32
    %2028 = vector.broadcast %cst_652 : f32 to vector<8x128xf32>
    %2029 = arith.subf %1953, %2028 : vector<8x128xf32>
    %cst_653 = arith.constant -1.800000e+00 : f32
    %2030 = vector.broadcast %cst_653 : f32 to vector<8x128xf32>
    %2031 = arith.subf %1953, %2030 : vector<8x128xf32>
    %cst_654 = arith.constant -1.400000e+00 : f32
    %2032 = vector.broadcast %cst_654 : f32 to vector<8x128xf32>
    %2033 = arith.subf %1953, %2032 : vector<8x128xf32>
    %cst_655 = arith.constant -1.000000e+00 : f32
    %2034 = vector.broadcast %cst_655 : f32 to vector<8x128xf32>
    %2035 = arith.subf %1953, %2034 : vector<8x128xf32>
    %cst_656 = arith.constant -6.000000e-01 : f32
    %2036 = vector.broadcast %cst_656 : f32 to vector<8x128xf32>
    %2037 = arith.subf %1953, %2036 : vector<8x128xf32>
    %cst_657 = arith.constant -2.000000e-01 : f32
    %2038 = vector.broadcast %cst_657 : f32 to vector<8x128xf32>
    %2039 = arith.subf %1953, %2038 : vector<8x128xf32>
    %cst_658 = arith.constant 2.000000e-01 : f32
    %2040 = vector.broadcast %cst_658 : f32 to vector<8x128xf32>
    %2041 = arith.subf %1953, %2040 : vector<8x128xf32>
    %cst_659 = arith.constant 6.000000e-01 : f32
    %2042 = vector.broadcast %cst_659 : f32 to vector<8x128xf32>
    %2043 = arith.subf %1953, %2042 : vector<8x128xf32>
    %cst_660 = arith.constant 1.000000e+00 : f32
    %2044 = vector.broadcast %cst_660 : f32 to vector<8x128xf32>
    %2045 = arith.subf %1953, %2044 : vector<8x128xf32>
    %cst_661 = arith.constant 1.400000e+00 : f32
    %2046 = vector.broadcast %cst_661 : f32 to vector<8x128xf32>
    %2047 = arith.subf %1953, %2046 : vector<8x128xf32>
    %cst_662 = arith.constant 1.800000e+00 : f32
    %2048 = vector.broadcast %cst_662 : f32 to vector<8x128xf32>
    %2049 = arith.subf %1953, %2048 : vector<8x128xf32>
    %cst_663 = arith.constant 2.200000e+00 : f32
    %2050 = vector.broadcast %cst_663 : f32 to vector<8x128xf32>
    %2051 = arith.subf %1953, %2050 : vector<8x128xf32>
    %2052 = arith.mulf %2029, %1987 : vector<8x128xf32>
    %2053 = arith.mulf %2033, %1991 : vector<8x128xf32>
    %2054 = arith.subf %2052, %2053 : vector<8x128xf32>
    %cst_664 = arith.constant 2.500000e+00 : f32
    %2055 = vector.broadcast %cst_664 : f32 to vector<8x128xf32>
    %2056 = arith.mulf %2054, %2055 : vector<8x128xf32>
    %2057 = arith.mulf %2031, %1991 : vector<8x128xf32>
    %2058 = arith.mulf %2035, %1995 : vector<8x128xf32>
    %2059 = arith.subf %2057, %2058 : vector<8x128xf32>
    %cst_665 = arith.constant 2.500000e+00 : f32
    %2060 = vector.broadcast %cst_665 : f32 to vector<8x128xf32>
    %2061 = arith.mulf %2059, %2060 : vector<8x128xf32>
    %2062 = arith.mulf %2033, %1995 : vector<8x128xf32>
    %2063 = arith.mulf %2037, %1999 : vector<8x128xf32>
    %2064 = arith.subf %2062, %2063 : vector<8x128xf32>
    %cst_666 = arith.constant 2.500000e+00 : f32
    %2065 = vector.broadcast %cst_666 : f32 to vector<8x128xf32>
    %2066 = arith.mulf %2064, %2065 : vector<8x128xf32>
    %2067 = arith.mulf %2035, %1999 : vector<8x128xf32>
    %2068 = arith.mulf %2039, %2003 : vector<8x128xf32>
    %2069 = arith.subf %2067, %2068 : vector<8x128xf32>
    %cst_667 = arith.constant 2.500000e+00 : f32
    %2070 = vector.broadcast %cst_667 : f32 to vector<8x128xf32>
    %2071 = arith.mulf %2069, %2070 : vector<8x128xf32>
    %2072 = arith.mulf %2037, %2003 : vector<8x128xf32>
    %2073 = arith.mulf %2041, %2007 : vector<8x128xf32>
    %2074 = arith.subf %2072, %2073 : vector<8x128xf32>
    %cst_668 = arith.constant 2.500000e+00 : f32
    %2075 = vector.broadcast %cst_668 : f32 to vector<8x128xf32>
    %2076 = arith.mulf %2074, %2075 : vector<8x128xf32>
    %2077 = arith.mulf %2039, %2007 : vector<8x128xf32>
    %2078 = arith.mulf %2043, %2011 : vector<8x128xf32>
    %2079 = arith.subf %2077, %2078 : vector<8x128xf32>
    %cst_669 = arith.constant 2.500000e+00 : f32
    %2080 = vector.broadcast %cst_669 : f32 to vector<8x128xf32>
    %2081 = arith.mulf %2079, %2080 : vector<8x128xf32>
    %2082 = arith.mulf %2041, %2011 : vector<8x128xf32>
    %2083 = arith.mulf %2045, %2015 : vector<8x128xf32>
    %2084 = arith.subf %2082, %2083 : vector<8x128xf32>
    %cst_670 = arith.constant 2.500000e+00 : f32
    %2085 = vector.broadcast %cst_670 : f32 to vector<8x128xf32>
    %2086 = arith.mulf %2084, %2085 : vector<8x128xf32>
    %2087 = arith.mulf %2043, %2015 : vector<8x128xf32>
    %2088 = arith.mulf %2047, %2019 : vector<8x128xf32>
    %2089 = arith.subf %2087, %2088 : vector<8x128xf32>
    %cst_671 = arith.constant 2.500000e+00 : f32
    %2090 = vector.broadcast %cst_671 : f32 to vector<8x128xf32>
    %2091 = arith.mulf %2089, %2090 : vector<8x128xf32>
    %2092 = arith.mulf %2045, %2019 : vector<8x128xf32>
    %2093 = arith.mulf %2049, %2023 : vector<8x128xf32>
    %2094 = arith.subf %2092, %2093 : vector<8x128xf32>
    %cst_672 = arith.constant 2.500000e+00 : f32
    %2095 = vector.broadcast %cst_672 : f32 to vector<8x128xf32>
    %2096 = arith.mulf %2094, %2095 : vector<8x128xf32>
    %2097 = arith.mulf %2047, %2023 : vector<8x128xf32>
    %2098 = arith.mulf %2051, %2027 : vector<8x128xf32>
    %2099 = arith.subf %2097, %2098 : vector<8x128xf32>
    %cst_673 = arith.constant 2.500000e+00 : f32
    %2100 = vector.broadcast %cst_673 : f32 to vector<8x128xf32>
    %2101 = arith.mulf %2099, %2100 : vector<8x128xf32>
    %2102 = arith.mulf %2029, %2056 : vector<8x128xf32>
    %2103 = arith.mulf %2035, %2061 : vector<8x128xf32>
    %2104 = arith.subf %2102, %2103 : vector<8x128xf32>
    %cst_674 = arith.constant 1.250000e+00 : f32
    %2105 = vector.broadcast %cst_674 : f32 to vector<8x128xf32>
    %2106 = arith.mulf %2104, %2105 : vector<8x128xf32>
    %2107 = arith.mulf %2031, %2061 : vector<8x128xf32>
    %2108 = arith.mulf %2037, %2066 : vector<8x128xf32>
    %2109 = arith.subf %2107, %2108 : vector<8x128xf32>
    %cst_675 = arith.constant 1.250000e+00 : f32
    %2110 = vector.broadcast %cst_675 : f32 to vector<8x128xf32>
    %2111 = arith.mulf %2109, %2110 : vector<8x128xf32>
    %2112 = arith.mulf %2033, %2066 : vector<8x128xf32>
    %2113 = arith.mulf %2039, %2071 : vector<8x128xf32>
    %2114 = arith.subf %2112, %2113 : vector<8x128xf32>
    %cst_676 = arith.constant 1.250000e+00 : f32
    %2115 = vector.broadcast %cst_676 : f32 to vector<8x128xf32>
    %2116 = arith.mulf %2114, %2115 : vector<8x128xf32>
    %2117 = arith.mulf %2035, %2071 : vector<8x128xf32>
    %2118 = arith.mulf %2041, %2076 : vector<8x128xf32>
    %2119 = arith.subf %2117, %2118 : vector<8x128xf32>
    %cst_677 = arith.constant 1.250000e+00 : f32
    %2120 = vector.broadcast %cst_677 : f32 to vector<8x128xf32>
    %2121 = arith.mulf %2119, %2120 : vector<8x128xf32>
    %2122 = arith.mulf %2037, %2076 : vector<8x128xf32>
    %2123 = arith.mulf %2043, %2081 : vector<8x128xf32>
    %2124 = arith.subf %2122, %2123 : vector<8x128xf32>
    %cst_678 = arith.constant 1.250000e+00 : f32
    %2125 = vector.broadcast %cst_678 : f32 to vector<8x128xf32>
    %2126 = arith.mulf %2124, %2125 : vector<8x128xf32>
    %2127 = arith.mulf %2039, %2081 : vector<8x128xf32>
    %2128 = arith.mulf %2045, %2086 : vector<8x128xf32>
    %2129 = arith.subf %2127, %2128 : vector<8x128xf32>
    %cst_679 = arith.constant 1.250000e+00 : f32
    %2130 = vector.broadcast %cst_679 : f32 to vector<8x128xf32>
    %2131 = arith.mulf %2129, %2130 : vector<8x128xf32>
    %2132 = arith.mulf %2041, %2086 : vector<8x128xf32>
    %2133 = arith.mulf %2047, %2091 : vector<8x128xf32>
    %2134 = arith.subf %2132, %2133 : vector<8x128xf32>
    %cst_680 = arith.constant 1.250000e+00 : f32
    %2135 = vector.broadcast %cst_680 : f32 to vector<8x128xf32>
    %2136 = arith.mulf %2134, %2135 : vector<8x128xf32>
    %2137 = arith.mulf %2043, %2091 : vector<8x128xf32>
    %2138 = arith.mulf %2049, %2096 : vector<8x128xf32>
    %2139 = arith.subf %2137, %2138 : vector<8x128xf32>
    %cst_681 = arith.constant 1.250000e+00 : f32
    %2140 = vector.broadcast %cst_681 : f32 to vector<8x128xf32>
    %2141 = arith.mulf %2139, %2140 : vector<8x128xf32>
    %2142 = arith.mulf %2045, %2096 : vector<8x128xf32>
    %2143 = arith.mulf %2051, %2101 : vector<8x128xf32>
    %2144 = arith.subf %2142, %2143 : vector<8x128xf32>
    %cst_682 = arith.constant 1.250000e+00 : f32
    %2145 = vector.broadcast %cst_682 : f32 to vector<8x128xf32>
    %2146 = arith.mulf %2144, %2145 : vector<8x128xf32>
    %2147 = arith.mulf %2029, %2106 : vector<8x128xf32>
    %2148 = arith.mulf %2037, %2111 : vector<8x128xf32>
    %2149 = arith.subf %2147, %2148 : vector<8x128xf32>
    %cst_683 = arith.constant 0.833333313 : f32
    %2150 = vector.broadcast %cst_683 : f32 to vector<8x128xf32>
    %2151 = arith.mulf %2149, %2150 : vector<8x128xf32>
    %2152 = arith.mulf %2031, %2111 : vector<8x128xf32>
    %2153 = arith.mulf %2039, %2116 : vector<8x128xf32>
    %2154 = arith.subf %2152, %2153 : vector<8x128xf32>
    %cst_684 = arith.constant 0.833333313 : f32
    %2155 = vector.broadcast %cst_684 : f32 to vector<8x128xf32>
    %2156 = arith.mulf %2154, %2155 : vector<8x128xf32>
    %2157 = arith.mulf %2033, %2116 : vector<8x128xf32>
    %2158 = arith.mulf %2041, %2121 : vector<8x128xf32>
    %2159 = arith.subf %2157, %2158 : vector<8x128xf32>
    %cst_685 = arith.constant 0.833333313 : f32
    %2160 = vector.broadcast %cst_685 : f32 to vector<8x128xf32>
    %2161 = arith.mulf %2159, %2160 : vector<8x128xf32>
    %2162 = arith.mulf %2035, %2121 : vector<8x128xf32>
    %2163 = arith.mulf %2043, %2126 : vector<8x128xf32>
    %2164 = arith.subf %2162, %2163 : vector<8x128xf32>
    %cst_686 = arith.constant 0.833333313 : f32
    %2165 = vector.broadcast %cst_686 : f32 to vector<8x128xf32>
    %2166 = arith.mulf %2164, %2165 : vector<8x128xf32>
    %2167 = arith.mulf %2037, %2126 : vector<8x128xf32>
    %2168 = arith.mulf %2045, %2131 : vector<8x128xf32>
    %2169 = arith.subf %2167, %2168 : vector<8x128xf32>
    %cst_687 = arith.constant 0.833333313 : f32
    %2170 = vector.broadcast %cst_687 : f32 to vector<8x128xf32>
    %2171 = arith.mulf %2169, %2170 : vector<8x128xf32>
    %2172 = arith.mulf %2039, %2131 : vector<8x128xf32>
    %2173 = arith.mulf %2047, %2136 : vector<8x128xf32>
    %2174 = arith.subf %2172, %2173 : vector<8x128xf32>
    %cst_688 = arith.constant 0.833333313 : f32
    %2175 = vector.broadcast %cst_688 : f32 to vector<8x128xf32>
    %2176 = arith.mulf %2174, %2175 : vector<8x128xf32>
    %2177 = arith.mulf %2041, %2136 : vector<8x128xf32>
    %2178 = arith.mulf %2049, %2141 : vector<8x128xf32>
    %2179 = arith.subf %2177, %2178 : vector<8x128xf32>
    %cst_689 = arith.constant 0.833333313 : f32
    %2180 = vector.broadcast %cst_689 : f32 to vector<8x128xf32>
    %2181 = arith.mulf %2179, %2180 : vector<8x128xf32>
    %2182 = arith.mulf %2043, %2141 : vector<8x128xf32>
    %2183 = arith.mulf %2051, %2146 : vector<8x128xf32>
    %2184 = arith.subf %2182, %2183 : vector<8x128xf32>
    %cst_690 = arith.constant 0.833333313 : f32
    %2185 = vector.broadcast %cst_690 : f32 to vector<8x128xf32>
    %2186 = arith.mulf %2184, %2185 : vector<8x128xf32>
    %c8_691 = arith.constant 8 : index
    %c0_692 = arith.constant 0 : index
    %2187 = vector.load %arg7[%c8_691, %c0_692] : memref<288x128xf32, #tpu.memory_space<vmem>>, vector<8x128xf32>
    tpu.vector_store %arg7[%c8_691, %c0_692], %1959 {strides = array<i32>} : memref<288x128xf32, #tpu.memory_space<vmem>>, vector<8x128xf32>,
    %c40_693 = arith.constant 40 : index
    %c0_694 = arith.constant 0 : index
    %2188 = vector.load %arg7[%c40_693, %c0_694] : memref<288x128xf32, #tpu.memory_space<vmem>>, vector<8x128xf32>
    tpu.vector_store %arg7[%c40_693, %c0_694], %2151 {strides = array<i32>} : memref<288x128xf32, #tpu.memory_space<vmem>>, vector<8x128xf32>,
    %c72_695 = arith.constant 72 : index
    %c0_696 = arith.constant 0 : index
    %2189 = vector.load %arg7[%c72_695, %c0_696] : memref<288x128xf32, #tpu.memory_space<vmem>>, vector<8x128xf32>
    tpu.vector_store %arg7[%c72_695, %c0_696], %2156 {strides = array<i32>} : memref<288x128xf32, #tpu.memory_space<vmem>>, vector<8x128xf32>,
    %c104_697 = arith.constant 104 : index
    %c0_698 = arith.constant 0 : index
    %2190 = vector.load %arg7[%c104_697, %c0_698] : memref<288x128xf32, #tpu.memory_space<vmem>>, vector<8x128xf32>
    tpu.vector_store %arg7[%c104_697, %c0_698], %2161 {strides = array<i32>} : memref<288x128xf32, #tpu.memory_space<vmem>>, vector<8x128xf32>,
    %c136_699 = arith.constant 136 : index
    %c0_700 = arith.constant 0 : index
    %2191 = vector.load %arg7[%c136_699, %c0_700] : memref<288x128xf32, #tpu.memory_space<vmem>>, vector<8x128xf32>
    tpu.vector_store %arg7[%c136_699, %c0_700], %2166 {strides = array<i32>} : memref<288x128xf32, #tpu.memory_space<vmem>>, vector<8x128xf32>,
    %c168_701 = arith.constant 168 : index
    %c0_702 = arith.constant 0 : index
    %2192 = vector.load %arg7[%c168_701, %c0_702] : memref<288x128xf32, #tpu.memory_space<vmem>>, vector<8x128xf32>
    tpu.vector_store %arg7[%c168_701, %c0_702], %2171 {strides = array<i32>} : memref<288x128xf32, #tpu.memory_space<vmem>>, vector<8x128xf32>,
    %c200_703 = arith.constant 200 : index
    %c0_704 = arith.constant 0 : index
    %2193 = vector.load %arg7[%c200_703, %c0_704] : memref<288x128xf32, #tpu.memory_space<vmem>>, vector<8x128xf32>
    tpu.vector_store %arg7[%c200_703, %c0_704], %2176 {strides = array<i32>} : memref<288x128xf32, #tpu.memory_space<vmem>>, vector<8x128xf32>,
    %c232_705 = arith.constant 232 : index
    %c0_706 = arith.constant 0 : index
    %2194 = vector.load %arg7[%c232_705, %c0_706] : memref<288x128xf32, #tpu.memory_space<vmem>>, vector<8x128xf32>
    tpu.vector_store %arg7[%c232_705, %c0_706], %2181 {strides = array<i32>} : memref<288x128xf32, #tpu.memory_space<vmem>>, vector<8x128xf32>,
    %c264_707 = arith.constant 264 : index
    %c0_708 = arith.constant 0 : index
    %2195 = vector.load %arg7[%c264_707, %c0_708] : memref<288x128xf32, #tpu.memory_space<vmem>>, vector<8x128xf32>
    tpu.vector_store %arg7[%c264_707, %c0_708], %2186 {strides = array<i32>} : memref<288x128xf32, #tpu.memory_space<vmem>>, vector<8x128xf32>,
    %2196 = vector.extract_strided_slice %1709 {offsets = [16, 0], sizes = [8, 128], strides = [1, 1]} : vector<32x128xf32> to vector<8x128xf32>
    %2197 = arith.negf %2196 : vector<8x128xf32>
    %2198 = math.exp %2197 : vector<8x128xf32>
    %cst_709 = arith.constant 1.000000e+00 : f32
    %2199 = vector.broadcast %cst_709 : f32 to vector<8x128xf32>
    %2200 = arith.addf %2199, %2198 : vector<8x128xf32>
    %2201 = arith.divf %2199, %2200 : vector<8x128xf32>
    %2202 = arith.mulf %2196, %2201 : vector<8x128xf32>
    %cst_710 = arith.constant -2.200000e+00 : f32
    %2203 = vector.broadcast %cst_710 : f32 to vector<8x128xf32>
    %2204 = arith.cmpf oge, %2196, %2203 : vector<8x128xf32>
    %cst_711 = arith.constant -1.800000e+00 : f32
    %2205 = vector.broadcast %cst_711 : f32 to vector<8x128xf32>
    %2206 = arith.cmpf oge, %2196, %2205 : vector<8x128xf32>
    %cst_712 = arith.constant -1.400000e+00 : f32
    %2207 = vector.broadcast %cst_712 : f32 to vector<8x128xf32>
    %2208 = arith.cmpf oge, %2196, %2207 : vector<8x128xf32>
    %cst_713 = arith.constant -1.000000e+00 : f32
    %2209 = vector.broadcast %cst_713 : f32 to vector<8x128xf32>
    %2210 = arith.cmpf oge, %2196, %2209 : vector<8x128xf32>
    %cst_714 = arith.constant -6.000000e-01 : f32
    %2211 = vector.broadcast %cst_714 : f32 to vector<8x128xf32>
    %2212 = arith.cmpf oge, %2196, %2211 : vector<8x128xf32>
    %cst_715 = arith.constant -2.000000e-01 : f32
    %2213 = vector.broadcast %cst_715 : f32 to vector<8x128xf32>
    %2214 = arith.cmpf oge, %2196, %2213 : vector<8x128xf32>
    %cst_716 = arith.constant 2.000000e-01 : f32
    %2215 = vector.broadcast %cst_716 : f32 to vector<8x128xf32>
    %2216 = arith.cmpf oge, %2196, %2215 : vector<8x128xf32>
    %cst_717 = arith.constant 6.000000e-01 : f32
    %2217 = vector.broadcast %cst_717 : f32 to vector<8x128xf32>
    %2218 = arith.cmpf oge, %2196, %2217 : vector<8x128xf32>
    %cst_718 = arith.constant 1.000000e+00 : f32
    %2219 = vector.broadcast %cst_718 : f32 to vector<8x128xf32>
    %2220 = arith.cmpf oge, %2196, %2219 : vector<8x128xf32>
    %cst_719 = arith.constant 1.400000e+00 : f32
    %2221 = vector.broadcast %cst_719 : f32 to vector<8x128xf32>
    %2222 = arith.cmpf oge, %2196, %2221 : vector<8x128xf32>
    %cst_720 = arith.constant 1.800000e+00 : f32
    %2223 = vector.broadcast %cst_720 : f32 to vector<8x128xf32>
    %2224 = arith.cmpf oge, %2196, %2223 : vector<8x128xf32>
    %cst_721 = arith.constant 2.200000e+00 : f32
    %2225 = vector.broadcast %cst_721 : f32 to vector<8x128xf32>
    %2226 = arith.cmpf oge, %2196, %2225 : vector<8x128xf32>
    %cst_722 = arith.constant dense<true> : vector<8x128xi1>
    %2227 = arith.xori %2206, %cst_722 : vector<8x128xi1>
    %2228 = arith.andi %2204, %2227 : vector<8x128xi1>
    %2229 = arith.extui %2228 : vector<8x128xi1> to vector<8x128xi32>
    %2230 = arith.sitofp %2229 : vector<8x128xi32> to vector<8x128xf32>
    %cst_723 = arith.constant dense<true> : vector<8x128xi1>
    %2231 = arith.xori %2208, %cst_723 : vector<8x128xi1>
    %2232 = arith.andi %2206, %2231 : vector<8x128xi1>
    %2233 = arith.extui %2232 : vector<8x128xi1> to vector<8x128xi32>
    %2234 = arith.sitofp %2233 : vector<8x128xi32> to vector<8x128xf32>
    %cst_724 = arith.constant dense<true> : vector<8x128xi1>
    %2235 = arith.xori %2210, %cst_724 : vector<8x128xi1>
    %2236 = arith.andi %2208, %2235 : vector<8x128xi1>
    %2237 = arith.extui %2236 : vector<8x128xi1> to vector<8x128xi32>
    %2238 = arith.sitofp %2237 : vector<8x128xi32> to vector<8x128xf32>
    %cst_725 = arith.constant dense<true> : vector<8x128xi1>
    %2239 = arith.xori %2212, %cst_725 : vector<8x128xi1>
    %2240 = arith.andi %2210, %2239 : vector<8x128xi1>
    %2241 = arith.extui %2240 : vector<8x128xi1> to vector<8x128xi32>
    %2242 = arith.sitofp %2241 : vector<8x128xi32> to vector<8x128xf32>
    %cst_726 = arith.constant dense<true> : vector<8x128xi1>
    %2243 = arith.xori %2214, %cst_726 : vector<8x128xi1>
    %2244 = arith.andi %2212, %2243 : vector<8x128xi1>
    %2245 = arith.extui %2244 : vector<8x128xi1> to vector<8x128xi32>
    %2246 = arith.sitofp %2245 : vector<8x128xi32> to vector<8x128xf32>
    %cst_727 = arith.constant dense<true> : vector<8x128xi1>
    %2247 = arith.xori %2216, %cst_727 : vector<8x128xi1>
    %2248 = arith.andi %2214, %2247 : vector<8x128xi1>
    %2249 = arith.extui %2248 : vector<8x128xi1> to vector<8x128xi32>
    %2250 = arith.sitofp %2249 : vector<8x128xi32> to vector<8x128xf32>
    %cst_728 = arith.constant dense<true> : vector<8x128xi1>
    %2251 = arith.xori %2218, %cst_728 : vector<8x128xi1>
    %2252 = arith.andi %2216, %2251 : vector<8x128xi1>
    %2253 = arith.extui %2252 : vector<8x128xi1> to vector<8x128xi32>
    %2254 = arith.sitofp %2253 : vector<8x128xi32> to vector<8x128xf32>
    %cst_729 = arith.constant dense<true> : vector<8x128xi1>
    %2255 = arith.xori %2220, %cst_729 : vector<8x128xi1>
    %2256 = arith.andi %2218, %2255 : vector<8x128xi1>
    %2257 = arith.extui %2256 : vector<8x128xi1> to vector<8x128xi32>
    %2258 = arith.sitofp %2257 : vector<8x128xi32> to vector<8x128xf32>
    %cst_730 = arith.constant dense<true> : vector<8x128xi1>
    %2259 = arith.xori %2222, %cst_730 : vector<8x128xi1>
    %2260 = arith.andi %2220, %2259 : vector<8x128xi1>
    %2261 = arith.extui %2260 : vector<8x128xi1> to vector<8x128xi32>
    %2262 = arith.sitofp %2261 : vector<8x128xi32> to vector<8x128xf32>
    %cst_731 = arith.constant dense<true> : vector<8x128xi1>
    %2263 = arith.xori %2224, %cst_731 : vector<8x128xi1>
    %2264 = arith.andi %2222, %2263 : vector<8x128xi1>
    %2265 = arith.extui %2264 : vector<8x128xi1> to vector<8x128xi32>
    %2266 = arith.sitofp %2265 : vector<8x128xi32> to vector<8x128xf32>
    %cst_732 = arith.constant dense<true> : vector<8x128xi1>
    %2267 = arith.xori %2226, %cst_732 : vector<8x128xi1>
    %2268 = arith.andi %2224, %2267 : vector<8x128xi1>
    %2269 = arith.extui %2268 : vector<8x128xi1> to vector<8x128xi32>
    %2270 = arith.sitofp %2269 : vector<8x128xi32> to vector<8x128xf32>
    %cst_733 = arith.constant -2.200000e+00 : f32
    %2271 = vector.broadcast %cst_733 : f32 to vector<8x128xf32>
    %2272 = arith.subf %2196, %2271 : vector<8x128xf32>
    %cst_734 = arith.constant -1.800000e+00 : f32
    %2273 = vector.broadcast %cst_734 : f32 to vector<8x128xf32>
    %2274 = arith.subf %2196, %2273 : vector<8x128xf32>
    %cst_735 = arith.constant -1.400000e+00 : f32
    %2275 = vector.broadcast %cst_735 : f32 to vector<8x128xf32>
    %2276 = arith.subf %2196, %2275 : vector<8x128xf32>
    %cst_736 = arith.constant -1.000000e+00 : f32
    %2277 = vector.broadcast %cst_736 : f32 to vector<8x128xf32>
    %2278 = arith.subf %2196, %2277 : vector<8x128xf32>
    %cst_737 = arith.constant -6.000000e-01 : f32
    %2279 = vector.broadcast %cst_737 : f32 to vector<8x128xf32>
    %2280 = arith.subf %2196, %2279 : vector<8x128xf32>
    %cst_738 = arith.constant -2.000000e-01 : f32
    %2281 = vector.broadcast %cst_738 : f32 to vector<8x128xf32>
    %2282 = arith.subf %2196, %2281 : vector<8x128xf32>
    %cst_739 = arith.constant 2.000000e-01 : f32
    %2283 = vector.broadcast %cst_739 : f32 to vector<8x128xf32>
    %2284 = arith.subf %2196, %2283 : vector<8x128xf32>
    %cst_740 = arith.constant 6.000000e-01 : f32
    %2285 = vector.broadcast %cst_740 : f32 to vector<8x128xf32>
    %2286 = arith.subf %2196, %2285 : vector<8x128xf32>
    %cst_741 = arith.constant 1.000000e+00 : f32
    %2287 = vector.broadcast %cst_741 : f32 to vector<8x128xf32>
    %2288 = arith.subf %2196, %2287 : vector<8x128xf32>
    %cst_742 = arith.constant 1.400000e+00 : f32
    %2289 = vector.broadcast %cst_742 : f32 to vector<8x128xf32>
    %2290 = arith.subf %2196, %2289 : vector<8x128xf32>
    %cst_743 = arith.constant 1.800000e+00 : f32
    %2291 = vector.broadcast %cst_743 : f32 to vector<8x128xf32>
    %2292 = arith.subf %2196, %2291 : vector<8x128xf32>
    %cst_744 = arith.constant 2.200000e+00 : f32
    %2293 = vector.broadcast %cst_744 : f32 to vector<8x128xf32>
    %2294 = arith.subf %2196, %2293 : vector<8x128xf32>
    %2295 = arith.mulf %2272, %2230 : vector<8x128xf32>
    %2296 = arith.mulf %2276, %2234 : vector<8x128xf32>
    %2297 = arith.subf %2295, %2296 : vector<8x128xf32>
    %cst_745 = arith.constant 2.500000e+00 : f32
    %2298 = vector.broadcast %cst_745 : f32 to vector<8x128xf32>
    %2299 = arith.mulf %2297, %2298 : vector<8x128xf32>
    %2300 = arith.mulf %2274, %2234 : vector<8x128xf32>
    %2301 = arith.mulf %2278, %2238 : vector<8x128xf32>
    %2302 = arith.subf %2300, %2301 : vector<8x128xf32>
    %cst_746 = arith.constant 2.500000e+00 : f32
    %2303 = vector.broadcast %cst_746 : f32 to vector<8x128xf32>
    %2304 = arith.mulf %2302, %2303 : vector<8x128xf32>
    %2305 = arith.mulf %2276, %2238 : vector<8x128xf32>
    %2306 = arith.mulf %2280, %2242 : vector<8x128xf32>
    %2307 = arith.subf %2305, %2306 : vector<8x128xf32>
    %cst_747 = arith.constant 2.500000e+00 : f32
    %2308 = vector.broadcast %cst_747 : f32 to vector<8x128xf32>
    %2309 = arith.mulf %2307, %2308 : vector<8x128xf32>
    %2310 = arith.mulf %2278, %2242 : vector<8x128xf32>
    %2311 = arith.mulf %2282, %2246 : vector<8x128xf32>
    %2312 = arith.subf %2310, %2311 : vector<8x128xf32>
    %cst_748 = arith.constant 2.500000e+00 : f32
    %2313 = vector.broadcast %cst_748 : f32 to vector<8x128xf32>
    %2314 = arith.mulf %2312, %2313 : vector<8x128xf32>
    %2315 = arith.mulf %2280, %2246 : vector<8x128xf32>
    %2316 = arith.mulf %2284, %2250 : vector<8x128xf32>
    %2317 = arith.subf %2315, %2316 : vector<8x128xf32>
    %cst_749 = arith.constant 2.500000e+00 : f32
    %2318 = vector.broadcast %cst_749 : f32 to vector<8x128xf32>
    %2319 = arith.mulf %2317, %2318 : vector<8x128xf32>
    %2320 = arith.mulf %2282, %2250 : vector<8x128xf32>
    %2321 = arith.mulf %2286, %2254 : vector<8x128xf32>
    %2322 = arith.subf %2320, %2321 : vector<8x128xf32>
    %cst_750 = arith.constant 2.500000e+00 : f32
    %2323 = vector.broadcast %cst_750 : f32 to vector<8x128xf32>
    %2324 = arith.mulf %2322, %2323 : vector<8x128xf32>
    %2325 = arith.mulf %2284, %2254 : vector<8x128xf32>
    %2326 = arith.mulf %2288, %2258 : vector<8x128xf32>
    %2327 = arith.subf %2325, %2326 : vector<8x128xf32>
    %cst_751 = arith.constant 2.500000e+00 : f32
    %2328 = vector.broadcast %cst_751 : f32 to vector<8x128xf32>
    %2329 = arith.mulf %2327, %2328 : vector<8x128xf32>
    %2330 = arith.mulf %2286, %2258 : vector<8x128xf32>
    %2331 = arith.mulf %2290, %2262 : vector<8x128xf32>
    %2332 = arith.subf %2330, %2331 : vector<8x128xf32>
    %cst_752 = arith.constant 2.500000e+00 : f32
    %2333 = vector.broadcast %cst_752 : f32 to vector<8x128xf32>
    %2334 = arith.mulf %2332, %2333 : vector<8x128xf32>
    %2335 = arith.mulf %2288, %2262 : vector<8x128xf32>
    %2336 = arith.mulf %2292, %2266 : vector<8x128xf32>
    %2337 = arith.subf %2335, %2336 : vector<8x128xf32>
    %cst_753 = arith.constant 2.500000e+00 : f32
    %2338 = vector.broadcast %cst_753 : f32 to vector<8x128xf32>
    %2339 = arith.mulf %2337, %2338 : vector<8x128xf32>
    %2340 = arith.mulf %2290, %2266 : vector<8x128xf32>
    %2341 = arith.mulf %2294, %2270 : vector<8x128xf32>
    %2342 = arith.subf %2340, %2341 : vector<8x128xf32>
    %cst_754 = arith.constant 2.500000e+00 : f32
    %2343 = vector.broadcast %cst_754 : f32 to vector<8x128xf32>
    %2344 = arith.mulf %2342, %2343 : vector<8x128xf32>
    %2345 = arith.mulf %2272, %2299 : vector<8x128xf32>
    %2346 = arith.mulf %2278, %2304 : vector<8x128xf32>
    %2347 = arith.subf %2345, %2346 : vector<8x128xf32>
    %cst_755 = arith.constant 1.250000e+00 : f32
    %2348 = vector.broadcast %cst_755 : f32 to vector<8x128xf32>
    %2349 = arith.mulf %2347, %2348 : vector<8x128xf32>
    %2350 = arith.mulf %2274, %2304 : vector<8x128xf32>
    %2351 = arith.mulf %2280, %2309 : vector<8x128xf32>
    %2352 = arith.subf %2350, %2351 : vector<8x128xf32>
    %cst_756 = arith.constant 1.250000e+00 : f32
    %2353 = vector.broadcast %cst_756 : f32 to vector<8x128xf32>
    %2354 = arith.mulf %2352, %2353 : vector<8x128xf32>
    %2355 = arith.mulf %2276, %2309 : vector<8x128xf32>
    %2356 = arith.mulf %2282, %2314 : vector<8x128xf32>
    %2357 = arith.subf %2355, %2356 : vector<8x128xf32>
    %cst_757 = arith.constant 1.250000e+00 : f32
    %2358 = vector.broadcast %cst_757 : f32 to vector<8x128xf32>
    %2359 = arith.mulf %2357, %2358 : vector<8x128xf32>
    %2360 = arith.mulf %2278, %2314 : vector<8x128xf32>
    %2361 = arith.mulf %2284, %2319 : vector<8x128xf32>
    %2362 = arith.subf %2360, %2361 : vector<8x128xf32>
    %cst_758 = arith.constant 1.250000e+00 : f32
    %2363 = vector.broadcast %cst_758 : f32 to vector<8x128xf32>
    %2364 = arith.mulf %2362, %2363 : vector<8x128xf32>
    %2365 = arith.mulf %2280, %2319 : vector<8x128xf32>
    %2366 = arith.mulf %2286, %2324 : vector<8x128xf32>
    %2367 = arith.subf %2365, %2366 : vector<8x128xf32>
    %cst_759 = arith.constant 1.250000e+00 : f32
    %2368 = vector.broadcast %cst_759 : f32 to vector<8x128xf32>
    %2369 = arith.mulf %2367, %2368 : vector<8x128xf32>
    %2370 = arith.mulf %2282, %2324 : vector<8x128xf32>
    %2371 = arith.mulf %2288, %2329 : vector<8x128xf32>
    %2372 = arith.subf %2370, %2371 : vector<8x128xf32>
    %cst_760 = arith.constant 1.250000e+00 : f32
    %2373 = vector.broadcast %cst_760 : f32 to vector<8x128xf32>
    %2374 = arith.mulf %2372, %2373 : vector<8x128xf32>
    %2375 = arith.mulf %2284, %2329 : vector<8x128xf32>
    %2376 = arith.mulf %2290, %2334 : vector<8x128xf32>
    %2377 = arith.subf %2375, %2376 : vector<8x128xf32>
    %cst_761 = arith.constant 1.250000e+00 : f32
    %2378 = vector.broadcast %cst_761 : f32 to vector<8x128xf32>
    %2379 = arith.mulf %2377, %2378 : vector<8x128xf32>
    %2380 = arith.mulf %2286, %2334 : vector<8x128xf32>
    %2381 = arith.mulf %2292, %2339 : vector<8x128xf32>
    %2382 = arith.subf %2380, %2381 : vector<8x128xf32>
    %cst_762 = arith.constant 1.250000e+00 : f32
    %2383 = vector.broadcast %cst_762 : f32 to vector<8x128xf32>
    %2384 = arith.mulf %2382, %2383 : vector<8x128xf32>
    %2385 = arith.mulf %2288, %2339 : vector<8x128xf32>
    %2386 = arith.mulf %2294, %2344 : vector<8x128xf32>
    %2387 = arith.subf %2385, %2386 : vector<8x128xf32>
    %cst_763 = arith.constant 1.250000e+00 : f32
    %2388 = vector.broadcast %cst_763 : f32 to vector<8x128xf32>
    %2389 = arith.mulf %2387, %2388 : vector<8x128xf32>
    %2390 = arith.mulf %2272, %2349 : vector<8x128xf32>
    %2391 = arith.mulf %2280, %2354 : vector<8x128xf32>
    %2392 = arith.subf %2390, %2391 : vector<8x128xf32>
    %cst_764 = arith.constant 0.833333313 : f32
    %2393 = vector.broadcast %cst_764 : f32 to vector<8x128xf32>
    %2394 = arith.mulf %2392, %2393 : vector<8x128xf32>
    %2395 = arith.mulf %2274, %2354 : vector<8x128xf32>
    %2396 = arith.mulf %2282, %2359 : vector<8x128xf32>
    %2397 = arith.subf %2395, %2396 : vector<8x128xf32>
    %cst_765 = arith.constant 0.833333313 : f32
    %2398 = vector.broadcast %cst_765 : f32 to vector<8x128xf32>
    %2399 = arith.mulf %2397, %2398 : vector<8x128xf32>
    %2400 = arith.mulf %2276, %2359 : vector<8x128xf32>
    %2401 = arith.mulf %2284, %2364 : vector<8x128xf32>
    %2402 = arith.subf %2400, %2401 : vector<8x128xf32>
    %cst_766 = arith.constant 0.833333313 : f32
    %2403 = vector.broadcast %cst_766 : f32 to vector<8x128xf32>
    %2404 = arith.mulf %2402, %2403 : vector<8x128xf32>
    %2405 = arith.mulf %2278, %2364 : vector<8x128xf32>
    %2406 = arith.mulf %2286, %2369 : vector<8x128xf32>
    %2407 = arith.subf %2405, %2406 : vector<8x128xf32>
    %cst_767 = arith.constant 0.833333313 : f32
    %2408 = vector.broadcast %cst_767 : f32 to vector<8x128xf32>
    %2409 = arith.mulf %2407, %2408 : vector<8x128xf32>
    %2410 = arith.mulf %2280, %2369 : vector<8x128xf32>
    %2411 = arith.mulf %2288, %2374 : vector<8x128xf32>
    %2412 = arith.subf %2410, %2411 : vector<8x128xf32>
    %cst_768 = arith.constant 0.833333313 : f32
    %2413 = vector.broadcast %cst_768 : f32 to vector<8x128xf32>
    %2414 = arith.mulf %2412, %2413 : vector<8x128xf32>
    %2415 = arith.mulf %2282, %2374 : vector<8x128xf32>
    %2416 = arith.mulf %2290, %2379 : vector<8x128xf32>
    %2417 = arith.subf %2415, %2416 : vector<8x128xf32>
    %cst_769 = arith.constant 0.833333313 : f32
    %2418 = vector.broadcast %cst_769 : f32 to vector<8x128xf32>
    %2419 = arith.mulf %2417, %2418 : vector<8x128xf32>
    %2420 = arith.mulf %2284, %2379 : vector<8x128xf32>
    %2421 = arith.mulf %2292, %2384 : vector<8x128xf32>
    %2422 = arith.subf %2420, %2421 : vector<8x128xf32>
    %cst_770 = arith.constant 0.833333313 : f32
    %2423 = vector.broadcast %cst_770 : f32 to vector<8x128xf32>
    %2424 = arith.mulf %2422, %2423 : vector<8x128xf32>
    %2425 = arith.mulf %2286, %2384 : vector<8x128xf32>
    %2426 = arith.mulf %2294, %2389 : vector<8x128xf32>
    %2427 = arith.subf %2425, %2426 : vector<8x128xf32>
    %cst_771 = arith.constant 0.833333313 : f32
    %2428 = vector.broadcast %cst_771 : f32 to vector<8x128xf32>
    %2429 = arith.mulf %2427, %2428 : vector<8x128xf32>
    %c16_772 = arith.constant 16 : index
    %c0_773 = arith.constant 0 : index
    %2430 = vector.load %arg7[%c16_772, %c0_773] : memref<288x128xf32, #tpu.memory_space<vmem>>, vector<8x128xf32>
    tpu.vector_store %arg7[%c16_772, %c0_773], %2202 {strides = array<i32>} : memref<288x128xf32, #tpu.memory_space<vmem>>, vector<8x128xf32>,
    %c48_774 = arith.constant 48 : index
    %c0_775 = arith.constant 0 : index
    %2431 = vector.load %arg7[%c48_774, %c0_775] : memref<288x128xf32, #tpu.memory_space<vmem>>, vector<8x128xf32>
    tpu.vector_store %arg7[%c48_774, %c0_775], %2394 {strides = array<i32>} : memref<288x128xf32, #tpu.memory_space<vmem>>, vector<8x128xf32>,
    %c80_776 = arith.constant 80 : index
    %c0_777 = arith.constant 0 : index
    %2432 = vector.load %arg7[%c80_776, %c0_777] : memref<288x128xf32, #tpu.memory_space<vmem>>, vector<8x128xf32>
    tpu.vector_store %arg7[%c80_776, %c0_777], %2399 {strides = array<i32>} : memref<288x128xf32, #tpu.memory_space<vmem>>, vector<8x128xf32>,
    %c112_778 = arith.constant 112 : index
    %c0_779 = arith.constant 0 : index
    %2433 = vector.load %arg7[%c112_778, %c0_779] : memref<288x128xf32, #tpu.memory_space<vmem>>, vector<8x128xf32>
    tpu.vector_store %arg7[%c112_778, %c0_779], %2404 {strides = array<i32>} : memref<288x128xf32, #tpu.memory_space<vmem>>, vector<8x128xf32>,
    %c144_780 = arith.constant 144 : index
    %c0_781 = arith.constant 0 : index
    %2434 = vector.load %arg7[%c144_780, %c0_781] : memref<288x128xf32, #tpu.memory_space<vmem>>, vector<8x128xf32>
    tpu.vector_store %arg7[%c144_780, %c0_781], %2409 {strides = array<i32>} : memref<288x128xf32, #tpu.memory_space<vmem>>, vector<8x128xf32>,
    %c176_782 = arith.constant 176 : index
    %c0_783 = arith.constant 0 : index
    %2435 = vector.load %arg7[%c176_782, %c0_783] : memref<288x128xf32, #tpu.memory_space<vmem>>, vector<8x128xf32>
    tpu.vector_store %arg7[%c176_782, %c0_783], %2414 {strides = array<i32>} : memref<288x128xf32, #tpu.memory_space<vmem>>, vector<8x128xf32>,
    %c208_784 = arith.constant 208 : index
    %c0_785 = arith.constant 0 : index
    %2436 = vector.load %arg7[%c208_784, %c0_785] : memref<288x128xf32, #tpu.memory_space<vmem>>, vector<8x128xf32>
    tpu.vector_store %arg7[%c208_784, %c0_785], %2419 {strides = array<i32>} : memref<288x128xf32, #tpu.memory_space<vmem>>, vector<8x128xf32>,
    %c240_786 = arith.constant 240 : index
    %c0_787 = arith.constant 0 : index
    %2437 = vector.load %arg7[%c240_786, %c0_787] : memref<288x128xf32, #tpu.memory_space<vmem>>, vector<8x128xf32>
    tpu.vector_store %arg7[%c240_786, %c0_787], %2424 {strides = array<i32>} : memref<288x128xf32, #tpu.memory_space<vmem>>, vector<8x128xf32>,
    %c272_788 = arith.constant 272 : index
    %c0_789 = arith.constant 0 : index
    %2438 = vector.load %arg7[%c272_788, %c0_789] : memref<288x128xf32, #tpu.memory_space<vmem>>, vector<8x128xf32>
    tpu.vector_store %arg7[%c272_788, %c0_789], %2429 {strides = array<i32>} : memref<288x128xf32, #tpu.memory_space<vmem>>, vector<8x128xf32>,
    %2439 = vector.extract_strided_slice %1709 {offsets = [24, 0], sizes = [8, 128], strides = [1, 1]} : vector<32x128xf32> to vector<8x128xf32>
    %2440 = arith.negf %2439 : vector<8x128xf32>
    %2441 = math.exp %2440 : vector<8x128xf32>
    %cst_790 = arith.constant 1.000000e+00 : f32
    %2442 = vector.broadcast %cst_790 : f32 to vector<8x128xf32>
    %2443 = arith.addf %2442, %2441 : vector<8x128xf32>
    %2444 = arith.divf %2442, %2443 : vector<8x128xf32>
    %2445 = arith.mulf %2439, %2444 : vector<8x128xf32>
    %cst_791 = arith.constant -2.200000e+00 : f32
    %2446 = vector.broadcast %cst_791 : f32 to vector<8x128xf32>
    %2447 = arith.cmpf oge, %2439, %2446 : vector<8x128xf32>
    %cst_792 = arith.constant -1.800000e+00 : f32
    %2448 = vector.broadcast %cst_792 : f32 to vector<8x128xf32>
    %2449 = arith.cmpf oge, %2439, %2448 : vector<8x128xf32>
    %cst_793 = arith.constant -1.400000e+00 : f32
    %2450 = vector.broadcast %cst_793 : f32 to vector<8x128xf32>
    %2451 = arith.cmpf oge, %2439, %2450 : vector<8x128xf32>
    %cst_794 = arith.constant -1.000000e+00 : f32
    %2452 = vector.broadcast %cst_794 : f32 to vector<8x128xf32>
    %2453 = arith.cmpf oge, %2439, %2452 : vector<8x128xf32>
    %cst_795 = arith.constant -6.000000e-01 : f32
    %2454 = vector.broadcast %cst_795 : f32 to vector<8x128xf32>
    %2455 = arith.cmpf oge, %2439, %2454 : vector<8x128xf32>
    %cst_796 = arith.constant -2.000000e-01 : f32
    %2456 = vector.broadcast %cst_796 : f32 to vector<8x128xf32>
    %2457 = arith.cmpf oge, %2439, %2456 : vector<8x128xf32>
    %cst_797 = arith.constant 2.000000e-01 : f32
    %2458 = vector.broadcast %cst_797 : f32 to vector<8x128xf32>
    %2459 = arith.cmpf oge, %2439, %2458 : vector<8x128xf32>
    %cst_798 = arith.constant 6.000000e-01 : f32
    %2460 = vector.broadcast %cst_798 : f32 to vector<8x128xf32>
    %2461 = arith.cmpf oge, %2439, %2460 : vector<8x128xf32>
    %cst_799 = arith.constant 1.000000e+00 : f32
    %2462 = vector.broadcast %cst_799 : f32 to vector<8x128xf32>
    %2463 = arith.cmpf oge, %2439, %2462 : vector<8x128xf32>
    %cst_800 = arith.constant 1.400000e+00 : f32
    %2464 = vector.broadcast %cst_800 : f32 to vector<8x128xf32>
    %2465 = arith.cmpf oge, %2439, %2464 : vector<8x128xf32>
    %cst_801 = arith.constant 1.800000e+00 : f32
    %2466 = vector.broadcast %cst_801 : f32 to vector<8x128xf32>
    %2467 = arith.cmpf oge, %2439, %2466 : vector<8x128xf32>
    %cst_802 = arith.constant 2.200000e+00 : f32
    %2468 = vector.broadcast %cst_802 : f32 to vector<8x128xf32>
    %2469 = arith.cmpf oge, %2439, %2468 : vector<8x128xf32>
    %cst_803 = arith.constant dense<true> : vector<8x128xi1>
    %2470 = arith.xori %2449, %cst_803 : vector<8x128xi1>
    %2471 = arith.andi %2447, %2470 : vector<8x128xi1>
    %2472 = arith.extui %2471 : vector<8x128xi1> to vector<8x128xi32>
    %2473 = arith.sitofp %2472 : vector<8x128xi32> to vector<8x128xf32>
    %cst_804 = arith.constant dense<true> : vector<8x128xi1>
    %2474 = arith.xori %2451, %cst_804 : vector<8x128xi1>
    %2475 = arith.andi %2449, %2474 : vector<8x128xi1>
    %2476 = arith.extui %2475 : vector<8x128xi1> to vector<8x128xi32>
    %2477 = arith.sitofp %2476 : vector<8x128xi32> to vector<8x128xf32>
    %cst_805 = arith.constant dense<true> : vector<8x128xi1>
    %2478 = arith.xori %2453, %cst_805 : vector<8x128xi1>
    %2479 = arith.andi %2451, %2478 : vector<8x128xi1>
    %2480 = arith.extui %2479 : vector<8x128xi1> to vector<8x128xi32>
    %2481 = arith.sitofp %2480 : vector<8x128xi32> to vector<8x128xf32>
    %cst_806 = arith.constant dense<true> : vector<8x128xi1>
    %2482 = arith.xori %2455, %cst_806 : vector<8x128xi1>
    %2483 = arith.andi %2453, %2482 : vector<8x128xi1>
    %2484 = arith.extui %2483 : vector<8x128xi1> to vector<8x128xi32>
    %2485 = arith.sitofp %2484 : vector<8x128xi32> to vector<8x128xf32>
    %cst_807 = arith.constant dense<true> : vector<8x128xi1>
    %2486 = arith.xori %2457, %cst_807 : vector<8x128xi1>
    %2487 = arith.andi %2455, %2486 : vector<8x128xi1>
    %2488 = arith.extui %2487 : vector<8x128xi1> to vector<8x128xi32>
    %2489 = arith.sitofp %2488 : vector<8x128xi32> to vector<8x128xf32>
    %cst_808 = arith.constant dense<true> : vector<8x128xi1>
    %2490 = arith.xori %2459, %cst_808 : vector<8x128xi1>
    %2491 = arith.andi %2457, %2490 : vector<8x128xi1>
    %2492 = arith.extui %2491 : vector<8x128xi1> to vector<8x128xi32>
    %2493 = arith.sitofp %2492 : vector<8x128xi32> to vector<8x128xf32>
    %cst_809 = arith.constant dense<true> : vector<8x128xi1>
    %2494 = arith.xori %2461, %cst_809 : vector<8x128xi1>
    %2495 = arith.andi %2459, %2494 : vector<8x128xi1>
    %2496 = arith.extui %2495 : vector<8x128xi1> to vector<8x128xi32>
    %2497 = arith.sitofp %2496 : vector<8x128xi32> to vector<8x128xf32>
    %cst_810 = arith.constant dense<true> : vector<8x128xi1>
    %2498 = arith.xori %2463, %cst_810 : vector<8x128xi1>
    %2499 = arith.andi %2461, %2498 : vector<8x128xi1>
    %2500 = arith.extui %2499 : vector<8x128xi1> to vector<8x128xi32>
    %2501 = arith.sitofp %2500 : vector<8x128xi32> to vector<8x128xf32>
    %cst_811 = arith.constant dense<true> : vector<8x128xi1>
    %2502 = arith.xori %2465, %cst_811 : vector<8x128xi1>
    %2503 = arith.andi %2463, %2502 : vector<8x128xi1>
    %2504 = arith.extui %2503 : vector<8x128xi1> to vector<8x128xi32>
    %2505 = arith.sitofp %2504 : vector<8x128xi32> to vector<8x128xf32>
    %cst_812 = arith.constant dense<true> : vector<8x128xi1>
    %2506 = arith.xori %2467, %cst_812 : vector<8x128xi1>
    %2507 = arith.andi %2465, %2506 : vector<8x128xi1>
    %2508 = arith.extui %2507 : vector<8x128xi1> to vector<8x128xi32>
    %2509 = arith.sitofp %2508 : vector<8x128xi32> to vector<8x128xf32>
    %cst_813 = arith.constant dense<true> : vector<8x128xi1>
    %2510 = arith.xori %2469, %cst_813 : vector<8x128xi1>
    %2511 = arith.andi %2467, %2510 : vector<8x128xi1>
    %2512 = arith.extui %2511 : vector<8x128xi1> to vector<8x128xi32>
    %2513 = arith.sitofp %2512 : vector<8x128xi32> to vector<8x128xf32>
    %cst_814 = arith.constant -2.200000e+00 : f32
    %2514 = vector.broadcast %cst_814 : f32 to vector<8x128xf32>
    %2515 = arith.subf %2439, %2514 : vector<8x128xf32>
    %cst_815 = arith.constant -1.800000e+00 : f32
    %2516 = vector.broadcast %cst_815 : f32 to vector<8x128xf32>
    %2517 = arith.subf %2439, %2516 : vector<8x128xf32>
    %cst_816 = arith.constant -1.400000e+00 : f32
    %2518 = vector.broadcast %cst_816 : f32 to vector<8x128xf32>
    %2519 = arith.subf %2439, %2518 : vector<8x128xf32>
    %cst_817 = arith.constant -1.000000e+00 : f32
    %2520 = vector.broadcast %cst_817 : f32 to vector<8x128xf32>
    %2521 = arith.subf %2439, %2520 : vector<8x128xf32>
    %cst_818 = arith.constant -6.000000e-01 : f32
    %2522 = vector.broadcast %cst_818 : f32 to vector<8x128xf32>
    %2523 = arith.subf %2439, %2522 : vector<8x128xf32>
    %cst_819 = arith.constant -2.000000e-01 : f32
    %2524 = vector.broadcast %cst_819 : f32 to vector<8x128xf32>
    %2525 = arith.subf %2439, %2524 : vector<8x128xf32>
    %cst_820 = arith.constant 2.000000e-01 : f32
    %2526 = vector.broadcast %cst_820 : f32 to vector<8x128xf32>
    %2527 = arith.subf %2439, %2526 : vector<8x128xf32>
    %cst_821 = arith.constant 6.000000e-01 : f32
    %2528 = vector.broadcast %cst_821 : f32 to vector<8x128xf32>
    %2529 = arith.subf %2439, %2528 : vector<8x128xf32>
    %cst_822 = arith.constant 1.000000e+00 : f32
    %2530 = vector.broadcast %cst_822 : f32 to vector<8x128xf32>
    %2531 = arith.subf %2439, %2530 : vector<8x128xf32>
    %cst_823 = arith.constant 1.400000e+00 : f32
    %2532 = vector.broadcast %cst_823 : f32 to vector<8x128xf32>
    %2533 = arith.subf %2439, %2532 : vector<8x128xf32>
    %cst_824 = arith.constant 1.800000e+00 : f32
    %2534 = vector.broadcast %cst_824 : f32 to vector<8x128xf32>
    %2535 = arith.subf %2439, %2534 : vector<8x128xf32>
    %cst_825 = arith.constant 2.200000e+00 : f32
    %2536 = vector.broadcast %cst_825 : f32 to vector<8x128xf32>
    %2537 = arith.subf %2439, %2536 : vector<8x128xf32>
    %2538 = arith.mulf %2515, %2473 : vector<8x128xf32>
    %2539 = arith.mulf %2519, %2477 : vector<8x128xf32>
    %2540 = arith.subf %2538, %2539 : vector<8x128xf32>
    %cst_826 = arith.constant 2.500000e+00 : f32
    %2541 = vector.broadcast %cst_826 : f32 to vector<8x128xf32>
    %2542 = arith.mulf %2540, %2541 : vector<8x128xf32>
    %2543 = arith.mulf %2517, %2477 : vector<8x128xf32>
    %2544 = arith.mulf %2521, %2481 : vector<8x128xf32>
    %2545 = arith.subf %2543, %2544 : vector<8x128xf32>
    %cst_827 = arith.constant 2.500000e+00 : f32
    %2546 = vector.broadcast %cst_827 : f32 to vector<8x128xf32>
    %2547 = arith.mulf %2545, %2546 : vector<8x128xf32>
    %2548 = arith.mulf %2519, %2481 : vector<8x128xf32>
    %2549 = arith.mulf %2523, %2485 : vector<8x128xf32>
    %2550 = arith.subf %2548, %2549 : vector<8x128xf32>
    %cst_828 = arith.constant 2.500000e+00 : f32
    %2551 = vector.broadcast %cst_828 : f32 to vector<8x128xf32>
    %2552 = arith.mulf %2550, %2551 : vector<8x128xf32>
    %2553 = arith.mulf %2521, %2485 : vector<8x128xf32>
    %2554 = arith.mulf %2525, %2489 : vector<8x128xf32>
    %2555 = arith.subf %2553, %2554 : vector<8x128xf32>
    %cst_829 = arith.constant 2.500000e+00 : f32
    %2556 = vector.broadcast %cst_829 : f32 to vector<8x128xf32>
    %2557 = arith.mulf %2555, %2556 : vector<8x128xf32>
    %2558 = arith.mulf %2523, %2489 : vector<8x128xf32>
    %2559 = arith.mulf %2527, %2493 : vector<8x128xf32>
    %2560 = arith.subf %2558, %2559 : vector<8x128xf32>
    %cst_830 = arith.constant 2.500000e+00 : f32
    %2561 = vector.broadcast %cst_830 : f32 to vector<8x128xf32>
    %2562 = arith.mulf %2560, %2561 : vector<8x128xf32>
    %2563 = arith.mulf %2525, %2493 : vector<8x128xf32>
    %2564 = arith.mulf %2529, %2497 : vector<8x128xf32>
    %2565 = arith.subf %2563, %2564 : vector<8x128xf32>
    %cst_831 = arith.constant 2.500000e+00 : f32
    %2566 = vector.broadcast %cst_831 : f32 to vector<8x128xf32>
    %2567 = arith.mulf %2565, %2566 : vector<8x128xf32>
    %2568 = arith.mulf %2527, %2497 : vector<8x128xf32>
    %2569 = arith.mulf %2531, %2501 : vector<8x128xf32>
    %2570 = arith.subf %2568, %2569 : vector<8x128xf32>
    %cst_832 = arith.constant 2.500000e+00 : f32
    %2571 = vector.broadcast %cst_832 : f32 to vector<8x128xf32>
    %2572 = arith.mulf %2570, %2571 : vector<8x128xf32>
    %2573 = arith.mulf %2529, %2501 : vector<8x128xf32>
    %2574 = arith.mulf %2533, %2505 : vector<8x128xf32>
    %2575 = arith.subf %2573, %2574 : vector<8x128xf32>
    %cst_833 = arith.constant 2.500000e+00 : f32
    %2576 = vector.broadcast %cst_833 : f32 to vector<8x128xf32>
    %2577 = arith.mulf %2575, %2576 : vector<8x128xf32>
    %2578 = arith.mulf %2531, %2505 : vector<8x128xf32>
    %2579 = arith.mulf %2535, %2509 : vector<8x128xf32>
    %2580 = arith.subf %2578, %2579 : vector<8x128xf32>
    %cst_834 = arith.constant 2.500000e+00 : f32
    %2581 = vector.broadcast %cst_834 : f32 to vector<8x128xf32>
    %2582 = arith.mulf %2580, %2581 : vector<8x128xf32>
    %2583 = arith.mulf %2533, %2509 : vector<8x128xf32>
    %2584 = arith.mulf %2537, %2513 : vector<8x128xf32>
    %2585 = arith.subf %2583, %2584 : vector<8x128xf32>
    %cst_835 = arith.constant 2.500000e+00 : f32
    %2586 = vector.broadcast %cst_835 : f32 to vector<8x128xf32>
    %2587 = arith.mulf %2585, %2586 : vector<8x128xf32>
    %2588 = arith.mulf %2515, %2542 : vector<8x128xf32>
    %2589 = arith.mulf %2521, %2547 : vector<8x128xf32>
    %2590 = arith.subf %2588, %2589 : vector<8x128xf32>
    %cst_836 = arith.constant 1.250000e+00 : f32
    %2591 = vector.broadcast %cst_836 : f32 to vector<8x128xf32>
    %2592 = arith.mulf %2590, %2591 : vector<8x128xf32>
    %2593 = arith.mulf %2517, %2547 : vector<8x128xf32>
    %2594 = arith.mulf %2523, %2552 : vector<8x128xf32>
    %2595 = arith.subf %2593, %2594 : vector<8x128xf32>
    %cst_837 = arith.constant 1.250000e+00 : f32
    %2596 = vector.broadcast %cst_837 : f32 to vector<8x128xf32>
    %2597 = arith.mulf %2595, %2596 : vector<8x128xf32>
    %2598 = arith.mulf %2519, %2552 : vector<8x128xf32>
    %2599 = arith.mulf %2525, %2557 : vector<8x128xf32>
    %2600 = arith.subf %2598, %2599 : vector<8x128xf32>
    %cst_838 = arith.constant 1.250000e+00 : f32
    %2601 = vector.broadcast %cst_838 : f32 to vector<8x128xf32>
    %2602 = arith.mulf %2600, %2601 : vector<8x128xf32>
    %2603 = arith.mulf %2521, %2557 : vector<8x128xf32>
    %2604 = arith.mulf %2527, %2562 : vector<8x128xf32>
    %2605 = arith.subf %2603, %2604 : vector<8x128xf32>
    %cst_839 = arith.constant 1.250000e+00 : f32
    %2606 = vector.broadcast %cst_839 : f32 to vector<8x128xf32>
    %2607 = arith.mulf %2605, %2606 : vector<8x128xf32>
    %2608 = arith.mulf %2523, %2562 : vector<8x128xf32>
    %2609 = arith.mulf %2529, %2567 : vector<8x128xf32>
    %2610 = arith.subf %2608, %2609 : vector<8x128xf32>
    %cst_840 = arith.constant 1.250000e+00 : f32
    %2611 = vector.broadcast %cst_840 : f32 to vector<8x128xf32>
    %2612 = arith.mulf %2610, %2611 : vector<8x128xf32>
    %2613 = arith.mulf %2525, %2567 : vector<8x128xf32>
    %2614 = arith.mulf %2531, %2572 : vector<8x128xf32>
    %2615 = arith.subf %2613, %2614 : vector<8x128xf32>
    %cst_841 = arith.constant 1.250000e+00 : f32
    %2616 = vector.broadcast %cst_841 : f32 to vector<8x128xf32>
    %2617 = arith.mulf %2615, %2616 : vector<8x128xf32>
    %2618 = arith.mulf %2527, %2572 : vector<8x128xf32>
    %2619 = arith.mulf %2533, %2577 : vector<8x128xf32>
    %2620 = arith.subf %2618, %2619 : vector<8x128xf32>
    %cst_842 = arith.constant 1.250000e+00 : f32
    %2621 = vector.broadcast %cst_842 : f32 to vector<8x128xf32>
    %2622 = arith.mulf %2620, %2621 : vector<8x128xf32>
    %2623 = arith.mulf %2529, %2577 : vector<8x128xf32>
    %2624 = arith.mulf %2535, %2582 : vector<8x128xf32>
    %2625 = arith.subf %2623, %2624 : vector<8x128xf32>
    %cst_843 = arith.constant 1.250000e+00 : f32
    %2626 = vector.broadcast %cst_843 : f32 to vector<8x128xf32>
    %2627 = arith.mulf %2625, %2626 : vector<8x128xf32>
    %2628 = arith.mulf %2531, %2582 : vector<8x128xf32>
    %2629 = arith.mulf %2537, %2587 : vector<8x128xf32>
    %2630 = arith.subf %2628, %2629 : vector<8x128xf32>
    %cst_844 = arith.constant 1.250000e+00 : f32
    %2631 = vector.broadcast %cst_844 : f32 to vector<8x128xf32>
    %2632 = arith.mulf %2630, %2631 : vector<8x128xf32>
    %2633 = arith.mulf %2515, %2592 : vector<8x128xf32>
    %2634 = arith.mulf %2523, %2597 : vector<8x128xf32>
    %2635 = arith.subf %2633, %2634 : vector<8x128xf32>
    %cst_845 = arith.constant 0.833333313 : f32
    %2636 = vector.broadcast %cst_845 : f32 to vector<8x128xf32>
    %2637 = arith.mulf %2635, %2636 : vector<8x128xf32>
    %2638 = arith.mulf %2517, %2597 : vector<8x128xf32>
    %2639 = arith.mulf %2525, %2602 : vector<8x128xf32>
    %2640 = arith.subf %2638, %2639 : vector<8x128xf32>
    %cst_846 = arith.constant 0.833333313 : f32
    %2641 = vector.broadcast %cst_846 : f32 to vector<8x128xf32>
    %2642 = arith.mulf %2640, %2641 : vector<8x128xf32>
    %2643 = arith.mulf %2519, %2602 : vector<8x128xf32>
    %2644 = arith.mulf %2527, %2607 : vector<8x128xf32>
    %2645 = arith.subf %2643, %2644 : vector<8x128xf32>
    %cst_847 = arith.constant 0.833333313 : f32
    %2646 = vector.broadcast %cst_847 : f32 to vector<8x128xf32>
    %2647 = arith.mulf %2645, %2646 : vector<8x128xf32>
    %2648 = arith.mulf %2521, %2607 : vector<8x128xf32>
    %2649 = arith.mulf %2529, %2612 : vector<8x128xf32>
    %2650 = arith.subf %2648, %2649 : vector<8x128xf32>
    %cst_848 = arith.constant 0.833333313 : f32
    %2651 = vector.broadcast %cst_848 : f32 to vector<8x128xf32>
    %2652 = arith.mulf %2650, %2651 : vector<8x128xf32>
    %2653 = arith.mulf %2523, %2612 : vector<8x128xf32>
    %2654 = arith.mulf %2531, %2617 : vector<8x128xf32>
    %2655 = arith.subf %2653, %2654 : vector<8x128xf32>
    %cst_849 = arith.constant 0.833333313 : f32
    %2656 = vector.broadcast %cst_849 : f32 to vector<8x128xf32>
    %2657 = arith.mulf %2655, %2656 : vector<8x128xf32>
    %2658 = arith.mulf %2525, %2617 : vector<8x128xf32>
    %2659 = arith.mulf %2533, %2622 : vector<8x128xf32>
    %2660 = arith.subf %2658, %2659 : vector<8x128xf32>
    %cst_850 = arith.constant 0.833333313 : f32
    %2661 = vector.broadcast %cst_850 : f32 to vector<8x128xf32>
    %2662 = arith.mulf %2660, %2661 : vector<8x128xf32>
    %2663 = arith.mulf %2527, %2622 : vector<8x128xf32>
    %2664 = arith.mulf %2535, %2627 : vector<8x128xf32>
    %2665 = arith.subf %2663, %2664 : vector<8x128xf32>
    %cst_851 = arith.constant 0.833333313 : f32
    %2666 = vector.broadcast %cst_851 : f32 to vector<8x128xf32>
    %2667 = arith.mulf %2665, %2666 : vector<8x128xf32>
    %2668 = arith.mulf %2529, %2627 : vector<8x128xf32>
    %2669 = arith.mulf %2537, %2632 : vector<8x128xf32>
    %2670 = arith.subf %2668, %2669 : vector<8x128xf32>
    %cst_852 = arith.constant 0.833333313 : f32
    %2671 = vector.broadcast %cst_852 : f32 to vector<8x128xf32>
    %2672 = arith.mulf %2670, %2671 : vector<8x128xf32>
    %c24_853 = arith.constant 24 : index
    %c0_854 = arith.constant 0 : index
    %2673 = vector.load %arg7[%c24_853, %c0_854] : memref<288x128xf32, #tpu.memory_space<vmem>>, vector<8x128xf32>
    tpu.vector_store %arg7[%c24_853, %c0_854], %2445 {strides = array<i32>} : memref<288x128xf32, #tpu.memory_space<vmem>>, vector<8x128xf32>,
    %c56_855 = arith.constant 56 : index
    %c0_856 = arith.constant 0 : index
    %2674 = vector.load %arg7[%c56_855, %c0_856] : memref<288x128xf32, #tpu.memory_space<vmem>>, vector<8x128xf32>
    tpu.vector_store %arg7[%c56_855, %c0_856], %2637 {strides = array<i32>} : memref<288x128xf32, #tpu.memory_space<vmem>>, vector<8x128xf32>,
    %c88_857 = arith.constant 88 : index
    %c0_858 = arith.constant 0 : index
    %2675 = vector.load %arg7[%c88_857, %c0_858] : memref<288x128xf32, #tpu.memory_space<vmem>>, vector<8x128xf32>
    tpu.vector_store %arg7[%c88_857, %c0_858], %2642 {strides = array<i32>} : memref<288x128xf32, #tpu.memory_space<vmem>>, vector<8x128xf32>,
    %c120_859 = arith.constant 120 : index
    %c0_860 = arith.constant 0 : index
    %2676 = vector.load %arg7[%c120_859, %c0_860] : memref<288x128xf32, #tpu.memory_space<vmem>>, vector<8x128xf32>
    tpu.vector_store %arg7[%c120_859, %c0_860], %2647 {strides = array<i32>} : memref<288x128xf32, #tpu.memory_space<vmem>>, vector<8x128xf32>,
    %c152_861 = arith.constant 152 : index
    %c0_862 = arith.constant 0 : index
    %2677 = vector.load %arg7[%c152_861, %c0_862] : memref<288x128xf32, #tpu.memory_space<vmem>>, vector<8x128xf32>
    tpu.vector_store %arg7[%c152_861, %c0_862], %2652 {strides = array<i32>} : memref<288x128xf32, #tpu.memory_space<vmem>>, vector<8x128xf32>,
    %c184_863 = arith.constant 184 : index
    %c0_864 = arith.constant 0 : index
    %2678 = vector.load %arg7[%c184_863, %c0_864] : memref<288x128xf32, #tpu.memory_space<vmem>>, vector<8x128xf32>
    tpu.vector_store %arg7[%c184_863, %c0_864], %2657 {strides = array<i32>} : memref<288x128xf32, #tpu.memory_space<vmem>>, vector<8x128xf32>,
    %c216_865 = arith.constant 216 : index
    %c0_866 = arith.constant 0 : index
    %2679 = vector.load %arg7[%c216_865, %c0_866] : memref<288x128xf32, #tpu.memory_space<vmem>>, vector<8x128xf32>
    tpu.vector_store %arg7[%c216_865, %c0_866], %2662 {strides = array<i32>} : memref<288x128xf32, #tpu.memory_space<vmem>>, vector<8x128xf32>,
    %c248_867 = arith.constant 248 : index
    %c0_868 = arith.constant 0 : index
    %2680 = vector.load %arg7[%c248_867, %c0_868] : memref<288x128xf32, #tpu.memory_space<vmem>>, vector<8x128xf32>
    tpu.vector_store %arg7[%c248_867, %c0_868], %2667 {strides = array<i32>} : memref<288x128xf32, #tpu.memory_space<vmem>>, vector<8x128xf32>,
    %c280_869 = arith.constant 280 : index
    %c0_870 = arith.constant 0 : index
    %2681 = vector.load %arg7[%c280_869, %c0_870] : memref<288x128xf32, #tpu.memory_space<vmem>>, vector<8x128xf32>
    tpu.vector_store %arg7[%c280_869, %c0_870], %2672 {strides = array<i32>} : memref<288x128xf32, #tpu.memory_space<vmem>>, vector<8x128xf32>,
    %c0_871 = arith.constant 0 : index
    %c0_872 = arith.constant 0 : index
    %2682 = vector.load %arg5[%c0_871, %c0_872] : memref<8x288xf32, #tpu.memory_space<vmem>>, vector<8x288xf32>
    %c0_873 = arith.constant 0 : index
    %c0_874 = arith.constant 0 : index
    %2683 = vector.load %arg7[%c0_873, %c0_874] : memref<288x128xf32, #tpu.memory_space<vmem>>, vector<288x128xf32>
    %cst_875 = arith.constant dense<0.000000e+00> : vector<8x128xf32>
    %2684 = tpu.matmul %2682, %2683, %cst_875 {dimension_numbers = #tpu.dot_dimension_numbers<[1], [0], [0], [1], [0, 0, 1, 1], [], []>} : vector<8x288xf32>, vector<288x128xf32>, vector<8x128xf32> -> vector<8x128xf32>
    %c0_876 = arith.constant 0 : index
    %c0_877 = arith.constant 0 : index
    %2685 = vector.load %arg6[%c0_876, %c0_877] : memref<8x128xf32, #tpu.memory_space<vmem>>, vector<8x128xf32>
    tpu.vector_store %arg6[%c0_876, %c0_877], %2684 {strides = array<i32>} : memref<8x128xf32, #tpu.memory_space<vmem>>, vector<8x128xf32>,
    return
  }
  func.func @transform_0(%arg0: i32) -> (i32, i32) {
    %c0_i32 = arith.constant 0 : i32
    %c0_i32_0 = arith.constant 0 : i32
    return %c0_i32, %arg0 : i32, i32
  }
  func.func @transform_1(%arg0: i32) -> (i32, i32) {
    %c0_i32 = arith.constant 0 : i32
    %c0_i32_0 = arith.constant 0 : i32
    %c0_i32_1 = arith.constant 0 : i32
    return %c0_i32, %c0_i32_0 : i32, i32
  }
  func.func @transform_2(%arg0: i32) -> (i32, i32) {
    %c0_i32 = arith.constant 0 : i32
    %c0_i32_0 = arith.constant 0 : i32
    %c0_i32_1 = arith.constant 0 : i32
    return %c0_i32, %c0_i32_0 : i32, i32
  }
  func.func @transform_3(%arg0: i32) -> (i32, i32) {
    %c0_i32 = arith.constant 0 : i32
    %c0_i32_0 = arith.constant 0 : i32
    %c0_i32_1 = arith.constant 0 : i32
    return %c0_i32, %c0_i32_0 : i32, i32
  }
  func.func @transform_4(%arg0: i32) -> (i32, i32) {
    %c0_i32 = arith.constant 0 : i32
    %c0_i32_0 = arith.constant 0 : i32
    %c0_i32_1 = arith.constant 0 : i32
    return %c0_i32, %c0_i32_0 : i32, i32
  }
  func.func @transform_5(%arg0: i32) -> (i32, i32) {
    %c0_i32 = arith.constant 0 : i32
    %c0_i32_0 = arith.constant 0 : i32
    return %c0_i32, %arg0 : i32, i32
  }
}

</mosaic_0001>

<llo_original>
// kernel: _kan_actor_critic_forward.1
$region0: #{_kan_actor_critic_forward.1}
  #allocation0 [shape = 'u32[]', space=smem, size = 0x4, offset = 0x4, fixed_abs, tag = 'smem constant byte address 0x4 - core index']
  #allocation1 [shape = 'u32[144,128]{1,0:T(1,128)}', space=vmem, size = 0x12000, scoped, tag = 'internal scratch']
  #allocation2 [shape = 'f32[288,128]{1,0:T(8,128)}', space=vmem, size = 0x24000, scoped, tag = 'scratch operand']
  %s0 = inlined_call_operand.vmem [shape: f32[8,128], index: 0, kind: input, shape index: {}]
  %s1 = inlined_call_operand.vmem [shape: f32[16,72], index: 1, kind: input, shape index: {}]
  %s2 = inlined_call_operand.hbm [shape: f32[32,144], index: 2, kind: input, shape index: {}]
  %s3 = inlined_call_operand.hbm [shape: f32[32,288], index: 3, kind: input, shape index: {}]
  %s4 = inlined_call_operand.hbm [shape: f32[8,288], index: 4, kind: input, shape index: {}]
  %s5 = inlined_call_operand.hbm [shape: f32[8,128], index: 5, kind: output, shape index: {}]
  %s6 = sld [smem:[#allocation0]]
  $region42: #{_kan_actor_critic_forward.1} parent=0
    _
  %s8 = ssub.s32 1, %s6
  %s9 = scalar_select 0, %s8, %s6
  $region1: #{_kan_actor_critic_forward.1} parent=0
    #allocation3 [shape = 'u8[32768]{0}', space=vmem, size = 0x8000, scoped, tag = 'input window, operand 2, single buffered']
    #allocation4 [shape = 's32[1]{0}', space=sflag, size = 0x4, scoped, tag = 'scoped memory for _kan_actor_critic_forward.1']
    #allocation5 [shape = 's32[1]{0}', space=sflag, size = 0x4, scoped, tag = 'scoped memory for _kan_actor_critic_forward.1']
    #allocation6 [shape = 'u8[49152]{0}', space=vmem, size = 0xc000, scoped, tag = 'input window, operand 3, single buffered']
    #allocation7 [shape = 's32[1]{0}', space=sflag, size = 0x4, scoped, tag = 'scoped memory for _kan_actor_critic_forward.1']
    #allocation8 [shape = 'u8[12288]{0}', space=vmem, size = 0x3000, scoped, tag = 'input window, operand 4, single buffered']
    #allocation9 [shape = 'u8[4096]{0}', space=vmem, size = 0x1000, scoped, tag = 'output window, operand 0, single buffered']
    %10 = vsyncpa [#allocation4], 0
    %11 = vsyncpa [#allocation7], 0
    %12 = vsyncpa [#allocation5], 0
    // Predicated region
    $region2: #{_kan_actor_critic_forward.1} parent=1 // pred_check
      _
    $region3: #{_kan_actor_critic_forward.1} parent=1 // pred_check_branch
      %14 = sbr.rel (0) target = $region5
    $region4: #{_kan_actor_critic_forward.1} parent=1 // pred_region
      _
    $region5: #{_kan_actor_critic_forward.1} parent=1 // pred_fallthru
      _
    // Predicated region
    $region6: #{_kan_actor_critic_forward.1} parent=1 // pred_check
      _
    $region7: #{_kan_actor_critic_forward.1} parent=1 // pred_check_branch
      %16 = sbr.rel (0) target = $region9
    $region8: #{_kan_actor_critic_forward.1} parent=1 // pred_region
      _
    $region9: #{_kan_actor_critic_forward.1} parent=1 // pred_fallthru
      _
    // Predicated region
    $region10: #{_kan_actor_critic_forward.1} parent=1 // pred_check
      _
    $region11: #{_kan_actor_critic_forward.1} parent=1 // pred_check_branch
      %18 = sbr.rel (0) target = $region13
    $region12: #{_kan_actor_critic_forward.1} parent=1 // pred_region
      %s20 = ssub.s32 1024, 1024
      %21 = vsyncadd [#allocation4], %s20
      %s22 = sshll.u32 [#allocation3], 4
      %s23 = int_to_ptr.vmem [resolvable:$true] %s22
      %28 = dma.hbm_to_vmem [thread:$0]  %s2, 1024, %s23, [#allocation4], 256, 256, 16
    $region13: #{_kan_actor_critic_forward.1} parent=1 // pred_fallthru
      _
    // Predicated region
    $region14: #{_kan_actor_critic_forward.1} parent=1 // pred_check
      _
    $region15: #{_kan_actor_critic_forward.1} parent=1 // pred_check_branch
      %30 = sbr.rel (0) target = $region17
    $region16: #{_kan_actor_critic_forward.1} parent=1 // pred_region
      %s32 = ssub.s32 1536, 1536
      %33 = vsyncadd [#allocation7], %s32
      %s34 = sshll.u32 [#allocation6], 4
      %s35 = int_to_ptr.vmem [resolvable:$true] %s34
      %40 = dma.hbm_to_vmem [thread:$0]  %s3, 1536, %s35, [#allocation7], 384, 384, 24
    $region17: #{_kan_actor_critic_forward.1} parent=1 // pred_fallthru
      _
    // Predicated region
    $region18: #{_kan_actor_critic_forward.1} parent=1 // pred_check
      _
    $region19: #{_kan_actor_critic_forward.1} parent=1 // pred_check_branch
      %42 = sbr.rel (0) target = $region21
    $region20: #{_kan_actor_critic_forward.1} parent=1 // pred_region
      %s44 = ssub.s32 384, 384
      %45 = vsyncadd [#allocation7], %s44
      %s47 = sshll.u32 [#allocation8], 4
      %s48 = int_to_ptr.vmem [resolvable:$true] %s47
      %50 = dma.hbm_to_vmem [thread:$0]  %s4, 384, %s48, [#allocation7]
    $region21: #{_kan_actor_critic_forward.1} parent=1 // pred_fallthru
      _
    // Predicated region
    $region22: #{_kan_actor_critic_forward.1} parent=1 // pred_check
      _
    $region23: #{_kan_actor_critic_forward.1} parent=1 // pred_check_branch
      %52 = sbr.rel (0) target = $region25
    $region24: #{_kan_actor_critic_forward.1} parent=1 // pred_region
      %53 = dma.done [#allocation4], 1024
    $region25: #{_kan_actor_critic_forward.1} parent=1 // pred_fallthru
      _
    // Predicated region
    $region26: #{_kan_actor_critic_forward.1} parent=1 // pred_check
      _
    $region27: #{_kan_actor_critic_forward.1} parent=1 // pred_check_branch
      %55 = sbr.rel (0) target = $region29
    $region28: #{_kan_actor_critic_forward.1} parent=1 // pred_region
      %56 = dma.done [#allocation7], 1536
    $region29: #{_kan_actor_critic_forward.1} parent=1 // pred_fallthru
      _
    // Predicated region
    $region30: #{_kan_actor_critic_forward.1} parent=1 // pred_check
      _
    $region31: #{_kan_actor_critic_forward.1} parent=1 // pred_check_branch
      %58 = sbr.rel (0) target = $region33
    $region32: #{_kan_actor_critic_forward.1} parent=1 // pred_region
      %59 = dma.done [#allocation7], 384
    $region33: #{_kan_actor_critic_forward.1} parent=1 // pred_fallthru
      _
    %v60 = vld [vmem:[%s0] sm:$0xff]
    %v61 = vxor.u32 %v60, 2147483648
    %v62 = vmul.f32 %v61, 1.442695
    %v63 = vpow.pop %v62
    %v64 = vadd.f32 %v63, 1.0
    %v65 = vrcp.pop %v64
    %v66 = vmul.f32 1.0, %v65
    %v67 = vmul.f32 %v60, %v66
    %vm68 = vcmp.ge.f32.partialorder %v60, -2.2
    %vm69 = vcmp.ge.f32.partialorder %v60, -1.8
    %vm70 = vcmp.ge.f32.partialorder %v60, -1.4
    %vm71 = vcmp.ge.f32.partialorder %v60, -1.0
    %vm72 = vcmp.ge.f32.partialorder %v60, -0.6
    %vm73 = vcmp.ge.f32.partialorder %v60, -0.2
    %vm74 = vcmp.ge.f32.partialorder %v60, 0.2
    %vm75 = vcmp.ge.f32.partialorder %v60, 0.6
    %vm76 = vcmp.ge.f32.partialorder %v60, 1.0
    %vm77 = vcmp.ge.f32.partialorder %v60, 1.4
    %vm78 = vcmp.ge.f32.partialorder %v60, 1.8
    %vm79 = vcmp.ge.f32.partialorder %v60, 2.2
    %vm80 = vmxor %vm69, 1
    %vm81 = vmand %vm68, %vm80
    %v82 = vsel %vm81, 1, 0
    %v83 = vcvt.s32.f32 %v82
    %vm84 = vmxor %vm70, 1
    %vm85 = vmand %vm69, %vm84
    %v86 = vsel %vm85, 1, 0
    %v87 = vcvt.s32.f32 %v86
    %vm88 = vmxor %vm71, 1
    %vm89 = vmand %vm70, %vm88
    %v90 = vsel %vm89, 1, 0
    %v91 = vcvt.s32.f32 %v90
    %vm92 = vmxor %vm72, 1
    %vm93 = vmand %vm71, %vm92
    %v94 = vsel %vm93, 1, 0
    %v95 = vcvt.s32.f32 %v94
    %vm96 = vmxor %vm73, 1
    %vm97 = vmand %vm72, %vm96
    %v98 = vsel %vm97, 1, 0
    %v99 = vcvt.s32.f32 %v98
    %vm100 = vmxor %vm74, 1
    %vm101 = vmand %vm73, %vm100
    %v102 = vsel %vm101, 1, 0
    %v103 = vcvt.s32.f32 %v102
    %vm104 = vmxor %vm75, 1
    %vm105 = vmand %vm74, %vm104
    %v106 = vsel %vm105, 1, 0
    %v107 = vcvt.s32.f32 %v106
    %vm108 = vmxor %vm76, 1
    %vm109 = vmand %vm75, %vm108
    %v110 = vsel %vm109, 1, 0
    %v111 = vcvt.s32.f32 %v110
    %vm112 = vmxor %vm77, 1
    %vm113 = vmand %vm76, %vm112
    %v114 = vsel %vm113, 1, 0
    %v115 = vcvt.s32.f32 %v114
    %vm116 = vmxor %vm78, 1
    %vm117 = vmand %vm77, %vm116
    %v118 = vsel %vm117, 1, 0
    %v119 = vcvt.s32.f32 %v118
    %vm120 = vmxor %vm79, 1
    %vm121 = vmand %vm78, %vm120
    %v122 = vsel %vm121, 1, 0
    %v123 = vcvt.s32.f32 %v122
    %v124 = vsub.f32 %v60, -2.2
    %v125 = vsub.f32 %v60, -1.8
    %v126 = vsub.f32 %v60, -1.4
    %v127 = vsub.f32 %v60, -1.0
    %v128 = vsub.f32 %v60, -0.6
    %v129 = vsub.f32 %v60, -0.2
    %v130 = vsub.f32 %v60, 0.2
    %v131 = vsub.f32 %v60, 0.6
    %v132 = vsub.f32 %v60, 1.0
    %v133 = vsub.f32 %v60, 1.4
    %v134 = vsub.f32 %v60, 1.8
    %v135 = vsub.f32 %v60, 2.2
    %v136 = vmul.f32 %v124, %v83
    %v137 = vmul.f32 %v126, %v87
    %v138 = vsub.f32 %v136, %v137
    %v139 = vmul.f32 %v138, 2.5
    %v140 = vmul.f32 %v125, %v87
    %v141 = vmul.f32 %v127, %v91
    %v142 = vsub.f32 %v140, %v141
    %v143 = vmul.f32 %v142, 2.5
    %v144 = vmul.f32 %v126, %v91
    %v145 = vmul.f32 %v128, %v95
    %v146 = vsub.f32 %v144, %v145
    %v147 = vmul.f32 %v146, 2.5
    %v148 = vmul.f32 %v127, %v95
    %v149 = vmul.f32 %v129, %v99
    %v150 = vsub.f32 %v148, %v149
    %v151 = vmul.f32 %v150, 2.5
    %v152 = vmul.f32 %v128, %v99
    %v153 = vmul.f32 %v130, %v103
    %v154 = vsub.f32 %v152, %v153
    %v155 = vmul.f32 %v154, 2.5
    %v156 = vmul.f32 %v129, %v103
    %v157 = vmul.f32 %v131, %v107
    %v158 = vsub.f32 %v156, %v157
    %v159 = vmul.f32 %v158, 2.5
    %v160 = vmul.f32 %v130, %v107
    %v161 = vmul.f32 %v132, %v111
    %v162 = vsub.f32 %v160, %v161
    %v163 = vmul.f32 %v162, 2.5
    %v164 = vmul.f32 %v131, %v111
    %v165 = vmul.f32 %v133, %v115
    %v166 = vsub.f32 %v164, %v165
    %v167 = vmul.f32 %v166, 2.5
    %v168 = vmul.f32 %v132, %v115
    %v169 = vmul.f32 %v134, %v119
    %v170 = vsub.f32 %v168, %v169
    %v171 = vmul.f32 %v170, 2.5
    %v172 = vmul.f32 %v133, %v119
    %v173 = vmul.f32 %v135, %v123
    %v174 = vsub.f32 %v172, %v173
    %v175 = vmul.f32 %v174, 2.5
    %v176 = vmul.f32 %v124, %v139
    %v177 = vmul.f32 %v127, %v143
    %v178 = vsub.f32 %v176, %v177
    %v179 = vmul.f32 %v178, 1.25
    %v180 = vmul.f32 %v125, %v143
    %v181 = vmul.f32 %v128, %v147
    %v182 = vsub.f32 %v180, %v181
    %v183 = vmul.f32 %v182, 1.25
    %v184 = vmul.f32 %v126, %v147
    %v185 = vmul.f32 %v129, %v151
    %v186 = vsub.f32 %v184, %v185
    %v187 = vmul.f32 %v186, 1.25
    %v188 = vmul.f32 %v127, %v151
    %v189 = vmul.f32 %v130, %v155
    %v190 = vsub.f32 %v188, %v189
    %v191 = vmul.f32 %v190, 1.25
    %v192 = vmul.f32 %v128, %v155
    %v193 = vmul.f32 %v131, %v159
    %v194 = vsub.f32 %v192, %v193
    %v195 = vmul.f32 %v194, 1.25
    %v196 = vmul.f32 %v129, %v159
    %v197 = vmul.f32 %v132, %v163
    %v198 = vsub.f32 %v196, %v197
    %v199 = vmul.f32 %v198, 1.25
    %v200 = vmul.f32 %v130, %v163
    %v201 = vmul.f32 %v133, %v167
    %v202 = vsub.f32 %v200, %v201
    %v203 = vmul.f32 %v202, 1.25
    %v204 = vmul.f32 %v131, %v167
    %v205 = vmul.f32 %v134, %v171
    %v206 = vsub.f32 %v204, %v205
    %v207 = vmul.f32 %v206, 1.25
    %v208 = vmul.f32 %v132, %v171
    %v209 = vmul.f32 %v135, %v175
    %v210 = vsub.f32 %v208, %v209
    %v211 = vmul.f32 %v210, 1.25
    %v212 = vmul.f32 %v124, %v179
    %v213 = vmul.f32 %v128, %v183
    %v214 = vsub.f32 %v212, %v213
    %v215 = vmul.f32 %v214, 0.8333333
    %v216 = vmul.f32 %v125, %v183
    %v217 = vmul.f32 %v129, %v187
    %v218 = vsub.f32 %v216, %v217
    %v219 = vmul.f32 %v218, 0.8333333
    %v220 = vmul.f32 %v126, %v187
    %v221 = vmul.f32 %v130, %v191
    %v222 = vsub.f32 %v220, %v221
    %v223 = vmul.f32 %v222, 0.8333333
    %v224 = vmul.f32 %v127, %v191
    %v225 = vmul.f32 %v131, %v195
    %v226 = vsub.f32 %v224, %v225
    %v227 = vmul.f32 %v226, 0.8333333
    %v228 = vmul.f32 %v128, %v195
    %v229 = vmul.f32 %v132, %v199
    %v230 = vsub.f32 %v228, %v229
    %v231 = vmul.f32 %v230, 0.8333333
    %v232 = vmul.f32 %v129, %v199
    %v233 = vmul.f32 %v133, %v203
    %v234 = vsub.f32 %v232, %v233
    %v235 = vmul.f32 %v234, 0.8333333
    %v236 = vmul.f32 %v130, %v203
    %v237 = vmul.f32 %v134, %v207
    %v238 = vsub.f32 %v236, %v237
    %v239 = vmul.f32 %v238, 0.8333333
    %v240 = vmul.f32 %v131, %v207
    %v241 = vmul.f32 %v135, %v211
    %v242 = vsub.f32 %v240, %v241
    %v243 = vmul.f32 %v242, 0.8333333
    %244 = vst [vmem:[#allocation2] sm:$0xff] %v67
    %245 = vst [vmem:[#allocation2 + $0x8] sm:$0xff] %v215
    %246 = vst [vmem:[#allocation2 + $0x10] sm:$0xff] %v219
    %247 = vst [vmem:[#allocation2 + $0x18] sm:$0xff] %v223
    %248 = vst [vmem:[#allocation2 + $0x20] sm:$0xff] %v227
    %249 = vst [vmem:[#allocation2 + $0x28] sm:$0xff] %v231
    %250 = vst [vmem:[#allocation2 + $0x30] sm:$0xff] %v235
    %251 = vst [vmem:[#allocation2 + $0x38] sm:$0xff] %v239
    %252 = vst [vmem:[#allocation2 + $0x40] sm:$0xff] %v243
    %v253 = vld [vmem:[%s1] sm:$0xff]
    %v254 = vld [vmem:[%s1 + $0x8] sm:$0xff]
    %v255 = vld [vmem:[#allocation2] sm:$0xff]
    %v256 = vld [vmem:[#allocation2 + $0x8] sm:$0xff]
    %v257 = vld [vmem:[#allocation2 + $0x10] sm:$0xff]
    %v258 = vld [vmem:[#allocation2 + $0x18] sm:$0xff]
    %v259 = vld [vmem:[#allocation2 + $0x20] sm:$0xff]
    %v260 = vld [vmem:[#allocation2 + $0x28] sm:$0xff]
    %v261 = vld [vmem:[#allocation2 + $0x30] sm:$0xff]
    %v262 = vld [vmem:[#allocation2 + $0x38] sm:$0xff]
    %v263 = vld [vmem:[#allocation2 + $0x40] sm:$0xff]
    %vm264 = vcmask 588800
    %v266 = vsel %vm264, %v253, 0
    %v269 = vsel %vm264, %v254, 0
    %271 = vmatprep.subr.mxu0 0.0
    %272 = vmatpush1.msra.mxu0 0.0
    %273 = vmatprep.subr.mxu0 0.0
    %274 = vmatpush1.msra.mxu0 0.0
    %275 = vmatprep.subr.mxu0 0.0
    %276 = vmatpush1.msra.mxu0 0.0
    %277 = vmatprep.subr.mxu0 0.0
    %278 = vmatpush1.msra.mxu0 0.0
    %279 = vmatprep.subr.mxu0 0.0
    %280 = vmatpush1.msra.mxu0 0.0
    %281 = vmatprep.subr.mxu0 0.0
    %282 = vmatpush1.msra.mxu0 0.0
    %283 = vmatprep.subr.mxu0 0.0
    %284 = vmatpush1.msra.mxu0 0.0
    %285 = vmatprep.subr.mxu0 0.0
    %286 = vmatpush1.msra.mxu0 %v263
    %287 = vmatprep.subr.mxu0 0.0
    %288 = vmatpush1.msra.mxu0 %v262
    %289 = vmatprep.subr.mxu0 0.0
    %290 = vmatpush1.msra.mxu0 %v261
    %291 = vmatprep.subr.mxu0 0.0
    %292 = vmatpush1.msra.mxu0 %v260
    %293 = vmatprep.subr.mxu0 0.0
    %294 = vmatpush1.msra.mxu0 %v259
    %295 = vmatprep.subr.mxu0 0.0
    %296 = vmatpush1.msra.mxu0 %v258
    %297 = vmatprep.subr.mxu0 0.0
    %298 = vmatpush1.msra.mxu0 %v257
    %299 = vmatprep.subr.mxu0 0.0
    %300 = vmatpush1.msra.mxu0 %v256
    %301 = vmatprep.subr.mxu0 0.0
    %302 = vmatpush1.msra.mxu0 %v255
    %303 = vmatprep.subr.mxu0 0.0
    %304 = vmatpush2.msra.mxu0 0.0
    %305 = vmatprep.subr.mxu0 0.0
    %306 = vmatpush2.msra.mxu0 0.0
    %307 = vmatprep.subr.mxu0 0.0
    %308 = vmatpush2.msra.mxu0 0.0
    %309 = vmatprep.subr.mxu0 0.0
    %310 = vmatpush2.msra.mxu0 0.0
    %311 = vmatprep.subr.mxu0 0.0
    %312 = vmatpush2.msra.mxu0 0.0
    %313 = vmatprep.subr.mxu0 0.0
    %314 = vmatpush2.msra.mxu0 0.0
    %315 = vmatprep.subr.mxu0 0.0
    %316 = vmatpush2.msra.mxu0 0.0
    %317 = vmatprep.subr.mxu0 0.0
    %318 = vmatpush2.msra.mxu0 0.0
    %319 = vmatprep.subr.mxu0 0.0
    %320 = vmatpush2.msra.mxu0 0.0
    %321 = vmatprep.subr.mxu0 0.0
    %322 = vmatpush2.msra.mxu0 0.0
    %323 = vmatprep.subr.mxu0 0.0
    %324 = vmatpush2.msra.mxu0 0.0
    %325 = vmatprep.subr.mxu0 0.0
    %326 = vmatpush2.msra.mxu0 0.0
    %327 = vmatprep.subr.mxu0 0.0
    %328 = vmatpush2.msra.mxu0 0.0
    %329 = vmatprep.subr.mxu0 0.0
    %330 = vmatpush2.msra.mxu0 0.0
    %331 = vmatprep.subr.mxu0 0.0
    %332 = vmatpush2.msra.mxu0 0.0
    %333 = vmatprep.subr.mxu0 0.0
    %334 = vmatpush2.msra.mxu0 0.0
    %335 = vmatprep.mubr.f32.mxu0 0.0
    %336 = vmatmul.mubr.f32.gmra.mxu0 %v266
    %v337 = vpop.f32.mrf.mxu0
    %v338 = vadd.f32 0.0, %v337
    %v339 = vpop.f32.mrf.mxu0
    %340 = vmatprep.mubr.f32.mxu0 0.0
    %341 = vmatmul.mubr.f32.gmra.mxu0 %v269
    %v342 = vpop.f32.mrf.mxu0
    %v343 = vadd.f32 0.0, %v342
    %v344 = vpop.f32.mrf.mxu0
    %345 = vdwg.mxu0
    %v346 = vxor.u32 %v338, 2147483648
    %v347 = vmul.f32 %v346, 1.442695
    %v348 = vpow.pop %v347
    %v349 = vadd.f32 %v348, 1.0
    %v350 = vrcp.pop %v349
    %v351 = vmul.f32 1.0, %v350
    %v352 = vmul.f32 %v338, %v351
    %vm353 = vcmp.ge.f32.partialorder %v338, -2.2
    %vm354 = vcmp.ge.f32.partialorder %v338, -1.8
    %vm355 = vcmp.ge.f32.partialorder %v338, -1.4
    %vm356 = vcmp.ge.f32.partialorder %v338, -1.0
    %vm357 = vcmp.ge.f32.partialorder %v338, -0.6
    %vm358 = vcmp.ge.f32.partialorder %v338, -0.2
    %vm359 = vcmp.ge.f32.partialorder %v338, 0.2
    %vm360 = vcmp.ge.f32.partialorder %v338, 0.6
    %vm361 = vcmp.ge.f32.partialorder %v338, 1.0
    %vm362 = vcmp.ge.f32.partialorder %v338, 1.4
    %vm363 = vcmp.ge.f32.partialorder %v338, 1.8
    %vm364 = vcmp.ge.f32.partialorder %v338, 2.2
    %vm365 = vmxor %vm354, 1
    %vm366 = vmand %vm353, %vm365
    %v367 = vsel %vm366, 1, 0
    %v368 = vcvt.s32.f32 %v367
    %vm369 = vmxor %vm355, 1
    %vm370 = vmand %vm354, %vm369
    %v371 = vsel %vm370, 1, 0
    %v372 = vcvt.s32.f32 %v371
    %vm373 = vmxor %vm356, 1
    %vm374 = vmand %vm355, %vm373
    %v375 = vsel %vm374, 1, 0
    %v376 = vcvt.s32.f32 %v375
    %vm377 = vmxor %vm357, 1
    %vm378 = vmand %vm356, %vm377
    %v379 = vsel %vm378, 1, 0
    %v380 = vcvt.s32.f32 %v379
    %vm381 = vmxor %vm358, 1
    %vm382 = vmand %vm357, %vm381
    %v383 = vsel %vm382, 1, 0
    %v384 = vcvt.s32.f32 %v383
    %vm385 = vmxor %vm359, 1
    %vm386 = vmand %vm358, %vm385
    %v387 = vsel %vm386, 1, 0
    %v388 = vcvt.s32.f32 %v387
    %vm389 = vmxor %vm360, 1
    %vm390 = vmand %vm359, %vm389
    %v391 = vsel %vm390, 1, 0
    %v392 = vcvt.s32.f32 %v391
    %vm393 = vmxor %vm361, 1
    %vm394 = vmand %vm360, %vm393
    %v395 = vsel %vm394, 1, 0
    %v396 = vcvt.s32.f32 %v395
    %vm397 = vmxor %vm362, 1
    %vm398 = vmand %vm361, %vm397
    %v399 = vsel %vm398, 1, 0
    %v400 = vcvt.s32.f32 %v399
    %vm401 = vmxor %vm363, 1
    %vm402 = vmand %vm362, %vm401
    %v403 = vsel %vm402, 1, 0
    %v404 = vcvt.s32.f32 %v403
    %vm405 = vmxor %vm364, 1
    %vm406 = vmand %vm363, %vm405
    %v407 = vsel %vm406, 1, 0
    %v408 = vcvt.s32.f32 %v407
    %v409 = vsub.f32 %v338, -2.2
    %v410 = vsub.f32 %v338, -1.8
    %v411 = vsub.f32 %v338, -1.4
    %v412 = vsub.f32 %v338, -1.0
    %v413 = vsub.f32 %v338, -0.6
    %v414 = vsub.f32 %v338, -0.2
    %v415 = vsub.f32 %v338, 0.2
    %v416 = vsub.f32 %v338, 0.6
    %v417 = vsub.f32 %v338, 1.0
    %v418 = vsub.f32 %v338, 1.4
    %v419 = vsub.f32 %v338, 1.8
    %v420 = vsub.f32 %v338, 2.2
    %v421 = vmul.f32 %v409, %v368
    %v422 = vmul.f32 %v411, %v372
    %v423 = vsub.f32 %v421, %v422
    %v424 = vmul.f32 %v423, 2.5
    %v425 = vmul.f32 %v410, %v372
    %v426 = vmul.f32 %v412, %v376
    %v427 = vsub.f32 %v425, %v426
    %v428 = vmul.f32 %v427, 2.5
    %v429 = vmul.f32 %v411, %v376
    %v430 = vmul.f32 %v413, %v380
    %v431 = vsub.f32 %v429, %v430
    %v432 = vmul.f32 %v431, 2.5
    %v433 = vmul.f32 %v412, %v380
    %v434 = vmul.f32 %v414, %v384
    %v435 = vsub.f32 %v433, %v434
    %v436 = vmul.f32 %v435, 2.5
    %v437 = vmul.f32 %v413, %v384
    %v438 = vmul.f32 %v415, %v388
    %v439 = vsub.f32 %v437, %v438
    %v440 = vmul.f32 %v439, 2.5
    %v441 = vmul.f32 %v414, %v388
    %v442 = vmul.f32 %v416, %v392
    %v443 = vsub.f32 %v441, %v442
    %v444 = vmul.f32 %v443, 2.5
    %v445 = vmul.f32 %v415, %v392
    %v446 = vmul.f32 %v417, %v396
    %v447 = vsub.f32 %v445, %v446
    %v448 = vmul.f32 %v447, 2.5
    %v449 = vmul.f32 %v416, %v396
    %v450 = vmul.f32 %v418, %v400
    %v451 = vsub.f32 %v449, %v450
    %v452 = vmul.f32 %v451, 2.5
    %v453 = vmul.f32 %v417, %v400
    %v454 = vmul.f32 %v419, %v404
    %v455 = vsub.f32 %v453, %v454
    %v456 = vmul.f32 %v455, 2.5
    %v457 = vmul.f32 %v418, %v404
    %v458 = vmul.f32 %v420, %v408
    %v459 = vsub.f32 %v457, %v458
    %v460 = vmul.f32 %v459, 2.5
    %v461 = vmul.f32 %v409, %v424
    %v462 = vmul.f32 %v412, %v428
    %v463 = vsub.f32 %v461, %v462
    %v464 = vmul.f32 %v463, 1.25
    %v465 = vmul.f32 %v410, %v428
    %v466 = vmul.f32 %v413, %v432
    %v467 = vsub.f32 %v465, %v466
    %v468 = vmul.f32 %v467, 1.25
    %v469 = vmul.f32 %v411, %v432
    %v470 = vmul.f32 %v414, %v436
    %v471 = vsub.f32 %v469, %v470
    %v472 = vmul.f32 %v471, 1.25
    %v473 = vmul.f32 %v412, %v436
    %v474 = vmul.f32 %v415, %v440
    %v475 = vsub.f32 %v473, %v474
    %v476 = vmul.f32 %v475, 1.25
    %v477 = vmul.f32 %v413, %v440
    %v478 = vmul.f32 %v416, %v444
    %v479 = vsub.f32 %v477, %v478
    %v480 = vmul.f32 %v479, 1.25
    %v481 = vmul.f32 %v414, %v444
    %v482 = vmul.f32 %v417, %v448
    %v483 = vsub.f32 %v481, %v482
    %v484 = vmul.f32 %v483, 1.25
    %v485 = vmul.f32 %v415, %v448
    %v486 = vmul.f32 %v418, %v452
    %v487 = vsub.f32 %v485, %v486
    %v488 = vmul.f32 %v487, 1.25
    %v489 = vmul.f32 %v416, %v452
    %v490 = vmul.f32 %v419, %v456
    %v491 = vsub.f32 %v489, %v490
    %v492 = vmul.f32 %v491, 1.25
    %v493 = vmul.f32 %v417, %v456
    %v494 = vmul.f32 %v420, %v460
    %v495 = vsub.f32 %v493, %v494
    %v496 = vmul.f32 %v495, 1.25
    %v497 = vmul.f32 %v409, %v464
    %v498 = vmul.f32 %v413, %v468
    %v499 = vsub.f32 %v497, %v498
    %v500 = vmul.f32 %v499, 0.8333333
    %v501 = vmul.f32 %v410, %v468
    %v502 = vmul.f32 %v414, %v472
    %v503 = vsub.f32 %v501, %v502
    %v504 = vmul.f32 %v503, 0.8333333
    %v505 = vmul.f32 %v411, %v472
    %v506 = vmul.f32 %v415, %v476
    %v507 = vsub.f32 %v505, %v506
    %v508 = vmul.f32 %v507, 0.8333333
    %v509 = vmul.f32 %v412, %v476
    %v510 = vmul.f32 %v416, %v480
    %v511 = vsub.f32 %v509, %v510
    %v512 = vmul.f32 %v511, 0.8333333
    %v513 = vmul.f32 %v413, %v480
    %v514 = vmul.f32 %v417, %v484
    %v515 = vsub.f32 %v513, %v514
    %v516 = vmul.f32 %v515, 0.8333333
    %v517 = vmul.f32 %v414, %v484
    %v518 = vmul.f32 %v418, %v488
    %v519 = vsub.f32 %v517, %v518
    %v520 = vmul.f32 %v519, 0.8333333
    %v521 = vmul.f32 %v415, %v488
    %v522 = vmul.f32 %v419, %v492
    %v523 = vsub.f32 %v521, %v522
    %v524 = vmul.f32 %v523, 0.8333333
    %v525 = vmul.f32 %v416, %v492
    %v526 = vmul.f32 %v420, %v496
    %v527 = vsub.f32 %v525, %v526
    %v528 = vmul.f32 %v527, 0.8333333
    %529 = vst [vmem:[#allocation2] sm:$0xff] %v352
    %530 = vst [vmem:[#allocation2 + $0x10] sm:$0xff] %v500
    %531 = vst [vmem:[#allocation2 + $0x20] sm:$0xff] %v504
    %532 = vst [vmem:[#allocation2 + $0x30] sm:$0xff] %v508
    %533 = vst [vmem:[#allocation2 + $0x40] sm:$0xff] %v512
    %534 = vst [vmem:[#allocation2 + $0x50] sm:$0xff] %v516
    %535 = vst [vmem:[#allocation2 + $0x60] sm:$0xff] %v520
    %536 = vst [vmem:[#allocation2 + $0x70] sm:$0xff] %v524
    %537 = vst [vmem:[#allocation2 + $0x80] sm:$0xff] %v528
    %v538 = vxor.u32 %v343, 2147483648
    %v539 = vmul.f32 %v538, 1.442695
    %v540 = vpow.pop %v539
    %v541 = vadd.f32 %v540, 1.0
    %v542 = vrcp.pop %v541
    %v543 = vmul.f32 1.0, %v542
    %v544 = vmul.f32 %v343, %v543
    %vm545 = vcmp.ge.f32.partialorder %v343, -2.2
    %vm546 = vcmp.ge.f32.partialorder %v343, -1.8
    %vm547 = vcmp.ge.f32.partialorder %v343, -1.4
    %vm548 = vcmp.ge.f32.partialorder %v343, -1.0
    %vm549 = vcmp.ge.f32.partialorder %v343, -0.6
    %vm550 = vcmp.ge.f32.partialorder %v343, -0.2
    %vm551 = vcmp.ge.f32.partialorder %v343, 0.2
    %vm552 = vcmp.ge.f32.partialorder %v343, 0.6
    %vm553 = vcmp.ge.f32.partialorder %v343, 1.0
    %vm554 = vcmp.ge.f32.partialorder %v343, 1.4
    %vm555 = vcmp.ge.f32.partialorder %v343, 1.8
    %vm556 = vcmp.ge.f32.partialorder %v343, 2.2
    %vm557 = vmxor %vm546, 1
    %vm558 = vmand %vm545, %vm557
    %v559 = vsel %vm558, 1, 0
    %v560 = vcvt.s32.f32 %v559
    %vm561 = vmxor %vm547, 1
    %vm562 = vmand %vm546, %vm561
    %v563 = vsel %vm562, 1, 0
    %v564 = vcvt.s32.f32 %v563
    %vm565 = vmxor %vm548, 1
    %vm566 = vmand %vm547, %vm565
    %v567 = vsel %vm566, 1, 0
    %v568 = vcvt.s32.f32 %v567
    %vm569 = vmxor %vm549, 1
    %vm570 = vmand %vm548, %vm569
    %v571 = vsel %vm570, 1, 0
    %v572 = vcvt.s32.f32 %v571
    %vm573 = vmxor %vm550, 1
    %vm574 = vmand %vm549, %vm573
    %v575 = vsel %vm574, 1, 0
    %v576 = vcvt.s32.f32 %v575
    %vm577 = vmxor %vm551, 1
    %vm578 = vmand %vm550, %vm577
    %v579 = vsel %vm578, 1, 0
    %v580 = vcvt.s32.f32 %v579
    %vm581 = vmxor %vm552, 1
    %vm582 = vmand %vm551, %vm581
    %v583 = vsel %vm582, 1, 0
    %v584 = vcvt.s32.f32 %v583
    %vm585 = vmxor %vm553, 1
    %vm586 = vmand %vm552, %vm585
    %v587 = vsel %vm586, 1, 0
    %v588 = vcvt.s32.f32 %v587
    %vm589 = vmxor %vm554, 1
    %vm590 = vmand %vm553, %vm589
    %v591 = vsel %vm590, 1, 0
    %v592 = vcvt.s32.f32 %v591
    %vm593 = vmxor %vm555, 1
    %vm594 = vmand %vm554, %vm593
    %v595 = vsel %vm594, 1, 0
    %v596 = vcvt.s32.f32 %v595
    %vm597 = vmxor %vm556, 1
    %vm598 = vmand %vm555, %vm597
    %v599 = vsel %vm598, 1, 0
    %v600 = vcvt.s32.f32 %v599
    %v601 = vsub.f32 %v343, -2.2
    %v602 = vsub.f32 %v343, -1.8
    %v603 = vsub.f32 %v343, -1.4
    %v604 = vsub.f32 %v343, -1.0
    %v605 = vsub.f32 %v343, -0.6
    %v606 = vsub.f32 %v343, -0.2
    %v607 = vsub.f32 %v343, 0.2
    %v608 = vsub.f32 %v343, 0.6
    %v609 = vsub.f32 %v343, 1.0
    %v610 = vsub.f32 %v343, 1.4
    %v611 = vsub.f32 %v343, 1.8
    %v612 = vsub.f32 %v343, 2.2
    %v613 = vmul.f32 %v601, %v560
    %v614 = vmul.f32 %v603, %v564
    %v615 = vsub.f32 %v613, %v614
    %v616 = vmul.f32 %v615, 2.5
    %v617 = vmul.f32 %v602, %v564
    %v618 = vmul.f32 %v604, %v568
    %v619 = vsub.f32 %v617, %v618
    %v620 = vmul.f32 %v619, 2.5
    %v621 = vmul.f32 %v603, %v568
    %v622 = vmul.f32 %v605, %v572
    %v623 = vsub.f32 %v621, %v622
    %v624 = vmul.f32 %v623, 2.5
    %v625 = vmul.f32 %v604, %v572
    %v626 = vmul.f32 %v606, %v576
    %v627 = vsub.f32 %v625, %v626
    %v628 = vmul.f32 %v627, 2.5
    %v629 = vmul.f32 %v605, %v576
    %v630 = vmul.f32 %v607, %v580
    %v631 = vsub.f32 %v629, %v630
    %v632 = vmul.f32 %v631, 2.5
    %v633 = vmul.f32 %v606, %v580
    %v634 = vmul.f32 %v608, %v584
    %v635 = vsub.f32 %v633, %v634
    %v636 = vmul.f32 %v635, 2.5
    %v637 = vmul.f32 %v607, %v584
    %v638 = vmul.f32 %v609, %v588
    %v639 = vsub.f32 %v637, %v638
    %v640 = vmul.f32 %v639, 2.5
    %v641 = vmul.f32 %v608, %v588
    %v642 = vmul.f32 %v610, %v592
    %v643 = vsub.f32 %v641, %v642
    %v644 = vmul.f32 %v643, 2.5
    %v645 = vmul.f32 %v609, %v592
    %v646 = vmul.f32 %v611, %v596
    %v647 = vsub.f32 %v645, %v646
    %v648 = vmul.f32 %v647, 2.5
    %v649 = vmul.f32 %v610, %v596
    %v650 = vmul.f32 %v612, %v600
    %v651 = vsub.f32 %v649, %v650
    %v652 = vmul.f32 %v651, 2.5
    %v653 = vmul.f32 %v601, %v616
    %v654 = vmul.f32 %v604, %v620
    %v655 = vsub.f32 %v653, %v654
    %v656 = vmul.f32 %v655, 1.25
    %v657 = vmul.f32 %v602, %v620
    %v658 = vmul.f32 %v605, %v624
    %v659 = vsub.f32 %v657, %v658
    %v660 = vmul.f32 %v659, 1.25
    %v661 = vmul.f32 %v603, %v624
    %v662 = vmul.f32 %v606, %v628
    %v663 = vsub.f32 %v661, %v662
    %v664 = vmul.f32 %v663, 1.25
    %v665 = vmul.f32 %v604, %v628
    %v666 = vmul.f32 %v607, %v632
    %v667 = vsub.f32 %v665, %v666
    %v668 = vmul.f32 %v667, 1.25
    %v669 = vmul.f32 %v605, %v632
    %v670 = vmul.f32 %v608, %v636
    %v671 = vsub.f32 %v669, %v670
    %v672 = vmul.f32 %v671, 1.25
    %v673 = vmul.f32 %v606, %v636
    %v674 = vmul.f32 %v609, %v640
    %v675 = vsub.f32 %v673, %v674
    %v676 = vmul.f32 %v675, 1.25
    %v677 = vmul.f32 %v607, %v640
    %v678 = vmul.f32 %v610, %v644
    %v679 = vsub.f32 %v677, %v678
    %v680 = vmul.f32 %v679, 1.25
    %v681 = vmul.f32 %v608, %v644
    %v682 = vmul.f32 %v611, %v648
    %v683 = vsub.f32 %v681, %v682
    %v684 = vmul.f32 %v683, 1.25
    %v685 = vmul.f32 %v609, %v648
    %v686 = vmul.f32 %v612, %v652
    %v687 = vsub.f32 %v685, %v686
    %v688 = vmul.f32 %v687, 1.25
    %v689 = vmul.f32 %v601, %v656
    %v690 = vmul.f32 %v605, %v660
    %v691 = vsub.f32 %v689, %v690
    %v692 = vmul.f32 %v691, 0.8333333
    %v693 = vmul.f32 %v602, %v660
    %v694 = vmul.f32 %v606, %v664
    %v695 = vsub.f32 %v693, %v694
    %v696 = vmul.f32 %v695, 0.8333333
    %v697 = vmul.f32 %v603, %v664
    %v698 = vmul.f32 %v607, %v668
    %v699 = vsub.f32 %v697, %v698
    %v700 = vmul.f32 %v699, 0.8333333
    %v701 = vmul.f32 %v604, %v668
    %v702 = vmul.f32 %v608, %v672
    %v703 = vsub.f32 %v701, %v702
    %v704 = vmul.f32 %v703, 0.8333333
    %v705 = vmul.f32 %v605, %v672
    %v706 = vmul.f32 %v609, %v676
    %v707 = vsub.f32 %v705, %v706
    %v708 = vmul.f32 %v707, 0.8333333
    %v709 = vmul.f32 %v606, %v676
    %v710 = vmul.f32 %v610, %v680
    %v711 = vsub.f32 %v709, %v710
    %v712 = vmul.f32 %v711, 0.8333333
    %v713 = vmul.f32 %v607, %v680
    %v714 = vmul.f32 %v611, %v684
    %v715 = vsub.f32 %v713, %v714
    %v716 = vmul.f32 %v715, 0.8333333
    %v717 = vmul.f32 %v608, %v684
    %v718 = vmul.f32 %v612, %v688
    %v719 = vsub.f32 %v717, %v718
    %v720 = vmul.f32 %v719, 0.8333333
    %721 = vst [vmem:[#allocation2 + $0x8] sm:$0xff] %v544
    %722 = vst [vmem:[#allocation2 + $0x18] sm:$0xff] %v692
    %723 = vst [vmem:[#allocation2 + $0x28] sm:$0xff] %v696
    %724 = vst [vmem:[#allocation2 + $0x38] sm:$0xff] %v700
    %725 = vst [vmem:[#allocation2 + $0x48] sm:$0xff] %v704
    %726 = vst [vmem:[#allocation2 + $0x58] sm:$0xff] %v708
    %727 = vst [vmem:[#allocation2 + $0x68] sm:$0xff] %v712
    %728 = vst [vmem:[#allocation2 + $0x78] sm:$0xff] %v716
    %729 = vst [vmem:[#allocation2 + $0x88] sm:$0xff] %v720
    %v730 = vld [vmem:[#allocation3] sm:$0xff]
    %v731 = vld [vmem:[#allocation3 + $0x8] sm:$0xff]
    %v732 = vld [vmem:[#allocation3 + $0x10] sm:$0xff]
    %v733 = vld [vmem:[#allocation3 + $0x18] sm:$0xff]
    %v734 = vld [vmem:[#allocation3 + $0x20] sm:$0xff]
    %v735 = vld [vmem:[#allocation3 + $0x28] sm:$0xff]
    %v736 = vld [vmem:[#allocation3 + $0x30] sm:$0xff]
    %v737 = vld [vmem:[#allocation3 + $0x38] sm:$0xff]
    %v738 = vld [vmem:[#allocation2] sm:$0xff]
    %v739 = vld [vmem:[#allocation2 + $0x8] sm:$0xff]
    %v740 = vld [vmem:[#allocation2 + $0x10] sm:$0xff]
    %v741 = vld [vmem:[#allocation2 + $0x18] sm:$0xff]
    %v742 = vld [vmem:[#allocation2 + $0x20] sm:$0xff]
    %v743 = vld [vmem:[#allocation2 + $0x28] sm:$0xff]
    %v744 = vld [vmem:[#allocation2 + $0x30] sm:$0xff]
    %v745 = vld [vmem:[#allocation2 + $0x38] sm:$0xff]
    %v746 = vld [vmem:[#allocation2 + $0x40] sm:$0xff]
    %v747 = vld [vmem:[#allocation2 + $0x48] sm:$0xff]
    %v748 = vld [vmem:[#allocation2 + $0x50] sm:$0xff]
    %v749 = vld [vmem:[#allocation2 + $0x58] sm:$0xff]
    %v750 = vld [vmem:[#allocation2 + $0x60] sm:$0xff]
    %v751 = vld [vmem:[#allocation2 + $0x68] sm:$0xff]
    %v752 = vld [vmem:[#allocation2 + $0x70] sm:$0xff]
    %v753 = vld [vmem:[#allocation2 + $0x78] sm:$0xff]
    %v754 = vld [vmem:[#allocation2 + $0x80] sm:$0xff]
    %v755 = vld [vmem:[#allocation2 + $0x88] sm:$0xff]
    %vm756 = vcmask 130048
    %v758 = vsel %vm756, %v731, 0
    %v761 = vsel %vm756, %v733, 0
    %v764 = vsel %vm756, %v735, 0
    %v767 = vsel %vm756, %v737, 0
    %769 = vmatprep.subr.mxu0 0.0
    %770 = vmatpush1.msra.mxu0 %v753
    %771 = vmatprep.subr.mxu0 0.0
    %772 = vmatpush1.msra.mxu0 %v752
    %773 = vmatprep.subr.mxu0 0.0
    %774 = vmatpush1.msra.mxu0 %v751
    %775 = vmatprep.subr.mxu0 0.0
    %776 = vmatpush1.msra.mxu0 %v750
    %777 = vmatprep.subr.mxu0 0.0
    %778 = vmatpush1.msra.mxu0 %v749
    %779 = vmatprep.subr.mxu0 0.0
    %780 = vmatpush1.msra.mxu0 %v748
    %781 = vmatprep.subr.mxu0 0.0
    %782 = vmatpush1.msra.mxu0 %v747
    %783 = vmatprep.subr.mxu0 0.0
    %784 = vmatpush1.msra.mxu0 %v746
    %785 = vmatprep.subr.mxu0 0.0
    %786 = vmatpush1.msra.mxu0 %v745
    %787 = vmatprep.subr.mxu0 0.0
    %788 = vmatpush1.msra.mxu0 %v744
    %789 = vmatprep.subr.mxu0 0.0
    %790 = vmatpush1.msra.mxu0 %v743
    %791 = vmatprep.subr.mxu0 0.0
    %792 = vmatpush1.msra.mxu0 %v742
    %793 = vmatprep.subr.mxu0 0.0
    %794 = vmatpush1.msra.mxu0 %v741
    %795 = vmatprep.subr.mxu0 0.0
    %796 = vmatpush1.msra.mxu0 %v740
    %797 = vmatprep.subr.mxu0 0.0
    %798 = vmatpush1.msra.mxu0 %v739
    %799 = vmatprep.subr.mxu0 0.0
    %800 = vmatpush1.msra.mxu0 %v738
    %801 = vmatprep.subr.mxu0 0.0
    %802 = vmatpush2.msra.mxu0 0.0
    %803 = vmatprep.subr.mxu0 0.0
    %804 = vmatpush2.msra.mxu0 0.0
    %805 = vmatprep.subr.mxu0 0.0
    %806 = vmatpush2.msra.mxu0 0.0
    %807 = vmatprep.subr.mxu0 0.0
    %808 = vmatpush2.msra.mxu0 0.0
    %809 = vmatprep.subr.mxu0 0.0
    %810 = vmatpush2.msra.mxu0 0.0
    %811 = vmatprep.subr.mxu0 0.0
    %812 = vmatpush2.msra.mxu0 0.0
    %813 = vmatprep.subr.mxu0 0.0
    %814 = vmatpush2.msra.mxu0 0.0
    %815 = vmatprep.subr.mxu0 0.0
    %816 = vmatpush2.msra.mxu0 0.0
    %817 = vmatprep.subr.mxu0 0.0
    %818 = vmatpush2.msra.mxu0 0.0
    %819 = vmatprep.subr.mxu0 0.0
    %820 = vmatpush2.msra.mxu0 0.0
    %821 = vmatprep.subr.mxu0 0.0
    %822 = vmatpush2.msra.mxu0 0.0
    %823 = vmatprep.subr.mxu0 0.0
    %824 = vmatpush2.msra.mxu0 0.0
    %825 = vmatprep.subr.mxu0 0.0
    %826 = vmatpush2.msra.mxu0 0.0
    %827 = vmatprep.subr.mxu0 0.0
    %828 = vmatpush2.msra.mxu0 0.0
    %829 = vmatprep.subr.mxu0 0.0
    %830 = vmatpush2.msra.mxu0 %v755
    %831 = vmatprep.subr.mxu0 0.0
    %832 = vmatpush2.msra.mxu0 %v754
    %833 = vmatprep.mubr.f32.mxu0 %v758
    %834 = vmatmul.mubr.f32.gmra.mxu0 %v730
    %v835 = vpop.f32.mrf.mxu0
    %v836 = vadd.f32 0.0, %v835
    %v837 = vpop.f32.mrf.mxu0
    %838 = vmatprep.mubr.f32.mxu0 %v761
    %839 = vmatmul.mubr.f32.gmra.mxu0 %v732
    %v840 = vpop.f32.mrf.mxu0
    %v841 = vadd.f32 0.0, %v840
    %v842 = vpop.f32.mrf.mxu0
    %843 = vmatprep.mubr.f32.mxu0 %v764
    %844 = vmatmul.mubr.f32.gmra.mxu0 %v734
    %v845 = vpop.f32.mrf.mxu0
    %v846 = vadd.f32 0.0, %v845
    %v847 = vpop.f32.mrf.mxu0
    %848 = vmatprep.mubr.f32.mxu0 %v767
    %849 = vmatmul.mubr.f32.gmra.mxu0 %v736
    %v850 = vpop.f32.mrf.mxu0
    %v851 = vadd.f32 0.0, %v850
    %v852 = vpop.f32.mrf.mxu0
    %853 = vdwg.mxu0
    %v854 = vxor.u32 %v836, 2147483648
    %v855 = vmul.f32 %v854, 1.442695
    %v856 = vpow.pop %v855
    %v857 = vadd.f32 %v856, 1.0
    %v858 = vrcp.pop %v857
    %v859 = vmul.f32 1.0, %v858
    %v860 = vmul.f32 %v836, %v859
    %vm861 = vcmp.ge.f32.partialorder %v836, -2.2
    %vm862 = vcmp.ge.f32.partialorder %v836, -1.8
    %vm863 = vcmp.ge.f32.partialorder %v836, -1.4
    %vm864 = vcmp.ge.f32.partialorder %v836, -1.0
    %vm865 = vcmp.ge.f32.partialorder %v836, -0.6
    %vm866 = vcmp.ge.f32.partialorder %v836, -0.2
    %vm867 = vcmp.ge.f32.partialorder %v836, 0.2
    %vm868 = vcmp.ge.f32.partialorder %v836, 0.6
    %vm869 = vcmp.ge.f32.partialorder %v836, 1.0
    %vm870 = vcmp.ge.f32.partialorder %v836, 1.4
    %vm871 = vcmp.ge.f32.partialorder %v836, 1.8
    %vm872 = vcmp.ge.f32.partialorder %v836, 2.2
    %vm873 = vmxor %vm862, 1
    %vm874 = vmand %vm861, %vm873
    %v875 = vsel %vm874, 1, 0
    %v876 = vcvt.s32.f32 %v875
    %vm877 = vmxor %vm863, 1
    %vm878 = vmand %vm862, %vm877
    %v879 = vsel %vm878, 1, 0
    %v880 = vcvt.s32.f32 %v879
    %vm881 = vmxor %vm864, 1
    %vm882 = vmand %vm863, %vm881
    %v883 = vsel %vm882, 1, 0
    %v884 = vcvt.s32.f32 %v883
    %vm885 = vmxor %vm865, 1
    %vm886 = vmand %vm864, %vm885
    %v887 = vsel %vm886, 1, 0
    %v888 = vcvt.s32.f32 %v887
    %vm889 = vmxor %vm866, 1
    %vm890 = vmand %vm865, %vm889
    %v891 = vsel %vm890, 1, 0
    %v892 = vcvt.s32.f32 %v891
    %vm893 = vmxor %vm867, 1
    %vm894 = vmand %vm866, %vm893
    %v895 = vsel %vm894, 1, 0
    %v896 = vcvt.s32.f32 %v895
    %vm897 = vmxor %vm868, 1
    %vm898 = vmand %vm867, %vm897
    %v899 = vsel %vm898, 1, 0
    %v900 = vcvt.s32.f32 %v899
    %vm901 = vmxor %vm869, 1
    %vm902 = vmand %vm868, %vm901
    %v903 = vsel %vm902, 1, 0
    %v904 = vcvt.s32.f32 %v903
    %vm905 = vmxor %vm870, 1
    %vm906 = vmand %vm869, %vm905
    %v907 = vsel %vm906, 1, 0
    %v908 = vcvt.s32.f32 %v907
    %vm909 = vmxor %vm871, 1
    %vm910 = vmand %vm870, %vm909
    %v911 = vsel %vm910, 1, 0
    %v912 = vcvt.s32.f32 %v911
    %vm913 = vmxor %vm872, 1
    %vm914 = vmand %vm871, %vm913
    %v915 = vsel %vm914, 1, 0
    %v916 = vcvt.s32.f32 %v915
    %v917 = vsub.f32 %v836, -2.2
    %v918 = vsub.f32 %v836, -1.8
    %v919 = vsub.f32 %v836, -1.4
    %v920 = vsub.f32 %v836, -1.0
    %v921 = vsub.f32 %v836, -0.6
    %v922 = vsub.f32 %v836, -0.2
    %v923 = vsub.f32 %v836, 0.2
    %v924 = vsub.f32 %v836, 0.6
    %v925 = vsub.f32 %v836, 1.0
    %v926 = vsub.f32 %v836, 1.4
    %v927 = vsub.f32 %v836, 1.8
    %v928 = vsub.f32 %v836, 2.2
    %v929 = vmul.f32 %v917, %v876
    %v930 = vmul.f32 %v919, %v880
    %v931 = vsub.f32 %v929, %v930
    %v932 = vmul.f32 %v931, 2.5
    %v933 = vmul.f32 %v918, %v880
    %v934 = vmul.f32 %v920, %v884
    %v935 = vsub.f32 %v933, %v934
    %v936 = vmul.f32 %v935, 2.5
    %v937 = vmul.f32 %v919, %v884
    %v938 = vmul.f32 %v921, %v888
    %v939 = vsub.f32 %v937, %v938
    %v940 = vmul.f32 %v939, 2.5
    %v941 = vmul.f32 %v920, %v888
    %v942 = vmul.f32 %v922, %v892
    %v943 = vsub.f32 %v941, %v942
    %v944 = vmul.f32 %v943, 2.5
    %v945 = vmul.f32 %v921, %v892
    %v946 = vmul.f32 %v923, %v896
    %v947 = vsub.f32 %v945, %v946
    %v948 = vmul.f32 %v947, 2.5
    %v949 = vmul.f32 %v922, %v896
    %v950 = vmul.f32 %v924, %v900
    %v951 = vsub.f32 %v949, %v950
    %v952 = vmul.f32 %v951, 2.5
    %v953 = vmul.f32 %v923, %v900
    %v954 = vmul.f32 %v925, %v904
    %v955 = vsub.f32 %v953, %v954
    %v956 = vmul.f32 %v955, 2.5
    %v957 = vmul.f32 %v924, %v904
    %v958 = vmul.f32 %v926, %v908
    %v959 = vsub.f32 %v957, %v958
    %v960 = vmul.f32 %v959, 2.5
    %v961 = vmul.f32 %v925, %v908
    %v962 = vmul.f32 %v927, %v912
    %v963 = vsub.f32 %v961, %v962
    %v964 = vmul.f32 %v963, 2.5
    %v965 = vmul.f32 %v926, %v912
    %v966 = vmul.f32 %v928, %v916
    %v967 = vsub.f32 %v965, %v966
    %v968 = vmul.f32 %v967, 2.5
    %v969 = vmul.f32 %v917, %v932
    %v970 = vmul.f32 %v920, %v936
    %v971 = vsub.f32 %v969, %v970
    %v972 = vmul.f32 %v971, 1.25
    %v973 = vmul.f32 %v918, %v936
    %v974 = vmul.f32 %v921, %v940
    %v975 = vsub.f32 %v973, %v974
    %v976 = vmul.f32 %v975, 1.25
    %v977 = vmul.f32 %v919, %v940
    %v978 = vmul.f32 %v922, %v944
    %v979 = vsub.f32 %v977, %v978
    %v980 = vmul.f32 %v979, 1.25
    %v981 = vmul.f32 %v920, %v944
    %v982 = vmul.f32 %v923, %v948
    %v983 = vsub.f32 %v981, %v982
    %v984 = vmul.f32 %v983, 1.25
    %v985 = vmul.f32 %v921, %v948
    %v986 = vmul.f32 %v924, %v952
    %v987 = vsub.f32 %v985, %v986
    %v988 = vmul.f32 %v987, 1.25
    %v989 = vmul.f32 %v922, %v952
    %v990 = vmul.f32 %v925, %v956
    %v991 = vsub.f32 %v989, %v990
    %v992 = vmul.f32 %v991, 1.25
    %v993 = vmul.f32 %v923, %v956
    %v994 = vmul.f32 %v926, %v960
    %v995 = vsub.f32 %v993, %v994
    %v996 = vmul.f32 %v995, 1.25
    %v997 = vmul.f32 %v924, %v960
    %v998 = vmul.f32 %v927, %v964
    %v999 = vsub.f32 %v997, %v998
    %v1000 = vmul.f32 %v999, 1.25
    %v1001 = vmul.f32 %v925, %v964
    %v1002 = vmul.f32 %v928, %v968
    %v1003 = vsub.f32 %v1001, %v1002
    %v1004 = vmul.f32 %v1003, 1.25
    %v1005 = vmul.f32 %v917, %v972
    %v1006 = vmul.f32 %v921, %v976
    %v1007 = vsub.f32 %v1005, %v1006
    %v1008 = vmul.f32 %v1007, 0.8333333
    %v1009 = vmul.f32 %v918, %v976
    %v1010 = vmul.f32 %v922, %v980
    %v1011 = vsub.f32 %v1009, %v1010
    %v1012 = vmul.f32 %v1011, 0.8333333
    %v1013 = vmul.f32 %v919, %v980
    %v1014 = vmul.f32 %v923, %v984
    %v1015 = vsub.f32 %v1013, %v1014
    %v1016 = vmul.f32 %v1015, 0.8333333
    %v1017 = vmul.f32 %v920, %v984
    %v1018 = vmul.f32 %v924, %v988
    %v1019 = vsub.f32 %v1017, %v1018
    %v1020 = vmul.f32 %v1019, 0.8333333
    %v1021 = vmul.f32 %v921, %v988
    %v1022 = vmul.f32 %v925, %v992
    %v1023 = vsub.f32 %v1021, %v1022
    %v1024 = vmul.f32 %v1023, 0.8333333
    %v1025 = vmul.f32 %v922, %v992
    %v1026 = vmul.f32 %v926, %v996
    %v1027 = vsub.f32 %v1025, %v1026
    %v1028 = vmul.f32 %v1027, 0.8333333
    %v1029 = vmul.f32 %v923, %v996
    %v1030 = vmul.f32 %v927, %v1000
    %v1031 = vsub.f32 %v1029, %v1030
    %v1032 = vmul.f32 %v1031, 0.8333333
    %v1033 = vmul.f32 %v924, %v1000
    %v1034 = vmul.f32 %v928, %v1004
    %v1035 = vsub.f32 %v1033, %v1034
    %v1036 = vmul.f32 %v1035, 0.8333333
    %1037 = vst [vmem:[#allocation2] sm:$0xff] %v860
    %1038 = vst [vmem:[#allocation2 + $0x20] sm:$0xff] %v1008
    %1039 = vst [vmem:[#allocation2 + $0x40] sm:$0xff] %v1012
    %1040 = vst [vmem:[#allocation2 + $0x60] sm:$0xff] %v1016
    %1041 = vst [vmem:[#allocation2 + $0x80] sm:$0xff] %v1020
    %1042 = vst [vmem:[#allocation2 + $0xa0] sm:$0xff] %v1024
    %1043 = vst [vmem:[#allocation2 + $0xc0] sm:$0xff] %v1028
    %1044 = vst [vmem:[#allocation2 + $0xe0] sm:$0xff] %v1032
    %1045 = vst [vmem:[#allocation2 + $0x100] sm:$0xff] %v1036
    %v1046 = vxor.u32 %v841, 2147483648
    %v1047 = vmul.f32 %v1046, 1.442695
    %v1048 = vpow.pop %v1047
    %v1049 = vadd.f32 %v1048, 1.0
    %v1050 = vrcp.pop %v1049
    %v1051 = vmul.f32 1.0, %v1050
    %v1052 = vmul.f32 %v841, %v1051
    %vm1053 = vcmp.ge.f32.partialorder %v841, -2.2
    %vm1054 = vcmp.ge.f32.partialorder %v841, -1.8
    %vm1055 = vcmp.ge.f32.partialorder %v841, -1.4
    %vm1056 = vcmp.ge.f32.partialorder %v841, -1.0
    %vm1057 = vcmp.ge.f32.partialorder %v841, -0.6
    %vm1058 = vcmp.ge.f32.partialorder %v841, -0.2
    %vm1059 = vcmp.ge.f32.partialorder %v841, 0.2
    %vm1060 = vcmp.ge.f32.partialorder %v841, 0.6
    %vm1061 = vcmp.ge.f32.partialorder %v841, 1.0
    %vm1062 = vcmp.ge.f32.partialorder %v841, 1.4
    %vm1063 = vcmp.ge.f32.partialorder %v841, 1.8
    %vm1064 = vcmp.ge.f32.partialorder %v841, 2.2
    %vm1065 = vmxor %vm1054, 1
    %vm1066 = vmand %vm1053, %vm1065
    %v1067 = vsel %vm1066, 1, 0
    %v1068 = vcvt.s32.f32 %v1067
    %vm1069 = vmxor %vm1055, 1
    %vm1070 = vmand %vm1054, %vm1069
    %v1071 = vsel %vm1070, 1, 0
    %v1072 = vcvt.s32.f32 %v1071
    %vm1073 = vmxor %vm1056, 1
    %vm1074 = vmand %vm1055, %vm1073
    %v1075 = vsel %vm1074, 1, 0
    %v1076 = vcvt.s32.f32 %v1075
    %vm1077 = vmxor %vm1057, 1
    %vm1078 = vmand %vm1056, %vm1077
    %v1079 = vsel %vm1078, 1, 0
    %v1080 = vcvt.s32.f32 %v1079
    %vm1081 = vmxor %vm1058, 1
    %vm1082 = vmand %vm1057, %vm1081
    %v1083 = vsel %vm1082, 1, 0
    %v1084 = vcvt.s32.f32 %v1083
    %vm1085 = vmxor %vm1059, 1
    %vm1086 = vmand %vm1058, %vm1085
    %v1087 = vsel %vm1086, 1, 0
    %v1088 = vcvt.s32.f32 %v1087
    %vm1089 = vmxor %vm1060, 1
    %vm1090 = vmand %vm1059, %vm1089
    %v1091 = vsel %vm1090, 1, 0
    %v1092 = vcvt.s32.f32 %v1091
    %vm1093 = vmxor %vm1061, 1
    %vm1094 = vmand %vm1060, %vm1093
    %v1095 = vsel %vm1094, 1, 0
    %v1096 = vcvt.s32.f32 %v1095
    %vm1097 = vmxor %vm1062, 1
    %vm1098 = vmand %vm1061, %vm1097
    %v1099 = vsel %vm1098, 1, 0
    %v1100 = vcvt.s32.f32 %v1099
    %vm1101 = vmxor %vm1063, 1
    %vm1102 = vmand %vm1062, %vm1101
    %v1103 = vsel %vm1102, 1, 0
    %v1104 = vcvt.s32.f32 %v1103
    %vm1105 = vmxor %vm1064, 1
    %vm1106 = vmand %vm1063, %vm1105
    %v1107 = vsel %vm1106, 1, 0
    %v1108 = vcvt.s32.f32 %v1107
    %v1109 = vsub.f32 %v841, -2.2
    %v1110 = vsub.f32 %v841, -1.8
    %v1111 = vsub.f32 %v841, -1.4
    %v1112 = vsub.f32 %v841, -1.0
    %v1113 = vsub.f32 %v841, -0.6
    %v1114 = vsub.f32 %v841, -0.2
    %v1115 = vsub.f32 %v841, 0.2
    %v1116 = vsub.f32 %v841, 0.6
    %v1117 = vsub.f32 %v841, 1.0
    %v1118 = vsub.f32 %v841, 1.4
    %v1119 = vsub.f32 %v841, 1.8
    %v1120 = vsub.f32 %v841, 2.2
    %v1121 = vmul.f32 %v1109, %v1068
    %v1122 = vmul.f32 %v1111, %v1072
    %v1123 = vsub.f32 %v1121, %v1122
    %v1124 = vmul.f32 %v1123, 2.5
    %v1125 = vmul.f32 %v1110, %v1072
    %v1126 = vmul.f32 %v1112, %v1076
    %v1127 = vsub.f32 %v1125, %v1126
    %v1128 = vmul.f32 %v1127, 2.5
    %v1129 = vmul.f32 %v1111, %v1076
    %v1130 = vmul.f32 %v1113, %v1080
    %v1131 = vsub.f32 %v1129, %v1130
    %v1132 = vmul.f32 %v1131, 2.5
    %v1133 = vmul.f32 %v1112, %v1080
    %v1134 = vmul.f32 %v1114, %v1084
    %v1135 = vsub.f32 %v1133, %v1134
    %v1136 = vmul.f32 %v1135, 2.5
    %v1137 = vmul.f32 %v1113, %v1084
    %v1138 = vmul.f32 %v1115, %v1088
    %v1139 = vsub.f32 %v1137, %v1138
    %v1140 = vmul.f32 %v1139, 2.5
    %v1141 = vmul.f32 %v1114, %v1088
    %v1142 = vmul.f32 %v1116, %v1092
    %v1143 = vsub.f32 %v1141, %v1142
    %v1144 = vmul.f32 %v1143, 2.5
    %v1145 = vmul.f32 %v1115, %v1092
    %v1146 = vmul.f32 %v1117, %v1096
    %v1147 = vsub.f32 %v1145, %v1146
    %v1148 = vmul.f32 %v1147, 2.5
    %v1149 = vmul.f32 %v1116, %v1096
    %v1150 = vmul.f32 %v1118, %v1100
    %v1151 = vsub.f32 %v1149, %v1150
    %v1152 = vmul.f32 %v1151, 2.5
    %v1153 = vmul.f32 %v1117, %v1100
    %v1154 = vmul.f32 %v1119, %v1104
    %v1155 = vsub.f32 %v1153, %v1154
    %v1156 = vmul.f32 %v1155, 2.5
    %v1157 = vmul.f32 %v1118, %v1104
    %v1158 = vmul.f32 %v1120, %v1108
    %v1159 = vsub.f32 %v1157, %v1158
    %v1160 = vmul.f32 %v1159, 2.5
    %v1161 = vmul.f32 %v1109, %v1124
    %v1162 = vmul.f32 %v1112, %v1128
    %v1163 = vsub.f32 %v1161, %v1162
    %v1164 = vmul.f32 %v1163, 1.25
    %v1165 = vmul.f32 %v1110, %v1128
    %v1166 = vmul.f32 %v1113, %v1132
    %v1167 = vsub.f32 %v1165, %v1166
    %v1168 = vmul.f32 %v1167, 1.25
    %v1169 = vmul.f32 %v1111, %v1132
    %v1170 = vmul.f32 %v1114, %v1136
    %v1171 = vsub.f32 %v1169, %v1170
    %v1172 = vmul.f32 %v1171, 1.25
    %v1173 = vmul.f32 %v1112, %v1136
    %v1174 = vmul.f32 %v1115, %v1140
    %v1175 = vsub.f32 %v1173, %v1174
    %v1176 = vmul.f32 %v1175, 1.25
    %v1177 = vmul.f32 %v1113, %v1140
    %v1178 = vmul.f32 %v1116, %v1144
    %v1179 = vsub.f32 %v1177, %v1178
    %v1180 = vmul.f32 %v1179, 1.25
    %v1181 = vmul.f32 %v1114, %v1144
    %v1182 = vmul.f32 %v1117, %v1148
    %v1183 = vsub.f32 %v1181, %v1182
    %v1184 = vmul.f32 %v1183, 1.25
    %v1185 = vmul.f32 %v1115, %v1148
    %v1186 = vmul.f32 %v1118, %v1152
    %v1187 = vsub.f32 %v1185, %v1186
    %v1188 = vmul.f32 %v1187, 1.25
    %v1189 = vmul.f32 %v1116, %v1152
    %v1190 = vmul.f32 %v1119, %v1156
    %v1191 = vsub.f32 %v1189, %v1190
    %v1192 = vmul.f32 %v1191, 1.25
    %v1193 = vmul.f32 %v1117, %v1156
    %v1194 = vmul.f32 %v1120, %v1160
    %v1195 = vsub.f32 %v1193, %v1194
    %v1196 = vmul.f32 %v1195, 1.25
    %v1197 = vmul.f32 %v1109, %v1164
    %v1198 = vmul.f32 %v1113, %v1168
    %v1199 = vsub.f32 %v1197, %v1198
    %v1200 = vmul.f32 %v1199, 0.8333333
    %v1201 = vmul.f32 %v1110, %v1168
    %v1202 = vmul.f32 %v1114, %v1172
    %v1203 = vsub.f32 %v1201, %v1202
    %v1204 = vmul.f32 %v1203, 0.8333333
    %v1205 = vmul.f32 %v1111, %v1172
    %v1206 = vmul.f32 %v1115, %v1176
    %v1207 = vsub.f32 %v1205, %v1206
    %v1208 = vmul.f32 %v1207, 0.8333333
    %v1209 = vmul.f32 %v1112, %v1176
    %v1210 = vmul.f32 %v1116, %v1180
    %v1211 = vsub.f32 %v1209, %v1210
    %v1212 = vmul.f32 %v1211, 0.8333333
    %v1213 = vmul.f32 %v1113, %v1180
    %v1214 = vmul.f32 %v1117, %v1184
    %v1215 = vsub.f32 %v1213, %v1214
    %v1216 = vmul.f32 %v1215, 0.8333333
    %v1217 = vmul.f32 %v1114, %v1184
    %v1218 = vmul.f32 %v1118, %v1188
    %v1219 = vsub.f32 %v1217, %v1218
    %v1220 = vmul.f32 %v1219, 0.8333333
    %v1221 = vmul.f32 %v1115, %v1188
    %v1222 = vmul.f32 %v1119, %v1192
    %v1223 = vsub.f32 %v1221, %v1222
    %v1224 = vmul.f32 %v1223, 0.8333333
    %v1225 = vmul.f32 %v1116, %v1192
    %v1226 = vmul.f32 %v1120, %v1196
    %v1227 = vsub.f32 %v1225, %v1226
    %v1228 = vmul.f32 %v1227, 0.8333333
    %1229 = vst [vmem:[#allocation2 + $0x8] sm:$0xff] %v1052
    %1230 = vst [vmem:[#allocation2 + $0x28] sm:$0xff] %v1200
    %1231 = vst [vmem:[#allocation2 + $0x48] sm:$0xff] %v1204
    %1232 = vst [vmem:[#allocation2 + $0x68] sm:$0xff] %v1208
    %1233 = vst [vmem:[#allocation2 + $0x88] sm:$0xff] %v1212
    %1234 = vst [vmem:[#allocation2 + $0xa8] sm:$0xff] %v1216
    %1235 = vst [vmem:[#allocation2 + $0xc8] sm:$0xff] %v1220
    %1236 = vst [vmem:[#allocation2 + $0xe8] sm:$0xff] %v1224
    %1237 = vst [vmem:[#allocation2 + $0x108] sm:$0xff] %v1228
    %v1238 = vxor.u32 %v846, 2147483648
    %v1239 = vmul.f32 %v1238, 1.442695
    %v1240 = vpow.pop %v1239
    %v1241 = vadd.f32 %v1240, 1.0
    %v1242 = vrcp.pop %v1241
    %v1243 = vmul.f32 1.0, %v1242
    %v1244 = vmul.f32 %v846, %v1243
    %vm1245 = vcmp.ge.f32.partialorder %v846, -2.2
    %vm1246 = vcmp.ge.f32.partialorder %v846, -1.8
    %vm1247 = vcmp.ge.f32.partialorder %v846, -1.4
    %vm1248 = vcmp.ge.f32.partialorder %v846, -1.0
    %vm1249 = vcmp.ge.f32.partialorder %v846, -0.6
    %vm1250 = vcmp.ge.f32.partialorder %v846, -0.2
    %vm1251 = vcmp.ge.f32.partialorder %v846, 0.2
    %vm1252 = vcmp.ge.f32.partialorder %v846, 0.6
    %vm1253 = vcmp.ge.f32.partialorder %v846, 1.0
    %vm1254 = vcmp.ge.f32.partialorder %v846, 1.4
    %vm1255 = vcmp.ge.f32.partialorder %v846, 1.8
    %vm1256 = vcmp.ge.f32.partialorder %v846, 2.2
    %vm1257 = vmxor %vm1246, 1
    %vm1258 = vmand %vm1245, %vm1257
    %v1259 = vsel %vm1258, 1, 0
    %v1260 = vcvt.s32.f32 %v1259
    %vm1261 = vmxor %vm1247, 1
    %vm1262 = vmand %vm1246, %vm1261
    %v1263 = vsel %vm1262, 1, 0
    %v1264 = vcvt.s32.f32 %v1263
    %vm1265 = vmxor %vm1248, 1
    %vm1266 = vmand %vm1247, %vm1265
    %v1267 = vsel %vm1266, 1, 0
    %v1268 = vcvt.s32.f32 %v1267
    %vm1269 = vmxor %vm1249, 1
    %vm1270 = vmand %vm1248, %vm1269
    %v1271 = vsel %vm1270, 1, 0
    %v1272 = vcvt.s32.f32 %v1271
    %vm1273 = vmxor %vm1250, 1
    %vm1274 = vmand %vm1249, %vm1273
    %v1275 = vsel %vm1274, 1, 0
    %v1276 = vcvt.s32.f32 %v1275
    %vm1277 = vmxor %vm1251, 1
    %vm1278 = vmand %vm1250, %vm1277
    %v1279 = vsel %vm1278, 1, 0
    %v1280 = vcvt.s32.f32 %v1279
    %vm1281 = vmxor %vm1252, 1
    %vm1282 = vmand %vm1251, %vm1281
    %v1283 = vsel %vm1282, 1, 0
    %v1284 = vcvt.s32.f32 %v1283
    %vm1285 = vmxor %vm1253, 1
    %vm1286 = vmand %vm1252, %vm1285
    %v1287 = vsel %vm1286, 1, 0
    %v1288 = vcvt.s32.f32 %v1287
    %vm1289 = vmxor %vm1254, 1
    %vm1290 = vmand %vm1253, %vm1289
    %v1291 = vsel %vm1290, 1, 0
    %v1292 = vcvt.s32.f32 %v1291
    %vm1293 = vmxor %vm1255, 1
    %vm1294 = vmand %vm1254, %vm1293
    %v1295 = vsel %vm1294, 1, 0
    %v1296 = vcvt.s32.f32 %v1295
    %vm1297 = vmxor %vm1256, 1
    %vm1298 = vmand %vm1255, %vm1297
    %v1299 = vsel %vm1298, 1, 0
    %v1300 = vcvt.s32.f32 %v1299
    %v1301 = vsub.f32 %v846, -2.2
    %v1302 = vsub.f32 %v846, -1.8
    %v1303 = vsub.f32 %v846, -1.4
    %v1304 = vsub.f32 %v846, -1.0
    %v1305 = vsub.f32 %v846, -0.6
    %v1306 = vsub.f32 %v846, -0.2
    %v1307 = vsub.f32 %v846, 0.2
    %v1308 = vsub.f32 %v846, 0.6
    %v1309 = vsub.f32 %v846, 1.0
    %v1310 = vsub.f32 %v846, 1.4
    %v1311 = vsub.f32 %v846, 1.8
    %v1312 = vsub.f32 %v846, 2.2
    %v1313 = vmul.f32 %v1301, %v1260
    %v1314 = vmul.f32 %v1303, %v1264
    %v1315 = vsub.f32 %v1313, %v1314
    %v1316 = vmul.f32 %v1315, 2.5
    %v1317 = vmul.f32 %v1302, %v1264
    %v1318 = vmul.f32 %v1304, %v1268
    %v1319 = vsub.f32 %v1317, %v1318
    %v1320 = vmul.f32 %v1319, 2.5
    %v1321 = vmul.f32 %v1303, %v1268
    %v1322 = vmul.f32 %v1305, %v1272
    %v1323 = vsub.f32 %v1321, %v1322
    %v1324 = vmul.f32 %v1323, 2.5
    %v1325 = vmul.f32 %v1304, %v1272
    %v1326 = vmul.f32 %v1306, %v1276
    %v1327 = vsub.f32 %v1325, %v1326
    %v1328 = vmul.f32 %v1327, 2.5
    %v1329 = vmul.f32 %v1305, %v1276
    %v1330 = vmul.f32 %v1307, %v1280
    %v1331 = vsub.f32 %v1329, %v1330
    %v1332 = vmul.f32 %v1331, 2.5
    %v1333 = vmul.f32 %v1306, %v1280
    %v1334 = vmul.f32 %v1308, %v1284
    %v1335 = vsub.f32 %v1333, %v1334
    %v1336 = vmul.f32 %v1335, 2.5
    %v1337 = vmul.f32 %v1307, %v1284
    %v1338 = vmul.f32 %v1309, %v1288
    %v1339 = vsub.f32 %v1337, %v1338
    %v1340 = vmul.f32 %v1339, 2.5
    %v1341 = vmul.f32 %v1308, %v1288
    %v1342 = vmul.f32 %v1310, %v1292
    %v1343 = vsub.f32 %v1341, %v1342
    %v1344 = vmul.f32 %v1343, 2.5
    %v1345 = vmul.f32 %v1309, %v1292
    %v1346 = vmul.f32 %v1311, %v1296
    %v1347 = vsub.f32 %v1345, %v1346
    %v1348 = vmul.f32 %v1347, 2.5
    %v1349 = vmul.f32 %v1310, %v1296
    %v1350 = vmul.f32 %v1312, %v1300
    %v1351 = vsub.f32 %v1349, %v1350
    %v1352 = vmul.f32 %v1351, 2.5
    %v1353 = vmul.f32 %v1301, %v1316
    %v1354 = vmul.f32 %v1304, %v1320
    %v1355 = vsub.f32 %v1353, %v1354
    %v1356 = vmul.f32 %v1355, 1.25
    %v1357 = vmul.f32 %v1302, %v1320
    %v1358 = vmul.f32 %v1305, %v1324
    %v1359 = vsub.f32 %v1357, %v1358
    %v1360 = vmul.f32 %v1359, 1.25
    %v1361 = vmul.f32 %v1303, %v1324
    %v1362 = vmul.f32 %v1306, %v1328
    %v1363 = vsub.f32 %v1361, %v1362
    %v1364 = vmul.f32 %v1363, 1.25
    %v1365 = vmul.f32 %v1304, %v1328
    %v1366 = vmul.f32 %v1307, %v1332
    %v1367 = vsub.f32 %v1365, %v1366
    %v1368 = vmul.f32 %v1367, 1.25
    %v1369 = vmul.f32 %v1305, %v1332
    %v1370 = vmul.f32 %v1308, %v1336
    %v1371 = vsub.f32 %v1369, %v1370
    %v1372 = vmul.f32 %v1371, 1.25
    %v1373 = vmul.f32 %v1306, %v1336
    %v1374 = vmul.f32 %v1309, %v1340
    %v1375 = vsub.f32 %v1373, %v1374
    %v1376 = vmul.f32 %v1375, 1.25
    %v1377 = vmul.f32 %v1307, %v1340
    %v1378 = vmul.f32 %v1310, %v1344
    %v1379 = vsub.f32 %v1377, %v1378
    %v1380 = vmul.f32 %v1379, 1.25
    %v1381 = vmul.f32 %v1308, %v1344
    %v1382 = vmul.f32 %v1311, %v1348
    %v1383 = vsub.f32 %v1381, %v1382
    %v1384 = vmul.f32 %v1383, 1.25
    %v1385 = vmul.f32 %v1309, %v1348
    %v1386 = vmul.f32 %v1312, %v1352
    %v1387 = vsub.f32 %v1385, %v1386
    %v1388 = vmul.f32 %v1387, 1.25
    %v1389 = vmul.f32 %v1301, %v1356
    %v1390 = vmul.f32 %v1305, %v1360
    %v1391 = vsub.f32 %v1389, %v1390
    %v1392 = vmul.f32 %v1391, 0.8333333
    %v1393 = vmul.f32 %v1302, %v1360
    %v1394 = vmul.f32 %v1306, %v1364
    %v1395 = vsub.f32 %v1393, %v1394
    %v1396 = vmul.f32 %v1395, 0.8333333
    %v1397 = vmul.f32 %v1303, %v1364
    %v1398 = vmul.f32 %v1307, %v1368
    %v1399 = vsub.f32 %v1397, %v1398
    %v1400 = vmul.f32 %v1399, 0.8333333
    %v1401 = vmul.f32 %v1304, %v1368
    %v1402 = vmul.f32 %v1308, %v1372
    %v1403 = vsub.f32 %v1401, %v1402
    %v1404 = vmul.f32 %v1403, 0.8333333
    %v1405 = vmul.f32 %v1305, %v1372
    %v1406 = vmul.f32 %v1309, %v1376
    %v1407 = vsub.f32 %v1405, %v1406
    %v1408 = vmul.f32 %v1407, 0.8333333
    %v1409 = vmul.f32 %v1306, %v1376
    %v1410 = vmul.f32 %v1310, %v1380
    %v1411 = vsub.f32 %v1409, %v1410
    %v1412 = vmul.f32 %v1411, 0.8333333
    %v1413 = vmul.f32 %v1307, %v1380
    %v1414 = vmul.f32 %v1311, %v1384
    %v1415 = vsub.f32 %v1413, %v1414
    %v1416 = vmul.f32 %v1415, 0.8333333
    %v1417 = vmul.f32 %v1308, %v1384
    %v1418 = vmul.f32 %v1312, %v1388
    %v1419 = vsub.f32 %v1417, %v1418
    %v1420 = vmul.f32 %v1419, 0.8333333
    %1421 = vst [vmem:[#allocation2 + $0x10] sm:$0xff] %v1244
    %1422 = vst [vmem:[#allocation2 + $0x30] sm:$0xff] %v1392
    %1423 = vst [vmem:[#allocation2 + $0x50] sm:$0xff] %v1396
    %1424 = vst [vmem:[#allocation2 + $0x70] sm:$0xff] %v1400
    %1425 = vst [vmem:[#allocation2 + $0x90] sm:$0xff] %v1404
    %1426 = vst [vmem:[#allocation2 + $0xb0] sm:$0xff] %v1408
    %1427 = vst [vmem:[#allocation2 + $0xd0] sm:$0xff] %v1412
    %1428 = vst [vmem:[#allocation2 + $0xf0] sm:$0xff] %v1416
    %1429 = vst [vmem:[#allocation2 + $0x110] sm:$0xff] %v1420
    %v1430 = vxor.u32 %v851, 2147483648
    %v1431 = vmul.f32 %v1430, 1.442695
    %v1432 = vpow.pop %v1431
    %v1433 = vadd.f32 %v1432, 1.0
    %v1434 = vrcp.pop %v1433
    %v1435 = vmul.f32 1.0, %v1434
    %v1436 = vmul.f32 %v851, %v1435
    %vm1437 = vcmp.ge.f32.partialorder %v851, -2.2
    %vm1438 = vcmp.ge.f32.partialorder %v851, -1.8
    %vm1439 = vcmp.ge.f32.partialorder %v851, -1.4
    %vm1440 = vcmp.ge.f32.partialorder %v851, -1.0
    %vm1441 = vcmp.ge.f32.partialorder %v851, -0.6
    %vm1442 = vcmp.ge.f32.partialorder %v851, -0.2
    %vm1443 = vcmp.ge.f32.partialorder %v851, 0.2
    %vm1444 = vcmp.ge.f32.partialorder %v851, 0.6
    %vm1445 = vcmp.ge.f32.partialorder %v851, 1.0
    %vm1446 = vcmp.ge.f32.partialorder %v851, 1.4
    %vm1447 = vcmp.ge.f32.partialorder %v851, 1.8
    %vm1448 = vcmp.ge.f32.partialorder %v851, 2.2
    %vm1449 = vmxor %vm1438, 1
    %vm1450 = vmand %vm1437, %vm1449
    %v1451 = vsel %vm1450, 1, 0
    %v1452 = vcvt.s32.f32 %v1451
    %vm1453 = vmxor %vm1439, 1
    %vm1454 = vmand %vm1438, %vm1453
    %v1455 = vsel %vm1454, 1, 0
    %v1456 = vcvt.s32.f32 %v1455
    %vm1457 = vmxor %vm1440, 1
    %vm1458 = vmand %vm1439, %vm1457
    %v1459 = vsel %vm1458, 1, 0
    %v1460 = vcvt.s32.f32 %v1459
    %vm1461 = vmxor %vm1441, 1
    %vm1462 = vmand %vm1440, %vm1461
    %v1463 = vsel %vm1462, 1, 0
    %v1464 = vcvt.s32.f32 %v1463
    %vm1465 = vmxor %vm1442, 1
    %vm1466 = vmand %vm1441, %vm1465
    %v1467 = vsel %vm1466, 1, 0
    %v1468 = vcvt.s32.f32 %v1467
    %vm1469 = vmxor %vm1443, 1
    %vm1470 = vmand %vm1442, %vm1469
    %v1471 = vsel %vm1470, 1, 0
    %v1472 = vcvt.s32.f32 %v1471
    %vm1473 = vmxor %vm1444, 1
    %vm1474 = vmand %vm1443, %vm1473
    %v1475 = vsel %vm1474, 1, 0
    %v1476 = vcvt.s32.f32 %v1475
    %vm1477 = vmxor %vm1445, 1
    %vm1478 = vmand %vm1444, %vm1477
    %v1479 = vsel %vm1478, 1, 0
    %v1480 = vcvt.s32.f32 %v1479
    %vm1481 = vmxor %vm1446, 1
    %vm1482 = vmand %vm1445, %vm1481
    %v1483 = vsel %vm1482, 1, 0
    %v1484 = vcvt.s32.f32 %v1483
    %vm1485 = vmxor %vm1447, 1
    %vm1486 = vmand %vm1446, %vm1485
    %v1487 = vsel %vm1486, 1, 0
    %v1488 = vcvt.s32.f32 %v1487
    %vm1489 = vmxor %vm1448, 1
    %vm1490 = vmand %vm1447, %vm1489
    %v1491 = vsel %vm1490, 1, 0
    %v1492 = vcvt.s32.f32 %v1491
    %v1493 = vsub.f32 %v851, -2.2
    %v1494 = vsub.f32 %v851, -1.8
    %v1495 = vsub.f32 %v851, -1.4
    %v1496 = vsub.f32 %v851, -1.0
    %v1497 = vsub.f32 %v851, -0.6
    %v1498 = vsub.f32 %v851, -0.2
    %v1499 = vsub.f32 %v851, 0.2
    %v1500 = vsub.f32 %v851, 0.6
    %v1501 = vsub.f32 %v851, 1.0
    %v1502 = vsub.f32 %v851, 1.4
    %v1503 = vsub.f32 %v851, 1.8
    %v1504 = vsub.f32 %v851, 2.2
    %v1505 = vmul.f32 %v1493, %v1452
    %v1506 = vmul.f32 %v1495, %v1456
    %v1507 = vsub.f32 %v1505, %v1506
    %v1508 = vmul.f32 %v1507, 2.5
    %v1509 = vmul.f32 %v1494, %v1456
    %v1510 = vmul.f32 %v1496, %v1460
    %v1511 = vsub.f32 %v1509, %v1510
    %v1512 = vmul.f32 %v1511, 2.5
    %v1513 = vmul.f32 %v1495, %v1460
    %v1514 = vmul.f32 %v1497, %v1464
    %v1515 = vsub.f32 %v1513, %v1514
    %v1516 = vmul.f32 %v1515, 2.5
    %v1517 = vmul.f32 %v1496, %v1464
    %v1518 = vmul.f32 %v1498, %v1468
    %v1519 = vsub.f32 %v1517, %v1518
    %v1520 = vmul.f32 %v1519, 2.5
    %v1521 = vmul.f32 %v1497, %v1468
    %v1522 = vmul.f32 %v1499, %v1472
    %v1523 = vsub.f32 %v1521, %v1522
    %v1524 = vmul.f32 %v1523, 2.5
    %v1525 = vmul.f32 %v1498, %v1472
    %v1526 = vmul.f32 %v1500, %v1476
    %v1527 = vsub.f32 %v1525, %v1526
    %v1528 = vmul.f32 %v1527, 2.5
    %v1529 = vmul.f32 %v1499, %v1476
    %v1530 = vmul.f32 %v1501, %v1480
    %v1531 = vsub.f32 %v1529, %v1530
    %v1532 = vmul.f32 %v1531, 2.5
    %v1533 = vmul.f32 %v1500, %v1480
    %v1534 = vmul.f32 %v1502, %v1484
    %v1535 = vsub.f32 %v1533, %v1534
    %v1536 = vmul.f32 %v1535, 2.5
    %v1537 = vmul.f32 %v1501, %v1484
    %v1538 = vmul.f32 %v1503, %v1488
    %v1539 = vsub.f32 %v1537, %v1538
    %v1540 = vmul.f32 %v1539, 2.5
    %v1541 = vmul.f32 %v1502, %v1488
    %v1542 = vmul.f32 %v1504, %v1492
    %v1543 = vsub.f32 %v1541, %v1542
    %v1544 = vmul.f32 %v1543, 2.5
    %v1545 = vmul.f32 %v1493, %v1508
    %v1546 = vmul.f32 %v1496, %v1512
    %v1547 = vsub.f32 %v1545, %v1546
    %v1548 = vmul.f32 %v1547, 1.25
    %v1549 = vmul.f32 %v1494, %v1512
    %v1550 = vmul.f32 %v1497, %v1516
    %v1551 = vsub.f32 %v1549, %v1550
    %v1552 = vmul.f32 %v1551, 1.25
    %v1553 = vmul.f32 %v1495, %v1516
    %v1554 = vmul.f32 %v1498, %v1520
    %v1555 = vsub.f32 %v1553, %v1554
    %v1556 = vmul.f32 %v1555, 1.25
    %v1557 = vmul.f32 %v1496, %v1520
    %v1558 = vmul.f32 %v1499, %v1524
    %v1559 = vsub.f32 %v1557, %v1558
    %v1560 = vmul.f32 %v1559, 1.25
    %v1561 = vmul.f32 %v1497, %v1524
    %v1562 = vmul.f32 %v1500, %v1528
    %v1563 = vsub.f32 %v1561, %v1562
    %v1564 = vmul.f32 %v1563, 1.25
    %v1565 = vmul.f32 %v1498, %v1528
    %v1566 = vmul.f32 %v1501, %v1532
    %v1567 = vsub.f32 %v1565, %v1566
    %v1568 = vmul.f32 %v1567, 1.25
    %v1569 = vmul.f32 %v1499, %v1532
    %v1570 = vmul.f32 %v1502, %v1536
    %v1571 = vsub.f32 %v1569, %v1570
    %v1572 = vmul.f32 %v1571, 1.25
    %v1573 = vmul.f32 %v1500, %v1536
    %v1574 = vmul.f32 %v1503, %v1540
    %v1575 = vsub.f32 %v1573, %v1574
    %v1576 = vmul.f32 %v1575, 1.25
    %v1577 = vmul.f32 %v1501, %v1540
    %v1578 = vmul.f32 %v1504, %v1544
    %v1579 = vsub.f32 %v1577, %v1578
    %v1580 = vmul.f32 %v1579, 1.25
    %v1581 = vmul.f32 %v1493, %v1548
    %v1582 = vmul.f32 %v1497, %v1552
    %v1583 = vsub.f32 %v1581, %v1582
    %v1584 = vmul.f32 %v1583, 0.8333333
    %v1585 = vmul.f32 %v1494, %v1552
    %v1586 = vmul.f32 %v1498, %v1556
    %v1587 = vsub.f32 %v1585, %v1586
    %v1588 = vmul.f32 %v1587, 0.8333333
    %v1589 = vmul.f32 %v1495, %v1556
    %v1590 = vmul.f32 %v1499, %v1560
    %v1591 = vsub.f32 %v1589, %v1590
    %v1592 = vmul.f32 %v1591, 0.8333333
    %v1593 = vmul.f32 %v1496, %v1560
    %v1594 = vmul.f32 %v1500, %v1564
    %v1595 = vsub.f32 %v1593, %v1594
    %v1596 = vmul.f32 %v1595, 0.8333333
    %v1597 = vmul.f32 %v1497, %v1564
    %v1598 = vmul.f32 %v1501, %v1568
    %v1599 = vsub.f32 %v1597, %v1598
    %v1600 = vmul.f32 %v1599, 0.8333333
    %v1601 = vmul.f32 %v1498, %v1568
    %v1602 = vmul.f32 %v1502, %v1572
    %v1603 = vsub.f32 %v1601, %v1602
    %v1604 = vmul.f32 %v1603, 0.8333333
    %v1605 = vmul.f32 %v1499, %v1572
    %v1606 = vmul.f32 %v1503, %v1576
    %v1607 = vsub.f32 %v1605, %v1606
    %v1608 = vmul.f32 %v1607, 0.8333333
    %v1609 = vmul.f32 %v1500, %v1576
    %v1610 = vmul.f32 %v1504, %v1580
    %v1611 = vsub.f32 %v1609, %v1610
    %v1612 = vmul.f32 %v1611, 0.8333333
    %1613 = vst [vmem:[#allocation2 + $0x18] sm:$0xff] %v1436
    %1614 = vst [vmem:[#allocation2 + $0x38] sm:$0xff] %v1584
    %1615 = vst [vmem:[#allocation2 + $0x58] sm:$0xff] %v1588
    %1616 = vst [vmem:[#allocation2 + $0x78] sm:$0xff] %v1592
    %1617 = vst [vmem:[#allocation2 + $0x98] sm:$0xff] %v1596
    %1618 = vst [vmem:[#allocation2 + $0xb8] sm:$0xff] %v1600
    %1619 = vst [vmem:[#allocation2 + $0xd8] sm:$0xff] %v1604
    %1620 = vst [vmem:[#allocation2 + $0xf8] sm:$0xff] %v1608
    %1621 = vst [vmem:[#allocation2 + $0x118] sm:$0xff] %v1612
    %v1622 = vld [vmem:[#allocation6] sm:$0xff]
    %v1623 = vld [vmem:[#allocation6 + $0x8] sm:$0xff]
    %v1624 = vld [vmem:[#allocation6 + $0x10] sm:$0xff]
    %v1625 = vld [vmem:[#allocation6 + $0x18] sm:$0xff]
    %v1626 = vld [vmem:[#allocation6 + $0x20] sm:$0xff]
    %v1627 = vld [vmem:[#allocation6 + $0x28] sm:$0xff]
    %v1628 = vld [vmem:[#allocation6 + $0x30] sm:$0xff]
    %v1629 = vld [vmem:[#allocation6 + $0x38] sm:$0xff]
    %v1630 = vld [vmem:[#allocation6 + $0x40] sm:$0xff]
    %v1631 = vld [vmem:[#allocation6 + $0x48] sm:$0xff]
    %v1632 = vld [vmem:[#allocation6 + $0x50] sm:$0xff]
    %v1633 = vld [vmem:[#allocation6 + $0x58] sm:$0xff]
    %v1634 = vld [vmem:[#allocation2] sm:$0xff]
    %v1635 = vld [vmem:[#allocation2 + $0x8] sm:$0xff]
    %v1636 = vld [vmem:[#allocation2 + $0x10] sm:$0xff]
    %v1637 = vld [vmem:[#allocation2 + $0x18] sm:$0xff]
    %v1638 = vld [vmem:[#allocation2 + $0x20] sm:$0xff]
    %v1639 = vld [vmem:[#allocation2 + $0x28] sm:$0xff]
    %v1640 = vld [vmem:[#allocation2 + $0x30] sm:$0xff]
    %v1641 = vld [vmem:[#allocation2 + $0x38] sm:$0xff]
    %v1642 = vld [vmem:[#allocation2 + $0x40] sm:$0xff]
    %v1643 = vld [vmem:[#allocation2 + $0x48] sm:$0xff]
    %v1644 = vld [vmem:[#allocation2 + $0x50] sm:$0xff]
    %v1645 = vld [vmem:[#allocation2 + $0x58] sm:$0xff]
    %v1646 = vld [vmem:[#allocation2 + $0x60] sm:$0xff]
    %v1647 = vld [vmem:[#allocation2 + $0x68] sm:$0xff]
    %v1648 = vld [vmem:[#allocation2 + $0x70] sm:$0xff]
    %v1649 = vld [vmem:[#allocation2 + $0x78] sm:$0xff]
    %v1650 = vld [vmem:[#allocation2 + $0x80] sm:$0xff]
    %v1651 = vld [vmem:[#allocation2 + $0x88] sm:$0xff]
    %v1652 = vld [vmem:[#allocation2 + $0x90] sm:$0xff]
    %v1653 = vld [vmem:[#allocation2 + $0x98] sm:$0xff]
    %v1654 = vld [vmem:[#allocation2 + $0xa0] sm:$0xff]
    %v1655 = vld [vmem:[#allocation2 + $0xa8] sm:$0xff]
    %v1656 = vld [vmem:[#allocation2 + $0xb0] sm:$0xff]
    %v1657 = vld [vmem:[#allocation2 + $0xb8] sm:$0xff]
    %v1658 = vld [vmem:[#allocation2 + $0xc0] sm:$0xff]
    %v1659 = vld [vmem:[#allocation2 + $0xc8] sm:$0xff]
    %v1660 = vld [vmem:[#allocation2 + $0xd0] sm:$0xff]
    %v1661 = vld [vmem:[#allocation2 + $0xd8] sm:$0xff]
    %v1662 = vld [vmem:[#allocation2 + $0xe0] sm:$0xff]
    %v1663 = vld [vmem:[#allocation2 + $0xe8] sm:$0xff]
    %v1664 = vld [vmem:[#allocation2 + $0xf0] sm:$0xff]
    %v1665 = vld [vmem:[#allocation2 + $0xf8] sm:$0xff]
    %v1666 = vld [vmem:[#allocation2 + $0x100] sm:$0xff]
    %v1667 = vld [vmem:[#allocation2 + $0x108] sm:$0xff]
    %v1668 = vld [vmem:[#allocation2 + $0x110] sm:$0xff]
    %v1669 = vld [vmem:[#allocation2 + $0x118] sm:$0xff]
    %vm1670 = vcmask 261120
    %v1672 = vsel %vm1670, %v1624, 0
    %v1675 = vsel %vm1670, %v1627, 0
    %v1678 = vsel %vm1670, %v1630, 0
    %v1681 = vsel %vm1670, %v1633, 0
    %1683 = vmatprep.subr.mxu0 0.0
    %1684 = vmatpush1.msra.mxu0 %v1649
    %1685 = vmatprep.subr.mxu0 0.0
    %1686 = vmatpush1.msra.mxu0 %v1648
    %1687 = vmatprep.subr.mxu0 0.0
    %1688 = vmatpush1.msra.mxu0 %v1647
    %1689 = vmatprep.subr.mxu0 0.0
    %1690 = vmatpush1.msra.mxu0 %v1646
    %1691 = vmatprep.subr.mxu0 0.0
    %1692 = vmatpush1.msra.mxu0 %v1645
    %1693 = vmatprep.subr.mxu0 0.0
    %1694 = vmatpush1.msra.mxu0 %v1644
    %1695 = vmatprep.subr.mxu0 0.0
    %1696 = vmatpush1.msra.mxu0 %v1643
    %1697 = vmatprep.subr.mxu0 0.0
    %1698 = vmatpush1.msra.mxu0 %v1642
    %1699 = vmatprep.subr.mxu0 0.0
    %1700 = vmatpush1.msra.mxu0 %v1641
    %1701 = vmatprep.subr.mxu0 0.0
    %1702 = vmatpush1.msra.mxu0 %v1640
    %1703 = vmatprep.subr.mxu0 0.0
    %1704 = vmatpush1.msra.mxu0 %v1639
    %1705 = vmatprep.subr.mxu0 0.0
    %1706 = vmatpush1.msra.mxu0 %v1638
    %1707 = vmatprep.subr.mxu0 0.0
    %1708 = vmatpush1.msra.mxu0 %v1637
    %1709 = vmatprep.subr.mxu0 0.0
    %1710 = vmatpush1.msra.mxu0 %v1636
    %1711 = vmatprep.subr.mxu0 0.0
    %1712 = vmatpush1.msra.mxu0 %v1635
    %1713 = vmatprep.subr.mxu0 0.0
    %1714 = vmatpush1.msra.mxu0 %v1634
    %1715 = vmatprep.subr.mxu0 0.0
    %1716 = vmatpush2.msra.mxu0 %v1665
    %1717 = vmatprep.subr.mxu0 0.0
    %1718 = vmatpush2.msra.mxu0 %v1664
    %1719 = vmatprep.subr.mxu0 0.0
    %1720 = vmatpush2.msra.mxu0 %v1663
    %1721 = vmatprep.subr.mxu0 0.0
    %1722 = vmatpush2.msra.mxu0 %v1662
    %1723 = vmatprep.subr.mxu0 0.0
    %1724 = vmatpush2.msra.mxu0 %v1661
    %1725 = vmatprep.subr.mxu0 0.0
    %1726 = vmatpush2.msra.mxu0 %v1660
    %1727 = vmatprep.subr.mxu0 0.0
    %1728 = vmatpush2.msra.mxu0 %v1659
    %1729 = vmatprep.subr.mxu0 0.0
    %1730 = vmatpush2.msra.mxu0 %v1658
    %1731 = vmatprep.subr.mxu0 0.0
    %1732 = vmatpush2.msra.mxu0 %v1657
    %1733 = vmatprep.subr.mxu0 0.0
    %1734 = vmatpush2.msra.mxu0 %v1656
    %1735 = vmatprep.subr.mxu0 0.0
    %1736 = vmatpush2.msra.mxu0 %v1655
    %1737 = vmatprep.subr.mxu0 0.0
    %1738 = vmatpush2.msra.mxu0 %v1654
    %1739 = vmatprep.subr.mxu0 0.0
    %1740 = vmatpush2.msra.mxu0 %v1653
    %1741 = vmatprep.subr.mxu0 0.0
    %1742 = vmatpush2.msra.mxu0 %v1652
    %1743 = vmatprep.subr.mxu0 0.0
    %1744 = vmatpush2.msra.mxu0 %v1651
    %1745 = vmatprep.subr.mxu0 0.0
    %1746 = vmatpush2.msra.mxu0 %v1650
    %1747 = vmatprep.mubr.f32.mxu0 %v1623
    %1748 = vmatmul.mubr.f32.gmra.mxu0 %v1622
    %v1749 = vpop.f32.mrf.mxu0
    %v1750 = vadd.f32 0.0, %v1749
    %v1751 = vpop.f32.mrf.mxu0
    %1752 = vmatprep.mubr.f32.mxu0 %v1626
    %1753 = vmatmul.mubr.f32.gmra.mxu0 %v1625
    %v1754 = vpop.f32.mrf.mxu0
    %v1755 = vadd.f32 0.0, %v1754
    %v1756 = vpop.f32.mrf.mxu0
    %1757 = vmatprep.mubr.f32.mxu0 %v1629
    %1758 = vmatmul.mubr.f32.gmra.mxu0 %v1628
    %v1759 = vpop.f32.mrf.mxu0
    %v1760 = vadd.f32 0.0, %v1759
    %v1761 = vpop.f32.mrf.mxu0
    %1762 = vmatprep.mubr.f32.mxu0 %v1632
    %1763 = vmatmul.mubr.f32.gmra.mxu0 %v1631
    %v1764 = vpop.f32.mrf.mxu0
    %v1765 = vadd.f32 0.0, %v1764
    %v1766 = vpop.f32.mrf.mxu0
    %1767 = vdwg.mxu0
    %1768 = vmatprep.subr.mxu0 0.0
    %1769 = vmatpush1.msra.mxu0 0.0
    %1770 = vmatprep.subr.mxu0 0.0
    %1771 = vmatpush1.msra.mxu0 0.0
    %1772 = vmatprep.subr.mxu0 0.0
    %1773 = vmatpush1.msra.mxu0 0.0
    %1774 = vmatprep.subr.mxu0 0.0
    %1775 = vmatpush1.msra.mxu0 0.0
    %1776 = vmatprep.subr.mxu0 0.0
    %1777 = vmatpush1.msra.mxu0 0.0
    %1778 = vmatprep.subr.mxu0 0.0
    %1779 = vmatpush1.msra.mxu0 0.0
    %1780 = vmatprep.subr.mxu0 0.0
    %1781 = vmatpush1.msra.mxu0 0.0
    %1782 = vmatprep.subr.mxu0 0.0
    %1783 = vmatpush1.msra.mxu0 0.0
    %1784 = vmatprep.subr.mxu0 0.0
    %1785 = vmatpush1.msra.mxu0 0.0
    %1786 = vmatprep.subr.mxu0 0.0
    %1787 = vmatpush1.msra.mxu0 0.0
    %1788 = vmatprep.subr.mxu0 0.0
    %1789 = vmatpush1.msra.mxu0 0.0
    %1790 = vmatprep.subr.mxu0 0.0
    %1791 = vmatpush1.msra.mxu0 0.0
    %1792 = vmatprep.subr.mxu0 0.0
    %1793 = vmatpush1.msra.mxu0 %v1669
    %1794 = vmatprep.subr.mxu0 0.0
    %1795 = vmatpush1.msra.mxu0 %v1668
    %1796 = vmatprep.subr.mxu0 0.0
    %1797 = vmatpush1.msra.mxu0 %v1667
    %1798 = vmatprep.subr.mxu0 0.0
    %1799 = vmatpush1.msra.mxu0 %v1666
    %1800 = vmatprep.subr.mxu0 0.0
    %1801 = vmatpush2.msra.mxu0 0.0
    %1802 = vmatprep.subr.mxu0 0.0
    %1803 = vmatpush2.msra.mxu0 0.0
    %1804 = vmatprep.subr.mxu0 0.0
    %1805 = vmatpush2.msra.mxu0 0.0
    %1806 = vmatprep.subr.mxu0 0.0
    %1807 = vmatpush2.msra.mxu0 0.0
    %1808 = vmatprep.subr.mxu0 0.0
    %1809 = vmatpush2.msra.mxu0 0.0
    %1810 = vmatprep.subr.mxu0 0.0
    %1811 = vmatpush2.msra.mxu0 0.0
    %1812 = vmatprep.subr.mxu0 0.0
    %1813 = vmatpush2.msra.mxu0 0.0
    %1814 = vmatprep.subr.mxu0 0.0
    %1815 = vmatpush2.msra.mxu0 0.0
    %1816 = vmatprep.subr.mxu0 0.0
    %1817 = vmatpush2.msra.mxu0 0.0
    %1818 = vmatprep.subr.mxu0 0.0
    %1819 = vmatpush2.msra.mxu0 0.0
    %1820 = vmatprep.subr.mxu0 0.0
    %1821 = vmatpush2.msra.mxu0 0.0
    %1822 = vmatprep.subr.mxu0 0.0
    %1823 = vmatpush2.msra.mxu0 0.0
    %1824 = vmatprep.subr.mxu0 0.0
    %1825 = vmatpush2.msra.mxu0 0.0
    %1826 = vmatprep.subr.mxu0 0.0
    %1827 = vmatpush2.msra.mxu0 0.0
    %1828 = vmatprep.subr.mxu0 0.0
    %1829 = vmatpush2.msra.mxu0 0.0
    %1830 = vmatprep.subr.mxu0 0.0
    %1831 = vmatpush2.msra.mxu0 0.0
    %1832 = vmatprep.mubr.f32.mxu0 0.0
    %1833 = vmatmul.mubr.f32.gmra.mxu0 %v1672
    %v1834 = vpop.f32.mrf.mxu0
    %v1835 = vadd.f32 %v1750, %v1834
    %v1836 = vpop.f32.mrf.mxu0
    %1837 = vmatprep.mubr.f32.mxu0 0.0
    %1838 = vmatmul.mubr.f32.gmra.mxu0 %v1675
    %v1839 = vpop.f32.mrf.mxu0
    %v1840 = vadd.f32 %v1755, %v1839
    %v1841 = vpop.f32.mrf.mxu0
    %1842 = vmatprep.mubr.f32.mxu0 0.0
    %1843 = vmatmul.mubr.f32.gmra.mxu0 %v1678
    %v1844 = vpop.f32.mrf.mxu0
    %v1845 = vadd.f32 %v1760, %v1844
    %v1846 = vpop.f32.mrf.mxu0
    %1847 = vmatprep.mubr.f32.mxu0 0.0
    %1848 = vmatmul.mubr.f32.gmra.mxu0 %v1681
    %v1849 = vpop.f32.mrf.mxu0
    %v1850 = vadd.f32 %v1765, %v1849
    %v1851 = vpop.f32.mrf.mxu0
    %1852 = vdwg.mxu0
    %v1853 = vxor.u32 %v1835, 2147483648
    %v1854 = vmul.f32 %v1853, 1.442695
    %v1855 = vpow.pop %v1854
    %v1856 = vadd.f32 %v1855, 1.0
    %v1857 = vrcp.pop %v1856
    %v1858 = vmul.f32 1.0, %v1857
    %v1859 = vmul.f32 %v1835, %v1858
    %vm1860 = vcmp.ge.f32.partialorder %v1835, -2.2
    %vm1861 = vcmp.ge.f32.partialorder %v1835, -1.8
    %vm1862 = vcmp.ge.f32.partialorder %v1835, -1.4
    %vm1863 = vcmp.ge.f32.partialorder %v1835, -1.0
    %vm1864 = vcmp.ge.f32.partialorder %v1835, -0.6
    %vm1865 = vcmp.ge.f32.partialorder %v1835, -0.2
    %vm1866 = vcmp.ge.f32.partialorder %v1835, 0.2
    %vm1867 = vcmp.ge.f32.partialorder %v1835, 0.6
    %vm1868 = vcmp.ge.f32.partialorder %v1835, 1.0
    %vm1869 = vcmp.ge.f32.partialorder %v1835, 1.4
    %vm1870 = vcmp.ge.f32.partialorder %v1835, 1.8
    %vm1871 = vcmp.ge.f32.partialorder %v1835, 2.2
    %vm1872 = vmxor %vm1861, 1
    %vm1873 = vmand %vm1860, %vm1872
    %v1874 = vsel %vm1873, 1, 0
    %v1875 = vcvt.s32.f32 %v1874
    %vm1876 = vmxor %vm1862, 1
    %vm1877 = vmand %vm1861, %vm1876
    %v1878 = vsel %vm1877, 1, 0
    %v1879 = vcvt.s32.f32 %v1878
    %vm1880 = vmxor %vm1863, 1
    %vm1881 = vmand %vm1862, %vm1880
    %v1882 = vsel %vm1881, 1, 0
    %v1883 = vcvt.s32.f32 %v1882
    %vm1884 = vmxor %vm1864, 1
    %vm1885 = vmand %vm1863, %vm1884
    %v1886 = vsel %vm1885, 1, 0
    %v1887 = vcvt.s32.f32 %v1886
    %vm1888 = vmxor %vm1865, 1
    %vm1889 = vmand %vm1864, %vm1888
    %v1890 = vsel %vm1889, 1, 0
    %v1891 = vcvt.s32.f32 %v1890
    %vm1892 = vmxor %vm1866, 1
    %vm1893 = vmand %vm1865, %vm1892
    %v1894 = vsel %vm1893, 1, 0
    %v1895 = vcvt.s32.f32 %v1894
    %vm1896 = vmxor %vm1867, 1
    %vm1897 = vmand %vm1866, %vm1896
    %v1898 = vsel %vm1897, 1, 0
    %v1899 = vcvt.s32.f32 %v1898
    %vm1900 = vmxor %vm1868, 1
    %vm1901 = vmand %vm1867, %vm1900
    %v1902 = vsel %vm1901, 1, 0
    %v1903 = vcvt.s32.f32 %v1902
    %vm1904 = vmxor %vm1869, 1
    %vm1905 = vmand %vm1868, %vm1904
    %v1906 = vsel %vm1905, 1, 0
    %v1907 = vcvt.s32.f32 %v1906
    %vm1908 = vmxor %vm1870, 1
    %vm1909 = vmand %vm1869, %vm1908
    %v1910 = vsel %vm1909, 1, 0
    %v1911 = vcvt.s32.f32 %v1910
    %vm1912 = vmxor %vm1871, 1
    %vm1913 = vmand %vm1870, %vm1912
    %v1914 = vsel %vm1913, 1, 0
    %v1915 = vcvt.s32.f32 %v1914
    %v1916 = vsub.f32 %v1835, -2.2
    %v1917 = vsub.f32 %v1835, -1.8
    %v1918 = vsub.f32 %v1835, -1.4
    %v1919 = vsub.f32 %v1835, -1.0
    %v1920 = vsub.f32 %v1835, -0.6
    %v1921 = vsub.f32 %v1835, -0.2
    %v1922 = vsub.f32 %v1835, 0.2
    %v1923 = vsub.f32 %v1835, 0.6
    %v1924 = vsub.f32 %v1835, 1.0
    %v1925 = vsub.f32 %v1835, 1.4
    %v1926 = vsub.f32 %v1835, 1.8
    %v1927 = vsub.f32 %v1835, 2.2
    %v1928 = vmul.f32 %v1916, %v1875
    %v1929 = vmul.f32 %v1918, %v1879
    %v1930 = vsub.f32 %v1928, %v1929
    %v1931 = vmul.f32 %v1930, 2.5
    %v1932 = vmul.f32 %v1917, %v1879
    %v1933 = vmul.f32 %v1919, %v1883
    %v1934 = vsub.f32 %v1932, %v1933
    %v1935 = vmul.f32 %v1934, 2.5
    %v1936 = vmul.f32 %v1918, %v1883
    %v1937 = vmul.f32 %v1920, %v1887
    %v1938 = vsub.f32 %v1936, %v1937
    %v1939 = vmul.f32 %v1938, 2.5
    %v1940 = vmul.f32 %v1919, %v1887
    %v1941 = vmul.f32 %v1921, %v1891
    %v1942 = vsub.f32 %v1940, %v1941
    %v1943 = vmul.f32 %v1942, 2.5
    %v1944 = vmul.f32 %v1920, %v1891
    %v1945 = vmul.f32 %v1922, %v1895
    %v1946 = vsub.f32 %v1944, %v1945
    %v1947 = vmul.f32 %v1946, 2.5
    %v1948 = vmul.f32 %v1921, %v1895
    %v1949 = vmul.f32 %v1923, %v1899
    %v1950 = vsub.f32 %v1948, %v1949
    %v1951 = vmul.f32 %v1950, 2.5
    %v1952 = vmul.f32 %v1922, %v1899
    %v1953 = vmul.f32 %v1924, %v1903
    %v1954 = vsub.f32 %v1952, %v1953
    %v1955 = vmul.f32 %v1954, 2.5
    %v1956 = vmul.f32 %v1923, %v1903
    %v1957 = vmul.f32 %v1925, %v1907
    %v1958 = vsub.f32 %v1956, %v1957
    %v1959 = vmul.f32 %v1958, 2.5
    %v1960 = vmul.f32 %v1924, %v1907
    %v1961 = vmul.f32 %v1926, %v1911
    %v1962 = vsub.f32 %v1960, %v1961
    %v1963 = vmul.f32 %v1962, 2.5
    %v1964 = vmul.f32 %v1925, %v1911
    %v1965 = vmul.f32 %v1927, %v1915
    %v1966 = vsub.f32 %v1964, %v1965
    %v1967 = vmul.f32 %v1966, 2.5
    %v1968 = vmul.f32 %v1916, %v1931
    %v1969 = vmul.f32 %v1919, %v1935
    %v1970 = vsub.f32 %v1968, %v1969
    %v1971 = vmul.f32 %v1970, 1.25
    %v1972 = vmul.f32 %v1917, %v1935
    %v1973 = vmul.f32 %v1920, %v1939
    %v1974 = vsub.f32 %v1972, %v1973
    %v1975 = vmul.f32 %v1974, 1.25
    %v1976 = vmul.f32 %v1918, %v1939
    %v1977 = vmul.f32 %v1921, %v1943
    %v1978 = vsub.f32 %v1976, %v1977
    %v1979 = vmul.f32 %v1978, 1.25
    %v1980 = vmul.f32 %v1919, %v1943
    %v1981 = vmul.f32 %v1922, %v1947
    %v1982 = vsub.f32 %v1980, %v1981
    %v1983 = vmul.f32 %v1982, 1.25
    %v1984 = vmul.f32 %v1920, %v1947
    %v1985 = vmul.f32 %v1923, %v1951
    %v1986 = vsub.f32 %v1984, %v1985
    %v1987 = vmul.f32 %v1986, 1.25
    %v1988 = vmul.f32 %v1921, %v1951
    %v1989 = vmul.f32 %v1924, %v1955
    %v1990 = vsub.f32 %v1988, %v1989
    %v1991 = vmul.f32 %v1990, 1.25
    %v1992 = vmul.f32 %v1922, %v1955
    %v1993 = vmul.f32 %v1925, %v1959
    %v1994 = vsub.f32 %v1992, %v1993
    %v1995 = vmul.f32 %v1994, 1.25
    %v1996 = vmul.f32 %v1923, %v1959
    %v1997 = vmul.f32 %v1926, %v1963
    %v1998 = vsub.f32 %v1996, %v1997
    %v1999 = vmul.f32 %v1998, 1.25
    %v2000 = vmul.f32 %v1924, %v1963
    %v2001 = vmul.f32 %v1927, %v1967
    %v2002 = vsub.f32 %v2000, %v2001
    %v2003 = vmul.f32 %v2002, 1.25
    %v2004 = vmul.f32 %v1916, %v1971
    %v2005 = vmul.f32 %v1920, %v1975
    %v2006 = vsub.f32 %v2004, %v2005
    %v2007 = vmul.f32 %v2006, 0.8333333
    %v2008 = vmul.f32 %v1917, %v1975
    %v2009 = vmul.f32 %v1921, %v1979
    %v2010 = vsub.f32 %v2008, %v2009
    %v2011 = vmul.f32 %v2010, 0.8333333
    %v2012 = vmul.f32 %v1918, %v1979
    %v2013 = vmul.f32 %v1922, %v1983
    %v2014 = vsub.f32 %v2012, %v2013
    %v2015 = vmul.f32 %v2014, 0.8333333
    %v2016 = vmul.f32 %v1919, %v1983
    %v2017 = vmul.f32 %v1923, %v1987
    %v2018 = vsub.f32 %v2016, %v2017
    %v2019 = vmul.f32 %v2018, 0.8333333
    %v2020 = vmul.f32 %v1920, %v1987
    %v2021 = vmul.f32 %v1924, %v1991
    %v2022 = vsub.f32 %v2020, %v2021
    %v2023 = vmul.f32 %v2022, 0.8333333
    %v2024 = vmul.f32 %v1921, %v1991
    %v2025 = vmul.f32 %v1925, %v1995
    %v2026 = vsub.f32 %v2024, %v2025
    %v2027 = vmul.f32 %v2026, 0.8333333
    %v2028 = vmul.f32 %v1922, %v1995
    %v2029 = vmul.f32 %v1926, %v1999
    %v2030 = vsub.f32 %v2028, %v2029
    %v2031 = vmul.f32 %v2030, 0.8333333
    %v2032 = vmul.f32 %v1923, %v1999
    %v2033 = vmul.f32 %v1927, %v2003
    %v2034 = vsub.f32 %v2032, %v2033
    %v2035 = vmul.f32 %v2034, 0.8333333
    %2036 = vst [vmem:[#allocation2] sm:$0xff] %v1859
    %2037 = vst [vmem:[#allocation2 + $0x20] sm:$0xff] %v2007
    %2038 = vst [vmem:[#allocation2 + $0x40] sm:$0xff] %v2011
    %2039 = vst [vmem:[#allocation2 + $0x60] sm:$0xff] %v2015
    %2040 = vst [vmem:[#allocation2 + $0x80] sm:$0xff] %v2019
    %2041 = vst [vmem:[#allocation2 + $0xa0] sm:$0xff] %v2023
    %2042 = vst [vmem:[#allocation2 + $0xc0] sm:$0xff] %v2027
    %2043 = vst [vmem:[#allocation2 + $0xe0] sm:$0xff] %v2031
    %2044 = vst [vmem:[#allocation2 + $0x100] sm:$0xff] %v2035
    %v2045 = vxor.u32 %v1840, 2147483648
    %v2046 = vmul.f32 %v2045, 1.442695
    %v2047 = vpow.pop %v2046
    %v2048 = vadd.f32 %v2047, 1.0
    %v2049 = vrcp.pop %v2048
    %v2050 = vmul.f32 1.0, %v2049
    %v2051 = vmul.f32 %v1840, %v2050
    %vm2052 = vcmp.ge.f32.partialorder %v1840, -2.2
    %vm2053 = vcmp.ge.f32.partialorder %v1840, -1.8
    %vm2054 = vcmp.ge.f32.partialorder %v1840, -1.4
    %vm2055 = vcmp.ge.f32.partialorder %v1840, -1.0
    %vm2056 = vcmp.ge.f32.partialorder %v1840, -0.6
    %vm2057 = vcmp.ge.f32.partialorder %v1840, -0.2
    %vm2058 = vcmp.ge.f32.partialorder %v1840, 0.2
    %vm2059 = vcmp.ge.f32.partialorder %v1840, 0.6
    %vm2060 = vcmp.ge.f32.partialorder %v1840, 1.0
    %vm2061 = vcmp.ge.f32.partialorder %v1840, 1.4
    %vm2062 = vcmp.ge.f32.partialorder %v1840, 1.8
    %vm2063 = vcmp.ge.f32.partialorder %v1840, 2.2
    %vm2064 = vmxor %vm2053, 1
    %vm2065 = vmand %vm2052, %vm2064
    %v2066 = vsel %vm2065, 1, 0
    %v2067 = vcvt.s32.f32 %v2066
    %vm2068 = vmxor %vm2054, 1
    %vm2069 = vmand %vm2053, %vm2068
    %v2070 = vsel %vm2069, 1, 0
    %v2071 = vcvt.s32.f32 %v2070
    %vm2072 = vmxor %vm2055, 1
    %vm2073 = vmand %vm2054, %vm2072
    %v2074 = vsel %vm2073, 1, 0
    %v2075 = vcvt.s32.f32 %v2074
    %vm2076 = vmxor %vm2056, 1
    %vm2077 = vmand %vm2055, %vm2076
    %v2078 = vsel %vm2077, 1, 0
    %v2079 = vcvt.s32.f32 %v2078
    %vm2080 = vmxor %vm2057, 1
    %vm2081 = vmand %vm2056, %vm2080
    %v2082 = vsel %vm2081, 1, 0
    %v2083 = vcvt.s32.f32 %v2082
    %vm2084 = vmxor %vm2058, 1
    %vm2085 = vmand %vm2057, %vm2084
    %v2086 = vsel %vm2085, 1, 0
    %v2087 = vcvt.s32.f32 %v2086
    %vm2088 = vmxor %vm2059, 1
    %vm2089 = vmand %vm2058, %vm2088
    %v2090 = vsel %vm2089, 1, 0
    %v2091 = vcvt.s32.f32 %v2090
    %vm2092 = vmxor %vm2060, 1
    %vm2093 = vmand %vm2059, %vm2092
    %v2094 = vsel %vm2093, 1, 0
    %v2095 = vcvt.s32.f32 %v2094
    %vm2096 = vmxor %vm2061, 1
    %vm2097 = vmand %vm2060, %vm2096
    %v2098 = vsel %vm2097, 1, 0
    %v2099 = vcvt.s32.f32 %v2098
    %vm2100 = vmxor %vm2062, 1
    %vm2101 = vmand %vm2061, %vm2100
    %v2102 = vsel %vm2101, 1, 0
    %v2103 = vcvt.s32.f32 %v2102
    %vm2104 = vmxor %vm2063, 1
    %vm2105 = vmand %vm2062, %vm2104
    %v2106 = vsel %vm2105, 1, 0
    %v2107 = vcvt.s32.f32 %v2106
    %v2108 = vsub.f32 %v1840, -2.2
    %v2109 = vsub.f32 %v1840, -1.8
    %v2110 = vsub.f32 %v1840, -1.4
    %v2111 = vsub.f32 %v1840, -1.0
    %v2112 = vsub.f32 %v1840, -0.6
    %v2113 = vsub.f32 %v1840, -0.2
    %v2114 = vsub.f32 %v1840, 0.2
    %v2115 = vsub.f32 %v1840, 0.6
    %v2116 = vsub.f32 %v1840, 1.0
    %v2117 = vsub.f32 %v1840, 1.4
    %v2118 = vsub.f32 %v1840, 1.8
    %v2119 = vsub.f32 %v1840, 2.2
    %v2120 = vmul.f32 %v2108, %v2067
    %v2121 = vmul.f32 %v2110, %v2071
    %v2122 = vsub.f32 %v2120, %v2121
    %v2123 = vmul.f32 %v2122, 2.5
    %v2124 = vmul.f32 %v2109, %v2071
    %v2125 = vmul.f32 %v2111, %v2075
    %v2126 = vsub.f32 %v2124, %v2125
    %v2127 = vmul.f32 %v2126, 2.5
    %v2128 = vmul.f32 %v2110, %v2075
    %v2129 = vmul.f32 %v2112, %v2079
    %v2130 = vsub.f32 %v2128, %v2129
    %v2131 = vmul.f32 %v2130, 2.5
    %v2132 = vmul.f32 %v2111, %v2079
    %v2133 = vmul.f32 %v2113, %v2083
    %v2134 = vsub.f32 %v2132, %v2133
    %v2135 = vmul.f32 %v2134, 2.5
    %v2136 = vmul.f32 %v2112, %v2083
    %v2137 = vmul.f32 %v2114, %v2087
    %v2138 = vsub.f32 %v2136, %v2137
    %v2139 = vmul.f32 %v2138, 2.5
    %v2140 = vmul.f32 %v2113, %v2087
    %v2141 = vmul.f32 %v2115, %v2091
    %v2142 = vsub.f32 %v2140, %v2141
    %v2143 = vmul.f32 %v2142, 2.5
    %v2144 = vmul.f32 %v2114, %v2091
    %v2145 = vmul.f32 %v2116, %v2095
    %v2146 = vsub.f32 %v2144, %v2145
    %v2147 = vmul.f32 %v2146, 2.5
    %v2148 = vmul.f32 %v2115, %v2095
    %v2149 = vmul.f32 %v2117, %v2099
    %v2150 = vsub.f32 %v2148, %v2149
    %v2151 = vmul.f32 %v2150, 2.5
    %v2152 = vmul.f32 %v2116, %v2099
    %v2153 = vmul.f32 %v2118, %v2103
    %v2154 = vsub.f32 %v2152, %v2153
    %v2155 = vmul.f32 %v2154, 2.5
    %v2156 = vmul.f32 %v2117, %v2103
    %v2157 = vmul.f32 %v2119, %v2107
    %v2158 = vsub.f32 %v2156, %v2157
    %v2159 = vmul.f32 %v2158, 2.5
    %v2160 = vmul.f32 %v2108, %v2123
    %v2161 = vmul.f32 %v2111, %v2127
    %v2162 = vsub.f32 %v2160, %v2161
    %v2163 = vmul.f32 %v2162, 1.25
    %v2164 = vmul.f32 %v2109, %v2127
    %v2165 = vmul.f32 %v2112, %v2131
    %v2166 = vsub.f32 %v2164, %v2165
    %v2167 = vmul.f32 %v2166, 1.25
    %v2168 = vmul.f32 %v2110, %v2131
    %v2169 = vmul.f32 %v2113, %v2135
    %v2170 = vsub.f32 %v2168, %v2169
    %v2171 = vmul.f32 %v2170, 1.25
    %v2172 = vmul.f32 %v2111, %v2135
    %v2173 = vmul.f32 %v2114, %v2139
    %v2174 = vsub.f32 %v2172, %v2173
    %v2175 = vmul.f32 %v2174, 1.25
    %v2176 = vmul.f32 %v2112, %v2139
    %v2177 = vmul.f32 %v2115, %v2143
    %v2178 = vsub.f32 %v2176, %v2177
    %v2179 = vmul.f32 %v2178, 1.25
    %v2180 = vmul.f32 %v2113, %v2143
    %v2181 = vmul.f32 %v2116, %v2147
    %v2182 = vsub.f32 %v2180, %v2181
    %v2183 = vmul.f32 %v2182, 1.25
    %v2184 = vmul.f32 %v2114, %v2147
    %v2185 = vmul.f32 %v2117, %v2151
    %v2186 = vsub.f32 %v2184, %v2185
    %v2187 = vmul.f32 %v2186, 1.25
    %v2188 = vmul.f32 %v2115, %v2151
    %v2189 = vmul.f32 %v2118, %v2155
    %v2190 = vsub.f32 %v2188, %v2189
    %v2191 = vmul.f32 %v2190, 1.25
    %v2192 = vmul.f32 %v2116, %v2155
    %v2193 = vmul.f32 %v2119, %v2159
    %v2194 = vsub.f32 %v2192, %v2193
    %v2195 = vmul.f32 %v2194, 1.25
    %v2196 = vmul.f32 %v2108, %v2163
    %v2197 = vmul.f32 %v2112, %v2167
    %v2198 = vsub.f32 %v2196, %v2197
    %v2199 = vmul.f32 %v2198, 0.8333333
    %v2200 = vmul.f32 %v2109, %v2167
    %v2201 = vmul.f32 %v2113, %v2171
    %v2202 = vsub.f32 %v2200, %v2201
    %v2203 = vmul.f32 %v2202, 0.8333333
    %v2204 = vmul.f32 %v2110, %v2171
    %v2205 = vmul.f32 %v2114, %v2175
    %v2206 = vsub.f32 %v2204, %v2205
    %v2207 = vmul.f32 %v2206, 0.8333333
    %v2208 = vmul.f32 %v2111, %v2175
    %v2209 = vmul.f32 %v2115, %v2179
    %v2210 = vsub.f32 %v2208, %v2209
    %v2211 = vmul.f32 %v2210, 0.8333333
    %v2212 = vmul.f32 %v2112, %v2179
    %v2213 = vmul.f32 %v2116, %v2183
    %v2214 = vsub.f32 %v2212, %v2213
    %v2215 = vmul.f32 %v2214, 0.8333333
    %v2216 = vmul.f32 %v2113, %v2183
    %v2217 = vmul.f32 %v2117, %v2187
    %v2218 = vsub.f32 %v2216, %v2217
    %v2219 = vmul.f32 %v2218, 0.8333333
    %v2220 = vmul.f32 %v2114, %v2187
    %v2221 = vmul.f32 %v2118, %v2191
    %v2222 = vsub.f32 %v2220, %v2221
    %v2223 = vmul.f32 %v2222, 0.8333333
    %v2224 = vmul.f32 %v2115, %v2191
    %v2225 = vmul.f32 %v2119, %v2195
    %v2226 = vsub.f32 %v2224, %v2225
    %v2227 = vmul.f32 %v2226, 0.8333333
    %2228 = vst [vmem:[#allocation2 + $0x8] sm:$0xff] %v2051
    %2229 = vst [vmem:[#allocation2 + $0x28] sm:$0xff] %v2199
    %2230 = vst [vmem:[#allocation2 + $0x48] sm:$0xff] %v2203
    %2231 = vst [vmem:[#allocation2 + $0x68] sm:$0xff] %v2207
    %2232 = vst [vmem:[#allocation2 + $0x88] sm:$0xff] %v2211
    %2233 = vst [vmem:[#allocation2 + $0xa8] sm:$0xff] %v2215
    %2234 = vst [vmem:[#allocation2 + $0xc8] sm:$0xff] %v2219
    %2235 = vst [vmem:[#allocation2 + $0xe8] sm:$0xff] %v2223
    %2236 = vst [vmem:[#allocation2 + $0x108] sm:$0xff] %v2227
    %v2237 = vxor.u32 %v1845, 2147483648
    %v2238 = vmul.f32 %v2237, 1.442695
    %v2239 = vpow.pop %v2238
    %v2240 = vadd.f32 %v2239, 1.0
    %v2241 = vrcp.pop %v2240
    %v2242 = vmul.f32 1.0, %v2241
    %v2243 = vmul.f32 %v1845, %v2242
    %vm2244 = vcmp.ge.f32.partialorder %v1845, -2.2
    %vm2245 = vcmp.ge.f32.partialorder %v1845, -1.8
    %vm2246 = vcmp.ge.f32.partialorder %v1845, -1.4
    %vm2247 = vcmp.ge.f32.partialorder %v1845, -1.0
    %vm2248 = vcmp.ge.f32.partialorder %v1845, -0.6
    %vm2249 = vcmp.ge.f32.partialorder %v1845, -0.2
    %vm2250 = vcmp.ge.f32.partialorder %v1845, 0.2
    %vm2251 = vcmp.ge.f32.partialorder %v1845, 0.6
    %vm2252 = vcmp.ge.f32.partialorder %v1845, 1.0
    %vm2253 = vcmp.ge.f32.partialorder %v1845, 1.4
    %vm2254 = vcmp.ge.f32.partialorder %v1845, 1.8
    %vm2255 = vcmp.ge.f32.partialorder %v1845, 2.2
    %vm2256 = vmxor %vm2245, 1
    %vm2257 = vmand %vm2244, %vm2256
    %v2258 = vsel %vm2257, 1, 0
    %v2259 = vcvt.s32.f32 %v2258
    %vm2260 = vmxor %vm2246, 1
    %vm2261 = vmand %vm2245, %vm2260
    %v2262 = vsel %vm2261, 1, 0
    %v2263 = vcvt.s32.f32 %v2262
    %vm2264 = vmxor %vm2247, 1
    %vm2265 = vmand %vm2246, %vm2264
    %v2266 = vsel %vm2265, 1, 0
    %v2267 = vcvt.s32.f32 %v2266
    %vm2268 = vmxor %vm2248, 1
    %vm2269 = vmand %vm2247, %vm2268
    %v2270 = vsel %vm2269, 1, 0
    %v2271 = vcvt.s32.f32 %v2270
    %vm2272 = vmxor %vm2249, 1
    %vm2273 = vmand %vm2248, %vm2272
    %v2274 = vsel %vm2273, 1, 0
    %v2275 = vcvt.s32.f32 %v2274
    %vm2276 = vmxor %vm2250, 1
    %vm2277 = vmand %vm2249, %vm2276
    %v2278 = vsel %vm2277, 1, 0
    %v2279 = vcvt.s32.f32 %v2278
    %vm2280 = vmxor %vm2251, 1
    %vm2281 = vmand %vm2250, %vm2280
    %v2282 = vsel %vm2281, 1, 0
    %v2283 = vcvt.s32.f32 %v2282
    %vm2284 = vmxor %vm2252, 1
    %vm2285 = vmand %vm2251, %vm2284
    %v2286 = vsel %vm2285, 1, 0
    %v2287 = vcvt.s32.f32 %v2286
    %vm2288 = vmxor %vm2253, 1
    %vm2289 = vmand %vm2252, %vm2288
    %v2290 = vsel %vm2289, 1, 0
    %v2291 = vcvt.s32.f32 %v2290
    %vm2292 = vmxor %vm2254, 1
    %vm2293 = vmand %vm2253, %vm2292
    %v2294 = vsel %vm2293, 1, 0
    %v2295 = vcvt.s32.f32 %v2294
    %vm2296 = vmxor %vm2255, 1
    %vm2297 = vmand %vm2254, %vm2296
    %v2298 = vsel %vm2297, 1, 0
    %v2299 = vcvt.s32.f32 %v2298
    %v2300 = vsub.f32 %v1845, -2.2
    %v2301 = vsub.f32 %v1845, -1.8
    %v2302 = vsub.f32 %v1845, -1.4
    %v2303 = vsub.f32 %v1845, -1.0
    %v2304 = vsub.f32 %v1845, -0.6
    %v2305 = vsub.f32 %v1845, -0.2
    %v2306 = vsub.f32 %v1845, 0.2
    %v2307 = vsub.f32 %v1845, 0.6
    %v2308 = vsub.f32 %v1845, 1.0
    %v2309 = vsub.f32 %v1845, 1.4
    %v2310 = vsub.f32 %v1845, 1.8
    %v2311 = vsub.f32 %v1845, 2.2
    %v2312 = vmul.f32 %v2300, %v2259
    %v2313 = vmul.f32 %v2302, %v2263
    %v2314 = vsub.f32 %v2312, %v2313
    %v2315 = vmul.f32 %v2314, 2.5
    %v2316 = vmul.f32 %v2301, %v2263
    %v2317 = vmul.f32 %v2303, %v2267
    %v2318 = vsub.f32 %v2316, %v2317
    %v2319 = vmul.f32 %v2318, 2.5
    %v2320 = vmul.f32 %v2302, %v2267
    %v2321 = vmul.f32 %v2304, %v2271
    %v2322 = vsub.f32 %v2320, %v2321
    %v2323 = vmul.f32 %v2322, 2.5
    %v2324 = vmul.f32 %v2303, %v2271
    %v2325 = vmul.f32 %v2305, %v2275
    %v2326 = vsub.f32 %v2324, %v2325
    %v2327 = vmul.f32 %v2326, 2.5
    %v2328 = vmul.f32 %v2304, %v2275
    %v2329 = vmul.f32 %v2306, %v2279
    %v2330 = vsub.f32 %v2328, %v2329
    %v2331 = vmul.f32 %v2330, 2.5
    %v2332 = vmul.f32 %v2305, %v2279
    %v2333 = vmul.f32 %v2307, %v2283
    %v2334 = vsub.f32 %v2332, %v2333
    %v2335 = vmul.f32 %v2334, 2.5
    %v2336 = vmul.f32 %v2306, %v2283
    %v2337 = vmul.f32 %v2308, %v2287
    %v2338 = vsub.f32 %v2336, %v2337
    %v2339 = vmul.f32 %v2338, 2.5
    %v2340 = vmul.f32 %v2307, %v2287
    %v2341 = vmul.f32 %v2309, %v2291
    %v2342 = vsub.f32 %v2340, %v2341
    %v2343 = vmul.f32 %v2342, 2.5
    %v2344 = vmul.f32 %v2308, %v2291
    %v2345 = vmul.f32 %v2310, %v2295
    %v2346 = vsub.f32 %v2344, %v2345
    %v2347 = vmul.f32 %v2346, 2.5
    %v2348 = vmul.f32 %v2309, %v2295
    %v2349 = vmul.f32 %v2311, %v2299
    %v2350 = vsub.f32 %v2348, %v2349
    %v2351 = vmul.f32 %v2350, 2.5
    %v2352 = vmul.f32 %v2300, %v2315
    %v2353 = vmul.f32 %v2303, %v2319
    %v2354 = vsub.f32 %v2352, %v2353
    %v2355 = vmul.f32 %v2354, 1.25
    %v2356 = vmul.f32 %v2301, %v2319
    %v2357 = vmul.f32 %v2304, %v2323
    %v2358 = vsub.f32 %v2356, %v2357
    %v2359 = vmul.f32 %v2358, 1.25
    %v2360 = vmul.f32 %v2302, %v2323
    %v2361 = vmul.f32 %v2305, %v2327
    %v2362 = vsub.f32 %v2360, %v2361
    %v2363 = vmul.f32 %v2362, 1.25
    %v2364 = vmul.f32 %v2303, %v2327
    %v2365 = vmul.f32 %v2306, %v2331
    %v2366 = vsub.f32 %v2364, %v2365
    %v2367 = vmul.f32 %v2366, 1.25
    %v2368 = vmul.f32 %v2304, %v2331
    %v2369 = vmul.f32 %v2307, %v2335
    %v2370 = vsub.f32 %v2368, %v2369
    %v2371 = vmul.f32 %v2370, 1.25
    %v2372 = vmul.f32 %v2305, %v2335
    %v2373 = vmul.f32 %v2308, %v2339
    %v2374 = vsub.f32 %v2372, %v2373
    %v2375 = vmul.f32 %v2374, 1.25
    %v2376 = vmul.f32 %v2306, %v2339
    %v2377 = vmul.f32 %v2309, %v2343
    %v2378 = vsub.f32 %v2376, %v2377
    %v2379 = vmul.f32 %v2378, 1.25
    %v2380 = vmul.f32 %v2307, %v2343
    %v2381 = vmul.f32 %v2310, %v2347
    %v2382 = vsub.f32 %v2380, %v2381
    %v2383 = vmul.f32 %v2382, 1.25
    %v2384 = vmul.f32 %v2308, %v2347
    %v2385 = vmul.f32 %v2311, %v2351
    %v2386 = vsub.f32 %v2384, %v2385
    %v2387 = vmul.f32 %v2386, 1.25
    %v2388 = vmul.f32 %v2300, %v2355
    %v2389 = vmul.f32 %v2304, %v2359
    %v2390 = vsub.f32 %v2388, %v2389
    %v2391 = vmul.f32 %v2390, 0.8333333
    %v2392 = vmul.f32 %v2301, %v2359
    %v2393 = vmul.f32 %v2305, %v2363
    %v2394 = vsub.f32 %v2392, %v2393
    %v2395 = vmul.f32 %v2394, 0.8333333
    %v2396 = vmul.f32 %v2302, %v2363
    %v2397 = vmul.f32 %v2306, %v2367
    %v2398 = vsub.f32 %v2396, %v2397
    %v2399 = vmul.f32 %v2398, 0.8333333
    %v2400 = vmul.f32 %v2303, %v2367
    %v2401 = vmul.f32 %v2307, %v2371
    %v2402 = vsub.f32 %v2400, %v2401
    %v2403 = vmul.f32 %v2402, 0.8333333
    %v2404 = vmul.f32 %v2304, %v2371
    %v2405 = vmul.f32 %v2308, %v2375
    %v2406 = vsub.f32 %v2404, %v2405
    %v2407 = vmul.f32 %v2406, 0.8333333
    %v2408 = vmul.f32 %v2305, %v2375
    %v2409 = vmul.f32 %v2309, %v2379
    %v2410 = vsub.f32 %v2408, %v2409
    %v2411 = vmul.f32 %v2410, 0.8333333
    %v2412 = vmul.f32 %v2306, %v2379
    %v2413 = vmul.f32 %v2310, %v2383
    %v2414 = vsub.f32 %v2412, %v2413
    %v2415 = vmul.f32 %v2414, 0.8333333
    %v2416 = vmul.f32 %v2307, %v2383
    %v2417 = vmul.f32 %v2311, %v2387
    %v2418 = vsub.f32 %v2416, %v2417
    %v2419 = vmul.f32 %v2418, 0.8333333
    %2420 = vst [vmem:[#allocation2 + $0x10] sm:$0xff] %v2243
    %2421 = vst [vmem:[#allocation2 + $0x30] sm:$0xff] %v2391
    %2422 = vst [vmem:[#allocation2 + $0x50] sm:$0xff] %v2395
    %2423 = vst [vmem:[#allocation2 + $0x70] sm:$0xff] %v2399
    %2424 = vst [vmem:[#allocation2 + $0x90] sm:$0xff] %v2403
    %2425 = vst [vmem:[#allocation2 + $0xb0] sm:$0xff] %v2407
    %2426 = vst [vmem:[#allocation2 + $0xd0] sm:$0xff] %v2411
    %2427 = vst [vmem:[#allocation2 + $0xf0] sm:$0xff] %v2415
    %2428 = vst [vmem:[#allocation2 + $0x110] sm:$0xff] %v2419
    %v2429 = vxor.u32 %v1850, 2147483648
    %v2430 = vmul.f32 %v2429, 1.442695
    %v2431 = vpow.pop %v2430
    %v2432 = vadd.f32 %v2431, 1.0
    %v2433 = vrcp.pop %v2432
    %v2434 = vmul.f32 1.0, %v2433
    %v2435 = vmul.f32 %v1850, %v2434
    %vm2436 = vcmp.ge.f32.partialorder %v1850, -2.2
    %vm2437 = vcmp.ge.f32.partialorder %v1850, -1.8
    %vm2438 = vcmp.ge.f32.partialorder %v1850, -1.4
    %vm2439 = vcmp.ge.f32.partialorder %v1850, -1.0
    %vm2440 = vcmp.ge.f32.partialorder %v1850, -0.6
    %vm2441 = vcmp.ge.f32.partialorder %v1850, -0.2
    %vm2442 = vcmp.ge.f32.partialorder %v1850, 0.2
    %vm2443 = vcmp.ge.f32.partialorder %v1850, 0.6
    %vm2444 = vcmp.ge.f32.partialorder %v1850, 1.0
    %vm2445 = vcmp.ge.f32.partialorder %v1850, 1.4
    %vm2446 = vcmp.ge.f32.partialorder %v1850, 1.8
    %vm2447 = vcmp.ge.f32.partialorder %v1850, 2.2
    %vm2448 = vmxor %vm2437, 1
    %vm2449 = vmand %vm2436, %vm2448
    %v2450 = vsel %vm2449, 1, 0
    %v2451 = vcvt.s32.f32 %v2450
    %vm2452 = vmxor %vm2438, 1
    %vm2453 = vmand %vm2437, %vm2452
    %v2454 = vsel %vm2453, 1, 0
    %v2455 = vcvt.s32.f32 %v2454
    %vm2456 = vmxor %vm2439, 1
    %vm2457 = vmand %vm2438, %vm2456
    %v2458 = vsel %vm2457, 1, 0
    %v2459 = vcvt.s32.f32 %v2458
    %vm2460 = vmxor %vm2440, 1
    %vm2461 = vmand %vm2439, %vm2460
    %v2462 = vsel %vm2461, 1, 0
    %v2463 = vcvt.s32.f32 %v2462
    %vm2464 = vmxor %vm2441, 1
    %vm2465 = vmand %vm2440, %vm2464
    %v2466 = vsel %vm2465, 1, 0
    %v2467 = vcvt.s32.f32 %v2466
    %vm2468 = vmxor %vm2442, 1
    %vm2469 = vmand %vm2441, %vm2468
    %v2470 = vsel %vm2469, 1, 0
    %v2471 = vcvt.s32.f32 %v2470
    %vm2472 = vmxor %vm2443, 1
    %vm2473 = vmand %vm2442, %vm2472
    %v2474 = vsel %vm2473, 1, 0
    %v2475 = vcvt.s32.f32 %v2474
    %vm2476 = vmxor %vm2444, 1
    %vm2477 = vmand %vm2443, %vm2476
    %v2478 = vsel %vm2477, 1, 0
    %v2479 = vcvt.s32.f32 %v2478
    %vm2480 = vmxor %vm2445, 1
    %vm2481 = vmand %vm2444, %vm2480
    %v2482 = vsel %vm2481, 1, 0
    %v2483 = vcvt.s32.f32 %v2482
    %vm2484 = vmxor %vm2446, 1
    %vm2485 = vmand %vm2445, %vm2484
    %v2486 = vsel %vm2485, 1, 0
    %v2487 = vcvt.s32.f32 %v2486
    %vm2488 = vmxor %vm2447, 1
    %vm2489 = vmand %vm2446, %vm2488
    %v2490 = vsel %vm2489, 1, 0
    %v2491 = vcvt.s32.f32 %v2490
    %v2492 = vsub.f32 %v1850, -2.2
    %v2493 = vsub.f32 %v1850, -1.8
    %v2494 = vsub.f32 %v1850, -1.4
    %v2495 = vsub.f32 %v1850, -1.0
    %v2496 = vsub.f32 %v1850, -0.6
    %v2497 = vsub.f32 %v1850, -0.2
    %v2498 = vsub.f32 %v1850, 0.2
    %v2499 = vsub.f32 %v1850, 0.6
    %v2500 = vsub.f32 %v1850, 1.0
    %v2501 = vsub.f32 %v1850, 1.4
    %v2502 = vsub.f32 %v1850, 1.8
    %v2503 = vsub.f32 %v1850, 2.2
    %v2504 = vmul.f32 %v2492, %v2451
    %v2505 = vmul.f32 %v2494, %v2455
    %v2506 = vsub.f32 %v2504, %v2505
    %v2507 = vmul.f32 %v2506, 2.5
    %v2508 = vmul.f32 %v2493, %v2455
    %v2509 = vmul.f32 %v2495, %v2459
    %v2510 = vsub.f32 %v2508, %v2509
    %v2511 = vmul.f32 %v2510, 2.5
    %v2512 = vmul.f32 %v2494, %v2459
    %v2513 = vmul.f32 %v2496, %v2463
    %v2514 = vsub.f32 %v2512, %v2513
    %v2515 = vmul.f32 %v2514, 2.5
    %v2516 = vmul.f32 %v2495, %v2463
    %v2517 = vmul.f32 %v2497, %v2467
    %v2518 = vsub.f32 %v2516, %v2517
    %v2519 = vmul.f32 %v2518, 2.5
    %v2520 = vmul.f32 %v2496, %v2467
    %v2521 = vmul.f32 %v2498, %v2471
    %v2522 = vsub.f32 %v2520, %v2521
    %v2523 = vmul.f32 %v2522, 2.5
    %v2524 = vmul.f32 %v2497, %v2471
    %v2525 = vmul.f32 %v2499, %v2475
    %v2526 = vsub.f32 %v2524, %v2525
    %v2527 = vmul.f32 %v2526, 2.5
    %v2528 = vmul.f32 %v2498, %v2475
    %v2529 = vmul.f32 %v2500, %v2479
    %v2530 = vsub.f32 %v2528, %v2529
    %v2531 = vmul.f32 %v2530, 2.5
    %v2532 = vmul.f32 %v2499, %v2479
    %v2533 = vmul.f32 %v2501, %v2483
    %v2534 = vsub.f32 %v2532, %v2533
    %v2535 = vmul.f32 %v2534, 2.5
    %v2536 = vmul.f32 %v2500, %v2483
    %v2537 = vmul.f32 %v2502, %v2487
    %v2538 = vsub.f32 %v2536, %v2537
    %v2539 = vmul.f32 %v2538, 2.5
    %v2540 = vmul.f32 %v2501, %v2487
    %v2541 = vmul.f32 %v2503, %v2491
    %v2542 = vsub.f32 %v2540, %v2541
    %v2543 = vmul.f32 %v2542, 2.5
    %v2544 = vmul.f32 %v2492, %v2507
    %v2545 = vmul.f32 %v2495, %v2511
    %v2546 = vsub.f32 %v2544, %v2545
    %v2547 = vmul.f32 %v2546, 1.25
    %v2548 = vmul.f32 %v2493, %v2511
    %v2549 = vmul.f32 %v2496, %v2515
    %v2550 = vsub.f32 %v2548, %v2549
    %v2551 = vmul.f32 %v2550, 1.25
    %v2552 = vmul.f32 %v2494, %v2515
    %v2553 = vmul.f32 %v2497, %v2519
    %v2554 = vsub.f32 %v2552, %v2553
    %v2555 = vmul.f32 %v2554, 1.25
    %v2556 = vmul.f32 %v2495, %v2519
    %v2557 = vmul.f32 %v2498, %v2523
    %v2558 = vsub.f32 %v2556, %v2557
    %v2559 = vmul.f32 %v2558, 1.25
    %v2560 = vmul.f32 %v2496, %v2523
    %v2561 = vmul.f32 %v2499, %v2527
    %v2562 = vsub.f32 %v2560, %v2561
    %v2563 = vmul.f32 %v2562, 1.25
    %v2564 = vmul.f32 %v2497, %v2527
    %v2565 = vmul.f32 %v2500, %v2531
    %v2566 = vsub.f32 %v2564, %v2565
    %v2567 = vmul.f32 %v2566, 1.25
    %v2568 = vmul.f32 %v2498, %v2531
    %v2569 = vmul.f32 %v2501, %v2535
    %v2570 = vsub.f32 %v2568, %v2569
    %v2571 = vmul.f32 %v2570, 1.25
    %v2572 = vmul.f32 %v2499, %v2535
    %v2573 = vmul.f32 %v2502, %v2539
    %v2574 = vsub.f32 %v2572, %v2573
    %v2575 = vmul.f32 %v2574, 1.25
    %v2576 = vmul.f32 %v2500, %v2539
    %v2577 = vmul.f32 %v2503, %v2543
    %v2578 = vsub.f32 %v2576, %v2577
    %v2579 = vmul.f32 %v2578, 1.25
    %v2580 = vmul.f32 %v2492, %v2547
    %v2581 = vmul.f32 %v2496, %v2551
    %v2582 = vsub.f32 %v2580, %v2581
    %v2583 = vmul.f32 %v2582, 0.8333333
    %v2584 = vmul.f32 %v2493, %v2551
    %v2585 = vmul.f32 %v2497, %v2555
    %v2586 = vsub.f32 %v2584, %v2585
    %v2587 = vmul.f32 %v2586, 0.8333333
    %v2588 = vmul.f32 %v2494, %v2555
    %v2589 = vmul.f32 %v2498, %v2559
    %v2590 = vsub.f32 %v2588, %v2589
    %v2591 = vmul.f32 %v2590, 0.8333333
    %v2592 = vmul.f32 %v2495, %v2559
    %v2593 = vmul.f32 %v2499, %v2563
    %v2594 = vsub.f32 %v2592, %v2593
    %v2595 = vmul.f32 %v2594, 0.8333333
    %v2596 = vmul.f32 %v2496, %v2563
    %v2597 = vmul.f32 %v2500, %v2567
    %v2598 = vsub.f32 %v2596, %v2597
    %v2599 = vmul.f32 %v2598, 0.8333333
    %v2600 = vmul.f32 %v2497, %v2567
    %v2601 = vmul.f32 %v2501, %v2571
    %v2602 = vsub.f32 %v2600, %v2601
    %v2603 = vmul.f32 %v2602, 0.8333333
    %v2604 = vmul.f32 %v2498, %v2571
    %v2605 = vmul.f32 %v2502, %v2575
    %v2606 = vsub.f32 %v2604, %v2605
    %v2607 = vmul.f32 %v2606, 0.8333333
    %v2608 = vmul.f32 %v2499, %v2575
    %v2609 = vmul.f32 %v2503, %v2579
    %v2610 = vsub.f32 %v2608, %v2609
    %v2611 = vmul.f32 %v2610, 0.8333333
    %2612 = vst [vmem:[#allocation2 + $0x18] sm:$0xff] %v2435
    %2613 = vst [vmem:[#allocation2 + $0x38] sm:$0xff] %v2583
    %2614 = vst [vmem:[#allocation2 + $0x58] sm:$0xff] %v2587
    %2615 = vst [vmem:[#allocation2 + $0x78] sm:$0xff] %v2591
    %2616 = vst [vmem:[#allocation2 + $0x98] sm:$0xff] %v2595
    %2617 = vst [vmem:[#allocation2 + $0xb8] sm:$0xff] %v2599
    %2618 = vst [vmem:[#allocation2 + $0xd8] sm:$0xff] %v2603
    %2619 = vst [vmem:[#allocation2 + $0xf8] sm:$0xff] %v2607
    %2620 = vst [vmem:[#allocation2 + $0x118] sm:$0xff] %v2611
    %v2621 = vld [vmem:[#allocation8] sm:$0xff]
    %v2622 = vld [vmem:[#allocation8 + $0x8] sm:$0xff]
    %v2623 = vld [vmem:[#allocation8 + $0x10] sm:$0xff]
    %v2624 = vld [vmem:[#allocation2] sm:$0xff]
    %v2625 = vld [vmem:[#allocation2 + $0x8] sm:$0xff]
    %v2626 = vld [vmem:[#allocation2 + $0x10] sm:$0xff]
    %v2627 = vld [vmem:[#allocation2 + $0x18] sm:$0xff]
    %v2628 = vld [vmem:[#allocation2 + $0x20] sm:$0xff]
    %v2629 = vld [vmem:[#allocation2 + $0x28] sm:$0xff]
    %v2630 = vld [vmem:[#allocation2 + $0x30] sm:$0xff]
    %v2631 = vld [vmem:[#allocation2 + $0x38] sm:$0xff]
    %v2632 = vld [vmem:[#allocation2 + $0x40] sm:$0xff]
    %v2633 = vld [vmem:[#allocation2 + $0x48] sm:$0xff]
    %v2634 = vld [vmem:[#allocation2 + $0x50] sm:$0xff]
    %v2635 = vld [vmem:[#allocation2 + $0x58] sm:$0xff]
    %v2636 = vld [vmem:[#allocation2 + $0x60] sm:$0xff]
    %v2637 = vld [vmem:[#allocation2 + $0x68] sm:$0xff]
    %v2638 = vld [vmem:[#allocation2 + $0x70] sm:$0xff]
    %v2639 = vld [vmem:[#allocation2 + $0x78] sm:$0xff]
    %v2640 = vld [vmem:[#allocation2 + $0x80] sm:$0xff]
    %v2641 = vld [vmem:[#allocation2 + $0x88] sm:$0xff]
    %v2642 = vld [vmem:[#allocation2 + $0x90] sm:$0xff]
    %v2643 = vld [vmem:[#allocation2 + $0x98] sm:$0xff]
    %v2644 = vld [vmem:[#allocation2 + $0xa0] sm:$0xff]
    %v2645 = vld [vmem:[#allocation2 + $0xa8] sm:$0xff]
    %v2646 = vld [vmem:[#allocation2 + $0xb0] sm:$0xff]
    %v2647 = vld [vmem:[#allocation2 + $0xb8] sm:$0xff]
    %v2648 = vld [vmem:[#allocation2 + $0xc0] sm:$0xff]
    %v2649 = vld [vmem:[#allocation2 + $0xc8] sm:$0xff]
    %v2650 = vld [vmem:[#allocation2 + $0xd0] sm:$0xff]
    %v2651 = vld [vmem:[#allocation2 + $0xd8] sm:$0xff]
    %v2652 = vld [vmem:[#allocation2 + $0xe0] sm:$0xff]
    %v2653 = vld [vmem:[#allocation2 + $0xe8] sm:$0xff]
    %v2654 = vld [vmem:[#allocation2 + $0xf0] sm:$0xff]
    %v2655 = vld [vmem:[#allocation2 + $0xf8] sm:$0xff]
    %v2656 = vld [vmem:[#allocation2 + $0x100] sm:$0xff]
    %v2657 = vld [vmem:[#allocation2 + $0x108] sm:$0xff]
    %v2658 = vld [vmem:[#allocation2 + $0x110] sm:$0xff]
    %v2659 = vld [vmem:[#allocation2 + $0x118] sm:$0xff]
    %v2661 = vsel %vm1670, %v2623, 0
    %2663 = vmatprep.subr.mxu0 0.0
    %2664 = vmatpush1.msra.mxu0 %v2639
    %2665 = vmatprep.subr.mxu0 0.0
    %2666 = vmatpush1.msra.mxu0 %v2638
    %2667 = vmatprep.subr.mxu0 0.0
    %2668 = vmatpush1.msra.mxu0 %v2637
    %2669 = vmatprep.subr.mxu0 0.0
    %2670 = vmatpush1.msra.mxu0 %v2636
    %2671 = vmatprep.subr.mxu0 0.0
    %2672 = vmatpush1.msra.mxu0 %v2635
    %2673 = vmatprep.subr.mxu0 0.0
    %2674 = vmatpush1.msra.mxu0 %v2634
    %2675 = vmatprep.subr.mxu0 0.0
    %2676 = vmatpush1.msra.mxu0 %v2633
    %2677 = vmatprep.subr.mxu0 0.0
    %2678 = vmatpush1.msra.mxu0 %v2632
    %2679 = vmatprep.subr.mxu0 0.0
    %2680 = vmatpush1.msra.mxu0 %v2631
    %2681 = vmatprep.subr.mxu0 0.0
    %2682 = vmatpush1.msra.mxu0 %v2630
    %2683 = vmatprep.subr.mxu0 0.0
    %2684 = vmatpush1.msra.mxu0 %v2629
    %2685 = vmatprep.subr.mxu0 0.0
    %2686 = vmatpush1.msra.mxu0 %v2628
    %2687 = vmatprep.subr.mxu0 0.0
    %2688 = vmatpush1.msra.mxu0 %v2627
    %2689 = vmatprep.subr.mxu0 0.0
    %2690 = vmatpush1.msra.mxu0 %v2626
    %2691 = vmatprep.subr.mxu0 0.0
    %2692 = vmatpush1.msra.mxu0 %v2625
    %2693 = vmatprep.subr.mxu0 0.0
    %2694 = vmatpush1.msra.mxu0 %v2624
    %2695 = vmatprep.subr.mxu0 0.0
    %2696 = vmatpush2.msra.mxu0 %v2655
    %2697 = vmatprep.subr.mxu0 0.0
    %2698 = vmatpush2.msra.mxu0 %v2654
    %2699 = vmatprep.subr.mxu0 0.0
    %2700 = vmatpush2.msra.mxu0 %v2653
    %2701 = vmatprep.subr.mxu0 0.0
    %2702 = vmatpush2.msra.mxu0 %v2652
    %2703 = vmatprep.subr.mxu0 0.0
    %2704 = vmatpush2.msra.mxu0 %v2651
    %2705 = vmatprep.subr.mxu0 0.0
    %2706 = vmatpush2.msra.mxu0 %v2650
    %2707 = vmatprep.subr.mxu0 0.0
    %2708 = vmatpush2.msra.mxu0 %v2649
    %2709 = vmatprep.subr.mxu0 0.0
    %2710 = vmatpush2.msra.mxu0 %v2648
    %2711 = vmatprep.subr.mxu0 0.0
    %2712 = vmatpush2.msra.mxu0 %v2647
    %2713 = vmatprep.subr.mxu0 0.0
    %2714 = vmatpush2.msra.mxu0 %v2646
    %2715 = vmatprep.subr.mxu0 0.0
    %2716 = vmatpush2.msra.mxu0 %v2645
    %2717 = vmatprep.subr.mxu0 0.0
    %2718 = vmatpush2.msra.mxu0 %v2644
    %2719 = vmatprep.subr.mxu0 0.0
    %2720 = vmatpush2.msra.mxu0 %v2643
    %2721 = vmatprep.subr.mxu0 0.0
    %2722 = vmatpush2.msra.mxu0 %v2642
    %2723 = vmatprep.subr.mxu0 0.0
    %2724 = vmatpush2.msra.mxu0 %v2641
    %2725 = vmatprep.subr.mxu0 0.0
    %2726 = vmatpush2.msra.mxu0 %v2640
    %2727 = vmatprep.mubr.f32.mxu0 %v2622
    %2728 = vmatmul.mubr.f32.gmra.mxu0 %v2621
    %v2729 = vpop.f32.mrf.mxu0
    %v2730 = vadd.f32 0.0, %v2729
    %v2731 = vpop.f32.mrf.mxu0
    %2732 = vdwg.mxu0
    %2733 = vmatprep.subr.mxu0 0.0
    %2734 = vmatpush1.msra.mxu0 0.0
    %2735 = vmatprep.subr.mxu0 0.0
    %2736 = vmatpush1.msra.mxu0 0.0
    %2737 = vmatprep.subr.mxu0 0.0
    %2738 = vmatpush1.msra.mxu0 0.0
    %2739 = vmatprep.subr.mxu0 0.0
    %2740 = vmatpush1.msra.mxu0 0.0
    %2741 = vmatprep.subr.mxu0 0.0
    %2742 = vmatpush1.msra.mxu0 0.0
    %2743 = vmatprep.subr.mxu0 0.0
    %2744 = vmatpush1.msra.mxu0 0.0
    %2745 = vmatprep.subr.mxu0 0.0
    %2746 = vmatpush1.msra.mxu0 0.0
    %2747 = vmatprep.subr.mxu0 0.0
    %2748 = vmatpush1.msra.mxu0 0.0
    %2749 = vmatprep.subr.mxu0 0.0
    %2750 = vmatpush1.msra.mxu0 0.0
    %2751 = vmatprep.subr.mxu0 0.0
    %2752 = vmatpush1.msra.mxu0 0.0
    %2753 = vmatprep.subr.mxu0 0.0
    %2754 = vmatpush1.msra.mxu0 0.0
    %2755 = vmatprep.subr.mxu0 0.0
    %2756 = vmatpush1.msra.mxu0 0.0
    %2757 = vmatprep.subr.mxu0 0.0
    %2758 = vmatpush1.msra.mxu0 %v2659
    %2759 = vmatprep.subr.mxu0 0.0
    %2760 = vmatpush1.msra.mxu0 %v2658
    %2761 = vmatprep.subr.mxu0 0.0
    %2762 = vmatpush1.msra.mxu0 %v2657
    %2763 = vmatprep.subr.mxu0 0.0
    %2764 = vmatpush1.msra.mxu0 %v2656
    %2765 = vmatprep.subr.mxu0 0.0
    %2766 = vmatpush2.msra.mxu0 0.0
    %2767 = vmatprep.subr.mxu0 0.0
    %2768 = vmatpush2.msra.mxu0 0.0
    %2769 = vmatprep.subr.mxu0 0.0
    %2770 = vmatpush2.msra.mxu0 0.0
    %2771 = vmatprep.subr.mxu0 0.0
    %2772 = vmatpush2.msra.mxu0 0.0
    %2773 = vmatprep.subr.mxu0 0.0
    %2774 = vmatpush2.msra.mxu0 0.0
    %2775 = vmatprep.subr.mxu0 0.0
    %2776 = vmatpush2.msra.mxu0 0.0
    %2777 = vmatprep.subr.mxu0 0.0
    %2778 = vmatpush2.msra.mxu0 0.0
    %2779 = vmatprep.subr.mxu0 0.0
    %2780 = vmatpush2.msra.mxu0 0.0
    %2781 = vmatprep.subr.mxu0 0.0
    %2782 = vmatpush2.msra.mxu0 0.0
    %2783 = vmatprep.subr.mxu0 0.0
    %2784 = vmatpush2.msra.mxu0 0.0
    %2785 = vmatprep.subr.mxu0 0.0
    %2786 = vmatpush2.msra.mxu0 0.0
    %2787 = vmatprep.subr.mxu0 0.0
    %2788 = vmatpush2.msra.mxu0 0.0
    %2789 = vmatprep.subr.mxu0 0.0
    %2790 = vmatpush2.msra.mxu0 0.0
    %2791 = vmatprep.subr.mxu0 0.0
    %2792 = vmatpush2.msra.mxu0 0.0
    %2793 = vmatprep.subr.mxu0 0.0
    %2794 = vmatpush2.msra.mxu0 0.0
    %2795 = vmatprep.subr.mxu0 0.0
    %2796 = vmatpush2.msra.mxu0 0.0
    %2797 = vmatprep.mubr.f32.mxu0 0.0
    %2798 = vmatmul.mubr.f32.gmra.mxu0 %v2661
    %v2799 = vpop.f32.mrf.mxu0
    %v2800 = vadd.f32 %v2730, %v2799
    %v2801 = vpop.f32.mrf.mxu0
    %2802 = vdwg.mxu0
    %2803 = vst [vmem:[#allocation9] sm:$0xff] %v2800
    // Predicated region
    $region34: #{_kan_actor_critic_forward.1} parent=1 // pred_check
      _
    $region35: #{_kan_actor_critic_forward.1} parent=1 // pred_check_branch
      %2805 = sbr.rel (0) target = $region37
    $region36: #{_kan_actor_critic_forward.1} parent=1 // pred_region
      %s2807 = ssub.s32 128, 128
      %2808 = vsyncadd [#allocation5], %s2807
      %s2810 = sshll.u32 [#allocation9], 4
      %s2811 = int_to_ptr.vmem [resolvable:$true] %s2810
      %2813 = dma.vmem_to_hbm [thread:$0]  %s2811, 128, %s5, [#allocation5]
    $region37: #{_kan_actor_critic_forward.1} parent=1 // pred_fallthru
      _
    // Predicated region
    $region38: #{_kan_actor_critic_forward.1} parent=1 // pred_check
      _
    $region39: #{_kan_actor_critic_forward.1} parent=1 // pred_check_branch
      %2815 = sbr.rel (0) target = $region41
    $region40: #{_kan_actor_critic_forward.1} parent=1 // pred_region
      %2816 = dma.done [#allocation5], 128
    $region41: #{_kan_actor_critic_forward.1} parent=1 // pred_fallthru
      _
    %2817 = vsyncpa [#allocation4], 1
    %2818 = vsyncpa [#allocation7], 1
    %2819 = vsyncpa [#allocation5], 1

</llo_original>
